<compile_context>
chip_gen: v7x
topology: tpu7x:2x2x1
jax: 0.10.0
libtpu: 0.0.40
codegen_flags: <defaults>
</compile_context>

<pallas_src>
import jax
import jax.numpy as jnp
from jax.experimental import pallas as pl
from jax.experimental.pallas import tpu as pltpu


# bf16 MXU compute with f32 accumulation (set to jnp.float32 for strict mode).
COMPUTE_DTYPE = jnp.bfloat16


def _round_up(x, m):
    return ((x + m - 1) // m) * m


# ----------------------------------------------------------------------------
# Pallas kernel 1: dual-stream tiled matmul + bias + ReLU  (conv via im2col)
# ----------------------------------------------------------------------------
def _dual_matmul_bias_act(p_list, w_list, b_list, relu, out_dtype=jnp.float32):
    """out[s] = act(p[s] @ w[s] + b[s]) for every stream s, in one pallas_call.

    Operands arrive (or are cast) in COMPUTE_DTYPE and are zero-padded so K and
    N are multiples of 128 (lane dense) and M is a multiple of the row tile.
    If the whole padded K fits one tile, the K grid axis and the accumulator
    scratch are elided; otherwise grid = (stream, Mt, Nt, Kt) with an f32 VMEM
    accumulator whose init folds in the bias.
    """
    G = len(p_list)
    M = p_list[0].shape[0]
    K_pad = max(_round_up(p.shape[1], 128) for p in p_list)
    N_pad = max(_round_up(w.shape[1], 128) for w in w_list)

    # Row tile multiple of 16 (bf16 sublane packing); lane-dense K/N tiles.
    tm = min(512, _round_up(M, 16))
    Mp = _round_up(M, tm)
    tn = 256 if N_pad % 256 == 0 else 128

    if K_pad <= 2048:
        tk = K_pad                       # single-shot K: no accumulator needed
    else:
        tk = 128
        nk128 = K_pad // 128
        for d in range(nk128, 0, -1):
            if nk128 % d == 0 and 128 * d <= 2048:
                tk = 128 * d
                break
    n_k = K_pad // tk

    cd = COMPUTE_DTYPE
    p3 = jnp.stack([jnp.pad(p.astype(cd), ((0, Mp - M), (0, K_pad - p.shape[1])))
                    for p in p_list])
    w3 = jnp.stack([jnp.pad(w.astype(cd),
                            ((0, K_pad - w.shape[0]), (0, N_pad - w.shape[1])))
                    for w in w_list])
    b3 = jnp.stack([jnp.pad(b.reshape(1, -1).astype(jnp.float32),
                            ((0, 0), (0, N_pad - b.shape[0])))
                    for b in b_list])

    if n_k == 1:
        def kernel(p_ref, w_ref, b_ref, o_ref):
            r = jnp.dot(p_ref[0], w_ref[0], preferred_element_type=jnp.float32)
            r = r + b_ref[0]
            if relu:
                r = jnp.maximum(r, 0.0)
            o_ref[0] = r.astype(o_ref.dtype)

        out = pl.pallas_call(
            kernel,
            out_shape=jax.ShapeDtypeStruct((G, Mp, N_pad), out_dtype),
            grid=(G, Mp // tm, N_pad // tn),
            in_specs=[
                pl.BlockSpec((1, tm, K_pad), lambda g, i, j: (g, i, 0)),
                pl.BlockSpec((1, K_pad, tn), lambda g, i, j: (g, 0, j)),
                pl.BlockSpec((1, 1, tn), lambda g, i, j: (g, 0, j)),
            ],
            out_specs=pl.BlockSpec((1, tm, tn), lambda g, i, j: (g, i, j)),
            compiler_params=pltpu.CompilerParams(
                dimension_semantics=("parallel", "parallel", "parallel"),
                vmem_limit_bytes=32 * 1024 * 1024),
        )(p3, w3, b3)
    else:
        def kernel(p_ref, w_ref, b_ref, o_ref, acc_ref):
            k = pl.program_id(3)

            @pl.when(k == 0)
            def _init():
                # Fold the bias into the accumulator init.
                acc_ref[...] = jnp.broadcast_to(b_ref[0], acc_ref.shape)

            acc_ref[...] += jnp.dot(p_ref[0], w_ref[0],
                                    preferred_element_type=jnp.float32)

            @pl.when(k == n_k - 1)
            def _finalize():
                r = acc_ref[...]
                if relu:
                    r = jnp.maximum(r, 0.0)
                o_ref[0] = r.astype(o_ref.dtype)

        out = pl.pallas_call(
            kernel,
            out_shape=jax.ShapeDtypeStruct((G, Mp, N_pad), out_dtype),
            grid=(G, Mp // tm, N_pad // tn, n_k),
            in_specs=[
                pl.BlockSpec((1, tm, tk), lambda g, i, j, k: (g, i, k)),
                pl.BlockSpec((1, tk, tn), lambda g, i, j, k: (g, k, j)),
                pl.BlockSpec((1, 1, tn), lambda g, i, j, k: (g, 0, j)),
            ],
            out_specs=pl.BlockSpec((1, tm, tn), lambda g, i, j, k: (g, i, j)),
            scratch_shapes=[pltpu.VMEM((tm, tn), jnp.float32)],
            compiler_params=pltpu.CompilerParams(
                dimension_semantics=("parallel", "parallel", "parallel",
                                     "arbitrary"),
                vmem_limit_bytes=32 * 1024 * 1024),
        )(p3, w3, b3)

    return [out[s, :M, :w_list[s].shape[1]] for s in range(G)]


# ----------------------------------------------------------------------------
# Pallas kernel 2: lane-packed, row-tiled window reduction (max / mean)
# ----------------------------------------------------------------------------
def _window_reduce(p3, kind):
    """(M, K, C) -> (M, C): max or mean over the K (window) axis.

    Rows are lane-packed (g = 128 // C rows per vreg row) so loads/stores are
    lane dense; the reduction runs over the leading (untiled) axis so it lowers
    to pure elementwise combines; the grid tiles rows for pipelining.
    """
    M, K, C = p3.shape
    pad_val = float("-inf") if kind == "max" else 0.0
    g = max(1, 128 // C) if C < 128 else 1
    Mg = _round_up(M, g)
    if Mg != M:
        p3 = jnp.pad(p3, ((0, Mg - M), (0, 0), (0, 0)), constant_values=pad_val)
    Mr = Mg // g
    Cl = g * C
    # (Mg, K, C) -> (Mr, g, K, C) -> (K, Mr, g, C) -> (K, Mr, g*C)
    pk = p3.reshape(Mr, g, K, C).transpose(2, 0, 1, 3).reshape(K, Mr, Cl)

    tm = min(512, _round_up(Mr, 8))
    Mrp = _round_up(Mr, tm)
    if Mrp != Mr:
        pk = jnp.pad(pk, ((0, 0), (0, Mrp - Mr), (0, 0)), constant_values=pad_val)
    inv_k = 1.0 / K

    def kernel(p_ref, o_ref):
        x = p_ref[...]
        if kind == "max":
            o_ref[...] = jnp.max(x, axis=0)
        else:
            o_ref[...] = (jnp.sum(x.astype(jnp.float32), axis=0)
                          * inv_k).astype(o_ref.dtype)

    out = pl.pallas_call(
        kernel,
        out_shape=jax.ShapeDtypeStruct((Mrp, Cl), p3.dtype),
        grid=(Mrp // tm,),
        in_specs=[pl.BlockSpec((K, tm, Cl), lambda i: (0, i, 0))],
        out_specs=pl.BlockSpec((tm, Cl), lambda i: (i, 0)),
        compiler_params=pltpu.CompilerParams(
            dimension_semantics=("parallel",),
            vmem_limit_bytes=32 * 1024 * 1024),
    )(pk)
    return out[:Mr].reshape(Mr, g, C).reshape(Mg, C)[:M]


# ----------------------------------------------------------------------------
# Glue: im2col patch extraction for 3-D conv / pool (reshapes + static slices)
# ----------------------------------------------------------------------------
def _extract_patches(x, ksize, stride, padding, pad_value):
    B, T, H, W, C = x.shape
    kt, kh, kw = ksize
    st, sh, sw = stride
    pt, ph, pw = padding
    xp = jnp.pad(
        x, ((0, 0), (pt, pt), (ph, ph), (pw, pw), (0, 0)),
        constant_values=pad_value)
    Tp, Hp, Wp = T + 2 * pt, H + 2 * ph, W + 2 * pw
    To = (Tp - kt) // st + 1
    Ho = (Hp - kh) // sh + 1
    Wo = (Wp - kw) // sw + 1
    slices = []
    for dt in range(kt):
        for dh in range(kh):
            for dw in range(kw):
                sl = jax.lax.slice(
                    xp,
                    (0, dt, dh, dw, 0),
                    (B,
                     dt + (To - 1) * st + 1,
                     dh + (Ho - 1) * sh + 1,
                     dw + (Wo - 1) * sw + 1,
                     C),
                    (1, st, sh, sw, 1))
                slices.append(sl)
    patches = jnp.stack(slices, axis=-2)  # (B, To, Ho, Wo, KK, C)
    return patches, (To, Ho, Wo)


def conv3d_relu_dual(xr, xp, rgb_wb, pose_wb, ksize, stride, padding, relu=True):
    """Conv3d + ReLU for BOTH streams in one fused Pallas GEMM call."""
    B = xr.shape[0]
    wr, br = rgb_wb
    wp, bp = pose_wb
    # Materialize GEMM operands (patches) in bf16: halves the dominant HBM
    # traffic; accumulation stays f32, layer outputs stay f32.
    xr_c = xr.astype(COMPUTE_DTYPE)
    xp_c = xp.astype(COMPUTE_DTYPE)
    if ksize == (1, 1, 1) and stride == (1, 1, 1) and padding == (0, 0, 0):
        # 1x1x1 conv: no im2col needed, pure reshape.
        To, Ho, Wo = xr.shape[1:4]
        pr2 = xr_c.reshape(-1, xr.shape[-1])
        pp2 = xp_c.reshape(-1, xp.shape[-1])
    else:
        pat_r, (To, Ho, Wo) = _extract_patches(xr_c, ksize, stride, padding, 0.0)
        pat_p, _ = _extract_patches(xp_c, ksize, stride, padding, 0.0)
        M = B * To * Ho * Wo
        pr2 = pat_r.reshape(M, -1)
        pp2 = pat_p.reshape(M, -1)
    w2r = wr.reshape(-1, wr.shape[-1])
    w2p = wp.reshape(-1, wp.shape[-1])
    outs = _dual_matmul_bias_act([pr2, pp2], [w2r, w2p], [br, bp], relu)
    yr = outs[0].reshape(B, To, Ho, Wo, wr.shape[-1])
    yp = outs[1].reshape(B, To, Ho, Wo, wp.shape[-1])
    return yr, yp


def maxpool3d(x, ksize, stride, padding):
    """MaxPool3d (implicit -inf padding) via the lane-packed window-max kernel."""
    # No window can be all padding given PyTorch-style padding < kernel size.
    assert all(p < k for p, k in zip(padding, ksize))
    patches, (To, Ho, Wo) = _extract_patches(x, ksize, stride, padding, -jnp.inf)
    B, C = x.shape[0], x.shape[-1]
    KK = ksize[0] * ksize[1] * ksize[2]
    out = _window_reduce(patches.reshape(B * To * Ho * Wo, KK, C), "max")
    return out.reshape(B, To, Ho, Wo, C)


def _spatial_mean(x):
    """(B, T, H, W, C) -> (B, T, C): mean over H, W (== torch.mean(x, [3, 4]))."""
    B, T, H, W, C = x.shape
    out = _window_reduce(x.reshape(B * T, H * W, C), "mean")
    return out.reshape(B, T, C)


# ----------------------------------------------------------------------------
# Synthetic S3D-like backbone definition (13-layer base, stages at 0,3,6,12)
# ----------------------------------------------------------------------------
# Scaled-down channel widths (real S3D: 64 / 192 / 480 / 832).
def build_layer_defs(cin):
    k3 = dict(ksize=(3, 3, 3), stride=(1, 1, 1), padding=(1, 1, 1))
    return [
        ('conv', dict(ksize=(3, 3, 3), stride=(1, 2, 2), padding=(1, 1, 1)), (cin, 8)),   # 0  stage
        ('maxpool', dict(ksize=(1, 3, 3), stride=(1, 2, 2), padding=(0, 1, 1)), None),    # 1
        ('conv', dict(ksize=(1, 1, 1), stride=(1, 1, 1), padding=(0, 0, 0)), (8, 8)),     # 2
        ('conv', dict(k3), (8, 16)),                                                       # 3  stage
        ('maxpool', dict(ksize=(1, 3, 3), stride=(1, 2, 2), padding=(0, 1, 1)), None),    # 4
        ('conv', dict(k3), (16, 24)),                                                      # 5
        ('conv', dict(k3), (24, 32)),                                                      # 6  stage
        ('maxpool', dict(ksize=(3, 3, 3), stride=(2, 2, 2), padding=(1, 1, 1)), None),    # 7
        ('conv', dict(k3), (32, 32)),                                                      # 8
        ('conv', dict(k3), (32, 32)),                                                      # 9
        ('conv', dict(k3), (32, 32)),                                                      # 10
        ('conv', dict(k3), (32, 48)),                                                      # 11
        ('conv', dict(k3), (48, 64)),                                                      # 12 stage (final)
    ]


def init_stream_params(key, layer_defs):
    params = []
    for (kind, cfg, ch) in layer_defs:
        if kind != 'conv':
            params.append(None)
            continue
        key, kw_ = jax.random.split(key)
        kt, kh, kw = cfg['ksize']
        cin, cout = ch
        fan_in = kt * kh * kw * cin
        w = jax.random.normal(kw_, (kt, kh, kw, cin, cout), jnp.float32)
        w = w / jnp.sqrt(jnp.float32(fan_in))
        b = jnp.zeros((cout,), jnp.float32)
        params.append((w, b))
    return params


# ----------------------------------------------------------------------------
# S3D_two_stream forward (defaults: flag_lateral=[False,False], pyramid=None)
# ----------------------------------------------------------------------------
def s3d_two_stream_forward(x_rgb, x_pose, sgn_lengths,
                           rgb_defs, rgb_params, pose_defs, pose_params,
                           use_block=4):
    B, C, T_in, H, W = x_rgb.shape
    # NCTHW -> NTHWC
    xr = jnp.transpose(x_rgb, (0, 2, 3, 4, 1))
    xp = jnp.transpose(x_pose, (0, 2, 3, 4, 1))

    stage_idx = [0, 3, 6, 12][:use_block]
    rgb_fea_lst, pose_fea_lst = [], []

    for i in range(len(rgb_defs)):
        kind_r, cfg_r, _ = rgb_defs[i]
        kind_p, cfg_p, _ = pose_defs[i]
        assert kind_r == kind_p and cfg_r == cfg_p  # identical layer geometry
        if kind_r == 'conv':
            xr, xp = conv3d_relu_dual(xr, xp, rgb_params[i], pose_params[i], **cfg_r)
        else:
            # Fuse both streams along batch: same geometry & channel count.
            xc = maxpool3d(jnp.concatenate([xr, xp], axis=0), **cfg_r)
            xr, xp = xc[:B], xc[B:]
        if i in stage_idx[:use_block - 1]:
            # flag_lateral = [False, False] -> fused features == raw features
            rgb_fea_lst.append(xr)
            pose_fea_lst.append(xp)
        if i == stage_idx[-1]:
            rgb_fea_lst.append(xr)
            pose_fea_lst.append(xp)

    # flag_pyramid == [None, None] branch of the reference forward:
    T_out = xr.shape[1]
    pooled = _spatial_mean(jnp.concatenate([xr, xp], axis=0))  # (2B, T_out, C)
    rgb_out, pose_out = pooled[:B], pooled[B:]

    # torch.floor(sgn_lengths * T_out / T_in).long() semantics.
    valid_len_out = jnp.floor(
        sgn_lengths.astype(jnp.float32) * T_out / T_in).astype(jnp.int32)
    sgn_mask = (jnp.arange(T_out, dtype=jnp.int32)[None, None, :]
                < valid_len_out[:, None, None])  # (B, 1, T_out) bool

    to_ncthw = lambda f: jnp.transpose(f, (0, 4, 1, 2, 3))
    return {
        'sgn_feature': rgb_out,
        'pose_feature': pose_out,
        'sgn_mask': [sgn_mask],
        'valid_len_out': [valid_len_out],
        'rgb_fused': None,
        'pose_fused': None,
        'rgb_fea_lst': [to_ncthw(f) for f in rgb_fea_lst],
        'pose_fea_lst': [to_ncthw(f) for f in pose_fea_lst],
    }


# ----------------------------------------------------------------------------
if __name__ == "__main__":
    key = jax.random.PRNGKey(0)
    k_rgb_in, k_pose_in, k_rgb_p, k_pose_p = jax.random.split(key, 4)

    B, T, H, W = 2, 8, 16, 16
    C_RGB, C_POSE = 3, 17

    x_rgb = jax.random.normal(k_rgb_in, (B, C_RGB, T, H, W), jnp.float32)
    x_pose = jax.random.normal(k_pose_in, (B, C_POSE, T, H, W), jnp.float32)
    sgn_lengths = jnp.array([8.0, 5.0], dtype=jnp.float32)

    rgb_defs = build_layer_defs(C_RGB)
    pose_defs = build_layer_defs(C_POSE)
    rgb_params = init_stream_params(k_rgb_p, rgb_defs)
    pose_params = init_stream_params(k_pose_p, pose_defs)

    @jax.jit
    def forward_fn(xr, xp, sl, rp, pp):
        return s3d_two_stream_forward(xr, xp, sl, rgb_defs, rp, pose_defs, pp,
                                      use_block=4)

    out = forward_fn(x_rgb, x_pose, sgn_lengths, rgb_params, pose_params)

    jax.block_until_ready(out['sgn_feature'])
    jax.block_until_ready(out['pose_feature'])
    jax.block_until_ready(out['sgn_mask'][0])
    jax.block_until_ready(out['valid_len_out'][0])
    for f in out['rgb_fea_lst'] + out['pose_fea_lst']:
        jax.block_until_ready(f)

    assert out['sgn_feature'].shape == (B, 4, 64)
    assert out['pose_feature'].shape == (B, 4, 64)
    assert out['sgn_mask'][0].dtype == jnp.bool_
    assert out['sgn_mask'][0].shape == (B, 1, 4)
    assert len(out['rgb_fea_lst']) == 4 and len(out['pose_fea_lst']) == 4

    print("KERNEL_OK")
</pallas_src>

<mosaic_0001>
module attributes {stable_mosaic.version = 11 : i64} {
  func.func @kernel(%arg0: i32, %arg1: i32, %arg2: i32, %arg3: memref<1x512x512xbf16, #tpu.memory_space<vmem>>, %arg4: memref<1x512x128xbf16, #tpu.memory_space<vmem>>, %arg5: memref<1x1x128xf32, #tpu.memory_space<vmem>>, %arg6: memref<1x512x128xf32, #tpu.memory_space<vmem>>) attributes {dimension_semantics = [#tpu.dimension_semantics<parallel>, #tpu.dimension_semantics<parallel>, #tpu.dimension_semantics<parallel>], iteration_bounds = array<i64: 2, 2, 1>, scalar_prefetch = 0 : i64, scratch_operands = 0 : i64, tpu.core_type = #tpu.core_type<tc>, window_params = [{transform_indices = @transform_0, window_bounds = array<i64: 1, 512, 512>}, {transform_indices = @transform_1, window_bounds = array<i64: 1, 512, 128>}, {transform_indices = @transform_2, window_bounds = array<i64: 1, 1, 128>}, {transform_indices = @transform_3, window_bounds = array<i64: 1, 512, 128>}]} {
    %c0 = arith.constant 0 : index
    %c0_0 = arith.constant 0 : index
    %c0_1 = arith.constant 0 : index
    %0 = vector.load %arg3[%c0, %c0_0, %c0_1] : memref<1x512x512xbf16, #tpu.memory_space<vmem>>, vector<1x512x512xbf16>
    %1 = vector.shape_cast %0 : vector<1x512x512xbf16> to vector<512x512xbf16>
    %c0_2 = arith.constant 0 : index
    %c0_3 = arith.constant 0 : index
    %c0_4 = arith.constant 0 : index
    %2 = vector.load %arg4[%c0_2, %c0_3, %c0_4] : memref<1x512x128xbf16, #tpu.memory_space<vmem>>, vector<1x512x128xbf16>
    %3 = vector.shape_cast %2 : vector<1x512x128xbf16> to vector<512x128xbf16>
    %cst = arith.constant dense<0.000000e+00> : vector<512x128xf32>
    %4 = tpu.matmul %1, %3, %cst {dimension_numbers = #tpu.dot_dimension_numbers<[1], [0], [0], [1], [0, 0, 1, 1], [], []>} : vector<512x512xbf16>, vector<512x128xbf16>, vector<512x128xf32> -> vector<512x128xf32>
    %c0_5 = arith.constant 0 : index
    %c0_6 = arith.constant 0 : index
    %c0_7 = arith.constant 0 : index
    %5 = vector.load %arg5[%c0_5, %c0_6, %c0_7] : memref<1x1x128xf32, #tpu.memory_space<vmem>>, vector<1x1x128xf32>
    %6 = vector.shape_cast %5 : vector<1x1x128xf32> to vector<1x128xf32>
    %7 = vector.broadcast %6 : vector<1x128xf32> to vector<512x128xf32>
    %8 = arith.addf %4, %7 : vector<512x128xf32>
    %cst_8 = arith.constant 0.000000e+00 : f32
    %9 = vector.broadcast %cst_8 : f32 to vector<512x128xf32>
    %10 = arith.maximumf %8, %9 : vector<512x128xf32>
    %c0_9 = arith.constant 0 : index
    %c0_10 = arith.constant 0 : index
    %c0_11 = arith.constant 0 : index
    %11 = vector.load %arg6[%c0_9, %c0_10, %c0_11] : memref<1x512x128xf32, #tpu.memory_space<vmem>>, vector<1x512x128xf32>
    %12 = vector.shape_cast %11 : vector<1x512x128xf32> to vector<512x128xf32>
    %13 = vector.shape_cast %10 : vector<512x128xf32> to vector<1x512x128xf32>
    tpu.vector_store %arg6[%c0_9, %c0_10, %c0_11], %13 {strides = array<i32>} : memref<1x512x128xf32, #tpu.memory_space<vmem>>, vector<1x512x128xf32>,
    return
  }
  func.func @transform_0(%arg0: i32, %arg1: i32, %arg2: i32) -> (i32, i32, i32) {
    %c0_i32 = arith.constant 0 : i32
    %c0_i32_0 = arith.constant 0 : i32
    return %arg0, %arg1, %c0_i32 : i32, i32, i32
  }
  func.func @transform_1(%arg0: i32, %arg1: i32, %arg2: i32) -> (i32, i32, i32) {
    %c0_i32 = arith.constant 0 : i32
    %c0_i32_0 = arith.constant 0 : i32
    return %arg0, %c0_i32, %arg2 : i32, i32, i32
  }
  func.func @transform_2(%arg0: i32, %arg1: i32, %arg2: i32) -> (i32, i32, i32) {
    %c0_i32 = arith.constant 0 : i32
    %c0_i32_0 = arith.constant 0 : i32
    return %arg0, %c0_i32, %arg2 : i32, i32, i32
  }
  func.func @transform_3(%arg0: i32, %arg1: i32, %arg2: i32) -> (i32, i32, i32) {
    %c0_i32 = arith.constant 0 : i32
    return %arg0, %arg1, %arg2 : i32, i32, i32
  }
}

module attributes {stable_mosaic.version = 11 : i64} {
  func.func @kernel(%arg0: i32, %arg1: memref<9x32x128xf32, #tpu.memory_space<vmem>>, %arg2: memref<32x128xf32, #tpu.memory_space<vmem>>) attributes {dimension_semantics = [#tpu.dimension_semantics<parallel>], iteration_bounds = array<i64: 1>, scalar_prefetch = 0 : i64, scratch_operands = 0 : i64, tpu.core_type = #tpu.core_type<tc>, window_params = [{transform_indices = @transform_0, window_bounds = array<i64: 9, 32, 128>}, {transform_indices = @transform_1, window_bounds = array<i64: 32, 128>}]} {
    %c0 = arith.constant 0 : index
    %c0_0 = arith.constant 0 : index
    %c0_1 = arith.constant 0 : index
    %0 = vector.load %arg1[%c0, %c0_0, %c0_1] : memref<9x32x128xf32, #tpu.memory_space<vmem>>, vector<9x32x128xf32>
    %cst = arith.constant dense<0xFF800000> : vector<32x128xf32>
    %1 = vector.multi_reduction <maximumf>, %0, %cst [0] : vector<9x32x128xf32> to vector<32x128xf32>
    %c0_2 = arith.constant 0 : index
    %c0_3 = arith.constant 0 : index
    %2 = vector.load %arg2[%c0_2, %c0_3] : memref<32x128xf32, #tpu.memory_space<vmem>>, vector<32x128xf32>
    tpu.vector_store %arg2[%c0_2, %c0_3], %1 {strides = array<i32>} : memref<32x128xf32, #tpu.memory_space<vmem>>, vector<32x128xf32>,
    return
  }
  func.func @transform_0(%arg0: i32) -> (i32, i32, i32) {
    %c0_i32 = arith.constant 0 : i32
    %c0_i32_0 = arith.constant 0 : i32
    %c0_i32_1 = arith.constant 0 : i32
    return %c0_i32, %arg0, %c0_i32_0 : i32, i32, i32
  }
  func.func @transform_1(%arg0: i32) -> (i32, i32) {
    %c0_i32 = arith.constant 0 : i32
    %c0_i32_0 = arith.constant 0 : i32
    return %arg0, %c0_i32 : i32, i32
  }
}

module attributes {stable_mosaic.version = 11 : i64} {
  func.func @kernel(%arg0: i32, %arg1: i32, %arg2: i32, %arg3: memref<1x256x128xbf16, #tpu.memory_space<vmem>>, %arg4: memref<1x128x128xbf16, #tpu.memory_space<vmem>>, %arg5: memref<1x1x128xf32, #tpu.memory_space<vmem>>, %arg6: memref<1x256x128xf32, #tpu.memory_space<vmem>>) attributes {dimension_semantics = [#tpu.dimension_semantics<parallel>, #tpu.dimension_semantics<parallel>, #tpu.dimension_semantics<parallel>], iteration_bounds = array<i64: 2, 1, 1>, scalar_prefetch = 0 : i64, scratch_operands = 0 : i64, tpu.core_type = #tpu.core_type<tc>, window_params = [{transform_indices = @transform_0, window_bounds = array<i64: 1, 256, 128>}, {transform_indices = @transform_1, window_bounds = array<i64: 1, 128, 128>}, {transform_indices = @transform_2, window_bounds = array<i64: 1, 1, 128>}, {transform_indices = @transform_3, window_bounds = array<i64: 1, 256, 128>}]} {
    %c0 = arith.constant 0 : index
    %c0_0 = arith.constant 0 : index
    %c0_1 = arith.constant 0 : index
    %0 = vector.load %arg3[%c0, %c0_0, %c0_1] : memref<1x256x128xbf16, #tpu.memory_space<vmem>>, vector<1x256x128xbf16>
    %1 = vector.shape_cast %0 : vector<1x256x128xbf16> to vector<256x128xbf16>
    %c0_2 = arith.constant 0 : index
    %c0_3 = arith.constant 0 : index
    %c0_4 = arith.constant 0 : index
    %2 = vector.load %arg4[%c0_2, %c0_3, %c0_4] : memref<1x128x128xbf16, #tpu.memory_space<vmem>>, vector<1x128x128xbf16>
    %3 = vector.shape_cast %2 : vector<1x128x128xbf16> to vector<128x128xbf16>
    %cst = arith.constant dense<0.000000e+00> : vector<256x128xf32>
    %4 = tpu.matmul %1, %3, %cst {dimension_numbers = #tpu.dot_dimension_numbers<[1], [0], [0], [1], [0, 0, 1, 1], [], []>} : vector<256x128xbf16>, vector<128x128xbf16>, vector<256x128xf32> -> vector<256x128xf32>
    %c0_5 = arith.constant 0 : index
    %c0_6 = arith.constant 0 : index
    %c0_7 = arith.constant 0 : index
    %5 = vector.load %arg5[%c0_5, %c0_6, %c0_7] : memref<1x1x128xf32, #tpu.memory_space<vmem>>, vector<1x1x128xf32>
    %6 = vector.shape_cast %5 : vector<1x1x128xf32> to vector<1x128xf32>
    %7 = vector.broadcast %6 : vector<1x128xf32> to vector<256x128xf32>
    %8 = arith.addf %4, %7 : vector<256x128xf32>
    %cst_8 = arith.constant 0.000000e+00 : f32
    %9 = vector.broadcast %cst_8 : f32 to vector<256x128xf32>
    %10 = arith.maximumf %8, %9 : vector<256x128xf32>
    %c0_9 = arith.constant 0 : index
    %c0_10 = arith.constant 0 : index
    %c0_11 = arith.constant 0 : index
    %11 = vector.load %arg6[%c0_9, %c0_10, %c0_11] : memref<1x256x128xf32, #tpu.memory_space<vmem>>, vector<1x256x128xf32>
    %12 = vector.shape_cast %11 : vector<1x256x128xf32> to vector<256x128xf32>
    %13 = vector.shape_cast %10 : vector<256x128xf32> to vector<1x256x128xf32>
    tpu.vector_store %arg6[%c0_9, %c0_10, %c0_11], %13 {strides = array<i32>} : memref<1x256x128xf32, #tpu.memory_space<vmem>>, vector<1x256x128xf32>,
    return
  }
  func.func @transform_0(%arg0: i32, %arg1: i32, %arg2: i32) -> (i32, i32, i32) {
    %c0_i32 = arith.constant 0 : i32
    %c0_i32_0 = arith.constant 0 : i32
    return %arg0, %arg1, %c0_i32 : i32, i32, i32
  }
  func.func @transform_1(%arg0: i32, %arg1: i32, %arg2: i32) -> (i32, i32, i32) {
    %c0_i32 = arith.constant 0 : i32
    %c0_i32_0 = arith.constant 0 : i32
    return %arg0, %c0_i32, %arg2 : i32, i32, i32
  }
  func.func @transform_2(%arg0: i32, %arg1: i32, %arg2: i32) -> (i32, i32, i32) {
    %c0_i32 = arith.constant 0 : i32
    %c0_i32_0 = arith.constant 0 : i32
    return %arg0, %c0_i32, %arg2 : i32, i32, i32
  }
  func.func @transform_3(%arg0: i32, %arg1: i32, %arg2: i32) -> (i32, i32, i32) {
    %c0_i32 = arith.constant 0 : i32
    return %arg0, %arg1, %arg2 : i32, i32, i32
  }
}

module attributes {stable_mosaic.version = 11 : i64} {
  func.func @kernel(%arg0: i32, %arg1: i32, %arg2: i32, %arg3: memref<1x256x256xbf16, #tpu.memory_space<vmem>>, %arg4: memref<1x256x128xbf16, #tpu.memory_space<vmem>>, %arg5: memref<1x1x128xf32, #tpu.memory_space<vmem>>, %arg6: memref<1x256x128xf32, #tpu.memory_space<vmem>>) attributes {dimension_semantics = [#tpu.dimension_semantics<parallel>, #tpu.dimension_semantics<parallel>, #tpu.dimension_semantics<parallel>], iteration_bounds = array<i64: 2, 1, 1>, scalar_prefetch = 0 : i64, scratch_operands = 0 : i64, tpu.core_type = #tpu.core_type<tc>, window_params = [{transform_indices = @transform_0, window_bounds = array<i64: 1, 256, 256>}, {transform_indices = @transform_1, window_bounds = array<i64: 1, 256, 128>}, {transform_indices = @transform_2, window_bounds = array<i64: 1, 1, 128>}, {transform_indices = @transform_3, window_bounds = array<i64: 1, 256, 128>}]} {
    %c0 = arith.constant 0 : index
    %c0_0 = arith.constant 0 : index
    %c0_1 = arith.constant 0 : index
    %0 = vector.load %arg3[%c0, %c0_0, %c0_1] : memref<1x256x256xbf16, #tpu.memory_space<vmem>>, vector<1x256x256xbf16>
    %1 = vector.shape_cast %0 : vector<1x256x256xbf16> to vector<256x256xbf16>
    %c0_2 = arith.constant 0 : index
    %c0_3 = arith.constant 0 : index
    %c0_4 = arith.constant 0 : index
    %2 = vector.load %arg4[%c0_2, %c0_3, %c0_4] : memref<1x256x128xbf16, #tpu.memory_space<vmem>>, vector<1x256x128xbf16>
    %3 = vector.shape_cast %2 : vector<1x256x128xbf16> to vector<256x128xbf16>
    %cst = arith.constant dense<0.000000e+00> : vector<256x128xf32>
    %4 = tpu.matmul %1, %3, %cst {dimension_numbers = #tpu.dot_dimension_numbers<[1], [0], [0], [1], [0, 0, 1, 1], [], []>} : vector<256x256xbf16>, vector<256x128xbf16>, vector<256x128xf32> -> vector<256x128xf32>
    %c0_5 = arith.constant 0 : index
    %c0_6 = arith.constant 0 : index
    %c0_7 = arith.constant 0 : index
    %5 = vector.load %arg5[%c0_5, %c0_6, %c0_7] : memref<1x1x128xf32, #tpu.memory_space<vmem>>, vector<1x1x128xf32>
    %6 = vector.shape_cast %5 : vector<1x1x128xf32> to vector<1x128xf32>
    %7 = vector.broadcast %6 : vector<1x128xf32> to vector<256x128xf32>
    %8 = arith.addf %4, %7 : vector<256x128xf32>
    %cst_8 = arith.constant 0.000000e+00 : f32
    %9 = vector.broadcast %cst_8 : f32 to vector<256x128xf32>
    %10 = arith.maximumf %8, %9 : vector<256x128xf32>
    %c0_9 = arith.constant 0 : index
    %c0_10 = arith.constant 0 : index
    %c0_11 = arith.constant 0 : index
    %11 = vector.load %arg6[%c0_9, %c0_10, %c0_11] : memref<1x256x128xf32, #tpu.memory_space<vmem>>, vector<1x256x128xf32>
    %12 = vector.shape_cast %11 : vector<1x256x128xf32> to vector<256x128xf32>
    %13 = vector.shape_cast %10 : vector<256x128xf32> to vector<1x256x128xf32>
    tpu.vector_store %arg6[%c0_9, %c0_10, %c0_11], %13 {strides = array<i32>} : memref<1x256x128xf32, #tpu.memory_space<vmem>>, vector<1x256x128xf32>,
    return
  }
  func.func @transform_0(%arg0: i32, %arg1: i32, %arg2: i32) -> (i32, i32, i32) {
    %c0_i32 = arith.constant 0 : i32
    %c0_i32_0 = arith.constant 0 : i32
    return %arg0, %arg1, %c0_i32 : i32, i32, i32
  }
  func.func @transform_1(%arg0: i32, %arg1: i32, %arg2: i32) -> (i32, i32, i32) {
    %c0_i32 = arith.constant 0 : i32
    %c0_i32_0 = arith.constant 0 : i32
    return %arg0, %c0_i32, %arg2 : i32, i32, i32
  }
  func.func @transform_2(%arg0: i32, %arg1: i32, %arg2: i32) -> (i32, i32, i32) {
    %c0_i32 = arith.constant 0 : i32
    %c0_i32_0 = arith.constant 0 : i32
    return %arg0, %c0_i32, %arg2 : i32, i32, i32
  }
  func.func @transform_3(%arg0: i32, %arg1: i32, %arg2: i32) -> (i32, i32, i32) {
    %c0_i32 = arith.constant 0 : i32
    return %arg0, %arg1, %arg2 : i32, i32, i32
  }
}

module attributes {stable_mosaic.version = 11 : i64} {
  func.func @kernel(%arg0: i32, %arg1: memref<9x16x128xf32, #tpu.memory_space<vmem>>, %arg2: memref<16x128xf32, #tpu.memory_space<vmem>>) attributes {dimension_semantics = [#tpu.dimension_semantics<parallel>], iteration_bounds = array<i64: 1>, scalar_prefetch = 0 : i64, scratch_operands = 0 : i64, tpu.core_type = #tpu.core_type<tc>, window_params = [{transform_indices = @transform_0, window_bounds = array<i64: 9, 16, 128>}, {transform_indices = @transform_1, window_bounds = array<i64: 16, 128>}]} {
    %c0 = arith.constant 0 : index
    %c0_0 = arith.constant 0 : index
    %c0_1 = arith.constant 0 : index
    %0 = vector.load %arg1[%c0, %c0_0, %c0_1] : memref<9x16x128xf32, #tpu.memory_space<vmem>>, vector<9x16x128xf32>
    %cst = arith.constant dense<0xFF800000> : vector<16x128xf32>
    %1 = vector.multi_reduction <maximumf>, %0, %cst [0] : vector<9x16x128xf32> to vector<16x128xf32>
    %c0_2 = arith.constant 0 : index
    %c0_3 = arith.constant 0 : index
    %2 = vector.load %arg2[%c0_2, %c0_3] : memref<16x128xf32, #tpu.memory_space<vmem>>, vector<16x128xf32>
    tpu.vector_store %arg2[%c0_2, %c0_3], %1 {strides = array<i32>} : memref<16x128xf32, #tpu.memory_space<vmem>>, vector<16x128xf32>,
    return
  }
  func.func @transform_0(%arg0: i32) -> (i32, i32, i32) {
    %c0_i32 = arith.constant 0 : i32
    %c0_i32_0 = arith.constant 0 : i32
    %c0_i32_1 = arith.constant 0 : i32
    return %c0_i32, %arg0, %c0_i32_0 : i32, i32, i32
  }
  func.func @transform_1(%arg0: i32) -> (i32, i32) {
    %c0_i32 = arith.constant 0 : i32
    %c0_i32_0 = arith.constant 0 : i32
    return %arg0, %c0_i32 : i32, i32
  }
}

module attributes {stable_mosaic.version = 11 : i64} {
  func.func @kernel(%arg0: i32, %arg1: i32, %arg2: i32, %arg3: memref<1x64x512xbf16, #tpu.memory_space<vmem>>, %arg4: memref<1x512x128xbf16, #tpu.memory_space<vmem>>, %arg5: memref<1x1x128xf32, #tpu.memory_space<vmem>>, %arg6: memref<1x64x128xf32, #tpu.memory_space<vmem>>) attributes {dimension_semantics = [#tpu.dimension_semantics<parallel>, #tpu.dimension_semantics<parallel>, #tpu.dimension_semantics<parallel>], iteration_bounds = array<i64: 2, 1, 1>, scalar_prefetch = 0 : i64, scratch_operands = 0 : i64, tpu.core_type = #tpu.core_type<tc>, window_params = [{transform_indices = @transform_0, window_bounds = array<i64: 1, 64, 512>}, {transform_indices = @transform_1, window_bounds = array<i64: 1, 512, 128>}, {transform_indices = @transform_2, window_bounds = array<i64: 1, 1, 128>}, {transform_indices = @transform_3, window_bounds = array<i64: 1, 64, 128>}]} {
    %c0 = arith.constant 0 : index
    %c0_0 = arith.constant 0 : index
    %c0_1 = arith.constant 0 : index
    %0 = vector.load %arg3[%c0, %c0_0, %c0_1] : memref<1x64x512xbf16, #tpu.memory_space<vmem>>, vector<1x64x512xbf16>
    %1 = vector.shape_cast %0 : vector<1x64x512xbf16> to vector<64x512xbf16>
    %c0_2 = arith.constant 0 : index
    %c0_3 = arith.constant 0 : index
    %c0_4 = arith.constant 0 : index
    %2 = vector.load %arg4[%c0_2, %c0_3, %c0_4] : memref<1x512x128xbf16, #tpu.memory_space<vmem>>, vector<1x512x128xbf16>
    %3 = vector.shape_cast %2 : vector<1x512x128xbf16> to vector<512x128xbf16>
    %cst = arith.constant dense<0.000000e+00> : vector<64x128xf32>
    %4 = tpu.matmul %1, %3, %cst {dimension_numbers = #tpu.dot_dimension_numbers<[1], [0], [0], [1], [0, 0, 1, 1], [], []>} : vector<64x512xbf16>, vector<512x128xbf16>, vector<64x128xf32> -> vector<64x128xf32>
    %c0_5 = arith.constant 0 : index
    %c0_6 = arith.constant 0 : index
    %c0_7 = arith.constant 0 : index
    %5 = vector.load %arg5[%c0_5, %c0_6, %c0_7] : memref<1x1x128xf32, #tpu.memory_space<vmem>>, vector<1x1x128xf32>
    %6 = vector.shape_cast %5 : vector<1x1x128xf32> to vector<1x128xf32>
    %7 = vector.broadcast %6 : vector<1x128xf32> to vector<64x128xf32>
    %8 = arith.addf %4, %7 : vector<64x128xf32>
    %cst_8 = arith.constant 0.000000e+00 : f32
    %9 = vector.broadcast %cst_8 : f32 to vector<64x128xf32>
    %10 = arith.maximumf %8, %9 : vector<64x128xf32>
    %c0_9 = arith.constant 0 : index
    %c0_10 = arith.constant 0 : index
    %c0_11 = arith.constant 0 : index
    %11 = vector.load %arg6[%c0_9, %c0_10, %c0_11] : memref<1x64x128xf32, #tpu.memory_space<vmem>>, vector<1x64x128xf32>
    %12 = vector.shape_cast %11 : vector<1x64x128xf32> to vector<64x128xf32>
    %13 = vector.shape_cast %10 : vector<64x128xf32> to vector<1x64x128xf32>
    tpu.vector_store %arg6[%c0_9, %c0_10, %c0_11], %13 {strides = array<i32>} : memref<1x64x128xf32, #tpu.memory_space<vmem>>, vector<1x64x128xf32>,
    return
  }
  func.func @transform_0(%arg0: i32, %arg1: i32, %arg2: i32) -> (i32, i32, i32) {
    %c0_i32 = arith.constant 0 : i32
    %c0_i32_0 = arith.constant 0 : i32
    return %arg0, %arg1, %c0_i32 : i32, i32, i32
  }
  func.func @transform_1(%arg0: i32, %arg1: i32, %arg2: i32) -> (i32, i32, i32) {
    %c0_i32 = arith.constant 0 : i32
    %c0_i32_0 = arith.constant 0 : i32
    return %arg0, %c0_i32, %arg2 : i32, i32, i32
  }
  func.func @transform_2(%arg0: i32, %arg1: i32, %arg2: i32) -> (i32, i32, i32) {
    %c0_i32 = arith.constant 0 : i32
    %c0_i32_0 = arith.constant 0 : i32
    return %arg0, %c0_i32, %arg2 : i32, i32, i32
  }
  func.func @transform_3(%arg0: i32, %arg1: i32, %arg2: i32) -> (i32, i32, i32) {
    %c0_i32 = arith.constant 0 : i32
    return %arg0, %arg1, %arg2 : i32, i32, i32
  }
}

module attributes {stable_mosaic.version = 11 : i64} {
  func.func @kernel(%arg0: i32, %arg1: i32, %arg2: i32, %arg3: memref<1x64x768xbf16, #tpu.memory_space<vmem>>, %arg4: memref<1x768x128xbf16, #tpu.memory_space<vmem>>, %arg5: memref<1x1x128xf32, #tpu.memory_space<vmem>>, %arg6: memref<1x64x128xf32, #tpu.memory_space<vmem>>) attributes {dimension_semantics = [#tpu.dimension_semantics<parallel>, #tpu.dimension_semantics<parallel>, #tpu.dimension_semantics<parallel>], iteration_bounds = array<i64: 2, 1, 1>, scalar_prefetch = 0 : i64, scratch_operands = 0 : i64, tpu.core_type = #tpu.core_type<tc>, window_params = [{transform_indices = @transform_0, window_bounds = array<i64: 1, 64, 768>}, {transform_indices = @transform_1, window_bounds = array<i64: 1, 768, 128>}, {transform_indices = @transform_2, window_bounds = array<i64: 1, 1, 128>}, {transform_indices = @transform_3, window_bounds = array<i64: 1, 64, 128>}]} {
    %c0 = arith.constant 0 : index
    %c0_0 = arith.constant 0 : index
    %c0_1 = arith.constant 0 : index
    %0 = vector.load %arg3[%c0, %c0_0, %c0_1] : memref<1x64x768xbf16, #tpu.memory_space<vmem>>, vector<1x64x768xbf16>
    %1 = vector.shape_cast %0 : vector<1x64x768xbf16> to vector<64x768xbf16>
    %c0_2 = arith.constant 0 : index
    %c0_3 = arith.constant 0 : index
    %c0_4 = arith.constant 0 : index
    %2 = vector.load %arg4[%c0_2, %c0_3, %c0_4] : memref<1x768x128xbf16, #tpu.memory_space<vmem>>, vector<1x768x128xbf16>
    %3 = vector.shape_cast %2 : vector<1x768x128xbf16> to vector<768x128xbf16>
    %cst = arith.constant dense<0.000000e+00> : vector<64x128xf32>
    %4 = tpu.matmul %1, %3, %cst {dimension_numbers = #tpu.dot_dimension_numbers<[1], [0], [0], [1], [0, 0, 1, 1], [], []>} : vector<64x768xbf16>, vector<768x128xbf16>, vector<64x128xf32> -> vector<64x128xf32>
    %c0_5 = arith.constant 0 : index
    %c0_6 = arith.constant 0 : index
    %c0_7 = arith.constant 0 : index
    %5 = vector.load %arg5[%c0_5, %c0_6, %c0_7] : memref<1x1x128xf32, #tpu.memory_space<vmem>>, vector<1x1x128xf32>
    %6 = vector.shape_cast %5 : vector<1x1x128xf32> to vector<1x128xf32>
    %7 = vector.broadcast %6 : vector<1x128xf32> to vector<64x128xf32>
    %8 = arith.addf %4, %7 : vector<64x128xf32>
    %cst_8 = arith.constant 0.000000e+00 : f32
    %9 = vector.broadcast %cst_8 : f32 to vector<64x128xf32>
    %10 = arith.maximumf %8, %9 : vector<64x128xf32>
    %c0_9 = arith.constant 0 : index
    %c0_10 = arith.constant 0 : index
    %c0_11 = arith.constant 0 : index
    %11 = vector.load %arg6[%c0_9, %c0_10, %c0_11] : memref<1x64x128xf32, #tpu.memory_space<vmem>>, vector<1x64x128xf32>
    %12 = vector.shape_cast %11 : vector<1x64x128xf32> to vector<64x128xf32>
    %13 = vector.shape_cast %10 : vector<64x128xf32> to vector<1x64x128xf32>
    tpu.vector_store %arg6[%c0_9, %c0_10, %c0_11], %13 {strides = array<i32>} : memref<1x64x128xf32, #tpu.memory_space<vmem>>, vector<1x64x128xf32>,
    return
  }
  func.func @transform_0(%arg0: i32, %arg1: i32, %arg2: i32) -> (i32, i32, i32) {
    %c0_i32 = arith.constant 0 : i32
    %c0_i32_0 = arith.constant 0 : i32
    return %arg0, %arg1, %c0_i32 : i32, i32, i32
  }
  func.func @transform_1(%arg0: i32, %arg1: i32, %arg2: i32) -> (i32, i32, i32) {
    %c0_i32 = arith.constant 0 : i32
    %c0_i32_0 = arith.constant 0 : i32
    return %arg0, %c0_i32, %arg2 : i32, i32, i32
  }
  func.func @transform_2(%arg0: i32, %arg1: i32, %arg2: i32) -> (i32, i32, i32) {
    %c0_i32 = arith.constant 0 : i32
    %c0_i32_0 = arith.constant 0 : i32
    return %arg0, %c0_i32, %arg2 : i32, i32, i32
  }
  func.func @transform_3(%arg0: i32, %arg1: i32, %arg2: i32) -> (i32, i32, i32) {
    %c0_i32 = arith.constant 0 : i32
    return %arg0, %arg1, %arg2 : i32, i32, i32
  }
}

module attributes {stable_mosaic.version = 11 : i64} {
  func.func @kernel(%arg0: i32, %arg1: memref<27x8x128xf32, #tpu.memory_space<vmem>>, %arg2: memref<8x128xf32, #tpu.memory_space<vmem>>) attributes {dimension_semantics = [#tpu.dimension_semantics<parallel>], iteration_bounds = array<i64: 1>, scalar_prefetch = 0 : i64, scratch_operands = 0 : i64, tpu.core_type = #tpu.core_type<tc>, window_params = [{transform_indices = @transform_0, window_bounds = array<i64: 27, 8, 128>}, {transform_indices = @transform_1, window_bounds = array<i64: 8, 128>}]} {
    %c0 = arith.constant 0 : index
    %c0_0 = arith.constant 0 : index
    %c0_1 = arith.constant 0 : index
    %0 = vector.load %arg1[%c0, %c0_0, %c0_1] : memref<27x8x128xf32, #tpu.memory_space<vmem>>, vector<27x8x128xf32>
    %cst = arith.constant dense<0xFF800000> : vector<8x128xf32>
    %1 = vector.multi_reduction <maximumf>, %0, %cst [0] : vector<27x8x128xf32> to vector<8x128xf32>
    %c0_2 = arith.constant 0 : index
    %c0_3 = arith.constant 0 : index
    %2 = vector.load %arg2[%c0_2, %c0_3] : memref<8x128xf32, #tpu.memory_space<vmem>>, vector<8x128xf32>
    tpu.vector_store %arg2[%c0_2, %c0_3], %1 {strides = array<i32>} : memref<8x128xf32, #tpu.memory_space<vmem>>, vector<8x128xf32>,
    return
  }
  func.func @transform_0(%arg0: i32) -> (i32, i32, i32) {
    %c0_i32 = arith.constant 0 : i32
    %c0_i32_0 = arith.constant 0 : i32
    %c0_i32_1 = arith.constant 0 : i32
    return %c0_i32, %arg0, %c0_i32_0 : i32, i32, i32
  }
  func.func @transform_1(%arg0: i32) -> (i32, i32) {
    %c0_i32 = arith.constant 0 : i32
    %c0_i32_0 = arith.constant 0 : i32
    return %arg0, %c0_i32 : i32, i32
  }
}

module attributes {stable_mosaic.version = 11 : i64} {
  func.func @kernel(%arg0: i32, %arg1: i32, %arg2: i32, %arg3: memref<1x16x896xbf16, #tpu.memory_space<vmem>>, %arg4: memref<1x896x128xbf16, #tpu.memory_space<vmem>>, %arg5: memref<1x1x128xf32, #tpu.memory_space<vmem>>, %arg6: memref<1x16x128xf32, #tpu.memory_space<vmem>>) attributes {dimension_semantics = [#tpu.dimension_semantics<parallel>, #tpu.dimension_semantics<parallel>, #tpu.dimension_semantics<parallel>], iteration_bounds = array<i64: 2, 1, 1>, scalar_prefetch = 0 : i64, scratch_operands = 0 : i64, tpu.core_type = #tpu.core_type<tc>, window_params = [{transform_indices = @transform_0, window_bounds = array<i64: 1, 16, 896>}, {transform_indices = @transform_1, window_bounds = array<i64: 1, 896, 128>}, {transform_indices = @transform_2, window_bounds = array<i64: 1, 1, 128>}, {transform_indices = @transform_3, window_bounds = array<i64: 1, 16, 128>}]} {
    %c0 = arith.constant 0 : index
    %c0_0 = arith.constant 0 : index
    %c0_1 = arith.constant 0 : index
    %0 = vector.load %arg3[%c0, %c0_0, %c0_1] : memref<1x16x896xbf16, #tpu.memory_space<vmem>>, vector<1x16x896xbf16>
    %1 = vector.shape_cast %0 : vector<1x16x896xbf16> to vector<16x896xbf16>
    %c0_2 = arith.constant 0 : index
    %c0_3 = arith.constant 0 : index
    %c0_4 = arith.constant 0 : index
    %2 = vector.load %arg4[%c0_2, %c0_3, %c0_4] : memref<1x896x128xbf16, #tpu.memory_space<vmem>>, vector<1x896x128xbf16>
    %3 = vector.shape_cast %2 : vector<1x896x128xbf16> to vector<896x128xbf16>
    %cst = arith.constant dense<0.000000e+00> : vector<16x128xf32>
    %4 = tpu.matmul %1, %3, %cst {dimension_numbers = #tpu.dot_dimension_numbers<[1], [0], [0], [1], [0, 0, 1, 1], [], []>} : vector<16x896xbf16>, vector<896x128xbf16>, vector<16x128xf32> -> vector<16x128xf32>
    %c0_5 = arith.constant 0 : index
    %c0_6 = arith.constant 0 : index
    %c0_7 = arith.constant 0 : index
    %5 = vector.load %arg5[%c0_5, %c0_6, %c0_7] : memref<1x1x128xf32, #tpu.memory_space<vmem>>, vector<1x1x128xf32>
    %6 = vector.shape_cast %5 : vector<1x1x128xf32> to vector<1x128xf32>
    %7 = vector.broadcast %6 : vector<1x128xf32> to vector<16x128xf32>
    %8 = arith.addf %4, %7 : vector<16x128xf32>
    %cst_8 = arith.constant 0.000000e+00 : f32
    %9 = vector.broadcast %cst_8 : f32 to vector<16x128xf32>
    %10 = arith.maximumf %8, %9 : vector<16x128xf32>
    %c0_9 = arith.constant 0 : index
    %c0_10 = arith.constant 0 : index
    %c0_11 = arith.constant 0 : index
    %11 = vector.load %arg6[%c0_9, %c0_10, %c0_11] : memref<1x16x128xf32, #tpu.memory_space<vmem>>, vector<1x16x128xf32>
    %12 = vector.shape_cast %11 : vector<1x16x128xf32> to vector<16x128xf32>
    %13 = vector.shape_cast %10 : vector<16x128xf32> to vector<1x16x128xf32>
    tpu.vector_store %arg6[%c0_9, %c0_10, %c0_11], %13 {strides = array<i32>} : memref<1x16x128xf32, #tpu.memory_space<vmem>>, vector<1x16x128xf32>,
    return
  }
  func.func @transform_0(%arg0: i32, %arg1: i32, %arg2: i32) -> (i32, i32, i32) {
    %c0_i32 = arith.constant 0 : i32
    %c0_i32_0 = arith.constant 0 : i32
    return %arg0, %arg1, %c0_i32 : i32, i32, i32
  }
  func.func @transform_1(%arg0: i32, %arg1: i32, %arg2: i32) -> (i32, i32, i32) {
    %c0_i32 = arith.constant 0 : i32
    %c0_i32_0 = arith.constant 0 : i32
    return %arg0, %c0_i32, %arg2 : i32, i32, i32
  }
  func.func @transform_2(%arg0: i32, %arg1: i32, %arg2: i32) -> (i32, i32, i32) {
    %c0_i32 = arith.constant 0 : i32
    %c0_i32_0 = arith.constant 0 : i32
    return %arg0, %c0_i32, %arg2 : i32, i32, i32
  }
  func.func @transform_3(%arg0: i32, %arg1: i32, %arg2: i32) -> (i32, i32, i32) {
    %c0_i32 = arith.constant 0 : i32
    return %arg0, %arg1, %arg2 : i32, i32, i32
  }
}

module attributes {stable_mosaic.version = 11 : i64} {
  func.func @kernel(%arg0: i32, %arg1: i32, %arg2: i32, %arg3: memref<1x16x1408xbf16, #tpu.memory_space<vmem>>, %arg4: memref<1x1408x128xbf16, #tpu.memory_space<vmem>>, %arg5: memref<1x1x128xf32, #tpu.memory_space<vmem>>, %arg6: memref<1x16x128xf32, #tpu.memory_space<vmem>>) attributes {dimension_semantics = [#tpu.dimension_semantics<parallel>, #tpu.dimension_semantics<parallel>, #tpu.dimension_semantics<parallel>], iteration_bounds = array<i64: 2, 1, 1>, scalar_prefetch = 0 : i64, scratch_operands = 0 : i64, tpu.core_type = #tpu.core_type<tc>, window_params = [{transform_indices = @transform_0, window_bounds = array<i64: 1, 16, 1408>}, {transform_indices = @transform_1, window_bounds = array<i64: 1, 1408, 128>}, {transform_indices = @transform_2, window_bounds = array<i64: 1, 1, 128>}, {transform_indices = @transform_3, window_bounds = array<i64: 1, 16, 128>}]} {
    %c0 = arith.constant 0 : index
    %c0_0 = arith.constant 0 : index
    %c0_1 = arith.constant 0 : index
    %0 = vector.load %arg3[%c0, %c0_0, %c0_1] : memref<1x16x1408xbf16, #tpu.memory_space<vmem>>, vector<1x16x1408xbf16>
    %1 = vector.shape_cast %0 : vector<1x16x1408xbf16> to vector<16x1408xbf16>
    %c0_2 = arith.constant 0 : index
    %c0_3 = arith.constant 0 : index
    %c0_4 = arith.constant 0 : index
    %2 = vector.load %arg4[%c0_2, %c0_3, %c0_4] : memref<1x1408x128xbf16, #tpu.memory_space<vmem>>, vector<1x1408x128xbf16>
    %3 = vector.shape_cast %2 : vector<1x1408x128xbf16> to vector<1408x128xbf16>
    %cst = arith.constant dense<0.000000e+00> : vector<16x128xf32>
    %4 = tpu.matmul %1, %3, %cst {dimension_numbers = #tpu.dot_dimension_numbers<[1], [0], [0], [1], [0, 0, 1, 1], [], []>} : vector<16x1408xbf16>, vector<1408x128xbf16>, vector<16x128xf32> -> vector<16x128xf32>
    %c0_5 = arith.constant 0 : index
    %c0_6 = arith.constant 0 : index
    %c0_7 = arith.constant 0 : index
    %5 = vector.load %arg5[%c0_5, %c0_6, %c0_7] : memref<1x1x128xf32, #tpu.memory_space<vmem>>, vector<1x1x128xf32>
    %6 = vector.shape_cast %5 : vector<1x1x128xf32> to vector<1x128xf32>
    %7 = vector.broadcast %6 : vector<1x128xf32> to vector<16x128xf32>
    %8 = arith.addf %4, %7 : vector<16x128xf32>
    %cst_8 = arith.constant 0.000000e+00 : f32
    %9 = vector.broadcast %cst_8 : f32 to vector<16x128xf32>
    %10 = arith.maximumf %8, %9 : vector<16x128xf32>
    %c0_9 = arith.constant 0 : index
    %c0_10 = arith.constant 0 : index
    %c0_11 = arith.constant 0 : index
    %11 = vector.load %arg6[%c0_9, %c0_10, %c0_11] : memref<1x16x128xf32, #tpu.memory_space<vmem>>, vector<1x16x128xf32>
    %12 = vector.shape_cast %11 : vector<1x16x128xf32> to vector<16x128xf32>
    %13 = vector.shape_cast %10 : vector<16x128xf32> to vector<1x16x128xf32>
    tpu.vector_store %arg6[%c0_9, %c0_10, %c0_11], %13 {strides = array<i32>} : memref<1x16x128xf32, #tpu.memory_space<vmem>>, vector<1x16x128xf32>,
    return
  }
  func.func @transform_0(%arg0: i32, %arg1: i32, %arg2: i32) -> (i32, i32, i32) {
    %c0_i32 = arith.constant 0 : i32
    %c0_i32_0 = arith.constant 0 : i32
    return %arg0, %arg1, %c0_i32 : i32, i32, i32
  }
  func.func @transform_1(%arg0: i32, %arg1: i32, %arg2: i32) -> (i32, i32, i32) {
    %c0_i32 = arith.constant 0 : i32
    %c0_i32_0 = arith.constant 0 : i32
    return %arg0, %c0_i32, %arg2 : i32, i32, i32
  }
  func.func @transform_2(%arg0: i32, %arg1: i32, %arg2: i32) -> (i32, i32, i32) {
    %c0_i32 = arith.constant 0 : i32
    %c0_i32_0 = arith.constant 0 : i32
    return %arg0, %c0_i32, %arg2 : i32, i32, i32
  }
  func.func @transform_3(%arg0: i32, %arg1: i32, %arg2: i32) -> (i32, i32, i32) {
    %c0_i32 = arith.constant 0 : i32
    return %arg0, %arg1, %arg2 : i32, i32, i32
  }
}

module attributes {stable_mosaic.version = 11 : i64} {
  func.func @kernel(%arg0: i32, %arg1: memref<1x8x128xf32, #tpu.memory_space<vmem>>, %arg2: memref<8x128xf32, #tpu.memory_space<vmem>>) attributes {dimension_semantics = [#tpu.dimension_semantics<parallel>], iteration_bounds = array<i64: 1>, scalar_prefetch = 0 : i64, scratch_operands = 0 : i64, tpu.core_type = #tpu.core_type<tc>, window_params = [{transform_indices = @transform_0, window_bounds = array<i64: 1, 8, 128>}, {transform_indices = @transform_1, window_bounds = array<i64: 8, 128>}]} {
    %c0 = arith.constant 0 : index
    %c0_0 = arith.constant 0 : index
    %c0_1 = arith.constant 0 : index
    %0 = vector.load %arg1[%c0, %c0_0, %c0_1] : memref<1x8x128xf32, #tpu.memory_space<vmem>>, vector<1x8x128xf32>
    %cst = arith.constant dense<0.000000e+00> : vector<8x128xf32>
    %1 = vector.multi_reduction <add>, %0, %cst [0] : vector<1x8x128xf32> to vector<8x128xf32>
    %cst_2 = arith.constant 1.000000e+00 : f32
    %2 = vector.broadcast %cst_2 : f32 to vector<8x128xf32>
    %3 = arith.mulf %1, %2 : vector<8x128xf32>
    %c0_3 = arith.constant 0 : index
    %c0_4 = arith.constant 0 : index
    %4 = vector.load %arg2[%c0_3, %c0_4] : memref<8x128xf32, #tpu.memory_space<vmem>>, vector<8x128xf32>
    tpu.vector_store %arg2[%c0_3, %c0_4], %3 {strides = array<i32>} : memref<8x128xf32, #tpu.memory_space<vmem>>, vector<8x128xf32>,
    return
  }
  func.func @transform_0(%arg0: i32) -> (i32, i32, i32) {
    %c0_i32 = arith.constant 0 : i32
    %c0_i32_0 = arith.constant 0 : i32
    %c0_i32_1 = arith.constant 0 : i32
    return %c0_i32, %arg0, %c0_i32_0 : i32, i32, i32
  }
  func.func @transform_1(%arg0: i32) -> (i32, i32) {
    %c0_i32 = arith.constant 0 : i32
    %c0_i32_0 = arith.constant 0 : i32
    return %arg0, %c0_i32 : i32, i32
  }
}

</mosaic_0001>

<llo_original>
// kernel: forward_fn.14
$region0: #{forward_fn.14}
  #allocation0 [shape = 'u32[]', space=smem, size = 0x4, offset = 0x4, fixed_abs, tag = 'smem constant byte address 0x4 - core index']
  #allocation1 [shape = 'u32[144,128]{1,0:T(1,128)}', space=vmem, size = 0x12000, scoped, tag = 'internal scratch']
  %s0 = inlined_call_operand.vmem [shape: bf16[2,1024,512], index: 0, kind: input, shape index: {}]
  %s1 = inlined_call_operand.vmem [shape: bf16[2,512,128], index: 1, kind: input, shape index: {}]
  %s2 = inlined_call_operand.vmem [shape: f32[2,1,128], index: 2, kind: input, shape index: {}]
  %s3 = inlined_call_operand.vmem [shape: f32[2,1024,128], index: 3, kind: output, shape index: {}]
  %s4 = sld [smem:[#allocation0]]
  $region45: #{forward_fn.14} parent=0
    _
  %s6 = ssub.s32 1, %s4
  %s7 = scalar_select 0, %s6, %s4
  loop: start=0, step=1, limit=6
  $region2: #{forward_fn.14} parent=0 // loop_pre_header
    _
  $region3: #{forward_fn.14} parent=0 // loop_header
    %s9 = sphi 0, %s13
    %p10 = scmp.ge.s32.totalorder %s9, 6
    %s16 = sphi 0, %s35
    %s17 = sphi 0, %s31
    %s18 = sphi 0, %s27
    %s19 = sphi 0, %s16
    %s20 = sphi 0, %s17
    %s21 = sphi 0, %s18
    %s22 = sphi 0, %s19
    %s23 = sphi 0, %s20
    %s24 = sphi 0, %s21
    %s40 = sphi 0, %s42
    %s43 = sphi 0, %s40
    %s44 = sphi 0, %s43
    %s60 = sphi 0, %s44
    %s68 = sphi 0, %s70
    %s71 = sphi 0, %s68
    %s72 = sphi 0, %s71
    %s88 = sphi 0, %s72
    %s96 = sphi 0, %s98
    %s99 = sphi 0, %s96
    %s100 = sphi 0, %s99
    %s116 = sphi 0, %s100
    %s126 = sphi 0, %s128
    %s129 = sphi 0, %s126
    %s130 = sphi 0, %s129
    %s146 = sphi 0, %s130
  $region4: #{forward_fn.14} parent=0 // loop_header_branch
    %12 = sbr.rel (%p10) target = $region8
  $region5: #{forward_fn.14} parent=0 // loop_body
    %s14 = ssub.s32 %s9, 1
    %s15 = ssub.s32 %s9, 2
    %s25 = sadd.s32 1, %s18
    %p26 = scmp.ge.s32.totalorder %s25, 1
    %s27 = scalar_select %p26, 0, %s25
    %s28 = sadd.s32 1, %s17
    %s29 = scalar_select %p26, %s28, %s17
    %p30 = scmp.ge.s32.totalorder %s29, 2
    %s31 = scalar_select %p30, 0, %s29
    %s32 = sadd.s32 1, %s16
    %s33 = scalar_select %p30, %s32, %s16
    %p34 = scmp.ge.s32.totalorder %s33, 2
    %s35 = scalar_select %p34, 0, %s33
    %s36 = ssub.s32 %s16, %s35
    %s37 = ssub.s32 %s17, %s31
    %s38 = sor.u32 %s36, %s37
    %p39 = scmp.eq.s32.totalorder %s38, 0
    %s41 = sadd.s32 %s40, 1
    %s42 = scalar_select %p39, %s40, %s41
    %p45 = pneg %p39
    %p46 = scmp.eq.s32.totalorder %s9, 3
    %p47 = por %p45, %p46
    %p48 = scmp.ne.s32.totalorder %s40, %s43
    %p49 = scmp.eq.s32.totalorder %s9, 0
    %p50 = por %p48, %p49
    %p51 = scmp.ne.s32.totalorder %s40, %s43
    %p52 = scmp.eq.s32.totalorder %s14, 3
    %p53 = por %p51, %p52
    %p54 = scmp.ne.s32.totalorder %s43, %s44
    %p55 = scmp.eq.s32.totalorder %s14, 0
    %p56 = por %p54, %p55
    %p57 = scmp.ne.s32.totalorder %s43, %s44
    %p58 = scmp.eq.s32.totalorder %s15, 3
    %p59 = por %p57, %p58
    %p61 = scmp.ne.s32.totalorder %s44, %s60
    %p62 = scmp.eq.s32.totalorder %s15, 0
    %p63 = por %p61, %p62
    %s64 = ssub.s32 %s16, %s35
    %s65 = ssub.s32 %s18, %s27
    %s66 = sor.u32 %s64, %s65
    %p67 = scmp.eq.s32.totalorder %s66, 0
    %s69 = sadd.s32 %s68, 1
    %s70 = scalar_select %p67, %s68, %s69
    %p73 = pneg %p67
    %p74 = scmp.eq.s32.totalorder %s9, 3
    %p75 = por %p73, %p74
    %p76 = scmp.ne.s32.totalorder %s68, %s71
    %p77 = scmp.eq.s32.totalorder %s9, 0
    %p78 = por %p76, %p77
    %p79 = scmp.ne.s32.totalorder %s68, %s71
    %p80 = scmp.eq.s32.totalorder %s14, 3
    %p81 = por %p79, %p80
    %p82 = scmp.ne.s32.totalorder %s71, %s72
    %p83 = scmp.eq.s32.totalorder %s14, 0
    %p84 = por %p82, %p83
    %p85 = scmp.ne.s32.totalorder %s71, %s72
    %p86 = scmp.eq.s32.totalorder %s15, 3
    %p87 = por %p85, %p86
    %p89 = scmp.ne.s32.totalorder %s72, %s88
    %p90 = scmp.eq.s32.totalorder %s15, 0
    %p91 = por %p89, %p90
    %s92 = ssub.s32 %s16, %s35
    %s93 = ssub.s32 %s18, %s27
    %s94 = sor.u32 %s92, %s93
    %p95 = scmp.eq.s32.totalorder %s94, 0
    %s97 = sadd.s32 %s96, 1
    %s98 = scalar_select %p95, %s96, %s97
    %p101 = pneg %p95
    %p102 = scmp.eq.s32.totalorder %s9, 3
    %p103 = por %p101, %p102
    %p104 = scmp.ne.s32.totalorder %s96, %s99
    %p105 = scmp.eq.s32.totalorder %s9, 0
    %p106 = por %p104, %p105
    %p107 = scmp.ne.s32.totalorder %s96, %s99
    %p108 = scmp.eq.s32.totalorder %s14, 3
    %p109 = por %p107, %p108
    %p110 = scmp.ne.s32.totalorder %s99, %s100
    %p111 = scmp.eq.s32.totalorder %s14, 0
    %p112 = por %p110, %p111
    %p113 = scmp.ne.s32.totalorder %s99, %s100
    %p114 = scmp.eq.s32.totalorder %s15, 3
    %p115 = por %p113, %p114
    %p117 = scmp.ne.s32.totalorder %s100, %s116
    %p118 = scmp.eq.s32.totalorder %s15, 0
    %p119 = por %p117, %p118
    %s120 = ssub.s32 %s16, %s35
    %s121 = ssub.s32 %s17, %s31
    %s122 = sor.u32 %s120, %s121
    %s123 = ssub.s32 %s18, %s27
    %s124 = sor.u32 %s122, %s123
    %p125 = scmp.eq.s32.totalorder %s124, 0
    %s127 = sadd.s32 %s126, 1
    %s128 = scalar_select %p125, %s126, %s127
    %p131 = pneg %p125
    %p132 = scmp.eq.s32.totalorder %s9, 3
    %p133 = por %p131, %p132
    %p134 = scmp.ne.s32.totalorder %s126, %s129
    %p135 = scmp.eq.s32.totalorder %s9, 0
    %p136 = por %p134, %p135
    %p137 = scmp.ne.s32.totalorder %s126, %s129
    %p138 = scmp.eq.s32.totalorder %s14, 3
    %p139 = por %p137, %p138
    %p140 = scmp.ne.s32.totalorder %s129, %s130
    %p141 = scmp.eq.s32.totalorder %s14, 0
    %p142 = por %p140, %p141
    %p143 = scmp.ne.s32.totalorder %s129, %s130
    %p144 = scmp.eq.s32.totalorder %s15, 3
    %p145 = por %p143, %p144
    %p147 = scmp.ne.s32.totalorder %s130, %s146
    %p148 = scmp.eq.s32.totalorder %s15, 0
    %p149 = por %p147, %p148
    %p150 = scmp.le.s32.totalorder 1, %s9
    %p151 = scmp.lt.s32.totalorder %s9, 5
    %p152 = pnand %p150, %p151
    %p153 = pneg %p152
    // Predicated region
    $region9: #{forward_fn.14} parent=5 // pred_check
      _
    $region10: #{forward_fn.14} parent=5 // pred_check_branch
      %155 = sbr.rel (%p152) target = $region12
    $region11: #{forward_fn.14} parent=5 // pred_region
      %s156 = ssub.s32 %s9, 1
    $region12: #{forward_fn.14} parent=5 // pred_fallthru
      _
    %p157 = scmp.lt.s32.totalorder %s9, 4
    // Predicated region
    $region13: #{forward_fn.14} parent=5 // pred_check
      %p158 = pneg %p157
    $region14: #{forward_fn.14} parent=5 // pred_check_branch
      %160 = sbr.rel (%p158) target = $region16
    $region15: #{forward_fn.14} parent=5 // pred_region
      // Predicated region
      $region17: #{forward_fn.14} parent=15 // pred_check
        %p161 = pneg %p50
      $region18: #{forward_fn.14} parent=15 // pred_check_branch
        %163 = sbr.rel (%p161) target = $region20
      $region19: #{forward_fn.14} parent=15 // pred_region
        %s164 = smul.u32 64, %s17
        %p165 = scmp.lt.s32.totalorder %s16, 1
        %s166 = scalar_select %p165, %s16, 1
        %p167 = scmp.lt.s32.totalorder %s164, 127
        %s168 = scalar_select %p167, %s164, 127
        %s169 = smul.addr %s168, 4
        %s170 = smul.addr %s166, 512
        %s171 = sadd.s32 %s169, %s170
        %s172 = smul.addr %s171, 4
        %s173 = scalar_lea.vmem %s0, %s172
        %s174 = smul.u32 64, %s17
      $region20: #{forward_fn.14} parent=15 // pred_fallthru
        _
      // Predicated region
      $region21: #{forward_fn.14} parent=15 // pred_check
        %p175 = pneg %p78
      $region22: #{forward_fn.14} parent=15 // pred_check_branch
        %177 = sbr.rel (%p175) target = $region24
      $region23: #{forward_fn.14} parent=15 // pred_region
        %p178 = scmp.lt.s32.totalorder %s16, 1
        %s179 = scalar_select %p178, %s16, 1
        %p180 = scmp.lt.s32.totalorder %s18, 0
        %s181 = scalar_select %p180, %s18, 0
        %s182 = smul.addr %s179, 64
        %s183 = sadd.s32 %s181, %s182
        %s184 = smul.addr %s183, 4
        %s185 = scalar_lea.vmem %s1, %s184
      $region24: #{forward_fn.14} parent=15 // pred_fallthru
        _
      // Predicated region
      $region25: #{forward_fn.14} parent=15 // pred_check
        %p186 = pneg %p106
      $region26: #{forward_fn.14} parent=15 // pred_check_branch
        %188 = sbr.rel (%p186) target = $region28
      $region27: #{forward_fn.14} parent=15 // pred_region
        %p189 = scmp.lt.s32.totalorder %s16, 1
        %s190 = scalar_select %p189, %s16, 1
        %p191 = scmp.lt.s32.totalorder %s18, 0
        %s192 = scalar_select %p191, %s18, 0
        %s193 = sadd.s32 %s192, %s190
        %s194 = scalar_lea.vmem %s2, %s193
      $region28: #{forward_fn.14} parent=15 // pred_fallthru
        _
    $region16: #{forward_fn.14} parent=5 // pred_fallthru
      _
    %p195 = scmp.le.s32.totalorder 1, %s9
    %p196 = scmp.lt.s32.totalorder %s9, 5
    %p197 = pnand %p195, %p196
    %p198 = pneg %p197
    // Predicated region
    $region29: #{forward_fn.14} parent=5 // pred_check
      _
    $region30: #{forward_fn.14} parent=5 // pred_check_branch
      %200 = sbr.rel (%p197) target = $region32
    $region31: #{forward_fn.14} parent=5 // pred_region
      %s201 = ssub.s32 %s9, 1
      %s202 = smul.u32 64, %s20
      %p203 = scmp.lt.s32.totalorder %s19, 1
      %s204 = scalar_select %p203, %s19, 1
      %p205 = scmp.lt.s32.totalorder %s202, 127
      %s206 = scalar_select %p205, %s202, 127
      %s207 = smul.addr %s206, 4
      %s208 = smul.addr %s204, 512
      %s209 = sadd.s32 %s207, %s208
      %s210 = smul.addr %s209, 4
      %s211 = scalar_lea.vmem %s0, %s210
      %p212 = pneg %p56
      %p213 = pneg %p53
      %p214 = scmp.lt.s32.totalorder %s19, 1
      %s215 = scalar_select %p214, %s19, 1
      %p216 = scmp.lt.s32.totalorder %s21, 0
      %s217 = scalar_select %p216, %s21, 0
      %s218 = smul.addr %s215, 64
      %s219 = sadd.s32 %s217, %s218
      %s220 = smul.addr %s219, 4
      %s221 = scalar_lea.vmem %s1, %s220
      %p222 = pneg %p84
      %p223 = pneg %p81
      %p224 = scmp.lt.s32.totalorder %s19, 1
      %s225 = scalar_select %p224, %s19, 1
      %p226 = scmp.lt.s32.totalorder %s21, 0
      %s227 = scalar_select %p226, %s21, 0
      %s228 = sadd.s32 %s227, %s225
      %s229 = scalar_lea.vmem %s2, %s228
      %p230 = pneg %p112
      %p231 = pneg %p109
      %p232 = pneg %p142
      %p233 = pneg %p139
      %s234 = smul.u32 64, %s20
      %p235 = scmp.lt.s32.totalorder %s19, 1
      %s236 = scalar_select %p235, %s19, 1
      %p237 = scmp.lt.s32.totalorder %s234, 127
      %s238 = scalar_select %p237, %s234, 127
      %p239 = scmp.lt.s32.totalorder %s21, 0
      %s240 = scalar_select %p239, %s21, 0
      %s241 = sadd.s32 %s240, %s238
      %s242 = smul.addr %s236, 128
      %s243 = sadd.s32 %s241, %s242
      %s244 = smul.addr %s243, 8
      %s245 = scalar_lea.vmem %s3, %s244
      %s246 = smul.u32 64, %s20
      %p247 = scmp.lt.s32.totalorder %s19, 1
      %s248 = scalar_select %p247, %s19, 1
      %p249 = scmp.lt.s32.totalorder %s246, 127
      %s250 = scalar_select %p249, %s246, 127
      %s251 = smul.addr %s250, 4
      %s252 = smul.addr %s248, 512
      %s253 = sadd.s32 %s251, %s252
      %s254 = smul.addr %s253, 4
      %s255 = scalar_lea.vmem %s0, %s254
      %s256 = smul.u32 64, %s20
      %p257 = scmp.lt.s32.totalorder %s19, 1
      %s258 = scalar_select %p257, %s19, 1
      %p259 = scmp.lt.s32.totalorder %s21, 0
      %s260 = scalar_select %p259, %s21, 0
      %s261 = smul.addr %s258, 64
      %s262 = sadd.s32 %s260, %s261
      %s263 = smul.addr %s262, 4
      %s264 = scalar_lea.vmem %s1, %s263
      %p265 = scmp.lt.s32.totalorder %s19, 1
      %s266 = scalar_select %p265, %s19, 1
      %p267 = scmp.lt.s32.totalorder %s21, 0
      %s268 = scalar_select %p267, %s21, 0
      %s269 = sadd.s32 %s268, %s266
      %s270 = scalar_lea.vmem %s2, %s269
      %s271 = smul.u32 64, %s20
      %p272 = scmp.lt.s32.totalorder %s19, 1
      %s273 = scalar_select %p272, %s19, 1
      %p274 = scmp.lt.s32.totalorder %s271, 127
      %s275 = scalar_select %p274, %s271, 127
      %p276 = scmp.lt.s32.totalorder %s21, 0
      %s277 = scalar_select %p276, %s21, 0
      %s278 = sadd.s32 %s277, %s275
      %s279 = smul.addr %s273, 128
      %s280 = sadd.s32 %s278, %s279
      %s281 = smul.addr %s280, 8
      %s282 = scalar_lea.vmem %s3, %s281
      %s283 = smul.u32 64, %s20
      %v285 = vld [vmem:[%s255] sm:$0xff]
      %v286 = vld [vmem:[%s255 + $0x8] sm:$0xff]
      %v287 = vld [vmem:[%s255 + $0x10] sm:$0xff]
      %v288 = vld [vmem:[%s255 + $0x18] sm:$0xff]
      %v289 = vld [vmem:[%s255 + $0x20] sm:$0xff]
      %v290 = vld [vmem:[%s255 + $0x28] sm:$0xff]
      %v291 = vld [vmem:[%s255 + $0x30] sm:$0xff]
      %v292 = vld [vmem:[%s255 + $0x38] sm:$0xff]
      %v293 = vld [vmem:[%s255 + $0x40] sm:$0xff]
      %v294 = vld [vmem:[%s255 + $0x48] sm:$0xff]
      %v295 = vld [vmem:[%s255 + $0x50] sm:$0xff]
      %v296 = vld [vmem:[%s255 + $0x58] sm:$0xff]
      %v297 = vld [vmem:[%s255 + $0x60] sm:$0xff]
      %v298 = vld [vmem:[%s255 + $0x68] sm:$0xff]
      %v299 = vld [vmem:[%s255 + $0x70] sm:$0xff]
      %v300 = vld [vmem:[%s255 + $0x78] sm:$0xff]
      %v301 = vld [vmem:[%s255 + $0x80] sm:$0xff]
      %v302 = vld [vmem:[%s255 + $0x88] sm:$0xff]
      %v303 = vld [vmem:[%s255 + $0x90] sm:$0xff]
      %v304 = vld [vmem:[%s255 + $0x98] sm:$0xff]
      %v305 = vld [vmem:[%s255 + $0xa0] sm:$0xff]
      %v306 = vld [vmem:[%s255 + $0xa8] sm:$0xff]
      %v307 = vld [vmem:[%s255 + $0xb0] sm:$0xff]
      %v308 = vld [vmem:[%s255 + $0xb8] sm:$0xff]
      %v309 = vld [vmem:[%s255 + $0xc0] sm:$0xff]
      %v310 = vld [vmem:[%s255 + $0xc8] sm:$0xff]
      %v311 = vld [vmem:[%s255 + $0xd0] sm:$0xff]
      %v312 = vld [vmem:[%s255 + $0xd8] sm:$0xff]
      %v313 = vld [vmem:[%s255 + $0xe0] sm:$0xff]
      %v314 = vld [vmem:[%s255 + $0xe8] sm:$0xff]
      %v315 = vld [vmem:[%s255 + $0xf0] sm:$0xff]
      %v316 = vld [vmem:[%s255 + $0xf8] sm:$0xff]
      %v317 = vld [vmem:[%s255 + $0x100] sm:$0xff]
      %v318 = vld [vmem:[%s255 + $0x108] sm:$0xff]
      %v319 = vld [vmem:[%s255 + $0x110] sm:$0xff]
      %v320 = vld [vmem:[%s255 + $0x118] sm:$0xff]
      %v321 = vld [vmem:[%s255 + $0x120] sm:$0xff]
      %v322 = vld [vmem:[%s255 + $0x128] sm:$0xff]
      %v323 = vld [vmem:[%s255 + $0x130] sm:$0xff]
      %v324 = vld [vmem:[%s255 + $0x138] sm:$0xff]
      %v325 = vld [vmem:[%s255 + $0x140] sm:$0xff]
      %v326 = vld [vmem:[%s255 + $0x148] sm:$0xff]
      %v327 = vld [vmem:[%s255 + $0x150] sm:$0xff]
      %v328 = vld [vmem:[%s255 + $0x158] sm:$0xff]
      %v329 = vld [vmem:[%s255 + $0x160] sm:$0xff]
      %v330 = vld [vmem:[%s255 + $0x168] sm:$0xff]
      %v331 = vld [vmem:[%s255 + $0x170] sm:$0xff]
      %v332 = vld [vmem:[%s255 + $0x178] sm:$0xff]
      %v333 = vld [vmem:[%s255 + $0x180] sm:$0xff]
      %v334 = vld [vmem:[%s255 + $0x188] sm:$0xff]
      %v335 = vld [vmem:[%s255 + $0x190] sm:$0xff]
      %v336 = vld [vmem:[%s255 + $0x198] sm:$0xff]
      %v337 = vld [vmem:[%s255 + $0x1a0] sm:$0xff]
      %v338 = vld [vmem:[%s255 + $0x1a8] sm:$0xff]
      %v339 = vld [vmem:[%s255 + $0x1b0] sm:$0xff]
      %v340 = vld [vmem:[%s255 + $0x1b8] sm:$0xff]
      %v341 = vld [vmem:[%s255 + $0x1c0] sm:$0xff]
      %v342 = vld [vmem:[%s255 + $0x1c8] sm:$0xff]
      %v343 = vld [vmem:[%s255 + $0x1d0] sm:$0xff]
      %v344 = vld [vmem:[%s255 + $0x1d8] sm:$0xff]
      %v345 = vld [vmem:[%s255 + $0x1e0] sm:$0xff]
      %v346 = vld [vmem:[%s255 + $0x1e8] sm:$0xff]
      %v347 = vld [vmem:[%s255 + $0x1f0] sm:$0xff]
      %v348 = vld [vmem:[%s255 + $0x1f8] sm:$0xff]
      %v349 = vld [vmem:[%s255 + $0x200] sm:$0xff]
      %v350 = vld [vmem:[%s255 + $0x208] sm:$0xff]
      %v351 = vld [vmem:[%s255 + $0x210] sm:$0xff]
      %v352 = vld [vmem:[%s255 + $0x218] sm:$0xff]
      %v353 = vld [vmem:[%s255 + $0x220] sm:$0xff]
      %v354 = vld [vmem:[%s255 + $0x228] sm:$0xff]
      %v355 = vld [vmem:[%s255 + $0x230] sm:$0xff]
      %v356 = vld [vmem:[%s255 + $0x238] sm:$0xff]
      %v357 = vld [vmem:[%s255 + $0x240] sm:$0xff]
      %v358 = vld [vmem:[%s255 + $0x248] sm:$0xff]
      %v359 = vld [vmem:[%s255 + $0x250] sm:$0xff]
      %v360 = vld [vmem:[%s255 + $0x258] sm:$0xff]
      %v361 = vld [vmem:[%s255 + $0x260] sm:$0xff]
      %v362 = vld [vmem:[%s255 + $0x268] sm:$0xff]
      %v363 = vld [vmem:[%s255 + $0x270] sm:$0xff]
      %v364 = vld [vmem:[%s255 + $0x278] sm:$0xff]
      %v365 = vld [vmem:[%s255 + $0x280] sm:$0xff]
      %v366 = vld [vmem:[%s255 + $0x288] sm:$0xff]
      %v367 = vld [vmem:[%s255 + $0x290] sm:$0xff]
      %v368 = vld [vmem:[%s255 + $0x298] sm:$0xff]
      %v369 = vld [vmem:[%s255 + $0x2a0] sm:$0xff]
      %v370 = vld [vmem:[%s255 + $0x2a8] sm:$0xff]
      %v371 = vld [vmem:[%s255 + $0x2b0] sm:$0xff]
      %v372 = vld [vmem:[%s255 + $0x2b8] sm:$0xff]
      %v373 = vld [vmem:[%s255 + $0x2c0] sm:$0xff]
      %v374 = vld [vmem:[%s255 + $0x2c8] sm:$0xff]
      %v375 = vld [vmem:[%s255 + $0x2d0] sm:$0xff]
      %v376 = vld [vmem:[%s255 + $0x2d8] sm:$0xff]
      %v377 = vld [vmem:[%s255 + $0x2e0] sm:$0xff]
      %v378 = vld [vmem:[%s255 + $0x2e8] sm:$0xff]
      %v379 = vld [vmem:[%s255 + $0x2f0] sm:$0xff]
      %v380 = vld [vmem:[%s255 + $0x2f8] sm:$0xff]
      %v381 = vld [vmem:[%s255 + $0x300] sm:$0xff]
      %v382 = vld [vmem:[%s255 + $0x308] sm:$0xff]
      %v383 = vld [vmem:[%s255 + $0x310] sm:$0xff]
      %v384 = vld [vmem:[%s255 + $0x318] sm:$0xff]
      %v385 = vld [vmem:[%s255 + $0x320] sm:$0xff]
      %v386 = vld [vmem:[%s255 + $0x328] sm:$0xff]
      %v387 = vld [vmem:[%s255 + $0x330] sm:$0xff]
      %v388 = vld [vmem:[%s255 + $0x338] sm:$0xff]
      %v389 = vld [vmem:[%s255 + $0x340] sm:$0xff]
      %v390 = vld [vmem:[%s255 + $0x348] sm:$0xff]
      %v391 = vld [vmem:[%s255 + $0x350] sm:$0xff]
      %v392 = vld [vmem:[%s255 + $0x358] sm:$0xff]
      %v393 = vld [vmem:[%s255 + $0x360] sm:$0xff]
      %v394 = vld [vmem:[%s255 + $0x368] sm:$0xff]
      %v395 = vld [vmem:[%s255 + $0x370] sm:$0xff]
      %v396 = vld [vmem:[%s255 + $0x378] sm:$0xff]
      %v397 = vld [vmem:[%s255 + $0x380] sm:$0xff]
      %v398 = vld [vmem:[%s255 + $0x388] sm:$0xff]
      %v399 = vld [vmem:[%s255 + $0x390] sm:$0xff]
      %v400 = vld [vmem:[%s255 + $0x398] sm:$0xff]
      %v401 = vld [vmem:[%s255 + $0x3a0] sm:$0xff]
      %v402 = vld [vmem:[%s255 + $0x3a8] sm:$0xff]
      %v403 = vld [vmem:[%s255 + $0x3b0] sm:$0xff]
      %v404 = vld [vmem:[%s255 + $0x3b8] sm:$0xff]
      %v405 = vld [vmem:[%s255 + $0x3c0] sm:$0xff]
      %v406 = vld [vmem:[%s255 + $0x3c8] sm:$0xff]
      %v407 = vld [vmem:[%s255 + $0x3d0] sm:$0xff]
      %v408 = vld [vmem:[%s255 + $0x3d8] sm:$0xff]
      %v409 = vld [vmem:[%s255 + $0x3e0] sm:$0xff]
      %v410 = vld [vmem:[%s255 + $0x3e8] sm:$0xff]
      %v411 = vld [vmem:[%s255 + $0x3f0] sm:$0xff]
      %v412 = vld [vmem:[%s255 + $0x3f8] sm:$0xff]
      %v413 = vld [vmem:[%s264] sm:$0xf]
      %v414 = vld [vmem:[%s264 + $0x4] sm:$0xf]
      %v415 = vld [vmem:[%s264 + $0x8] sm:$0xf]
      %v416 = vld [vmem:[%s264 + $0xc] sm:$0xf]
      %v417 = vld [vmem:[%s264 + $0x10] sm:$0xf]
      %v418 = vld [vmem:[%s264 + $0x14] sm:$0xf]
      %v419 = vld [vmem:[%s264 + $0x18] sm:$0xf]
      %v420 = vld [vmem:[%s264 + $0x1c] sm:$0xf]
      %v421 = vld [vmem:[%s264 + $0x20] sm:$0xf]
      %v422 = vld [vmem:[%s264 + $0x24] sm:$0xf]
      %v423 = vld [vmem:[%s264 + $0x28] sm:$0xf]
      %v424 = vld [vmem:[%s264 + $0x2c] sm:$0xf]
      %v425 = vld [vmem:[%s264 + $0x30] sm:$0xf]
      %v426 = vld [vmem:[%s264 + $0x34] sm:$0xf]
      %v427 = vld [vmem:[%s264 + $0x38] sm:$0xf]
      %v428 = vld [vmem:[%s264 + $0x3c] sm:$0xf]
      %v429 = vld [vmem:[%s264 + $0x40] sm:$0xf]
      %v430 = vld [vmem:[%s264 + $0x44] sm:$0xf]
      %v431 = vld [vmem:[%s264 + $0x48] sm:$0xf]
      %v432 = vld [vmem:[%s264 + $0x4c] sm:$0xf]
      %v433 = vld [vmem:[%s264 + $0x50] sm:$0xf]
      %v434 = vld [vmem:[%s264 + $0x54] sm:$0xf]
      %v435 = vld [vmem:[%s264 + $0x58] sm:$0xf]
      %v436 = vld [vmem:[%s264 + $0x5c] sm:$0xf]
      %v437 = vld [vmem:[%s264 + $0x60] sm:$0xf]
      %v438 = vld [vmem:[%s264 + $0x64] sm:$0xf]
      %v439 = vld [vmem:[%s264 + $0x68] sm:$0xf]
      %v440 = vld [vmem:[%s264 + $0x6c] sm:$0xf]
      %v441 = vld [vmem:[%s264 + $0x70] sm:$0xf]
      %v442 = vld [vmem:[%s264 + $0x74] sm:$0xf]
      %v443 = vld [vmem:[%s264 + $0x78] sm:$0xf]
      %v444 = vld [vmem:[%s264 + $0x7c] sm:$0xf]
      %v445 = vld [vmem:[%s264 + $0x80] sm:$0xf]
      %v446 = vld [vmem:[%s264 + $0x84] sm:$0xf]
      %v447 = vld [vmem:[%s264 + $0x88] sm:$0xf]
      %v448 = vld [vmem:[%s264 + $0x8c] sm:$0xf]
      %v449 = vld [vmem:[%s264 + $0x90] sm:$0xf]
      %v450 = vld [vmem:[%s264 + $0x94] sm:$0xf]
      %v451 = vld [vmem:[%s264 + $0x98] sm:$0xf]
      %v452 = vld [vmem:[%s264 + $0x9c] sm:$0xf]
      %v453 = vld [vmem:[%s264 + $0xa0] sm:$0xf]
      %v454 = vld [vmem:[%s264 + $0xa4] sm:$0xf]
      %v455 = vld [vmem:[%s264 + $0xa8] sm:$0xf]
      %v456 = vld [vmem:[%s264 + $0xac] sm:$0xf]
      %v457 = vld [vmem:[%s264 + $0xb0] sm:$0xf]
      %v458 = vld [vmem:[%s264 + $0xb4] sm:$0xf]
      %v459 = vld [vmem:[%s264 + $0xb8] sm:$0xf]
      %v460 = vld [vmem:[%s264 + $0xbc] sm:$0xf]
      %v461 = vld [vmem:[%s264 + $0xc0] sm:$0xf]
      %v462 = vld [vmem:[%s264 + $0xc4] sm:$0xf]
      %v463 = vld [vmem:[%s264 + $0xc8] sm:$0xf]
      %v464 = vld [vmem:[%s264 + $0xcc] sm:$0xf]
      %v465 = vld [vmem:[%s264 + $0xd0] sm:$0xf]
      %v466 = vld [vmem:[%s264 + $0xd4] sm:$0xf]
      %v467 = vld [vmem:[%s264 + $0xd8] sm:$0xf]
      %v468 = vld [vmem:[%s264 + $0xdc] sm:$0xf]
      %v469 = vld [vmem:[%s264 + $0xe0] sm:$0xf]
      %v470 = vld [vmem:[%s264 + $0xe4] sm:$0xf]
      %v471 = vld [vmem:[%s264 + $0xe8] sm:$0xf]
      %v472 = vld [vmem:[%s264 + $0xec] sm:$0xf]
      %v473 = vld [vmem:[%s264 + $0xf0] sm:$0xf]
      %v474 = vld [vmem:[%s264 + $0xf4] sm:$0xf]
      %v475 = vld [vmem:[%s264 + $0xf8] sm:$0xf]
      %v476 = vld [vmem:[%s264 + $0xfc] sm:$0xf]
      %v477 = vld [vmem:[%s270] sm:$0x1]
      %v479 = vlaneseq
      %v480 = vshrl.u32 %v479, 7
      %v481 = vsub.s32 0, %v480
      %v482 = vrot.slane %v477, %v481
      %v612 = vunpack.c.l.b16 %v285
      %v613 = vunpack.c.h.b16 %v285
      %v614 = vunpack.c.l.b16 %v286
      %v615 = vunpack.c.h.b16 %v286
      %v616 = vunpack.c.l.b16 %v287
      %v617 = vunpack.c.h.b16 %v287
      %v618 = vunpack.c.l.b16 %v288
      %v619 = vunpack.c.h.b16 %v288
      %v620 = vunpack.c.l.b16 %v289
      %v621 = vunpack.c.h.b16 %v289
      %v622 = vunpack.c.l.b16 %v290
      %v623 = vunpack.c.h.b16 %v290
      %v624 = vunpack.c.l.b16 %v291
      %v625 = vunpack.c.h.b16 %v291
      %v626 = vunpack.c.l.b16 %v292
      %v627 = vunpack.c.h.b16 %v292
      %v628 = vunpack.c.l.b16 %v293
      %v629 = vunpack.c.h.b16 %v293
      %v630 = vunpack.c.l.b16 %v294
      %v631 = vunpack.c.h.b16 %v294
      %v632 = vunpack.c.l.b16 %v295
      %v633 = vunpack.c.h.b16 %v295
      %v634 = vunpack.c.l.b16 %v296
      %v635 = vunpack.c.h.b16 %v296
      %v636 = vunpack.c.l.b16 %v297
      %v637 = vunpack.c.h.b16 %v297
      %v638 = vunpack.c.l.b16 %v298
      %v639 = vunpack.c.h.b16 %v298
      %v640 = vunpack.c.l.b16 %v299
      %v641 = vunpack.c.h.b16 %v299
      %v642 = vunpack.c.l.b16 %v300
      %v643 = vunpack.c.h.b16 %v300
      %v644 = vunpack.c.l.b16 %v301
      %v645 = vunpack.c.h.b16 %v301
      %v646 = vunpack.c.l.b16 %v302
      %v647 = vunpack.c.h.b16 %v302
      %v648 = vunpack.c.l.b16 %v303
      %v649 = vunpack.c.h.b16 %v303
      %v650 = vunpack.c.l.b16 %v304
      %v651 = vunpack.c.h.b16 %v304
      %v652 = vunpack.c.l.b16 %v305
      %v653 = vunpack.c.h.b16 %v305
      %v654 = vunpack.c.l.b16 %v306
      %v655 = vunpack.c.h.b16 %v306
      %v656 = vunpack.c.l.b16 %v307
      %v657 = vunpack.c.h.b16 %v307
      %v658 = vunpack.c.l.b16 %v308
      %v659 = vunpack.c.h.b16 %v308
      %v660 = vunpack.c.l.b16 %v309
      %v661 = vunpack.c.h.b16 %v309
      %v662 = vunpack.c.l.b16 %v310
      %v663 = vunpack.c.h.b16 %v310
      %v664 = vunpack.c.l.b16 %v311
      %v665 = vunpack.c.h.b16 %v311
      %v666 = vunpack.c.l.b16 %v312
      %v667 = vunpack.c.h.b16 %v312
      %v668 = vunpack.c.l.b16 %v313
      %v669 = vunpack.c.h.b16 %v313
      %v670 = vunpack.c.l.b16 %v314
      %v671 = vunpack.c.h.b16 %v314
      %v672 = vunpack.c.l.b16 %v315
      %v673 = vunpack.c.h.b16 %v315
      %v674 = vunpack.c.l.b16 %v316
      %v675 = vunpack.c.h.b16 %v316
      %v676 = vunpack.c.l.b16 %v317
      %v677 = vunpack.c.h.b16 %v317
      %v678 = vunpack.c.l.b16 %v318
      %v679 = vunpack.c.h.b16 %v318
      %v680 = vunpack.c.l.b16 %v319
      %v681 = vunpack.c.h.b16 %v319
      %v682 = vunpack.c.l.b16 %v320
      %v683 = vunpack.c.h.b16 %v320
      %v684 = vunpack.c.l.b16 %v321
      %v685 = vunpack.c.h.b16 %v321
      %v686 = vunpack.c.l.b16 %v322
      %v687 = vunpack.c.h.b16 %v322
      %v688 = vunpack.c.l.b16 %v323
      %v689 = vunpack.c.h.b16 %v323
      %v690 = vunpack.c.l.b16 %v324
      %v691 = vunpack.c.h.b16 %v324
      %v692 = vunpack.c.l.b16 %v325
      %v693 = vunpack.c.h.b16 %v325
      %v694 = vunpack.c.l.b16 %v326
      %v695 = vunpack.c.h.b16 %v326
      %v696 = vunpack.c.l.b16 %v327
      %v697 = vunpack.c.h.b16 %v327
      %v698 = vunpack.c.l.b16 %v328
      %v699 = vunpack.c.h.b16 %v328
      %v700 = vunpack.c.l.b16 %v329
      %v701 = vunpack.c.h.b16 %v329
      %v702 = vunpack.c.l.b16 %v330
      %v703 = vunpack.c.h.b16 %v330
      %v704 = vunpack.c.l.b16 %v331
      %v705 = vunpack.c.h.b16 %v331
      %v706 = vunpack.c.l.b16 %v332
      %v707 = vunpack.c.h.b16 %v332
      %v708 = vunpack.c.l.b16 %v333
      %v709 = vunpack.c.h.b16 %v333
      %v710 = vunpack.c.l.b16 %v334
      %v711 = vunpack.c.h.b16 %v334
      %v712 = vunpack.c.l.b16 %v335
      %v713 = vunpack.c.h.b16 %v335
      %v714 = vunpack.c.l.b16 %v336
      %v715 = vunpack.c.h.b16 %v336
      %v716 = vunpack.c.l.b16 %v337
      %v717 = vunpack.c.h.b16 %v337
      %v718 = vunpack.c.l.b16 %v338
      %v719 = vunpack.c.h.b16 %v338
      %v720 = vunpack.c.l.b16 %v339
      %v721 = vunpack.c.h.b16 %v339
      %v722 = vunpack.c.l.b16 %v340
      %v723 = vunpack.c.h.b16 %v340
      %v724 = vunpack.c.l.b16 %v341
      %v725 = vunpack.c.h.b16 %v341
      %v726 = vunpack.c.l.b16 %v342
      %v727 = vunpack.c.h.b16 %v342
      %v728 = vunpack.c.l.b16 %v343
      %v729 = vunpack.c.h.b16 %v343
      %v730 = vunpack.c.l.b16 %v344
      %v731 = vunpack.c.h.b16 %v344
      %v732 = vunpack.c.l.b16 %v345
      %v733 = vunpack.c.h.b16 %v345
      %v734 = vunpack.c.l.b16 %v346
      %v735 = vunpack.c.h.b16 %v346
      %v736 = vunpack.c.l.b16 %v347
      %v737 = vunpack.c.h.b16 %v347
      %v738 = vunpack.c.l.b16 %v348
      %v739 = vunpack.c.h.b16 %v348
      %v740 = vunpack.c.l.b16 %v349
      %v741 = vunpack.c.h.b16 %v349
      %v742 = vunpack.c.l.b16 %v350
      %v743 = vunpack.c.h.b16 %v350
      %v744 = vunpack.c.l.b16 %v351
      %v745 = vunpack.c.h.b16 %v351
      %v746 = vunpack.c.l.b16 %v352
      %v747 = vunpack.c.h.b16 %v352
      %v748 = vunpack.c.l.b16 %v353
      %v749 = vunpack.c.h.b16 %v353
      %v750 = vunpack.c.l.b16 %v354
      %v751 = vunpack.c.h.b16 %v354
      %v752 = vunpack.c.l.b16 %v355
      %v753 = vunpack.c.h.b16 %v355
      %v754 = vunpack.c.l.b16 %v356
      %v755 = vunpack.c.h.b16 %v356
      %v756 = vunpack.c.l.b16 %v357
      %v757 = vunpack.c.h.b16 %v357
      %v758 = vunpack.c.l.b16 %v358
      %v759 = vunpack.c.h.b16 %v358
      %v760 = vunpack.c.l.b16 %v359
      %v761 = vunpack.c.h.b16 %v359
      %v762 = vunpack.c.l.b16 %v360
      %v763 = vunpack.c.h.b16 %v360
      %v764 = vunpack.c.l.b16 %v361
      %v765 = vunpack.c.h.b16 %v361
      %v766 = vunpack.c.l.b16 %v362
      %v767 = vunpack.c.h.b16 %v362
      %v768 = vunpack.c.l.b16 %v363
      %v769 = vunpack.c.h.b16 %v363
      %v770 = vunpack.c.l.b16 %v364
      %v771 = vunpack.c.h.b16 %v364
      %v772 = vunpack.c.l.b16 %v365
      %v773 = vunpack.c.h.b16 %v365
      %v774 = vunpack.c.l.b16 %v366
      %v775 = vunpack.c.h.b16 %v366
      %v776 = vunpack.c.l.b16 %v367
      %v777 = vunpack.c.h.b16 %v367
      %v778 = vunpack.c.l.b16 %v368
      %v779 = vunpack.c.h.b16 %v368
      %v780 = vunpack.c.l.b16 %v369
      %v781 = vunpack.c.h.b16 %v369
      %v782 = vunpack.c.l.b16 %v370
      %v783 = vunpack.c.h.b16 %v370
      %v784 = vunpack.c.l.b16 %v371
      %v785 = vunpack.c.h.b16 %v371
      %v786 = vunpack.c.l.b16 %v372
      %v787 = vunpack.c.h.b16 %v372
      %v788 = vunpack.c.l.b16 %v373
      %v789 = vunpack.c.h.b16 %v373
      %v790 = vunpack.c.l.b16 %v374
      %v791 = vunpack.c.h.b16 %v374
      %v792 = vunpack.c.l.b16 %v375
      %v793 = vunpack.c.h.b16 %v375
      %v794 = vunpack.c.l.b16 %v376
      %v795 = vunpack.c.h.b16 %v376
      %v796 = vunpack.c.l.b16 %v377
      %v797 = vunpack.c.h.b16 %v377
      %v798 = vunpack.c.l.b16 %v378
      %v799 = vunpack.c.h.b16 %v378
      %v800 = vunpack.c.l.b16 %v379
      %v801 = vunpack.c.h.b16 %v379
      %v802 = vunpack.c.l.b16 %v380
      %v803 = vunpack.c.h.b16 %v380
      %v804 = vunpack.c.l.b16 %v381
      %v805 = vunpack.c.h.b16 %v381
      %v806 = vunpack.c.l.b16 %v382
      %v807 = vunpack.c.h.b16 %v382
      %v808 = vunpack.c.l.b16 %v383
      %v809 = vunpack.c.h.b16 %v383
      %v810 = vunpack.c.l.b16 %v384
      %v811 = vunpack.c.h.b16 %v384
      %v812 = vunpack.c.l.b16 %v385
      %v813 = vunpack.c.h.b16 %v385
      %v814 = vunpack.c.l.b16 %v386
      %v815 = vunpack.c.h.b16 %v386
      %v816 = vunpack.c.l.b16 %v387
      %v817 = vunpack.c.h.b16 %v387
      %v818 = vunpack.c.l.b16 %v388
      %v819 = vunpack.c.h.b16 %v388
      %v820 = vunpack.c.l.b16 %v389
      %v821 = vunpack.c.h.b16 %v389
      %v822 = vunpack.c.l.b16 %v390
      %v823 = vunpack.c.h.b16 %v390
      %v824 = vunpack.c.l.b16 %v391
      %v825 = vunpack.c.h.b16 %v391
      %v826 = vunpack.c.l.b16 %v392
      %v827 = vunpack.c.h.b16 %v392
      %v828 = vunpack.c.l.b16 %v393
      %v829 = vunpack.c.h.b16 %v393
      %v830 = vunpack.c.l.b16 %v394
      %v831 = vunpack.c.h.b16 %v394
      %v832 = vunpack.c.l.b16 %v395
      %v833 = vunpack.c.h.b16 %v395
      %v834 = vunpack.c.l.b16 %v396
      %v835 = vunpack.c.h.b16 %v396
      %v836 = vunpack.c.l.b16 %v397
      %v837 = vunpack.c.h.b16 %v397
      %v838 = vunpack.c.l.b16 %v398
      %v839 = vunpack.c.h.b16 %v398
      %v840 = vunpack.c.l.b16 %v399
      %v841 = vunpack.c.h.b16 %v399
      %v842 = vunpack.c.l.b16 %v400
      %v843 = vunpack.c.h.b16 %v400
      %v844 = vunpack.c.l.b16 %v401
      %v845 = vunpack.c.h.b16 %v401
      %v846 = vunpack.c.l.b16 %v402
      %v847 = vunpack.c.h.b16 %v402
      %v848 = vunpack.c.l.b16 %v403
      %v849 = vunpack.c.h.b16 %v403
      %v850 = vunpack.c.l.b16 %v404
      %v851 = vunpack.c.h.b16 %v404
      %v852 = vunpack.c.l.b16 %v405
      %v853 = vunpack.c.h.b16 %v405
      %v854 = vunpack.c.l.b16 %v406
      %v855 = vunpack.c.h.b16 %v406
      %v856 = vunpack.c.l.b16 %v407
      %v857 = vunpack.c.h.b16 %v407
      %v858 = vunpack.c.l.b16 %v408
      %v859 = vunpack.c.h.b16 %v408
      %v860 = vunpack.c.l.b16 %v409
      %v861 = vunpack.c.h.b16 %v409
      %v862 = vunpack.c.l.b16 %v410
      %v863 = vunpack.c.h.b16 %v410
      %v864 = vunpack.c.l.b16 %v411
      %v865 = vunpack.c.h.b16 %v411
      %v866 = vunpack.c.l.b16 %v412
      %v867 = vunpack.c.h.b16 %v412
      %v868 = vpack.c.b16 %v616, %v612
      %v869 = vpack.c.b16 %v617, %v613
      %v870 = vpack.c.b16 %v618, %v614
      %v871 = vpack.c.b16 %v619, %v615
      %v872 = vpack.c.b16 %v624, %v620
      %v873 = vpack.c.b16 %v625, %v621
      %v874 = vpack.c.b16 %v626, %v622
      %v875 = vpack.c.b16 %v627, %v623
      %v876 = vpack.c.b16 %v632, %v628
      %v877 = vpack.c.b16 %v633, %v629
      %v878 = vpack.c.b16 %v634, %v630
      %v879 = vpack.c.b16 %v635, %v631
      %v880 = vpack.c.b16 %v640, %v636
      %v881 = vpack.c.b16 %v641, %v637
      %v882 = vpack.c.b16 %v642, %v638
      %v883 = vpack.c.b16 %v643, %v639
      %v884 = vpack.c.b16 %v648, %v644
      %v885 = vpack.c.b16 %v649, %v645
      %v886 = vpack.c.b16 %v650, %v646
      %v887 = vpack.c.b16 %v651, %v647
      %v888 = vpack.c.b16 %v656, %v652
      %v889 = vpack.c.b16 %v657, %v653
      %v890 = vpack.c.b16 %v658, %v654
      %v891 = vpack.c.b16 %v659, %v655
      %v892 = vpack.c.b16 %v664, %v660
      %v893 = vpack.c.b16 %v665, %v661
      %v894 = vpack.c.b16 %v666, %v662
      %v895 = vpack.c.b16 %v667, %v663
      %v896 = vpack.c.b16 %v672, %v668
      %v897 = vpack.c.b16 %v673, %v669
      %v898 = vpack.c.b16 %v674, %v670
      %v899 = vpack.c.b16 %v675, %v671
      %v900 = vpack.c.b16 %v680, %v676
      %v901 = vpack.c.b16 %v681, %v677
      %v902 = vpack.c.b16 %v682, %v678
      %v903 = vpack.c.b16 %v683, %v679
      %v904 = vpack.c.b16 %v688, %v684
      %v905 = vpack.c.b16 %v689, %v685
      %v906 = vpack.c.b16 %v690, %v686
      %v907 = vpack.c.b16 %v691, %v687
      %v908 = vpack.c.b16 %v696, %v692
      %v909 = vpack.c.b16 %v697, %v693
      %v910 = vpack.c.b16 %v698, %v694
      %v911 = vpack.c.b16 %v699, %v695
      %v912 = vpack.c.b16 %v704, %v700
      %v913 = vpack.c.b16 %v705, %v701
      %v914 = vpack.c.b16 %v706, %v702
      %v915 = vpack.c.b16 %v707, %v703
      %v916 = vpack.c.b16 %v712, %v708
      %v917 = vpack.c.b16 %v713, %v709
      %v918 = vpack.c.b16 %v714, %v710
      %v919 = vpack.c.b16 %v715, %v711
      %v920 = vpack.c.b16 %v720, %v716
      %v921 = vpack.c.b16 %v721, %v717
      %v922 = vpack.c.b16 %v722, %v718
      %v923 = vpack.c.b16 %v723, %v719
      %v924 = vpack.c.b16 %v728, %v724
      %v925 = vpack.c.b16 %v729, %v725
      %v926 = vpack.c.b16 %v730, %v726
      %v927 = vpack.c.b16 %v731, %v727
      %v928 = vpack.c.b16 %v736, %v732
      %v929 = vpack.c.b16 %v737, %v733
      %v930 = vpack.c.b16 %v738, %v734
      %v931 = vpack.c.b16 %v739, %v735
      %v932 = vpack.c.b16 %v744, %v740
      %v933 = vpack.c.b16 %v745, %v741
      %v934 = vpack.c.b16 %v746, %v742
      %v935 = vpack.c.b16 %v747, %v743
      %v936 = vpack.c.b16 %v752, %v748
      %v937 = vpack.c.b16 %v753, %v749
      %v938 = vpack.c.b16 %v754, %v750
      %v939 = vpack.c.b16 %v755, %v751
      %v940 = vpack.c.b16 %v760, %v756
      %v941 = vpack.c.b16 %v761, %v757
      %v942 = vpack.c.b16 %v762, %v758
      %v943 = vpack.c.b16 %v763, %v759
      %v944 = vpack.c.b16 %v768, %v764
      %v945 = vpack.c.b16 %v769, %v765
      %v946 = vpack.c.b16 %v770, %v766
      %v947 = vpack.c.b16 %v771, %v767
      %v948 = vpack.c.b16 %v776, %v772
      %v949 = vpack.c.b16 %v777, %v773
      %v950 = vpack.c.b16 %v778, %v774
      %v951 = vpack.c.b16 %v779, %v775
      %v952 = vpack.c.b16 %v784, %v780
      %v953 = vpack.c.b16 %v785, %v781
      %v954 = vpack.c.b16 %v786, %v782
      %v955 = vpack.c.b16 %v787, %v783
      %v956 = vpack.c.b16 %v792, %v788
      %v957 = vpack.c.b16 %v793, %v789
      %v958 = vpack.c.b16 %v794, %v790
      %v959 = vpack.c.b16 %v795, %v791
      %v960 = vpack.c.b16 %v800, %v796
      %v961 = vpack.c.b16 %v801, %v797
      %v962 = vpack.c.b16 %v802, %v798
      %v963 = vpack.c.b16 %v803, %v799
      %v964 = vpack.c.b16 %v808, %v804
      %v965 = vpack.c.b16 %v809, %v805
      %v966 = vpack.c.b16 %v810, %v806
      %v967 = vpack.c.b16 %v811, %v807
      %v968 = vpack.c.b16 %v816, %v812
      %v969 = vpack.c.b16 %v817, %v813
      %v970 = vpack.c.b16 %v818, %v814
      %v971 = vpack.c.b16 %v819, %v815
      %v972 = vpack.c.b16 %v824, %v820
      %v973 = vpack.c.b16 %v825, %v821
      %v974 = vpack.c.b16 %v826, %v822
      %v975 = vpack.c.b16 %v827, %v823
      %v976 = vpack.c.b16 %v832, %v828
      %v977 = vpack.c.b16 %v833, %v829
      %v978 = vpack.c.b16 %v834, %v830
      %v979 = vpack.c.b16 %v835, %v831
      %v980 = vpack.c.b16 %v840, %v836
      %v981 = vpack.c.b16 %v841, %v837
      %v982 = vpack.c.b16 %v842, %v838
      %v983 = vpack.c.b16 %v843, %v839
      %v984 = vpack.c.b16 %v848, %v844
      %v985 = vpack.c.b16 %v849, %v845
      %v986 = vpack.c.b16 %v850, %v846
      %v987 = vpack.c.b16 %v851, %v847
      %v988 = vpack.c.b16 %v856, %v852
      %v989 = vpack.c.b16 %v857, %v853
      %v990 = vpack.c.b16 %v858, %v854
      %v991 = vpack.c.b16 %v859, %v855
      %v992 = vpack.c.b16 %v864, %v860
      %v993 = vpack.c.b16 %v865, %v861
      %v994 = vpack.c.b16 %v866, %v862
      %v995 = vpack.c.b16 %v867, %v863
      %v1188 = vunpack.c.l.b16 %v413
      %v1189 = vunpack.c.l.b16 %v414
      %v1190 = vunpack.c.l.b16 %v415
      %v1191 = vunpack.c.l.b16 %v416
      %v1192 = vunpack.c.l.b16 %v417
      %v1193 = vunpack.c.l.b16 %v418
      %v1194 = vunpack.c.l.b16 %v419
      %v1195 = vunpack.c.l.b16 %v420
      %v1196 = vunpack.c.l.b16 %v421
      %v1197 = vunpack.c.l.b16 %v422
      %v1198 = vunpack.c.l.b16 %v423
      %v1199 = vunpack.c.l.b16 %v424
      %v1200 = vunpack.c.l.b16 %v425
      %v1201 = vunpack.c.l.b16 %v426
      %v1202 = vunpack.c.l.b16 %v427
      %v1203 = vunpack.c.l.b16 %v428
      %v1204 = vunpack.c.l.b16 %v429
      %v1205 = vunpack.c.l.b16 %v430
      %v1206 = vunpack.c.l.b16 %v431
      %v1207 = vunpack.c.l.b16 %v432
      %v1208 = vunpack.c.l.b16 %v433
      %v1209 = vunpack.c.l.b16 %v434
      %v1210 = vunpack.c.l.b16 %v435
      %v1211 = vunpack.c.l.b16 %v436
      %v1212 = vunpack.c.l.b16 %v437
      %v1213 = vunpack.c.l.b16 %v438
      %v1214 = vunpack.c.l.b16 %v439
      %v1215 = vunpack.c.l.b16 %v440
      %v1216 = vunpack.c.l.b16 %v441
      %v1217 = vunpack.c.l.b16 %v442
      %v1218 = vunpack.c.l.b16 %v443
      %v1219 = vunpack.c.l.b16 %v444
      %v1220 = vunpack.c.l.b16 %v445
      %v1221 = vunpack.c.l.b16 %v446
      %v1222 = vunpack.c.l.b16 %v447
      %v1223 = vunpack.c.l.b16 %v448
      %v1224 = vunpack.c.l.b16 %v449
      %v1225 = vunpack.c.l.b16 %v450
      %v1226 = vunpack.c.l.b16 %v451
      %v1227 = vunpack.c.l.b16 %v452
      %v1228 = vunpack.c.l.b16 %v453
      %v1229 = vunpack.c.l.b16 %v454
      %v1230 = vunpack.c.l.b16 %v455
      %v1231 = vunpack.c.l.b16 %v456
      %v1232 = vunpack.c.l.b16 %v457
      %v1233 = vunpack.c.l.b16 %v458
      %v1234 = vunpack.c.l.b16 %v459
      %v1235 = vunpack.c.l.b16 %v460
      %v1236 = vunpack.c.l.b16 %v461
      %v1237 = vunpack.c.l.b16 %v462
      %v1238 = vunpack.c.l.b16 %v463
      %v1239 = vunpack.c.l.b16 %v464
      %v1240 = vunpack.c.l.b16 %v465
      %v1241 = vunpack.c.l.b16 %v466
      %v1242 = vunpack.c.l.b16 %v467
      %v1243 = vunpack.c.l.b16 %v468
      %v1244 = vunpack.c.l.b16 %v469
      %v1245 = vunpack.c.l.b16 %v470
      %v1246 = vunpack.c.l.b16 %v471
      %v1247 = vunpack.c.l.b16 %v472
      %v1248 = vunpack.c.l.b16 %v473
      %v1249 = vunpack.c.l.b16 %v474
      %v1250 = vunpack.c.l.b16 %v475
      %v1251 = vunpack.c.l.b16 %v476
      %v1252 = vpack.c.b16 %v1189, %v1188
      %v1253 = vpack.c.b16 %v1191, %v1190
      %v1254 = vpack.c.b16 %v1193, %v1192
      %v1255 = vpack.c.b16 %v1195, %v1194
      %v1256 = vpack.c.b16 %v1197, %v1196
      %v1257 = vpack.c.b16 %v1199, %v1198
      %v1258 = vpack.c.b16 %v1201, %v1200
      %v1259 = vpack.c.b16 %v1203, %v1202
      %v1260 = vpack.c.b16 %v1205, %v1204
      %v1261 = vpack.c.b16 %v1207, %v1206
      %v1262 = vpack.c.b16 %v1209, %v1208
      %v1263 = vpack.c.b16 %v1211, %v1210
      %v1264 = vpack.c.b16 %v1213, %v1212
      %v1265 = vpack.c.b16 %v1215, %v1214
      %v1266 = vpack.c.b16 %v1217, %v1216
      %v1267 = vpack.c.b16 %v1219, %v1218
      %v1268 = vpack.c.b16 %v1221, %v1220
      %v1269 = vpack.c.b16 %v1223, %v1222
      %v1270 = vpack.c.b16 %v1225, %v1224
      %v1271 = vpack.c.b16 %v1227, %v1226
      %v1272 = vpack.c.b16 %v1229, %v1228
      %v1273 = vpack.c.b16 %v1231, %v1230
      %v1274 = vpack.c.b16 %v1233, %v1232
      %v1275 = vpack.c.b16 %v1235, %v1234
      %v1276 = vpack.c.b16 %v1237, %v1236
      %v1277 = vpack.c.b16 %v1239, %v1238
      %v1278 = vpack.c.b16 %v1241, %v1240
      %v1279 = vpack.c.b16 %v1243, %v1242
      %v1280 = vpack.c.b16 %v1245, %v1244
      %v1281 = vpack.c.b16 %v1247, %v1246
      %v1282 = vpack.c.b16 %v1249, %v1248
      %v1283 = vpack.c.b16 %v1251, %v1250
      %1316 = vmatprep.subr.bf16.mxu0 0
      %1317 = vmatpush1.bf16.msra.mxu0 %v1252
      %1318 = vmatprep.subr.bf16.mxu0 0
      %1319 = vmatpush1.bf16.msra.mxu0 %v1253
      %1320 = vmatprep.subr.bf16.mxu0 0
      %1321 = vmatpush1.bf16.msra.mxu0 %v1254
      %1322 = vmatprep.subr.bf16.mxu0 0
      %1323 = vmatpush1.bf16.msra.mxu0 %v1255
      %1324 = vmatprep.subr.bf16.mxu0 0
      %1325 = vmatpush1.bf16.msra.mxu0 %v1256
      %1326 = vmatprep.subr.bf16.mxu0 0
      %1327 = vmatpush1.bf16.msra.mxu0 %v1257
      %1328 = vmatprep.subr.bf16.mxu0 0
      %1329 = vmatpush1.bf16.msra.mxu0 %v1258
      %1330 = vmatprep.subr.bf16.mxu0 0
      %1331 = vmatpush1.bf16.msra.mxu0 %v1259
      %1332 = vmatprep.subr.bf16.mxu0 0
      %1333 = vmatpush1.bf16.msra.mxu0 %v1260
      %1334 = vmatprep.subr.bf16.mxu0 0
      %1335 = vmatpush1.bf16.msra.mxu0 %v1261
      %1336 = vmatprep.subr.bf16.mxu0 0
      %1337 = vmatpush1.bf16.msra.mxu0 %v1262
      %1338 = vmatprep.subr.bf16.mxu0 0
      %1339 = vmatpush1.bf16.msra.mxu0 %v1263
      %1340 = vmatprep.subr.bf16.mxu0 0
      %1341 = vmatpush1.bf16.msra.mxu0 %v1264
      %1342 = vmatprep.subr.bf16.mxu0 0
      %1343 = vmatpush1.bf16.msra.mxu0 %v1265
      %1344 = vmatprep.subr.bf16.mxu0 0
      %1345 = vmatpush1.bf16.msra.mxu0 %v1266
      %1346 = vmatprep.subr.bf16.mxu0 0
      %1347 = vmatpush1.bf16.msra.mxu0 %v1267
      %1348 = vmatprep.mubr.bf16.mxu0 %v869
      %1349 = vmatmul.mubr.bf16.gmra.mrb[0].mxu0 %v868
      %v1350 = vpop.f32.mrb[0].mxu0
      %v1351 = vadd.f32 %v482, %v1350
      %v1352 = vpop.f32.mrb[0].mxu0
      %v1353 = vpop.f32.mrb[0].mxu0
      %v1354 = vadd.f32 %v482, %v1353
      %v1355 = vpop.f32.mrb[0].mxu0
      %1356 = vmatprep.mubr.bf16.mxu0 %v873
      %1357 = vmatmul.mubr.bf16.gmra.mrb[0].mxu0 %v872
      %v1358 = vpop.f32.mrb[0].mxu0
      %v1359 = vadd.f32 %v482, %v1358
      %v1360 = vpop.f32.mrb[0].mxu0
      %v1361 = vpop.f32.mrb[0].mxu0
      %v1362 = vadd.f32 %v482, %v1361
      %v1363 = vpop.f32.mrb[0].mxu0
      %1364 = vmatprep.mubr.bf16.mxu0 %v877
      %1365 = vmatmul.mubr.bf16.gmra.mrb[0].mxu0 %v876
      %v1366 = vpop.f32.mrb[0].mxu0
      %v1367 = vadd.f32 %v482, %v1366
      %v1368 = vpop.f32.mrb[0].mxu0
      %v1369 = vpop.f32.mrb[0].mxu0
      %v1370 = vadd.f32 %v482, %v1369
      %v1371 = vpop.f32.mrb[0].mxu0
      %1372 = vmatprep.mubr.bf16.mxu0 %v881
      %1373 = vmatmul.mubr.bf16.gmra.mrb[0].mxu0 %v880
      %v1374 = vpop.f32.mrb[0].mxu0
      %v1375 = vadd.f32 %v482, %v1374
      %v1376 = vpop.f32.mrb[0].mxu0
      %v1377 = vpop.f32.mrb[0].mxu0
      %v1378 = vadd.f32 %v482, %v1377
      %v1379 = vpop.f32.mrb[0].mxu0
      %1380 = vmatprep.mubr.bf16.mxu0 %v885
      %1381 = vmatmul.mubr.bf16.gmra.mrb[0].mxu0 %v884
      %v1382 = vpop.f32.mrb[0].mxu0
      %v1383 = vadd.f32 %v482, %v1382
      %v1384 = vpop.f32.mrb[0].mxu0
      %v1385 = vpop.f32.mrb[0].mxu0
      %v1386 = vadd.f32 %v482, %v1385
      %v1387 = vpop.f32.mrb[0].mxu0
      %1388 = vmatprep.mubr.bf16.mxu0 %v889
      %1389 = vmatmul.mubr.bf16.gmra.mrb[0].mxu0 %v888
      %v1390 = vpop.f32.mrb[0].mxu0
      %v1391 = vadd.f32 %v482, %v1390
      %v1392 = vpop.f32.mrb[0].mxu0
      %v1393 = vpop.f32.mrb[0].mxu0
      %v1394 = vadd.f32 %v482, %v1393
      %v1395 = vpop.f32.mrb[0].mxu0
      %1396 = vmatprep.mubr.bf16.mxu0 %v893
      %1397 = vmatmul.mubr.bf16.gmra.mrb[0].mxu0 %v892
      %v1398 = vpop.f32.mrb[0].mxu0
      %v1399 = vadd.f32 %v482, %v1398
      %v1400 = vpop.f32.mrb[0].mxu0
      %v1401 = vpop.f32.mrb[0].mxu0
      %v1402 = vadd.f32 %v482, %v1401
      %v1403 = vpop.f32.mrb[0].mxu0
      %1404 = vmatprep.mubr.bf16.mxu0 %v897
      %1405 = vmatmul.mubr.bf16.gmra.mrb[0].mxu0 %v896
      %v1406 = vpop.f32.mrb[0].mxu0
      %v1407 = vadd.f32 %v482, %v1406
      %v1408 = vpop.f32.mrb[0].mxu0
      %v1409 = vpop.f32.mrb[0].mxu0
      %v1410 = vadd.f32 %v482, %v1409
      %v1411 = vpop.f32.mrb[0].mxu0
      %1412 = vmatprep.mubr.bf16.mxu0 %v901
      %1413 = vmatmul.mubr.bf16.gmra.mrb[0].mxu0 %v900
      %v1414 = vpop.f32.mrb[0].mxu0
      %v1415 = vadd.f32 %v482, %v1414
      %v1416 = vpop.f32.mrb[0].mxu0
      %v1417 = vpop.f32.mrb[0].mxu0
      %v1418 = vadd.f32 %v482, %v1417
      %v1419 = vpop.f32.mrb[0].mxu0
      %1420 = vmatprep.mubr.bf16.mxu0 %v905
      %1421 = vmatmul.mubr.bf16.gmra.mrb[0].mxu0 %v904
      %v1422 = vpop.f32.mrb[0].mxu0
      %v1423 = vadd.f32 %v482, %v1422
      %v1424 = vpop.f32.mrb[0].mxu0
      %v1425 = vpop.f32.mrb[0].mxu0
      %v1426 = vadd.f32 %v482, %v1425
      %v1427 = vpop.f32.mrb[0].mxu0
      %1428 = vmatprep.mubr.bf16.mxu0 %v909
      %1429 = vmatmul.mubr.bf16.gmra.mrb[0].mxu0 %v908
      %v1430 = vpop.f32.mrb[0].mxu0
      %v1431 = vadd.f32 %v482, %v1430
      %v1432 = vpop.f32.mrb[0].mxu0
      %v1433 = vpop.f32.mrb[0].mxu0
      %v1434 = vadd.f32 %v482, %v1433
      %v1435 = vpop.f32.mrb[0].mxu0
      %1436 = vmatprep.mubr.bf16.mxu0 %v913
      %1437 = vmatmul.mubr.bf16.gmra.mrb[0].mxu0 %v912
      %v1438 = vpop.f32.mrb[0].mxu0
      %v1439 = vadd.f32 %v482, %v1438
      %v1440 = vpop.f32.mrb[0].mxu0
      %v1441 = vpop.f32.mrb[0].mxu0
      %v1442 = vadd.f32 %v482, %v1441
      %v1443 = vpop.f32.mrb[0].mxu0
      %1444 = vmatprep.mubr.bf16.mxu0 %v917
      %1445 = vmatmul.mubr.bf16.gmra.mrb[0].mxu0 %v916
      %v1446 = vpop.f32.mrb[0].mxu0
      %v1447 = vadd.f32 %v482, %v1446
      %v1448 = vpop.f32.mrb[0].mxu0
      %v1449 = vpop.f32.mrb[0].mxu0
      %v1450 = vadd.f32 %v482, %v1449
      %v1451 = vpop.f32.mrb[0].mxu0
      %1452 = vmatprep.mubr.bf16.mxu0 %v921
      %1453 = vmatmul.mubr.bf16.gmra.mrb[0].mxu0 %v920
      %v1454 = vpop.f32.mrb[0].mxu0
      %v1455 = vadd.f32 %v482, %v1454
      %v1456 = vpop.f32.mrb[0].mxu0
      %v1457 = vpop.f32.mrb[0].mxu0
      %v1458 = vadd.f32 %v482, %v1457
      %v1459 = vpop.f32.mrb[0].mxu0
      %1460 = vmatprep.mubr.bf16.mxu0 %v925
      %1461 = vmatmul.mubr.bf16.gmra.mrb[0].mxu0 %v924
      %v1462 = vpop.f32.mrb[0].mxu0
      %v1463 = vadd.f32 %v482, %v1462
      %v1464 = vpop.f32.mrb[0].mxu0
      %v1465 = vpop.f32.mrb[0].mxu0
      %v1466 = vadd.f32 %v482, %v1465
      %v1467 = vpop.f32.mrb[0].mxu0
      %1468 = vmatprep.mubr.bf16.mxu0 %v929
      %1469 = vmatmul.mubr.bf16.gmra.mrb[0].mxu0 %v928
      %v1470 = vpop.f32.mrb[0].mxu0
      %v1471 = vadd.f32 %v482, %v1470
      %v1472 = vpop.f32.mrb[0].mxu0
      %v1473 = vpop.f32.mrb[0].mxu0
      %v1474 = vadd.f32 %v482, %v1473
      %v1475 = vpop.f32.mrb[0].mxu0
      %1476 = vmatprep.mubr.bf16.mxu0 %v933
      %1477 = vmatmul.mubr.bf16.gmra.mrb[0].mxu0 %v932
      %v1478 = vpop.f32.mrb[0].mxu0
      %v1479 = vadd.f32 %v482, %v1478
      %v1480 = vpop.f32.mrb[0].mxu0
      %v1481 = vpop.f32.mrb[0].mxu0
      %v1482 = vadd.f32 %v482, %v1481
      %v1483 = vpop.f32.mrb[0].mxu0
      %1484 = vmatprep.mubr.bf16.mxu0 %v937
      %1485 = vmatmul.mubr.bf16.gmra.mrb[0].mxu0 %v936
      %v1486 = vpop.f32.mrb[0].mxu0
      %v1487 = vadd.f32 %v482, %v1486
      %v1488 = vpop.f32.mrb[0].mxu0
      %v1489 = vpop.f32.mrb[0].mxu0
      %v1490 = vadd.f32 %v482, %v1489
      %v1491 = vpop.f32.mrb[0].mxu0
      %1492 = vmatprep.mubr.bf16.mxu0 %v941
      %1493 = vmatmul.mubr.bf16.gmra.mrb[0].mxu0 %v940
      %v1494 = vpop.f32.mrb[0].mxu0
      %v1495 = vadd.f32 %v482, %v1494
      %v1496 = vpop.f32.mrb[0].mxu0
      %v1497 = vpop.f32.mrb[0].mxu0
      %v1498 = vadd.f32 %v482, %v1497
      %v1499 = vpop.f32.mrb[0].mxu0
      %1500 = vmatprep.mubr.bf16.mxu0 %v945
      %1501 = vmatmul.mubr.bf16.gmra.mrb[0].mxu0 %v944
      %v1502 = vpop.f32.mrb[0].mxu0
      %v1503 = vadd.f32 %v482, %v1502
      %v1504 = vpop.f32.mrb[0].mxu0
      %v1505 = vpop.f32.mrb[0].mxu0
      %v1506 = vadd.f32 %v482, %v1505
      %v1507 = vpop.f32.mrb[0].mxu0
      %1508 = vmatprep.mubr.bf16.mxu0 %v949
      %1509 = vmatmul.mubr.bf16.gmra.mrb[0].mxu0 %v948
      %v1510 = vpop.f32.mrb[0].mxu0
      %v1511 = vadd.f32 %v482, %v1510
      %v1512 = vpop.f32.mrb[0].mxu0
      %v1513 = vpop.f32.mrb[0].mxu0
      %v1514 = vadd.f32 %v482, %v1513
      %v1515 = vpop.f32.mrb[0].mxu0
      %1516 = vmatprep.mubr.bf16.mxu0 %v953
      %1517 = vmatmul.mubr.bf16.gmra.mrb[0].mxu0 %v952
      %v1518 = vpop.f32.mrb[0].mxu0
      %v1519 = vadd.f32 %v482, %v1518
      %v1520 = vpop.f32.mrb[0].mxu0
      %v1521 = vpop.f32.mrb[0].mxu0
      %v1522 = vadd.f32 %v482, %v1521
      %v1523 = vpop.f32.mrb[0].mxu0
      %1524 = vmatprep.mubr.bf16.mxu0 %v957
      %1525 = vmatmul.mubr.bf16.gmra.mrb[0].mxu0 %v956
      %v1526 = vpop.f32.mrb[0].mxu0
      %v1527 = vadd.f32 %v482, %v1526
      %v1528 = vpop.f32.mrb[0].mxu0
      %v1529 = vpop.f32.mrb[0].mxu0
      %v1530 = vadd.f32 %v482, %v1529
      %v1531 = vpop.f32.mrb[0].mxu0
      %1532 = vmatprep.mubr.bf16.mxu0 %v961
      %1533 = vmatmul.mubr.bf16.gmra.mrb[0].mxu0 %v960
      %v1534 = vpop.f32.mrb[0].mxu0
      %v1535 = vadd.f32 %v482, %v1534
      %v1536 = vpop.f32.mrb[0].mxu0
      %v1537 = vpop.f32.mrb[0].mxu0
      %v1538 = vadd.f32 %v482, %v1537
      %v1539 = vpop.f32.mrb[0].mxu0
      %1540 = vmatprep.mubr.bf16.mxu0 %v965
      %1541 = vmatmul.mubr.bf16.gmra.mrb[0].mxu0 %v964
      %v1542 = vpop.f32.mrb[0].mxu0
      %v1543 = vadd.f32 %v482, %v1542
      %v1544 = vpop.f32.mrb[0].mxu0
      %v1545 = vpop.f32.mrb[0].mxu0
      %v1546 = vadd.f32 %v482, %v1545
      %v1547 = vpop.f32.mrb[0].mxu0
      %1548 = vmatprep.mubr.bf16.mxu0 %v969
      %1549 = vmatmul.mubr.bf16.gmra.mrb[0].mxu0 %v968
      %v1550 = vpop.f32.mrb[0].mxu0
      %v1551 = vadd.f32 %v482, %v1550
      %v1552 = vpop.f32.mrb[0].mxu0
      %v1553 = vpop.f32.mrb[0].mxu0
      %v1554 = vadd.f32 %v482, %v1553
      %v1555 = vpop.f32.mrb[0].mxu0
      %1556 = vmatprep.mubr.bf16.mxu0 %v973
      %1557 = vmatmul.mubr.bf16.gmra.mrb[0].mxu0 %v972
      %v1558 = vpop.f32.mrb[0].mxu0
      %v1559 = vadd.f32 %v482, %v1558
      %v1560 = vpop.f32.mrb[0].mxu0
      %v1561 = vpop.f32.mrb[0].mxu0
      %v1562 = vadd.f32 %v482, %v1561
      %v1563 = vpop.f32.mrb[0].mxu0
      %1564 = vmatprep.mubr.bf16.mxu0 %v977
      %1565 = vmatmul.mubr.bf16.gmra.mrb[0].mxu0 %v976
      %v1566 = vpop.f32.mrb[0].mxu0
      %v1567 = vadd.f32 %v482, %v1566
      %v1568 = vpop.f32.mrb[0].mxu0
      %v1569 = vpop.f32.mrb[0].mxu0
      %v1570 = vadd.f32 %v482, %v1569
      %v1571 = vpop.f32.mrb[0].mxu0
      %1572 = vmatprep.mubr.bf16.mxu0 %v981
      %1573 = vmatmul.mubr.bf16.gmra.mrb[0].mxu0 %v980
      %v1574 = vpop.f32.mrb[0].mxu0
      %v1575 = vadd.f32 %v482, %v1574
      %v1576 = vpop.f32.mrb[0].mxu0
      %v1577 = vpop.f32.mrb[0].mxu0
      %v1578 = vadd.f32 %v482, %v1577
      %v1579 = vpop.f32.mrb[0].mxu0
      %1580 = vmatprep.mubr.bf16.mxu0 %v985
      %1581 = vmatmul.mubr.bf16.gmra.mrb[0].mxu0 %v984
      %v1582 = vpop.f32.mrb[0].mxu0
      %v1583 = vadd.f32 %v482, %v1582
      %v1584 = vpop.f32.mrb[0].mxu0
      %v1585 = vpop.f32.mrb[0].mxu0
      %v1586 = vadd.f32 %v482, %v1585
      %v1587 = vpop.f32.mrb[0].mxu0
      %1588 = vmatprep.mubr.bf16.mxu0 %v989
      %1589 = vmatmul.mubr.bf16.gmra.mrb[0].mxu0 %v988
      %v1590 = vpop.f32.mrb[0].mxu0
      %v1591 = vadd.f32 %v482, %v1590
      %v1592 = vpop.f32.mrb[0].mxu0
      %v1593 = vpop.f32.mrb[0].mxu0
      %v1594 = vadd.f32 %v482, %v1593
      %v1595 = vpop.f32.mrb[0].mxu0
      %1596 = vmatprep.mubr.bf16.mxu0 %v993
      %1597 = vmatmul.mubr.bf16.gmra.mrb[0].mxu0 %v992
      %v1598 = vpop.f32.mrb[0].mxu0
      %v1599 = vadd.f32 %v482, %v1598
      %v1600 = vpop.f32.mrb[0].mxu0
      %v1601 = vpop.f32.mrb[0].mxu0
      %v1602 = vadd.f32 %v482, %v1601
      %v1603 = vpop.f32.mrb[0].mxu0
      %1604 = vdwg.mxu0
      %1605 = vmatprep.subr.bf16.mxu0 0
      %1606 = vmatpush1.bf16.msra.mxu0 %v1268
      %1607 = vmatprep.subr.bf16.mxu0 0
      %1608 = vmatpush1.bf16.msra.mxu0 %v1269
      %1609 = vmatprep.subr.bf16.mxu0 0
      %1610 = vmatpush1.bf16.msra.mxu0 %v1270
      %1611 = vmatprep.subr.bf16.mxu0 0
      %1612 = vmatpush1.bf16.msra.mxu0 %v1271
      %1613 = vmatprep.subr.bf16.mxu0 0
      %1614 = vmatpush1.bf16.msra.mxu0 %v1272
      %1615 = vmatprep.subr.bf16.mxu0 0
      %1616 = vmatpush1.bf16.msra.mxu0 %v1273
      %1617 = vmatprep.subr.bf16.mxu0 0
      %1618 = vmatpush1.bf16.msra.mxu0 %v1274
      %1619 = vmatprep.subr.bf16.mxu0 0
      %1620 = vmatpush1.bf16.msra.mxu0 %v1275
      %1621 = vmatprep.subr.bf16.mxu0 0
      %1622 = vmatpush1.bf16.msra.mxu0 %v1276
      %1623 = vmatprep.subr.bf16.mxu0 0
      %1624 = vmatpush1.bf16.msra.mxu0 %v1277
      %1625 = vmatprep.subr.bf16.mxu0 0
      %1626 = vmatpush1.bf16.msra.mxu0 %v1278
      %1627 = vmatprep.subr.bf16.mxu0 0
      %1628 = vmatpush1.bf16.msra.mxu0 %v1279
      %1629 = vmatprep.subr.bf16.mxu0 0
      %1630 = vmatpush1.bf16.msra.mxu0 %v1280
      %1631 = vmatprep.subr.bf16.mxu0 0
      %1632 = vmatpush1.bf16.msra.mxu0 %v1281
      %1633 = vmatprep.subr.bf16.mxu0 0
      %1634 = vmatpush1.bf16.msra.mxu0 %v1282
      %1635 = vmatprep.subr.bf16.mxu0 0
      %1636 = vmatpush1.bf16.msra.mxu0 %v1283
      %1637 = vmatprep.mubr.bf16.mxu0 %v871
      %1638 = vmatmul.mubr.bf16.gmra.mrb[0].mxu0 %v870
      %v1639 = vpop.f32.mrb[0].mxu0
      %v1640 = vadd.f32 %v1351, %v1639
      %v1641 = vpop.f32.mrb[0].mxu0
      %v1642 = vpop.f32.mrb[0].mxu0
      %v1643 = vadd.f32 %v1354, %v1642
      %v1644 = vpop.f32.mrb[0].mxu0
      %1645 = vmatprep.mubr.bf16.mxu0 %v875
      %1646 = vmatmul.mubr.bf16.gmra.mrb[0].mxu0 %v874
      %v1647 = vpop.f32.mrb[0].mxu0
      %v1648 = vadd.f32 %v1359, %v1647
      %v1649 = vpop.f32.mrb[0].mxu0
      %v1650 = vpop.f32.mrb[0].mxu0
      %v1651 = vadd.f32 %v1362, %v1650
      %v1652 = vpop.f32.mrb[0].mxu0
      %1653 = vmatprep.mubr.bf16.mxu0 %v879
      %1654 = vmatmul.mubr.bf16.gmra.mrb[0].mxu0 %v878
      %v1655 = vpop.f32.mrb[0].mxu0
      %v1656 = vadd.f32 %v1367, %v1655
      %v1657 = vpop.f32.mrb[0].mxu0
      %v1658 = vpop.f32.mrb[0].mxu0
      %v1659 = vadd.f32 %v1370, %v1658
      %v1660 = vpop.f32.mrb[0].mxu0
      %1661 = vmatprep.mubr.bf16.mxu0 %v883
      %1662 = vmatmul.mubr.bf16.gmra.mrb[0].mxu0 %v882
      %v1663 = vpop.f32.mrb[0].mxu0
      %v1664 = vadd.f32 %v1375, %v1663
      %v1665 = vpop.f32.mrb[0].mxu0
      %v1666 = vpop.f32.mrb[0].mxu0
      %v1667 = vadd.f32 %v1378, %v1666
      %v1668 = vpop.f32.mrb[0].mxu0
      %1669 = vmatprep.mubr.bf16.mxu0 %v887
      %1670 = vmatmul.mubr.bf16.gmra.mrb[0].mxu0 %v886
      %v1671 = vpop.f32.mrb[0].mxu0
      %v1672 = vadd.f32 %v1383, %v1671
      %v1673 = vpop.f32.mrb[0].mxu0
      %v1674 = vpop.f32.mrb[0].mxu0
      %v1675 = vadd.f32 %v1386, %v1674
      %v1676 = vpop.f32.mrb[0].mxu0
      %1677 = vmatprep.mubr.bf16.mxu0 %v891
      %1678 = vmatmul.mubr.bf16.gmra.mrb[0].mxu0 %v890
      %v1679 = vpop.f32.mrb[0].mxu0
      %v1680 = vadd.f32 %v1391, %v1679
      %v1681 = vpop.f32.mrb[0].mxu0
      %v1682 = vpop.f32.mrb[0].mxu0
      %v1683 = vadd.f32 %v1394, %v1682
      %v1684 = vpop.f32.mrb[0].mxu0
      %1685 = vmatprep.mubr.bf16.mxu0 %v895
      %1686 = vmatmul.mubr.bf16.gmra.mrb[0].mxu0 %v894
      %v1687 = vpop.f32.mrb[0].mxu0
      %v1688 = vadd.f32 %v1399, %v1687
      %v1689 = vpop.f32.mrb[0].mxu0
      %v1690 = vpop.f32.mrb[0].mxu0
      %v1691 = vadd.f32 %v1402, %v1690
      %v1692 = vpop.f32.mrb[0].mxu0
      %1693 = vmatprep.mubr.bf16.mxu0 %v899
      %1694 = vmatmul.mubr.bf16.gmra.mrb[0].mxu0 %v898
      %v1695 = vpop.f32.mrb[0].mxu0
      %v1696 = vadd.f32 %v1407, %v1695
      %v1697 = vpop.f32.mrb[0].mxu0
      %v1698 = vpop.f32.mrb[0].mxu0
      %v1699 = vadd.f32 %v1410, %v1698
      %v1700 = vpop.f32.mrb[0].mxu0
      %1701 = vmatprep.mubr.bf16.mxu0 %v903
      %1702 = vmatmul.mubr.bf16.gmra.mrb[0].mxu0 %v902
      %v1703 = vpop.f32.mrb[0].mxu0
      %v1704 = vadd.f32 %v1415, %v1703
      %v1705 = vpop.f32.mrb[0].mxu0
      %v1706 = vpop.f32.mrb[0].mxu0
      %v1707 = vadd.f32 %v1418, %v1706
      %v1708 = vpop.f32.mrb[0].mxu0
      %1709 = vmatprep.mubr.bf16.mxu0 %v907
      %1710 = vmatmul.mubr.bf16.gmra.mrb[0].mxu0 %v906
      %v1711 = vpop.f32.mrb[0].mxu0
      %v1712 = vadd.f32 %v1423, %v1711
      %v1713 = vpop.f32.mrb[0].mxu0
      %v1714 = vpop.f32.mrb[0].mxu0
      %v1715 = vadd.f32 %v1426, %v1714
      %v1716 = vpop.f32.mrb[0].mxu0
      %1717 = vmatprep.mubr.bf16.mxu0 %v911
      %1718 = vmatmul.mubr.bf16.gmra.mrb[0].mxu0 %v910
      %v1719 = vpop.f32.mrb[0].mxu0
      %v1720 = vadd.f32 %v1431, %v1719
      %v1721 = vpop.f32.mrb[0].mxu0
      %v1722 = vpop.f32.mrb[0].mxu0
      %v1723 = vadd.f32 %v1434, %v1722
      %v1724 = vpop.f32.mrb[0].mxu0
      %1725 = vmatprep.mubr.bf16.mxu0 %v915
      %1726 = vmatmul.mubr.bf16.gmra.mrb[0].mxu0 %v914
      %v1727 = vpop.f32.mrb[0].mxu0
      %v1728 = vadd.f32 %v1439, %v1727
      %v1729 = vpop.f32.mrb[0].mxu0
      %v1730 = vpop.f32.mrb[0].mxu0
      %v1731 = vadd.f32 %v1442, %v1730
      %v1732 = vpop.f32.mrb[0].mxu0
      %1733 = vmatprep.mubr.bf16.mxu0 %v919
      %1734 = vmatmul.mubr.bf16.gmra.mrb[0].mxu0 %v918
      %v1735 = vpop.f32.mrb[0].mxu0
      %v1736 = vadd.f32 %v1447, %v1735
      %v1737 = vpop.f32.mrb[0].mxu0
      %v1738 = vpop.f32.mrb[0].mxu0
      %v1739 = vadd.f32 %v1450, %v1738
      %v1740 = vpop.f32.mrb[0].mxu0
      %1741 = vmatprep.mubr.bf16.mxu0 %v923
      %1742 = vmatmul.mubr.bf16.gmra.mrb[0].mxu0 %v922
      %v1743 = vpop.f32.mrb[0].mxu0
      %v1744 = vadd.f32 %v1455, %v1743
      %v1745 = vpop.f32.mrb[0].mxu0
      %v1746 = vpop.f32.mrb[0].mxu0
      %v1747 = vadd.f32 %v1458, %v1746
      %v1748 = vpop.f32.mrb[0].mxu0
      %1749 = vmatprep.mubr.bf16.mxu0 %v927
      %1750 = vmatmul.mubr.bf16.gmra.mrb[0].mxu0 %v926
      %v1751 = vpop.f32.mrb[0].mxu0
      %v1752 = vadd.f32 %v1463, %v1751
      %v1753 = vpop.f32.mrb[0].mxu0
      %v1754 = vpop.f32.mrb[0].mxu0
      %v1755 = vadd.f32 %v1466, %v1754
      %v1756 = vpop.f32.mrb[0].mxu0
      %1757 = vmatprep.mubr.bf16.mxu0 %v931
      %1758 = vmatmul.mubr.bf16.gmra.mrb[0].mxu0 %v930
      %v1759 = vpop.f32.mrb[0].mxu0
      %v1760 = vadd.f32 %v1471, %v1759
      %v1761 = vpop.f32.mrb[0].mxu0
      %v1762 = vpop.f32.mrb[0].mxu0
      %v1763 = vadd.f32 %v1474, %v1762
      %v1764 = vpop.f32.mrb[0].mxu0
      %1765 = vmatprep.mubr.bf16.mxu0 %v935
      %1766 = vmatmul.mubr.bf16.gmra.mrb[0].mxu0 %v934
      %v1767 = vpop.f32.mrb[0].mxu0
      %v1768 = vadd.f32 %v1479, %v1767
      %v1769 = vpop.f32.mrb[0].mxu0
      %v1770 = vpop.f32.mrb[0].mxu0
      %v1771 = vadd.f32 %v1482, %v1770
      %v1772 = vpop.f32.mrb[0].mxu0
      %1773 = vmatprep.mubr.bf16.mxu0 %v939
      %1774 = vmatmul.mubr.bf16.gmra.mrb[0].mxu0 %v938
      %v1775 = vpop.f32.mrb[0].mxu0
      %v1776 = vadd.f32 %v1487, %v1775
      %v1777 = vpop.f32.mrb[0].mxu0
      %v1778 = vpop.f32.mrb[0].mxu0
      %v1779 = vadd.f32 %v1490, %v1778
      %v1780 = vpop.f32.mrb[0].mxu0
      %1781 = vmatprep.mubr.bf16.mxu0 %v943
      %1782 = vmatmul.mubr.bf16.gmra.mrb[0].mxu0 %v942
      %v1783 = vpop.f32.mrb[0].mxu0
      %v1784 = vadd.f32 %v1495, %v1783
      %v1785 = vpop.f32.mrb[0].mxu0
      %v1786 = vpop.f32.mrb[0].mxu0
      %v1787 = vadd.f32 %v1498, %v1786
      %v1788 = vpop.f32.mrb[0].mxu0
      %1789 = vmatprep.mubr.bf16.mxu0 %v947
      %1790 = vmatmul.mubr.bf16.gmra.mrb[0].mxu0 %v946
      %v1791 = vpop.f32.mrb[0].mxu0
      %v1792 = vadd.f32 %v1503, %v1791
      %v1793 = vpop.f32.mrb[0].mxu0
      %v1794 = vpop.f32.mrb[0].mxu0
      %v1795 = vadd.f32 %v1506, %v1794
      %v1796 = vpop.f32.mrb[0].mxu0
      %1797 = vmatprep.mubr.bf16.mxu0 %v951
      %1798 = vmatmul.mubr.bf16.gmra.mrb[0].mxu0 %v950
      %v1799 = vpop.f32.mrb[0].mxu0
      %v1800 = vadd.f32 %v1511, %v1799
      %v1801 = vpop.f32.mrb[0].mxu0
      %v1802 = vpop.f32.mrb[0].mxu0
      %v1803 = vadd.f32 %v1514, %v1802
      %v1804 = vpop.f32.mrb[0].mxu0
      %1805 = vmatprep.mubr.bf16.mxu0 %v955
      %1806 = vmatmul.mubr.bf16.gmra.mrb[0].mxu0 %v954
      %v1807 = vpop.f32.mrb[0].mxu0
      %v1808 = vadd.f32 %v1519, %v1807
      %v1809 = vpop.f32.mrb[0].mxu0
      %v1810 = vpop.f32.mrb[0].mxu0
      %v1811 = vadd.f32 %v1522, %v1810
      %v1812 = vpop.f32.mrb[0].mxu0
      %1813 = vmatprep.mubr.bf16.mxu0 %v959
      %1814 = vmatmul.mubr.bf16.gmra.mrb[0].mxu0 %v958
      %v1815 = vpop.f32.mrb[0].mxu0
      %v1816 = vadd.f32 %v1527, %v1815
      %v1817 = vpop.f32.mrb[0].mxu0
      %v1818 = vpop.f32.mrb[0].mxu0
      %v1819 = vadd.f32 %v1530, %v1818
      %v1820 = vpop.f32.mrb[0].mxu0
      %1821 = vmatprep.mubr.bf16.mxu0 %v963
      %1822 = vmatmul.mubr.bf16.gmra.mrb[0].mxu0 %v962
      %v1823 = vpop.f32.mrb[0].mxu0
      %v1824 = vadd.f32 %v1535, %v1823
      %v1825 = vpop.f32.mrb[0].mxu0
      %v1826 = vpop.f32.mrb[0].mxu0
      %v1827 = vadd.f32 %v1538, %v1826
      %v1828 = vpop.f32.mrb[0].mxu0
      %1829 = vmatprep.mubr.bf16.mxu0 %v967
      %1830 = vmatmul.mubr.bf16.gmra.mrb[0].mxu0 %v966
      %v1831 = vpop.f32.mrb[0].mxu0
      %v1832 = vadd.f32 %v1543, %v1831
      %v1833 = vpop.f32.mrb[0].mxu0
      %v1834 = vpop.f32.mrb[0].mxu0
      %v1835 = vadd.f32 %v1546, %v1834
      %v1836 = vpop.f32.mrb[0].mxu0
      %1837 = vmatprep.mubr.bf16.mxu0 %v971
      %1838 = vmatmul.mubr.bf16.gmra.mrb[0].mxu0 %v970
      %v1839 = vpop.f32.mrb[0].mxu0
      %v1840 = vadd.f32 %v1551, %v1839
      %v1841 = vpop.f32.mrb[0].mxu0
      %v1842 = vpop.f32.mrb[0].mxu0
      %v1843 = vadd.f32 %v1554, %v1842
      %v1844 = vpop.f32.mrb[0].mxu0
      %1845 = vmatprep.mubr.bf16.mxu0 %v975
      %1846 = vmatmul.mubr.bf16.gmra.mrb[0].mxu0 %v974
      %v1847 = vpop.f32.mrb[0].mxu0
      %v1848 = vadd.f32 %v1559, %v1847
      %v1849 = vpop.f32.mrb[0].mxu0
      %v1850 = vpop.f32.mrb[0].mxu0
      %v1851 = vadd.f32 %v1562, %v1850
      %v1852 = vpop.f32.mrb[0].mxu0
      %1853 = vmatprep.mubr.bf16.mxu0 %v979
      %1854 = vmatmul.mubr.bf16.gmra.mrb[0].mxu0 %v978
      %v1855 = vpop.f32.mrb[0].mxu0
      %v1856 = vadd.f32 %v1567, %v1855
      %v1857 = vpop.f32.mrb[0].mxu0
      %v1858 = vpop.f32.mrb[0].mxu0
      %v1859 = vadd.f32 %v1570, %v1858
      %v1860 = vpop.f32.mrb[0].mxu0
      %1861 = vmatprep.mubr.bf16.mxu0 %v983
      %1862 = vmatmul.mubr.bf16.gmra.mrb[0].mxu0 %v982
      %v1863 = vpop.f32.mrb[0].mxu0
      %v1864 = vadd.f32 %v1575, %v1863
      %v1865 = vpop.f32.mrb[0].mxu0
      %v1866 = vpop.f32.mrb[0].mxu0
      %v1867 = vadd.f32 %v1578, %v1866
      %v1868 = vpop.f32.mrb[0].mxu0
      %1869 = vmatprep.mubr.bf16.mxu0 %v987
      %1870 = vmatmul.mubr.bf16.gmra.mrb[0].mxu0 %v986
      %v1871 = vpop.f32.mrb[0].mxu0
      %v1872 = vadd.f32 %v1583, %v1871
      %v1873 = vpop.f32.mrb[0].mxu0
      %v1874 = vpop.f32.mrb[0].mxu0
      %v1875 = vadd.f32 %v1586, %v1874
      %v1876 = vpop.f32.mrb[0].mxu0
      %1877 = vmatprep.mubr.bf16.mxu0 %v991
      %1878 = vmatmul.mubr.bf16.gmra.mrb[0].mxu0 %v990
      %v1879 = vpop.f32.mrb[0].mxu0
      %v1880 = vadd.f32 %v1591, %v1879
      %v1881 = vpop.f32.mrb[0].mxu0
      %v1882 = vpop.f32.mrb[0].mxu0
      %v1883 = vadd.f32 %v1594, %v1882
      %v1884 = vpop.f32.mrb[0].mxu0
      %1885 = vmatprep.mubr.bf16.mxu0 %v995
      %1886 = vmatmul.mubr.bf16.gmra.mrb[0].mxu0 %v994
      %v1887 = vpop.f32.mrb[0].mxu0
      %v1888 = vadd.f32 %v1599, %v1887
      %v1889 = vpop.f32.mrb[0].mxu0
      %v1890 = vpop.f32.mrb[0].mxu0
      %v1891 = vadd.f32 %v1602, %v1890
      %v1892 = vpop.f32.mrb[0].mxu0
      %1893 = vdwg.mxu0
      %v1894 = vmax.f32 %v1640, 0.0
      %v1895 = vmax.f32 %v1643, 0.0
      %v1896 = vmax.f32 %v1648, 0.0
      %v1897 = vmax.f32 %v1651, 0.0
      %v1898 = vmax.f32 %v1656, 0.0
      %v1899 = vmax.f32 %v1659, 0.0
      %v1900 = vmax.f32 %v1664, 0.0
      %v1901 = vmax.f32 %v1667, 0.0
      %v1902 = vmax.f32 %v1672, 0.0
      %v1903 = vmax.f32 %v1675, 0.0
      %v1904 = vmax.f32 %v1680, 0.0
      %v1905 = vmax.f32 %v1683, 0.0
      %v1906 = vmax.f32 %v1688, 0.0
      %v1907 = vmax.f32 %v1691, 0.0
      %v1908 = vmax.f32 %v1696, 0.0
      %v1909 = vmax.f32 %v1699, 0.0
      %v1910 = vmax.f32 %v1704, 0.0
      %v1911 = vmax.f32 %v1707, 0.0
      %v1912 = vmax.f32 %v1712, 0.0
      %v1913 = vmax.f32 %v1715, 0.0
      %v1914 = vmax.f32 %v1720, 0.0
      %v1915 = vmax.f32 %v1723, 0.0
      %v1916 = vmax.f32 %v1728, 0.0
      %v1917 = vmax.f32 %v1731, 0.0
      %v1918 = vmax.f32 %v1736, 0.0
      %v1919 = vmax.f32 %v1739, 0.0
      %v1920 = vmax.f32 %v1744, 0.0
      %v1921 = vmax.f32 %v1747, 0.0
      %v1922 = vmax.f32 %v1752, 0.0
      %v1923 = vmax.f32 %v1755, 0.0
      %v1924 = vmax.f32 %v1760, 0.0
      %v1925 = vmax.f32 %v1763, 0.0
      %v1926 = vmax.f32 %v1768, 0.0
      %v1927 = vmax.f32 %v1771, 0.0
      %v1928 = vmax.f32 %v1776, 0.0
      %v1929 = vmax.f32 %v1779, 0.0
      %v1930 = vmax.f32 %v1784, 0.0
      %v1931 = vmax.f32 %v1787, 0.0
      %v1932 = vmax.f32 %v1792, 0.0
      %v1933 = vmax.f32 %v1795, 0.0
      %v1934 = vmax.f32 %v1800, 0.0
      %v1935 = vmax.f32 %v1803, 0.0
      %v1936 = vmax.f32 %v1808, 0.0
      %v1937 = vmax.f32 %v1811, 0.0
      %v1938 = vmax.f32 %v1816, 0.0
      %v1939 = vmax.f32 %v1819, 0.0
      %v1940 = vmax.f32 %v1824, 0.0
      %v1941 = vmax.f32 %v1827, 0.0
      %v1942 = vmax.f32 %v1832, 0.0
      %v1943 = vmax.f32 %v1835, 0.0
      %v1944 = vmax.f32 %v1840, 0.0
      %v1945 = vmax.f32 %v1843, 0.0
      %v1946 = vmax.f32 %v1848, 0.0
      %v1947 = vmax.f32 %v1851, 0.0
      %v1948 = vmax.f32 %v1856, 0.0
      %v1949 = vmax.f32 %v1859, 0.0
      %v1950 = vmax.f32 %v1864, 0.0
      %v1951 = vmax.f32 %v1867, 0.0
      %v1952 = vmax.f32 %v1872, 0.0
      %v1953 = vmax.f32 %v1875, 0.0
      %v1954 = vmax.f32 %v1880, 0.0
      %v1955 = vmax.f32 %v1883, 0.0
      %v1956 = vmax.f32 %v1888, 0.0
      %v1957 = vmax.f32 %v1891, 0.0
      %1958 = vst [vmem:[%s282] sm:$0xff] %v1894
      %1959 = vst [vmem:[%s282 + $0x8] sm:$0xff] %v1895
      %1960 = vst [vmem:[%s282 + $0x10] sm:$0xff] %v1896
      %1961 = vst [vmem:[%s282 + $0x18] sm:$0xff] %v1897
      %1962 = vst [vmem:[%s282 + $0x20] sm:$0xff] %v1898
      %1963 = vst [vmem:[%s282 + $0x28] sm:$0xff] %v1899
      %1964 = vst [vmem:[%s282 + $0x30] sm:$0xff] %v1900
      %1965 = vst [vmem:[%s282 + $0x38] sm:$0xff] %v1901
      %1966 = vst [vmem:[%s282 + $0x40] sm:$0xff] %v1902
      %1967 = vst [vmem:[%s282 + $0x48] sm:$0xff] %v1903
      %1968 = vst [vmem:[%s282 + $0x50] sm:$0xff] %v1904
      %1969 = vst [vmem:[%s282 + $0x58] sm:$0xff] %v1905
      %1970 = vst [vmem:[%s282 + $0x60] sm:$0xff] %v1906
      %1971 = vst [vmem:[%s282 + $0x68] sm:$0xff] %v1907
      %1972 = vst [vmem:[%s282 + $0x70] sm:$0xff] %v1908
      %1973 = vst [vmem:[%s282 + $0x78] sm:$0xff] %v1909
      %1974 = vst [vmem:[%s282 + $0x80] sm:$0xff] %v1910
      %1975 = vst [vmem:[%s282 + $0x88] sm:$0xff] %v1911
      %1976 = vst [vmem:[%s282 + $0x90] sm:$0xff] %v1912
      %1977 = vst [vmem:[%s282 + $0x98] sm:$0xff] %v1913
      %1978 = vst [vmem:[%s282 + $0xa0] sm:$0xff] %v1914
      %1979 = vst [vmem:[%s282 + $0xa8] sm:$0xff] %v1915
      %1980 = vst [vmem:[%s282 + $0xb0] sm:$0xff] %v1916
      %1981 = vst [vmem:[%s282 + $0xb8] sm:$0xff] %v1917
      %1982 = vst [vmem:[%s282 + $0xc0] sm:$0xff] %v1918
      %1983 = vst [vmem:[%s282 + $0xc8] sm:$0xff] %v1919
      %1984 = vst [vmem:[%s282 + $0xd0] sm:$0xff] %v1920
      %1985 = vst [vmem:[%s282 + $0xd8] sm:$0xff] %v1921
      %1986 = vst [vmem:[%s282 + $0xe0] sm:$0xff] %v1922
      %1987 = vst [vmem:[%s282 + $0xe8] sm:$0xff] %v1923
      %1988 = vst [vmem:[%s282 + $0xf0] sm:$0xff] %v1924
      %1989 = vst [vmem:[%s282 + $0xf8] sm:$0xff] %v1925
      %1990 = vst [vmem:[%s282 + $0x100] sm:$0xff] %v1926
      %1991 = vst [vmem:[%s282 + $0x108] sm:$0xff] %v1927
      %1992 = vst [vmem:[%s282 + $0x110] sm:$0xff] %v1928
      %1993 = vst [vmem:[%s282 + $0x118] sm:$0xff] %v1929
      %1994 = vst [vmem:[%s282 + $0x120] sm:$0xff] %v1930
      %1995 = vst [vmem:[%s282 + $0x128] sm:$0xff] %v1931
      %1996 = vst [vmem:[%s282 + $0x130] sm:$0xff] %v1932
      %1997 = vst [vmem:[%s282 + $0x138] sm:$0xff] %v1933
      %1998 = vst [vmem:[%s282 + $0x140] sm:$0xff] %v1934
      %1999 = vst [vmem:[%s282 + $0x148] sm:$0xff] %v1935
      %2000 = vst [vmem:[%s282 + $0x150] sm:$0xff] %v1936
      %2001 = vst [vmem:[%s282 + $0x158] sm:$0xff] %v1937
      %2002 = vst [vmem:[%s282 + $0x160] sm:$0xff] %v1938
      %2003 = vst [vmem:[%s282 + $0x168] sm:$0xff] %v1939
      %2004 = vst [vmem:[%s282 + $0x170] sm:$0xff] %v1940
      %2005 = vst [vmem:[%s282 + $0x178] sm:$0xff] %v1941
      %2006 = vst [vmem:[%s282 + $0x180] sm:$0xff] %v1942
      %2007 = vst [vmem:[%s282 + $0x188] sm:$0xff] %v1943
      %2008 = vst [vmem:[%s282 + $0x190] sm:$0xff] %v1944
      %2009 = vst [vmem:[%s282 + $0x198] sm:$0xff] %v1945
      %2010 = vst [vmem:[%s282 + $0x1a0] sm:$0xff] %v1946
      %2011 = vst [vmem:[%s282 + $0x1a8] sm:$0xff] %v1947
      %2012 = vst [vmem:[%s282 + $0x1b0] sm:$0xff] %v1948
      %2013 = vst [vmem:[%s282 + $0x1b8] sm:$0xff] %v1949
      %2014 = vst [vmem:[%s282 + $0x1c0] sm:$0xff] %v1950
      %2015 = vst [vmem:[%s282 + $0x1c8] sm:$0xff] %v1951
      %2016 = vst [vmem:[%s282 + $0x1d0] sm:$0xff] %v1952
      %2017 = vst [vmem:[%s282 + $0x1d8] sm:$0xff] %v1953
      %2018 = vst [vmem:[%s282 + $0x1e0] sm:$0xff] %v1954
      %2019 = vst [vmem:[%s282 + $0x1e8] sm:$0xff] %v1955
      %2020 = vst [vmem:[%s282 + $0x1f0] sm:$0xff] %v1956
      %2021 = vst [vmem:[%s282 + $0x1f8] sm:$0xff] %v1957
      %s2022 = smul.u32 64, %s20
      %p2023 = scmp.lt.s32.totalorder %s19, 1
      %s2024 = scalar_select %p2023, %s19, 1
      %p2025 = scmp.lt.s32.totalorder %s2022, 127
      %s2026 = scalar_select %p2025, %s2022, 127
      %p2027 = scmp.lt.s32.totalorder %s21, 0
      %s2028 = scalar_select %p2027, %s21, 0
      %s2029 = sadd.s32 %s2028, %s2026
      %s2030 = smul.addr %s2024, 128
      %s2031 = sadd.s32 %s2029, %s2030
      %s2032 = smul.addr %s2031, 8
      %s2033 = scalar_lea.vmem %s3, %s2032
      // Predicated region
      $region33: #{forward_fn.14} parent=31 // pred_check
        %p2034 = pneg %p139
      $region34: #{forward_fn.14} parent=31 // pred_check_branch
        %2036 = sbr.rel (%p2034) target = $region36
      $region35: #{forward_fn.14} parent=31 // pred_region
        %s2037 = smul.u32 64, %s20
      $region36: #{forward_fn.14} parent=31 // pred_fallthru
        _
    $region32: #{forward_fn.14} parent=5 // pred_fallthru
      _
    %p2038 = scmp.le.s32.totalorder 2, %s9
    // Predicated region
    $region37: #{forward_fn.14} parent=5 // pred_check
      %p2039 = pneg %p2038
    $region38: #{forward_fn.14} parent=5 // pred_check_branch
      %2041 = sbr.rel (%p2039) target = $region40
    $region39: #{forward_fn.14} parent=5 // pred_region
      %s2042 = ssub.s32 %s9, 2
      // Predicated region
      $region41: #{forward_fn.14} parent=39 // pred_check
        %p2043 = pneg %p145
      $region42: #{forward_fn.14} parent=39 // pred_check_branch
        %2045 = sbr.rel (%p2043) target = $region44
      $region43: #{forward_fn.14} parent=39 // pred_region
        %s2046 = smul.u32 64, %s23
        %p2047 = scmp.lt.s32.totalorder %s22, 1
        %s2048 = scalar_select %p2047, %s22, 1
        %p2049 = scmp.lt.s32.totalorder %s2046, 127
        %s2050 = scalar_select %p2049, %s2046, 127
        %p2051 = scmp.lt.s32.totalorder %s24, 0
        %s2052 = scalar_select %p2051, %s24, 0
        %s2053 = sadd.s32 %s2052, %s2050
        %s2054 = smul.addr %s2048, 128
        %s2055 = sadd.s32 %s2053, %s2054
        %s2056 = smul.addr %s2055, 8
        %s2057 = scalar_lea.vmem %s3, %s2056
      $region44: #{forward_fn.14} parent=39 // pred_fallthru
        _
    $region40: #{forward_fn.14} parent=5 // pred_fallthru
      _
  $region6: #{forward_fn.14} parent=0 // loop_footer
    %s13 = sadd.s32 1, %s9
  $region7: #{forward_fn.14} parent=0 // loop_footer_branch
    %8 = sbr.rel target = $region3
  $region8: #{forward_fn.14} parent=0 // loop_exit
    _

// kernel: forward_fn.15
$region0: #{forward_fn.15}
  #allocation0 [shape = 'u32[]', space=smem, size = 0x4, offset = 0x4, fixed_abs, tag = 'smem constant byte address 0x4 - core index']
  #allocation1 [shape = 'u32[144,128]{1,0:T(1,128)}', space=vmem, size = 0x12000, scoped, tag = 'internal scratch']
  %s0 = inlined_call_operand.vmem [shape: f32[9,32,128], index: 0, kind: input, shape index: {}]
  %s1 = inlined_call_operand.vmem [shape: f32[32,128], index: 1, kind: output, shape index: {}]
  %s2 = sld [smem:[#allocation0]]
  $region14: #{forward_fn.15} parent=0
    _
  %s4 = ssub.s32 1, %s2
  %s5 = scalar_select 0, %s4, %s2
  // Predicated region
  $region2: #{forward_fn.15} parent=0 // pred_check
    _
  $region3: #{forward_fn.15} parent=0 // pred_check_branch
    %7 = sbr.rel (0) target = $region5
  $region4: #{forward_fn.15} parent=0 // pred_region
    _
  $region5: #{forward_fn.15} parent=0 // pred_fallthru
    _
  %v8 = vld [vmem:[%s0] sm:$0xff]
  %v9 = vld [vmem:[%s0 + $0x8] sm:$0xff]
  %v10 = vld [vmem:[%s0 + $0x10] sm:$0xff]
  %v11 = vld [vmem:[%s0 + $0x18] sm:$0xff]
  %v12 = vld [vmem:[%s0 + $0x20] sm:$0xff]
  %v13 = vld [vmem:[%s0 + $0x28] sm:$0xff]
  %v14 = vld [vmem:[%s0 + $0x30] sm:$0xff]
  %v15 = vld [vmem:[%s0 + $0x38] sm:$0xff]
  %v16 = vld [vmem:[%s0 + $0x40] sm:$0xff]
  %v17 = vld [vmem:[%s0 + $0x48] sm:$0xff]
  %v18 = vld [vmem:[%s0 + $0x50] sm:$0xff]
  %v19 = vld [vmem:[%s0 + $0x58] sm:$0xff]
  %v20 = vld [vmem:[%s0 + $0x60] sm:$0xff]
  %v21 = vld [vmem:[%s0 + $0x68] sm:$0xff]
  %v22 = vld [vmem:[%s0 + $0x70] sm:$0xff]
  %v23 = vld [vmem:[%s0 + $0x78] sm:$0xff]
  %v24 = vld [vmem:[%s0 + $0x80] sm:$0xff]
  %v25 = vld [vmem:[%s0 + $0x88] sm:$0xff]
  %v26 = vld [vmem:[%s0 + $0x90] sm:$0xff]
  %v27 = vld [vmem:[%s0 + $0x98] sm:$0xff]
  %v28 = vld [vmem:[%s0 + $0xa0] sm:$0xff]
  %v29 = vld [vmem:[%s0 + $0xa8] sm:$0xff]
  %v30 = vld [vmem:[%s0 + $0xb0] sm:$0xff]
  %v31 = vld [vmem:[%s0 + $0xb8] sm:$0xff]
  %v32 = vld [vmem:[%s0 + $0xc0] sm:$0xff]
  %v33 = vld [vmem:[%s0 + $0xc8] sm:$0xff]
  %v34 = vld [vmem:[%s0 + $0xd0] sm:$0xff]
  %v35 = vld [vmem:[%s0 + $0xd8] sm:$0xff]
  %v36 = vld [vmem:[%s0 + $0xe0] sm:$0xff]
  %v37 = vld [vmem:[%s0 + $0xe8] sm:$0xff]
  %v38 = vld [vmem:[%s0 + $0xf0] sm:$0xff]
  %v39 = vld [vmem:[%s0 + $0xf8] sm:$0xff]
  %v40 = vld [vmem:[%s0 + $0x100] sm:$0xff]
  %v41 = vld [vmem:[%s0 + $0x108] sm:$0xff]
  %v42 = vld [vmem:[%s0 + $0x110] sm:$0xff]
  %v43 = vld [vmem:[%s0 + $0x118] sm:$0xff]
  %v44 = vmax.f32 %v8, %v12
  %v45 = vmax.f32 %v44, %v16
  %v46 = vmax.f32 %v45, %v20
  %v47 = vmax.f32 %v46, %v24
  %v48 = vmax.f32 %v47, %v28
  %v49 = vmax.f32 %v48, %v32
  %v50 = vmax.f32 %v49, %v36
  %v51 = vmax.f32 %v50, %v40
  %v52 = vmax.f32 %v9, %v13
  %v53 = vmax.f32 %v52, %v17
  %v54 = vmax.f32 %v53, %v21
  %v55 = vmax.f32 %v54, %v25
  %v56 = vmax.f32 %v55, %v29
  %v57 = vmax.f32 %v56, %v33
  %v58 = vmax.f32 %v57, %v37
  %v59 = vmax.f32 %v58, %v41
  %v60 = vmax.f32 %v10, %v14
  %v61 = vmax.f32 %v60, %v18
  %v62 = vmax.f32 %v61, %v22
  %v63 = vmax.f32 %v62, %v26
  %v64 = vmax.f32 %v63, %v30
  %v65 = vmax.f32 %v64, %v34
  %v66 = vmax.f32 %v65, %v38
  %v67 = vmax.f32 %v66, %v42
  %v68 = vmax.f32 %v11, %v15
  %v69 = vmax.f32 %v68, %v19
  %v70 = vmax.f32 %v69, %v23
  %v71 = vmax.f32 %v70, %v27
  %v72 = vmax.f32 %v71, %v31
  %v73 = vmax.f32 %v72, %v35
  %v74 = vmax.f32 %v73, %v39
  %v75 = vmax.f32 %v74, %v43
  %76 = vst [vmem:[%s1] sm:$0xff] %v51
  %77 = vst [vmem:[%s1 + $0x8] sm:$0xff] %v59
  %78 = vst [vmem:[%s1 + $0x10] sm:$0xff] %v67
  %79 = vst [vmem:[%s1 + $0x18] sm:$0xff] %v75
  // Predicated region
  $region6: #{forward_fn.15} parent=0 // pred_check
    _
  $region7: #{forward_fn.15} parent=0 // pred_check_branch
    %81 = sbr.rel (0) target = $region9
  $region8: #{forward_fn.15} parent=0 // pred_region
    _
  $region9: #{forward_fn.15} parent=0 // pred_fallthru
    _
  // Predicated region
  $region10: #{forward_fn.15} parent=0 // pred_check
    _
  $region11: #{forward_fn.15} parent=0 // pred_check_branch
    %83 = sbr.rel (0) target = $region13
  $region12: #{forward_fn.15} parent=0 // pred_region
    _
  $region13: #{forward_fn.15} parent=0 // pred_fallthru
    _

// kernel: forward_fn.16
$region0: #{forward_fn.16}
  #allocation0 [shape = 'u32[]', space=smem, size = 0x4, offset = 0x4, fixed_abs, tag = 'smem constant byte address 0x4 - core index']
  #allocation1 [shape = 'u32[144,128]{1,0:T(1,128)}', space=vmem, size = 0x12000, scoped, tag = 'internal scratch']
  %s0 = inlined_call_operand.vmem [shape: bf16[2,256,128], index: 0, kind: input, shape index: {}]
  %s1 = inlined_call_operand.vmem [shape: bf16[2,128,128], index: 1, kind: input, shape index: {}]
  %s2 = inlined_call_operand.vmem [shape: f32[2,1,128], index: 2, kind: input, shape index: {}]
  %s3 = inlined_call_operand.vmem [shape: f32[2,256,128], index: 3, kind: output, shape index: {}]
  %s4 = sld [smem:[#allocation0]]
  $region45: #{forward_fn.16} parent=0
    _
  %s6 = ssub.s32 1, %s4
  %s7 = scalar_select 0, %s6, %s4
  loop: start=0, step=1, limit=4
  $region2: #{forward_fn.16} parent=0 // loop_pre_header
    _
  $region3: #{forward_fn.16} parent=0 // loop_header
    %s9 = sphi 0, %s13
    %p10 = scmp.ge.s32.totalorder %s9, 4
    %s16 = sphi 0, %s35
    %s17 = sphi 0, %s31
    %s18 = sphi 0, %s27
    %s19 = sphi 0, %s16
    %s20 = sphi 0, %s17
    %s21 = sphi 0, %s18
    %s22 = sphi 0, %s19
    %s23 = sphi 0, %s20
    %s24 = sphi 0, %s21
    %s40 = sphi 0, %s42
    %s43 = sphi 0, %s40
    %s44 = sphi 0, %s43
    %s60 = sphi 0, %s44
    %s68 = sphi 0, %s70
    %s71 = sphi 0, %s68
    %s72 = sphi 0, %s71
    %s88 = sphi 0, %s72
    %s96 = sphi 0, %s98
    %s99 = sphi 0, %s96
    %s100 = sphi 0, %s99
    %s116 = sphi 0, %s100
    %s126 = sphi 0, %s128
    %s129 = sphi 0, %s126
    %s130 = sphi 0, %s129
    %s146 = sphi 0, %s130
  $region4: #{forward_fn.16} parent=0 // loop_header_branch
    %12 = sbr.rel (%p10) target = $region8
  $region5: #{forward_fn.16} parent=0 // loop_body
    %s14 = ssub.s32 %s9, 1
    %s15 = ssub.s32 %s9, 2
    %s25 = sadd.s32 1, %s18
    %p26 = scmp.ge.s32.totalorder %s25, 1
    %s27 = scalar_select %p26, 0, %s25
    %s28 = sadd.s32 1, %s17
    %s29 = scalar_select %p26, %s28, %s17
    %p30 = scmp.ge.s32.totalorder %s29, 1
    %s31 = scalar_select %p30, 0, %s29
    %s32 = sadd.s32 1, %s16
    %s33 = scalar_select %p30, %s32, %s16
    %p34 = scmp.ge.s32.totalorder %s33, 2
    %s35 = scalar_select %p34, 0, %s33
    %s36 = ssub.s32 %s16, %s35
    %s37 = ssub.s32 %s17, %s31
    %s38 = sor.u32 %s36, %s37
    %p39 = scmp.eq.s32.totalorder %s38, 0
    %s41 = sadd.s32 %s40, 1
    %s42 = scalar_select %p39, %s40, %s41
    %p45 = pneg %p39
    %p46 = scmp.eq.s32.totalorder %s9, 1
    %p47 = por %p45, %p46
    %p48 = scmp.ne.s32.totalorder %s40, %s43
    %p49 = scmp.eq.s32.totalorder %s9, 0
    %p50 = por %p48, %p49
    %p51 = scmp.ne.s32.totalorder %s40, %s43
    %p52 = scmp.eq.s32.totalorder %s14, 1
    %p53 = por %p51, %p52
    %p54 = scmp.ne.s32.totalorder %s43, %s44
    %p55 = scmp.eq.s32.totalorder %s14, 0
    %p56 = por %p54, %p55
    %p57 = scmp.ne.s32.totalorder %s43, %s44
    %p58 = scmp.eq.s32.totalorder %s15, 1
    %p59 = por %p57, %p58
    %p61 = scmp.ne.s32.totalorder %s44, %s60
    %p62 = scmp.eq.s32.totalorder %s15, 0
    %p63 = por %p61, %p62
    %s64 = ssub.s32 %s16, %s35
    %s65 = ssub.s32 %s18, %s27
    %s66 = sor.u32 %s64, %s65
    %p67 = scmp.eq.s32.totalorder %s66, 0
    %s69 = sadd.s32 %s68, 1
    %s70 = scalar_select %p67, %s68, %s69
    %p73 = pneg %p67
    %p74 = scmp.eq.s32.totalorder %s9, 1
    %p75 = por %p73, %p74
    %p76 = scmp.ne.s32.totalorder %s68, %s71
    %p77 = scmp.eq.s32.totalorder %s9, 0
    %p78 = por %p76, %p77
    %p79 = scmp.ne.s32.totalorder %s68, %s71
    %p80 = scmp.eq.s32.totalorder %s14, 1
    %p81 = por %p79, %p80
    %p82 = scmp.ne.s32.totalorder %s71, %s72
    %p83 = scmp.eq.s32.totalorder %s14, 0
    %p84 = por %p82, %p83
    %p85 = scmp.ne.s32.totalorder %s71, %s72
    %p86 = scmp.eq.s32.totalorder %s15, 1
    %p87 = por %p85, %p86
    %p89 = scmp.ne.s32.totalorder %s72, %s88
    %p90 = scmp.eq.s32.totalorder %s15, 0
    %p91 = por %p89, %p90
    %s92 = ssub.s32 %s16, %s35
    %s93 = ssub.s32 %s18, %s27
    %s94 = sor.u32 %s92, %s93
    %p95 = scmp.eq.s32.totalorder %s94, 0
    %s97 = sadd.s32 %s96, 1
    %s98 = scalar_select %p95, %s96, %s97
    %p101 = pneg %p95
    %p102 = scmp.eq.s32.totalorder %s9, 1
    %p103 = por %p101, %p102
    %p104 = scmp.ne.s32.totalorder %s96, %s99
    %p105 = scmp.eq.s32.totalorder %s9, 0
    %p106 = por %p104, %p105
    %p107 = scmp.ne.s32.totalorder %s96, %s99
    %p108 = scmp.eq.s32.totalorder %s14, 1
    %p109 = por %p107, %p108
    %p110 = scmp.ne.s32.totalorder %s99, %s100
    %p111 = scmp.eq.s32.totalorder %s14, 0
    %p112 = por %p110, %p111
    %p113 = scmp.ne.s32.totalorder %s99, %s100
    %p114 = scmp.eq.s32.totalorder %s15, 1
    %p115 = por %p113, %p114
    %p117 = scmp.ne.s32.totalorder %s100, %s116
    %p118 = scmp.eq.s32.totalorder %s15, 0
    %p119 = por %p117, %p118
    %s120 = ssub.s32 %s16, %s35
    %s121 = ssub.s32 %s17, %s31
    %s122 = sor.u32 %s120, %s121
    %s123 = ssub.s32 %s18, %s27
    %s124 = sor.u32 %s122, %s123
    %p125 = scmp.eq.s32.totalorder %s124, 0
    %s127 = sadd.s32 %s126, 1
    %s128 = scalar_select %p125, %s126, %s127
    %p131 = pneg %p125
    %p132 = scmp.eq.s32.totalorder %s9, 1
    %p133 = por %p131, %p132
    %p134 = scmp.ne.s32.totalorder %s126, %s129
    %p135 = scmp.eq.s32.totalorder %s9, 0
    %p136 = por %p134, %p135
    %p137 = scmp.ne.s32.totalorder %s126, %s129
    %p138 = scmp.eq.s32.totalorder %s14, 1
    %p139 = por %p137, %p138
    %p140 = scmp.ne.s32.totalorder %s129, %s130
    %p141 = scmp.eq.s32.totalorder %s14, 0
    %p142 = por %p140, %p141
    %p143 = scmp.ne.s32.totalorder %s129, %s130
    %p144 = scmp.eq.s32.totalorder %s15, 1
    %p145 = por %p143, %p144
    %p147 = scmp.ne.s32.totalorder %s130, %s146
    %p148 = scmp.eq.s32.totalorder %s15, 0
    %p149 = por %p147, %p148
    %p150 = scmp.le.s32.totalorder 1, %s9
    %p151 = scmp.lt.s32.totalorder %s9, 3
    %p152 = pnand %p150, %p151
    %p153 = pneg %p152
    // Predicated region
    $region9: #{forward_fn.16} parent=5 // pred_check
      _
    $region10: #{forward_fn.16} parent=5 // pred_check_branch
      %155 = sbr.rel (%p152) target = $region12
    $region11: #{forward_fn.16} parent=5 // pred_region
      %s156 = ssub.s32 %s9, 1
    $region12: #{forward_fn.16} parent=5 // pred_fallthru
      _
    %p157 = scmp.lt.s32.totalorder %s9, 2
    // Predicated region
    $region13: #{forward_fn.16} parent=5 // pred_check
      %p158 = pneg %p157
    $region14: #{forward_fn.16} parent=5 // pred_check_branch
      %160 = sbr.rel (%p158) target = $region16
    $region15: #{forward_fn.16} parent=5 // pred_region
      // Predicated region
      $region17: #{forward_fn.16} parent=15 // pred_check
        %p161 = pneg %p50
      $region18: #{forward_fn.16} parent=15 // pred_check_branch
        %163 = sbr.rel (%p161) target = $region20
      $region19: #{forward_fn.16} parent=15 // pred_region
        %s164 = smul.u32 32, %s17
        %p165 = scmp.lt.s32.totalorder %s16, 1
        %s166 = scalar_select %p165, %s16, 1
        %p167 = scmp.lt.s32.totalorder %s164, 31
        %s168 = scalar_select %p167, %s164, 31
        %s169 = smul.addr %s166, 32
        %s170 = sadd.s32 %s168, %s169
        %s171 = smul.addr %s170, 4
        %s172 = scalar_lea.vmem %s0, %s171
        %s173 = smul.u32 32, %s17
      $region20: #{forward_fn.16} parent=15 // pred_fallthru
        _
      // Predicated region
      $region21: #{forward_fn.16} parent=15 // pred_check
        %p174 = pneg %p78
      $region22: #{forward_fn.16} parent=15 // pred_check_branch
        %176 = sbr.rel (%p174) target = $region24
      $region23: #{forward_fn.16} parent=15 // pred_region
        %p177 = scmp.lt.s32.totalorder %s16, 1
        %s178 = scalar_select %p177, %s16, 1
        %p179 = scmp.lt.s32.totalorder %s18, 0
        %s180 = scalar_select %p179, %s18, 0
        %s181 = smul.addr %s178, 16
        %s182 = sadd.s32 %s180, %s181
        %s183 = smul.addr %s182, 4
        %s184 = scalar_lea.vmem %s1, %s183
      $region24: #{forward_fn.16} parent=15 // pred_fallthru
        _
      // Predicated region
      $region25: #{forward_fn.16} parent=15 // pred_check
        %p185 = pneg %p106
      $region26: #{forward_fn.16} parent=15 // pred_check_branch
        %187 = sbr.rel (%p185) target = $region28
      $region27: #{forward_fn.16} parent=15 // pred_region
        %p188 = scmp.lt.s32.totalorder %s16, 1
        %s189 = scalar_select %p188, %s16, 1
        %p190 = scmp.lt.s32.totalorder %s18, 0
        %s191 = scalar_select %p190, %s18, 0
        %s192 = sadd.s32 %s191, %s189
        %s193 = scalar_lea.vmem %s2, %s192
      $region28: #{forward_fn.16} parent=15 // pred_fallthru
        _
    $region16: #{forward_fn.16} parent=5 // pred_fallthru
      _
    %p194 = scmp.le.s32.totalorder 1, %s9
    %p195 = scmp.lt.s32.totalorder %s9, 3
    %p196 = pnand %p194, %p195
    %p197 = pneg %p196
    // Predicated region
    $region29: #{forward_fn.16} parent=5 // pred_check
      _
    $region30: #{forward_fn.16} parent=5 // pred_check_branch
      %199 = sbr.rel (%p196) target = $region32
    $region31: #{forward_fn.16} parent=5 // pred_region
      %s200 = ssub.s32 %s9, 1
      %s201 = smul.u32 32, %s20
      %p202 = scmp.lt.s32.totalorder %s19, 1
      %s203 = scalar_select %p202, %s19, 1
      %p204 = scmp.lt.s32.totalorder %s201, 31
      %s205 = scalar_select %p204, %s201, 31
      %s206 = smul.addr %s203, 32
      %s207 = sadd.s32 %s205, %s206
      %s208 = smul.addr %s207, 4
      %s209 = scalar_lea.vmem %s0, %s208
      %p210 = pneg %p56
      %p211 = pneg %p53
      %p212 = scmp.lt.s32.totalorder %s19, 1
      %s213 = scalar_select %p212, %s19, 1
      %p214 = scmp.lt.s32.totalorder %s21, 0
      %s215 = scalar_select %p214, %s21, 0
      %s216 = smul.addr %s213, 16
      %s217 = sadd.s32 %s215, %s216
      %s218 = smul.addr %s217, 4
      %s219 = scalar_lea.vmem %s1, %s218
      %p220 = pneg %p84
      %p221 = pneg %p81
      %p222 = scmp.lt.s32.totalorder %s19, 1
      %s223 = scalar_select %p222, %s19, 1
      %p224 = scmp.lt.s32.totalorder %s21, 0
      %s225 = scalar_select %p224, %s21, 0
      %s226 = sadd.s32 %s225, %s223
      %s227 = scalar_lea.vmem %s2, %s226
      %p228 = pneg %p112
      %p229 = pneg %p109
      %p230 = pneg %p142
      %p231 = pneg %p139
      %s232 = smul.u32 32, %s20
      %p233 = scmp.lt.s32.totalorder %s19, 1
      %s234 = scalar_select %p233, %s19, 1
      %p235 = scmp.lt.s32.totalorder %s232, 31
      %s236 = scalar_select %p235, %s232, 31
      %p237 = scmp.lt.s32.totalorder %s21, 0
      %s238 = scalar_select %p237, %s21, 0
      %s239 = sadd.s32 %s238, %s236
      %s240 = smul.addr %s234, 32
      %s241 = sadd.s32 %s239, %s240
      %s242 = smul.addr %s241, 8
      %s243 = scalar_lea.vmem %s3, %s242
      %s244 = smul.u32 32, %s20
      %p245 = scmp.lt.s32.totalorder %s19, 1
      %s246 = scalar_select %p245, %s19, 1
      %p247 = scmp.lt.s32.totalorder %s244, 31
      %s248 = scalar_select %p247, %s244, 31
      %s249 = smul.addr %s246, 32
      %s250 = sadd.s32 %s248, %s249
      %s251 = smul.addr %s250, 4
      %s252 = scalar_lea.vmem %s0, %s251
      %s253 = smul.u32 32, %s20
      %p254 = scmp.lt.s32.totalorder %s19, 1
      %s255 = scalar_select %p254, %s19, 1
      %p256 = scmp.lt.s32.totalorder %s21, 0
      %s257 = scalar_select %p256, %s21, 0
      %s258 = smul.addr %s255, 16
      %s259 = sadd.s32 %s257, %s258
      %s260 = smul.addr %s259, 4
      %s261 = scalar_lea.vmem %s1, %s260
      %p262 = scmp.lt.s32.totalorder %s19, 1
      %s263 = scalar_select %p262, %s19, 1
      %p264 = scmp.lt.s32.totalorder %s21, 0
      %s265 = scalar_select %p264, %s21, 0
      %s266 = sadd.s32 %s265, %s263
      %s267 = scalar_lea.vmem %s2, %s266
      %s268 = smul.u32 32, %s20
      %p269 = scmp.lt.s32.totalorder %s19, 1
      %s270 = scalar_select %p269, %s19, 1
      %p271 = scmp.lt.s32.totalorder %s268, 31
      %s272 = scalar_select %p271, %s268, 31
      %p273 = scmp.lt.s32.totalorder %s21, 0
      %s274 = scalar_select %p273, %s21, 0
      %s275 = sadd.s32 %s274, %s272
      %s276 = smul.addr %s270, 32
      %s277 = sadd.s32 %s275, %s276
      %s278 = smul.addr %s277, 8
      %s279 = scalar_lea.vmem %s3, %s278
      %s280 = smul.u32 32, %s20
      %v282 = vld [vmem:[%s252] sm:$0xf]
      %v283 = vld [vmem:[%s252 + $0x4] sm:$0xf]
      %v284 = vld [vmem:[%s252 + $0x8] sm:$0xf]
      %v285 = vld [vmem:[%s252 + $0xc] sm:$0xf]
      %v286 = vld [vmem:[%s252 + $0x10] sm:$0xf]
      %v287 = vld [vmem:[%s252 + $0x14] sm:$0xf]
      %v288 = vld [vmem:[%s252 + $0x18] sm:$0xf]
      %v289 = vld [vmem:[%s252 + $0x1c] sm:$0xf]
      %v290 = vld [vmem:[%s252 + $0x20] sm:$0xf]
      %v291 = vld [vmem:[%s252 + $0x24] sm:$0xf]
      %v292 = vld [vmem:[%s252 + $0x28] sm:$0xf]
      %v293 = vld [vmem:[%s252 + $0x2c] sm:$0xf]
      %v294 = vld [vmem:[%s252 + $0x30] sm:$0xf]
      %v295 = vld [vmem:[%s252 + $0x34] sm:$0xf]
      %v296 = vld [vmem:[%s252 + $0x38] sm:$0xf]
      %v297 = vld [vmem:[%s252 + $0x3c] sm:$0xf]
      %v298 = vld [vmem:[%s252 + $0x40] sm:$0xf]
      %v299 = vld [vmem:[%s252 + $0x44] sm:$0xf]
      %v300 = vld [vmem:[%s252 + $0x48] sm:$0xf]
      %v301 = vld [vmem:[%s252 + $0x4c] sm:$0xf]
      %v302 = vld [vmem:[%s252 + $0x50] sm:$0xf]
      %v303 = vld [vmem:[%s252 + $0x54] sm:$0xf]
      %v304 = vld [vmem:[%s252 + $0x58] sm:$0xf]
      %v305 = vld [vmem:[%s252 + $0x5c] sm:$0xf]
      %v306 = vld [vmem:[%s252 + $0x60] sm:$0xf]
      %v307 = vld [vmem:[%s252 + $0x64] sm:$0xf]
      %v308 = vld [vmem:[%s252 + $0x68] sm:$0xf]
      %v309 = vld [vmem:[%s252 + $0x6c] sm:$0xf]
      %v310 = vld [vmem:[%s252 + $0x70] sm:$0xf]
      %v311 = vld [vmem:[%s252 + $0x74] sm:$0xf]
      %v312 = vld [vmem:[%s252 + $0x78] sm:$0xf]
      %v313 = vld [vmem:[%s252 + $0x7c] sm:$0xf]
      %v314 = vld [vmem:[%s261] sm:$0xf]
      %v315 = vld [vmem:[%s261 + $0x4] sm:$0xf]
      %v316 = vld [vmem:[%s261 + $0x8] sm:$0xf]
      %v317 = vld [vmem:[%s261 + $0xc] sm:$0xf]
      %v318 = vld [vmem:[%s261 + $0x10] sm:$0xf]
      %v319 = vld [vmem:[%s261 + $0x14] sm:$0xf]
      %v320 = vld [vmem:[%s261 + $0x18] sm:$0xf]
      %v321 = vld [vmem:[%s261 + $0x1c] sm:$0xf]
      %v322 = vld [vmem:[%s261 + $0x20] sm:$0xf]
      %v323 = vld [vmem:[%s261 + $0x24] sm:$0xf]
      %v324 = vld [vmem:[%s261 + $0x28] sm:$0xf]
      %v325 = vld [vmem:[%s261 + $0x2c] sm:$0xf]
      %v326 = vld [vmem:[%s261 + $0x30] sm:$0xf]
      %v327 = vld [vmem:[%s261 + $0x34] sm:$0xf]
      %v328 = vld [vmem:[%s261 + $0x38] sm:$0xf]
      %v329 = vld [vmem:[%s261 + $0x3c] sm:$0xf]
      %v330 = vld [vmem:[%s267] sm:$0x1]
      %v332 = vlaneseq
      %v333 = vshrl.u32 %v332, 7
      %v334 = vsub.s32 0, %v333
      %v335 = vrot.slane %v330, %v334
      %v369 = vunpack.c.l.b16 %v282
      %v370 = vunpack.c.l.b16 %v283
      %v371 = vunpack.c.l.b16 %v284
      %v372 = vunpack.c.l.b16 %v285
      %v373 = vunpack.c.l.b16 %v286
      %v374 = vunpack.c.l.b16 %v287
      %v375 = vunpack.c.l.b16 %v288
      %v376 = vunpack.c.l.b16 %v289
      %v377 = vunpack.c.l.b16 %v290
      %v378 = vunpack.c.l.b16 %v291
      %v379 = vunpack.c.l.b16 %v292
      %v380 = vunpack.c.l.b16 %v293
      %v381 = vunpack.c.l.b16 %v294
      %v382 = vunpack.c.l.b16 %v295
      %v383 = vunpack.c.l.b16 %v296
      %v384 = vunpack.c.l.b16 %v297
      %v385 = vunpack.c.l.b16 %v298
      %v386 = vunpack.c.l.b16 %v299
      %v387 = vunpack.c.l.b16 %v300
      %v388 = vunpack.c.l.b16 %v301
      %v389 = vunpack.c.l.b16 %v302
      %v390 = vunpack.c.l.b16 %v303
      %v391 = vunpack.c.l.b16 %v304
      %v392 = vunpack.c.l.b16 %v305
      %v393 = vunpack.c.l.b16 %v306
      %v394 = vunpack.c.l.b16 %v307
      %v395 = vunpack.c.l.b16 %v308
      %v396 = vunpack.c.l.b16 %v309
      %v397 = vunpack.c.l.b16 %v310
      %v398 = vunpack.c.l.b16 %v311
      %v399 = vunpack.c.l.b16 %v312
      %v400 = vunpack.c.l.b16 %v313
      %v401 = vpack.c.b16 %v370, %v369
      %v402 = vpack.c.b16 %v372, %v371
      %v403 = vpack.c.b16 %v374, %v373
      %v404 = vpack.c.b16 %v376, %v375
      %v405 = vpack.c.b16 %v378, %v377
      %v406 = vpack.c.b16 %v380, %v379
      %v407 = vpack.c.b16 %v382, %v381
      %v408 = vpack.c.b16 %v384, %v383
      %v409 = vpack.c.b16 %v386, %v385
      %v410 = vpack.c.b16 %v388, %v387
      %v411 = vpack.c.b16 %v390, %v389
      %v412 = vpack.c.b16 %v392, %v391
      %v413 = vpack.c.b16 %v394, %v393
      %v414 = vpack.c.b16 %v396, %v395
      %v415 = vpack.c.b16 %v398, %v397
      %v416 = vpack.c.b16 %v400, %v399
      %v449 = vunpack.c.l.b16 %v314
      %v450 = vunpack.c.l.b16 %v315
      %v451 = vunpack.c.l.b16 %v316
      %v452 = vunpack.c.l.b16 %v317
      %v453 = vunpack.c.l.b16 %v318
      %v454 = vunpack.c.l.b16 %v319
      %v455 = vunpack.c.l.b16 %v320
      %v456 = vunpack.c.l.b16 %v321
      %v457 = vunpack.c.l.b16 %v322
      %v458 = vunpack.c.l.b16 %v323
      %v459 = vunpack.c.l.b16 %v324
      %v460 = vunpack.c.l.b16 %v325
      %v461 = vunpack.c.l.b16 %v326
      %v462 = vunpack.c.l.b16 %v327
      %v463 = vunpack.c.l.b16 %v328
      %v464 = vunpack.c.l.b16 %v329
      %v465 = vpack.c.b16 %v450, %v449
      %v466 = vpack.c.b16 %v452, %v451
      %v467 = vpack.c.b16 %v454, %v453
      %v468 = vpack.c.b16 %v456, %v455
      %v469 = vpack.c.b16 %v458, %v457
      %v470 = vpack.c.b16 %v460, %v459
      %v471 = vpack.c.b16 %v462, %v461
      %v472 = vpack.c.b16 %v464, %v463
      %481 = vmatprep.subr.bf16.mxu0 0
      %482 = vmatpush1.bf16.msra.mxu0 %v465
      %483 = vmatprep.subr.bf16.mxu0 0
      %484 = vmatpush1.bf16.msra.mxu0 %v466
      %485 = vmatprep.subr.bf16.mxu0 0
      %486 = vmatpush1.bf16.msra.mxu0 %v467
      %487 = vmatprep.subr.bf16.mxu0 0
      %488 = vmatpush1.bf16.msra.mxu0 %v468
      %489 = vmatprep.subr.bf16.mxu0 0
      %490 = vmatpush1.bf16.msra.mxu0 %v469
      %491 = vmatprep.subr.bf16.mxu0 0
      %492 = vmatpush1.bf16.msra.mxu0 %v470
      %493 = vmatprep.subr.bf16.mxu0 0
      %494 = vmatpush1.bf16.msra.mxu0 %v471
      %495 = vmatprep.subr.bf16.mxu0 0
      %496 = vmatpush1.bf16.msra.mxu0 %v472
      %497 = vmatprep.subr.bf16.mxu0 0
      %498 = vmatpush1.bf16.msra.mxu0 0
      %499 = vmatprep.subr.bf16.mxu0 0
      %500 = vmatpush1.bf16.msra.mxu0 0
      %501 = vmatprep.subr.bf16.mxu0 0
      %502 = vmatpush1.bf16.msra.mxu0 0
      %503 = vmatprep.subr.bf16.mxu0 0
      %504 = vmatpush1.bf16.msra.mxu0 0
      %505 = vmatprep.subr.bf16.mxu0 0
      %506 = vmatpush1.bf16.msra.mxu0 0
      %507 = vmatprep.subr.bf16.mxu0 0
      %508 = vmatpush1.bf16.msra.mxu0 0
      %509 = vmatprep.subr.bf16.mxu0 0
      %510 = vmatpush1.bf16.msra.mxu0 0
      %511 = vmatprep.subr.bf16.mxu0 0
      %512 = vmatpush1.bf16.msra.mxu0 0
      %513 = vmatprep.mubr.bf16.mxu0 0
      %514 = vmatmul.mubr.bf16.gmra.mrb[0].mxu0 %v401
      %v515 = vpop.f32.mrb[0].mxu0
      %v516 = vadd.f32 %v335, %v515
      %v517 = vpop.f32.mrb[0].mxu0
      %v518 = vpop.f32.mrb[0].mxu0
      %v519 = vadd.f32 %v335, %v518
      %v520 = vpop.f32.mrb[0].mxu0
      %521 = vmatprep.mubr.bf16.mxu0 0
      %522 = vmatmul.mubr.bf16.gmra.mrb[0].mxu0 %v402
      %v523 = vpop.f32.mrb[0].mxu0
      %v524 = vadd.f32 %v335, %v523
      %v525 = vpop.f32.mrb[0].mxu0
      %v526 = vpop.f32.mrb[0].mxu0
      %v527 = vadd.f32 %v335, %v526
      %v528 = vpop.f32.mrb[0].mxu0
      %529 = vmatprep.mubr.bf16.mxu0 0
      %530 = vmatmul.mubr.bf16.gmra.mrb[0].mxu0 %v403
      %v531 = vpop.f32.mrb[0].mxu0
      %v532 = vadd.f32 %v335, %v531
      %v533 = vpop.f32.mrb[0].mxu0
      %v534 = vpop.f32.mrb[0].mxu0
      %v535 = vadd.f32 %v335, %v534
      %v536 = vpop.f32.mrb[0].mxu0
      %537 = vmatprep.mubr.bf16.mxu0 0
      %538 = vmatmul.mubr.bf16.gmra.mrb[0].mxu0 %v404
      %v539 = vpop.f32.mrb[0].mxu0
      %v540 = vadd.f32 %v335, %v539
      %v541 = vpop.f32.mrb[0].mxu0
      %v542 = vpop.f32.mrb[0].mxu0
      %v543 = vadd.f32 %v335, %v542
      %v544 = vpop.f32.mrb[0].mxu0
      %545 = vmatprep.mubr.bf16.mxu0 0
      %546 = vmatmul.mubr.bf16.gmra.mrb[0].mxu0 %v405
      %v547 = vpop.f32.mrb[0].mxu0
      %v548 = vadd.f32 %v335, %v547
      %v549 = vpop.f32.mrb[0].mxu0
      %v550 = vpop.f32.mrb[0].mxu0
      %v551 = vadd.f32 %v335, %v550
      %v552 = vpop.f32.mrb[0].mxu0
      %553 = vmatprep.mubr.bf16.mxu0 0
      %554 = vmatmul.mubr.bf16.gmra.mrb[0].mxu0 %v406
      %v555 = vpop.f32.mrb[0].mxu0
      %v556 = vadd.f32 %v335, %v555
      %v557 = vpop.f32.mrb[0].mxu0
      %v558 = vpop.f32.mrb[0].mxu0
      %v559 = vadd.f32 %v335, %v558
      %v560 = vpop.f32.mrb[0].mxu0
      %561 = vmatprep.mubr.bf16.mxu0 0
      %562 = vmatmul.mubr.bf16.gmra.mrb[0].mxu0 %v407
      %v563 = vpop.f32.mrb[0].mxu0
      %v564 = vadd.f32 %v335, %v563
      %v565 = vpop.f32.mrb[0].mxu0
      %v566 = vpop.f32.mrb[0].mxu0
      %v567 = vadd.f32 %v335, %v566
      %v568 = vpop.f32.mrb[0].mxu0
      %569 = vmatprep.mubr.bf16.mxu0 0
      %570 = vmatmul.mubr.bf16.gmra.mrb[0].mxu0 %v408
      %v571 = vpop.f32.mrb[0].mxu0
      %v572 = vadd.f32 %v335, %v571
      %v573 = vpop.f32.mrb[0].mxu0
      %v574 = vpop.f32.mrb[0].mxu0
      %v575 = vadd.f32 %v335, %v574
      %v576 = vpop.f32.mrb[0].mxu0
      %577 = vmatprep.mubr.bf16.mxu0 0
      %578 = vmatmul.mubr.bf16.gmra.mrb[0].mxu0 %v409
      %v579 = vpop.f32.mrb[0].mxu0
      %v580 = vadd.f32 %v335, %v579
      %v581 = vpop.f32.mrb[0].mxu0
      %v582 = vpop.f32.mrb[0].mxu0
      %v583 = vadd.f32 %v335, %v582
      %v584 = vpop.f32.mrb[0].mxu0
      %585 = vmatprep.mubr.bf16.mxu0 0
      %586 = vmatmul.mubr.bf16.gmra.mrb[0].mxu0 %v410
      %v587 = vpop.f32.mrb[0].mxu0
      %v588 = vadd.f32 %v335, %v587
      %v589 = vpop.f32.mrb[0].mxu0
      %v590 = vpop.f32.mrb[0].mxu0
      %v591 = vadd.f32 %v335, %v590
      %v592 = vpop.f32.mrb[0].mxu0
      %593 = vmatprep.mubr.bf16.mxu0 0
      %594 = vmatmul.mubr.bf16.gmra.mrb[0].mxu0 %v411
      %v595 = vpop.f32.mrb[0].mxu0
      %v596 = vadd.f32 %v335, %v595
      %v597 = vpop.f32.mrb[0].mxu0
      %v598 = vpop.f32.mrb[0].mxu0
      %v599 = vadd.f32 %v335, %v598
      %v600 = vpop.f32.mrb[0].mxu0
      %601 = vmatprep.mubr.bf16.mxu0 0
      %602 = vmatmul.mubr.bf16.gmra.mrb[0].mxu0 %v412
      %v603 = vpop.f32.mrb[0].mxu0
      %v604 = vadd.f32 %v335, %v603
      %v605 = vpop.f32.mrb[0].mxu0
      %v606 = vpop.f32.mrb[0].mxu0
      %v607 = vadd.f32 %v335, %v606
      %v608 = vpop.f32.mrb[0].mxu0
      %609 = vmatprep.mubr.bf16.mxu0 0
      %610 = vmatmul.mubr.bf16.gmra.mrb[0].mxu0 %v413
      %v611 = vpop.f32.mrb[0].mxu0
      %v612 = vadd.f32 %v335, %v611
      %v613 = vpop.f32.mrb[0].mxu0
      %v614 = vpop.f32.mrb[0].mxu0
      %v615 = vadd.f32 %v335, %v614
      %v616 = vpop.f32.mrb[0].mxu0
      %617 = vmatprep.mubr.bf16.mxu0 0
      %618 = vmatmul.mubr.bf16.gmra.mrb[0].mxu0 %v414
      %v619 = vpop.f32.mrb[0].mxu0
      %v620 = vadd.f32 %v335, %v619
      %v621 = vpop.f32.mrb[0].mxu0
      %v622 = vpop.f32.mrb[0].mxu0
      %v623 = vadd.f32 %v335, %v622
      %v624 = vpop.f32.mrb[0].mxu0
      %625 = vmatprep.mubr.bf16.mxu0 0
      %626 = vmatmul.mubr.bf16.gmra.mrb[0].mxu0 %v415
      %v627 = vpop.f32.mrb[0].mxu0
      %v628 = vadd.f32 %v335, %v627
      %v629 = vpop.f32.mrb[0].mxu0
      %v630 = vpop.f32.mrb[0].mxu0
      %v631 = vadd.f32 %v335, %v630
      %v632 = vpop.f32.mrb[0].mxu0
      %633 = vmatprep.mubr.bf16.mxu0 0
      %634 = vmatmul.mubr.bf16.gmra.mrb[0].mxu0 %v416
      %v635 = vpop.f32.mrb[0].mxu0
      %v636 = vadd.f32 %v335, %v635
      %v637 = vpop.f32.mrb[0].mxu0
      %v638 = vpop.f32.mrb[0].mxu0
      %v639 = vadd.f32 %v335, %v638
      %v640 = vpop.f32.mrb[0].mxu0
      %641 = vdwg.mxu0
      %v642 = vmax.f32 %v516, 0.0
      %v643 = vmax.f32 %v519, 0.0
      %v644 = vmax.f32 %v524, 0.0
      %v645 = vmax.f32 %v527, 0.0
      %v646 = vmax.f32 %v532, 0.0
      %v647 = vmax.f32 %v535, 0.0
      %v648 = vmax.f32 %v540, 0.0
      %v649 = vmax.f32 %v543, 0.0
      %v650 = vmax.f32 %v548, 0.0
      %v651 = vmax.f32 %v551, 0.0
      %v652 = vmax.f32 %v556, 0.0
      %v653 = vmax.f32 %v559, 0.0
      %v654 = vmax.f32 %v564, 0.0
      %v655 = vmax.f32 %v567, 0.0
      %v656 = vmax.f32 %v572, 0.0
      %v657 = vmax.f32 %v575, 0.0
      %v658 = vmax.f32 %v580, 0.0
      %v659 = vmax.f32 %v583, 0.0
      %v660 = vmax.f32 %v588, 0.0
      %v661 = vmax.f32 %v591, 0.0
      %v662 = vmax.f32 %v596, 0.0
      %v663 = vmax.f32 %v599, 0.0
      %v664 = vmax.f32 %v604, 0.0
      %v665 = vmax.f32 %v607, 0.0
      %v666 = vmax.f32 %v612, 0.0
      %v667 = vmax.f32 %v615, 0.0
      %v668 = vmax.f32 %v620, 0.0
      %v669 = vmax.f32 %v623, 0.0
      %v670 = vmax.f32 %v628, 0.0
      %v671 = vmax.f32 %v631, 0.0
      %v672 = vmax.f32 %v636, 0.0
      %v673 = vmax.f32 %v639, 0.0
      %674 = vst [vmem:[%s279] sm:$0xff] %v642
      %675 = vst [vmem:[%s279 + $0x8] sm:$0xff] %v643
      %676 = vst [vmem:[%s279 + $0x10] sm:$0xff] %v644
      %677 = vst [vmem:[%s279 + $0x18] sm:$0xff] %v645
      %678 = vst [vmem:[%s279 + $0x20] sm:$0xff] %v646
      %679 = vst [vmem:[%s279 + $0x28] sm:$0xff] %v647
      %680 = vst [vmem:[%s279 + $0x30] sm:$0xff] %v648
      %681 = vst [vmem:[%s279 + $0x38] sm:$0xff] %v649
      %682 = vst [vmem:[%s279 + $0x40] sm:$0xff] %v650
      %683 = vst [vmem:[%s279 + $0x48] sm:$0xff] %v651
      %684 = vst [vmem:[%s279 + $0x50] sm:$0xff] %v652
      %685 = vst [vmem:[%s279 + $0x58] sm:$0xff] %v653
      %686 = vst [vmem:[%s279 + $0x60] sm:$0xff] %v654
      %687 = vst [vmem:[%s279 + $0x68] sm:$0xff] %v655
      %688 = vst [vmem:[%s279 + $0x70] sm:$0xff] %v656
      %689 = vst [vmem:[%s279 + $0x78] sm:$0xff] %v657
      %690 = vst [vmem:[%s279 + $0x80] sm:$0xff] %v658
      %691 = vst [vmem:[%s279 + $0x88] sm:$0xff] %v659
      %692 = vst [vmem:[%s279 + $0x90] sm:$0xff] %v660
      %693 = vst [vmem:[%s279 + $0x98] sm:$0xff] %v661
      %694 = vst [vmem:[%s279 + $0xa0] sm:$0xff] %v662
      %695 = vst [vmem:[%s279 + $0xa8] sm:$0xff] %v663
      %696 = vst [vmem:[%s279 + $0xb0] sm:$0xff] %v664
      %697 = vst [vmem:[%s279 + $0xb8] sm:$0xff] %v665
      %698 = vst [vmem:[%s279 + $0xc0] sm:$0xff] %v666
      %699 = vst [vmem:[%s279 + $0xc8] sm:$0xff] %v667
      %700 = vst [vmem:[%s279 + $0xd0] sm:$0xff] %v668
      %701 = vst [vmem:[%s279 + $0xd8] sm:$0xff] %v669
      %702 = vst [vmem:[%s279 + $0xe0] sm:$0xff] %v670
      %703 = vst [vmem:[%s279 + $0xe8] sm:$0xff] %v671
      %704 = vst [vmem:[%s279 + $0xf0] sm:$0xff] %v672
      %705 = vst [vmem:[%s279 + $0xf8] sm:$0xff] %v673
      %s706 = smul.u32 32, %s20
      %p707 = scmp.lt.s32.totalorder %s19, 1
      %s708 = scalar_select %p707, %s19, 1
      %p709 = scmp.lt.s32.totalorder %s706, 31
      %s710 = scalar_select %p709, %s706, 31
      %p711 = scmp.lt.s32.totalorder %s21, 0
      %s712 = scalar_select %p711, %s21, 0
      %s713 = sadd.s32 %s712, %s710
      %s714 = smul.addr %s708, 32
      %s715 = sadd.s32 %s713, %s714
      %s716 = smul.addr %s715, 8
      %s717 = scalar_lea.vmem %s3, %s716
      // Predicated region
      $region33: #{forward_fn.16} parent=31 // pred_check
        %p718 = pneg %p139
      $region34: #{forward_fn.16} parent=31 // pred_check_branch
        %720 = sbr.rel (%p718) target = $region36
      $region35: #{forward_fn.16} parent=31 // pred_region
        %s721 = smul.u32 32, %s20
      $region36: #{forward_fn.16} parent=31 // pred_fallthru
        _
    $region32: #{forward_fn.16} parent=5 // pred_fallthru
      _
    %p722 = scmp.le.s32.totalorder 2, %s9
    // Predicated region
    $region37: #{forward_fn.16} parent=5 // pred_check
      %p723 = pneg %p722
    $region38: #{forward_fn.16} parent=5 // pred_check_branch
      %725 = sbr.rel (%p723) target = $region40
    $region39: #{forward_fn.16} parent=5 // pred_region
      %s726 = ssub.s32 %s9, 2
      // Predicated region
      $region41: #{forward_fn.16} parent=39 // pred_check
        %p727 = pneg %p145
      $region42: #{forward_fn.16} parent=39 // pred_check_branch
        %729 = sbr.rel (%p727) target = $region44
      $region43: #{forward_fn.16} parent=39 // pred_region
        %s730 = smul.u32 32, %s23
        %p731 = scmp.lt.s32.totalorder %s22, 1
        %s732 = scalar_select %p731, %s22, 1
        %p733 = scmp.lt.s32.totalorder %s730, 31
        %s734 = scalar_select %p733, %s730, 31
        %p735 = scmp.lt.s32.totalorder %s24, 0
        %s736 = scalar_select %p735, %s24, 0
        %s737 = sadd.s32 %s736, %s734
        %s738 = smul.addr %s732, 32
        %s739 = sadd.s32 %s737, %s738
        %s740 = smul.addr %s739, 8
        %s741 = scalar_lea.vmem %s3, %s740
      $region44: #{forward_fn.16} parent=39 // pred_fallthru
        _
    $region40: #{forward_fn.16} parent=5 // pred_fallthru
      _
  $region6: #{forward_fn.16} parent=0 // loop_footer
    %s13 = sadd.s32 1, %s9
  $region7: #{forward_fn.16} parent=0 // loop_footer_branch
    %8 = sbr.rel target = $region3
  $region8: #{forward_fn.16} parent=0 // loop_exit
    _

// kernel: forward_fn.17
$region0: #{forward_fn.17}
  #allocation0 [shape = 'u32[]', space=smem, size = 0x4, offset = 0x4, fixed_abs, tag = 'smem constant byte address 0x4 - core index']
  #allocation1 [shape = 'u32[144,128]{1,0:T(1,128)}', space=vmem, size = 0x12000, scoped, tag = 'internal scratch']
  %s0 = inlined_call_operand.vmem [shape: bf16[2,256,256], index: 0, kind: input, shape index: {}]
  %s1 = inlined_call_operand.vmem [shape: bf16[2,256,128], index: 1, kind: input, shape index: {}]
  %s2 = inlined_call_operand.vmem [shape: f32[2,1,128], index: 2, kind: input, shape index: {}]
  %s3 = inlined_call_operand.vmem [shape: f32[2,256,128], index: 3, kind: output, shape index: {}]
  %s4 = sld [smem:[#allocation0]]
  $region45: #{forward_fn.17} parent=0
    _
  %s6 = ssub.s32 1, %s4
  %s7 = scalar_select 0, %s6, %s4
  loop: start=0, step=1, limit=4
  $region2: #{forward_fn.17} parent=0 // loop_pre_header
    _
  $region3: #{forward_fn.17} parent=0 // loop_header
    %s9 = sphi 0, %s13
    %p10 = scmp.ge.s32.totalorder %s9, 4
    %s16 = sphi 0, %s35
    %s17 = sphi 0, %s31
    %s18 = sphi 0, %s27
    %s19 = sphi 0, %s16
    %s20 = sphi 0, %s17
    %s21 = sphi 0, %s18
    %s22 = sphi 0, %s19
    %s23 = sphi 0, %s20
    %s24 = sphi 0, %s21
    %s40 = sphi 0, %s42
    %s43 = sphi 0, %s40
    %s44 = sphi 0, %s43
    %s60 = sphi 0, %s44
    %s68 = sphi 0, %s70
    %s71 = sphi 0, %s68
    %s72 = sphi 0, %s71
    %s88 = sphi 0, %s72
    %s96 = sphi 0, %s98
    %s99 = sphi 0, %s96
    %s100 = sphi 0, %s99
    %s116 = sphi 0, %s100
    %s126 = sphi 0, %s128
    %s129 = sphi 0, %s126
    %s130 = sphi 0, %s129
    %s146 = sphi 0, %s130
  $region4: #{forward_fn.17} parent=0 // loop_header_branch
    %12 = sbr.rel (%p10) target = $region8
  $region5: #{forward_fn.17} parent=0 // loop_body
    %s14 = ssub.s32 %s9, 1
    %s15 = ssub.s32 %s9, 2
    %s25 = sadd.s32 1, %s18
    %p26 = scmp.ge.s32.totalorder %s25, 1
    %s27 = scalar_select %p26, 0, %s25
    %s28 = sadd.s32 1, %s17
    %s29 = scalar_select %p26, %s28, %s17
    %p30 = scmp.ge.s32.totalorder %s29, 1
    %s31 = scalar_select %p30, 0, %s29
    %s32 = sadd.s32 1, %s16
    %s33 = scalar_select %p30, %s32, %s16
    %p34 = scmp.ge.s32.totalorder %s33, 2
    %s35 = scalar_select %p34, 0, %s33
    %s36 = ssub.s32 %s16, %s35
    %s37 = ssub.s32 %s17, %s31
    %s38 = sor.u32 %s36, %s37
    %p39 = scmp.eq.s32.totalorder %s38, 0
    %s41 = sadd.s32 %s40, 1
    %s42 = scalar_select %p39, %s40, %s41
    %p45 = pneg %p39
    %p46 = scmp.eq.s32.totalorder %s9, 1
    %p47 = por %p45, %p46
    %p48 = scmp.ne.s32.totalorder %s40, %s43
    %p49 = scmp.eq.s32.totalorder %s9, 0
    %p50 = por %p48, %p49
    %p51 = scmp.ne.s32.totalorder %s40, %s43
    %p52 = scmp.eq.s32.totalorder %s14, 1
    %p53 = por %p51, %p52
    %p54 = scmp.ne.s32.totalorder %s43, %s44
    %p55 = scmp.eq.s32.totalorder %s14, 0
    %p56 = por %p54, %p55
    %p57 = scmp.ne.s32.totalorder %s43, %s44
    %p58 = scmp.eq.s32.totalorder %s15, 1
    %p59 = por %p57, %p58
    %p61 = scmp.ne.s32.totalorder %s44, %s60
    %p62 = scmp.eq.s32.totalorder %s15, 0
    %p63 = por %p61, %p62
    %s64 = ssub.s32 %s16, %s35
    %s65 = ssub.s32 %s18, %s27
    %s66 = sor.u32 %s64, %s65
    %p67 = scmp.eq.s32.totalorder %s66, 0
    %s69 = sadd.s32 %s68, 1
    %s70 = scalar_select %p67, %s68, %s69
    %p73 = pneg %p67
    %p74 = scmp.eq.s32.totalorder %s9, 1
    %p75 = por %p73, %p74
    %p76 = scmp.ne.s32.totalorder %s68, %s71
    %p77 = scmp.eq.s32.totalorder %s9, 0
    %p78 = por %p76, %p77
    %p79 = scmp.ne.s32.totalorder %s68, %s71
    %p80 = scmp.eq.s32.totalorder %s14, 1
    %p81 = por %p79, %p80
    %p82 = scmp.ne.s32.totalorder %s71, %s72
    %p83 = scmp.eq.s32.totalorder %s14, 0
    %p84 = por %p82, %p83
    %p85 = scmp.ne.s32.totalorder %s71, %s72
    %p86 = scmp.eq.s32.totalorder %s15, 1
    %p87 = por %p85, %p86
    %p89 = scmp.ne.s32.totalorder %s72, %s88
    %p90 = scmp.eq.s32.totalorder %s15, 0
    %p91 = por %p89, %p90
    %s92 = ssub.s32 %s16, %s35
    %s93 = ssub.s32 %s18, %s27
    %s94 = sor.u32 %s92, %s93
    %p95 = scmp.eq.s32.totalorder %s94, 0
    %s97 = sadd.s32 %s96, 1
    %s98 = scalar_select %p95, %s96, %s97
    %p101 = pneg %p95
    %p102 = scmp.eq.s32.totalorder %s9, 1
    %p103 = por %p101, %p102
    %p104 = scmp.ne.s32.totalorder %s96, %s99
    %p105 = scmp.eq.s32.totalorder %s9, 0
    %p106 = por %p104, %p105
    %p107 = scmp.ne.s32.totalorder %s96, %s99
    %p108 = scmp.eq.s32.totalorder %s14, 1
    %p109 = por %p107, %p108
    %p110 = scmp.ne.s32.totalorder %s99, %s100
    %p111 = scmp.eq.s32.totalorder %s14, 0
    %p112 = por %p110, %p111
    %p113 = scmp.ne.s32.totalorder %s99, %s100
    %p114 = scmp.eq.s32.totalorder %s15, 1
    %p115 = por %p113, %p114
    %p117 = scmp.ne.s32.totalorder %s100, %s116
    %p118 = scmp.eq.s32.totalorder %s15, 0
    %p119 = por %p117, %p118
    %s120 = ssub.s32 %s16, %s35
    %s121 = ssub.s32 %s17, %s31
    %s122 = sor.u32 %s120, %s121
    %s123 = ssub.s32 %s18, %s27
    %s124 = sor.u32 %s122, %s123
    %p125 = scmp.eq.s32.totalorder %s124, 0
    %s127 = sadd.s32 %s126, 1
    %s128 = scalar_select %p125, %s126, %s127
    %p131 = pneg %p125
    %p132 = scmp.eq.s32.totalorder %s9, 1
    %p133 = por %p131, %p132
    %p134 = scmp.ne.s32.totalorder %s126, %s129
    %p135 = scmp.eq.s32.totalorder %s9, 0
    %p136 = por %p134, %p135
    %p137 = scmp.ne.s32.totalorder %s126, %s129
    %p138 = scmp.eq.s32.totalorder %s14, 1
    %p139 = por %p137, %p138
    %p140 = scmp.ne.s32.totalorder %s129, %s130
    %p141 = scmp.eq.s32.totalorder %s14, 0
    %p142 = por %p140, %p141
    %p143 = scmp.ne.s32.totalorder %s129, %s130
    %p144 = scmp.eq.s32.totalorder %s15, 1
    %p145 = por %p143, %p144
    %p147 = scmp.ne.s32.totalorder %s130, %s146
    %p148 = scmp.eq.s32.totalorder %s15, 0
    %p149 = por %p147, %p148
    %p150 = scmp.le.s32.totalorder 1, %s9
    %p151 = scmp.lt.s32.totalorder %s9, 3
    %p152 = pnand %p150, %p151
    %p153 = pneg %p152
    // Predicated region
    $region9: #{forward_fn.17} parent=5 // pred_check
      _
    $region10: #{forward_fn.17} parent=5 // pred_check_branch
      %155 = sbr.rel (%p152) target = $region12
    $region11: #{forward_fn.17} parent=5 // pred_region
      %s156 = ssub.s32 %s9, 1
    $region12: #{forward_fn.17} parent=5 // pred_fallthru
      _
    %p157 = scmp.lt.s32.totalorder %s9, 2
    // Predicated region
    $region13: #{forward_fn.17} parent=5 // pred_check
      %p158 = pneg %p157
    $region14: #{forward_fn.17} parent=5 // pred_check_branch
      %160 = sbr.rel (%p158) target = $region16
    $region15: #{forward_fn.17} parent=5 // pred_region
      // Predicated region
      $region17: #{forward_fn.17} parent=15 // pred_check
        %p161 = pneg %p50
      $region18: #{forward_fn.17} parent=15 // pred_check_branch
        %163 = sbr.rel (%p161) target = $region20
      $region19: #{forward_fn.17} parent=15 // pred_region
        %s164 = smul.u32 32, %s17
        %p165 = scmp.lt.s32.totalorder %s16, 1
        %s166 = scalar_select %p165, %s16, 1
        %p167 = scmp.lt.s32.totalorder %s164, 31
        %s168 = scalar_select %p167, %s164, 31
        %s169 = smul.addr %s168, 2
        %s170 = smul.addr %s166, 64
        %s171 = sadd.s32 %s169, %s170
        %s172 = smul.addr %s171, 4
        %s173 = scalar_lea.vmem %s0, %s172
        %s174 = smul.u32 32, %s17
      $region20: #{forward_fn.17} parent=15 // pred_fallthru
        _
      // Predicated region
      $region21: #{forward_fn.17} parent=15 // pred_check
        %p175 = pneg %p78
      $region22: #{forward_fn.17} parent=15 // pred_check_branch
        %177 = sbr.rel (%p175) target = $region24
      $region23: #{forward_fn.17} parent=15 // pred_region
        %p178 = scmp.lt.s32.totalorder %s16, 1
        %s179 = scalar_select %p178, %s16, 1
        %p180 = scmp.lt.s32.totalorder %s18, 0
        %s181 = scalar_select %p180, %s18, 0
        %s182 = smul.addr %s179, 32
        %s183 = sadd.s32 %s181, %s182
        %s184 = smul.addr %s183, 4
        %s185 = scalar_lea.vmem %s1, %s184
      $region24: #{forward_fn.17} parent=15 // pred_fallthru
        _
      // Predicated region
      $region25: #{forward_fn.17} parent=15 // pred_check
        %p186 = pneg %p106
      $region26: #{forward_fn.17} parent=15 // pred_check_branch
        %188 = sbr.rel (%p186) target = $region28
      $region27: #{forward_fn.17} parent=15 // pred_region
        %p189 = scmp.lt.s32.totalorder %s16, 1
        %s190 = scalar_select %p189, %s16, 1
        %p191 = scmp.lt.s32.totalorder %s18, 0
        %s192 = scalar_select %p191, %s18, 0
        %s193 = sadd.s32 %s192, %s190
        %s194 = scalar_lea.vmem %s2, %s193
      $region28: #{forward_fn.17} parent=15 // pred_fallthru
        _
    $region16: #{forward_fn.17} parent=5 // pred_fallthru
      _
    %p195 = scmp.le.s32.totalorder 1, %s9
    %p196 = scmp.lt.s32.totalorder %s9, 3
    %p197 = pnand %p195, %p196
    %p198 = pneg %p197
    // Predicated region
    $region29: #{forward_fn.17} parent=5 // pred_check
      _
    $region30: #{forward_fn.17} parent=5 // pred_check_branch
      %200 = sbr.rel (%p197) target = $region32
    $region31: #{forward_fn.17} parent=5 // pred_region
      %s201 = ssub.s32 %s9, 1
      %s202 = smul.u32 32, %s20
      %p203 = scmp.lt.s32.totalorder %s19, 1
      %s204 = scalar_select %p203, %s19, 1
      %p205 = scmp.lt.s32.totalorder %s202, 31
      %s206 = scalar_select %p205, %s202, 31
      %s207 = smul.addr %s206, 2
      %s208 = smul.addr %s204, 64
      %s209 = sadd.s32 %s207, %s208
      %s210 = smul.addr %s209, 4
      %s211 = scalar_lea.vmem %s0, %s210
      %p212 = pneg %p56
      %p213 = pneg %p53
      %p214 = scmp.lt.s32.totalorder %s19, 1
      %s215 = scalar_select %p214, %s19, 1
      %p216 = scmp.lt.s32.totalorder %s21, 0
      %s217 = scalar_select %p216, %s21, 0
      %s218 = smul.addr %s215, 32
      %s219 = sadd.s32 %s217, %s218
      %s220 = smul.addr %s219, 4
      %s221 = scalar_lea.vmem %s1, %s220
      %p222 = pneg %p84
      %p223 = pneg %p81
      %p224 = scmp.lt.s32.totalorder %s19, 1
      %s225 = scalar_select %p224, %s19, 1
      %p226 = scmp.lt.s32.totalorder %s21, 0
      %s227 = scalar_select %p226, %s21, 0
      %s228 = sadd.s32 %s227, %s225
      %s229 = scalar_lea.vmem %s2, %s228
      %p230 = pneg %p112
      %p231 = pneg %p109
      %p232 = pneg %p142
      %p233 = pneg %p139
      %s234 = smul.u32 32, %s20
      %p235 = scmp.lt.s32.totalorder %s19, 1
      %s236 = scalar_select %p235, %s19, 1
      %p237 = scmp.lt.s32.totalorder %s234, 31
      %s238 = scalar_select %p237, %s234, 31
      %p239 = scmp.lt.s32.totalorder %s21, 0
      %s240 = scalar_select %p239, %s21, 0
      %s241 = sadd.s32 %s240, %s238
      %s242 = smul.addr %s236, 32
      %s243 = sadd.s32 %s241, %s242
      %s244 = smul.addr %s243, 8
      %s245 = scalar_lea.vmem %s3, %s244
      %s246 = smul.u32 32, %s20
      %p247 = scmp.lt.s32.totalorder %s19, 1
      %s248 = scalar_select %p247, %s19, 1
      %p249 = scmp.lt.s32.totalorder %s246, 31
      %s250 = scalar_select %p249, %s246, 31
      %s251 = smul.addr %s250, 2
      %s252 = smul.addr %s248, 64
      %s253 = sadd.s32 %s251, %s252
      %s254 = smul.addr %s253, 4
      %s255 = scalar_lea.vmem %s0, %s254
      %s256 = smul.u32 32, %s20
      %p257 = scmp.lt.s32.totalorder %s19, 1
      %s258 = scalar_select %p257, %s19, 1
      %p259 = scmp.lt.s32.totalorder %s21, 0
      %s260 = scalar_select %p259, %s21, 0
      %s261 = smul.addr %s258, 32
      %s262 = sadd.s32 %s260, %s261
      %s263 = smul.addr %s262, 4
      %s264 = scalar_lea.vmem %s1, %s263
      %p265 = scmp.lt.s32.totalorder %s19, 1
      %s266 = scalar_select %p265, %s19, 1
      %p267 = scmp.lt.s32.totalorder %s21, 0
      %s268 = scalar_select %p267, %s21, 0
      %s269 = sadd.s32 %s268, %s266
      %s270 = scalar_lea.vmem %s2, %s269
      %s271 = smul.u32 32, %s20
      %p272 = scmp.lt.s32.totalorder %s19, 1
      %s273 = scalar_select %p272, %s19, 1
      %p274 = scmp.lt.s32.totalorder %s271, 31
      %s275 = scalar_select %p274, %s271, 31
      %p276 = scmp.lt.s32.totalorder %s21, 0
      %s277 = scalar_select %p276, %s21, 0
      %s278 = sadd.s32 %s277, %s275
      %s279 = smul.addr %s273, 32
      %s280 = sadd.s32 %s278, %s279
      %s281 = smul.addr %s280, 8
      %s282 = scalar_lea.vmem %s3, %s281
      %s283 = smul.u32 32, %s20
      %v285 = vld [vmem:[%s255] sm:$0xff]
      %v286 = vld [vmem:[%s255 + $0x8] sm:$0xff]
      %v287 = vld [vmem:[%s255 + $0x10] sm:$0xff]
      %v288 = vld [vmem:[%s255 + $0x18] sm:$0xff]
      %v289 = vld [vmem:[%s255 + $0x20] sm:$0xff]
      %v290 = vld [vmem:[%s255 + $0x28] sm:$0xff]
      %v291 = vld [vmem:[%s255 + $0x30] sm:$0xff]
      %v292 = vld [vmem:[%s255 + $0x38] sm:$0xff]
      %v293 = vld [vmem:[%s255 + $0x40] sm:$0xff]
      %v294 = vld [vmem:[%s255 + $0x48] sm:$0xff]
      %v295 = vld [vmem:[%s255 + $0x50] sm:$0xff]
      %v296 = vld [vmem:[%s255 + $0x58] sm:$0xff]
      %v297 = vld [vmem:[%s255 + $0x60] sm:$0xff]
      %v298 = vld [vmem:[%s255 + $0x68] sm:$0xff]
      %v299 = vld [vmem:[%s255 + $0x70] sm:$0xff]
      %v300 = vld [vmem:[%s255 + $0x78] sm:$0xff]
      %v301 = vld [vmem:[%s255 + $0x80] sm:$0xff]
      %v302 = vld [vmem:[%s255 + $0x88] sm:$0xff]
      %v303 = vld [vmem:[%s255 + $0x90] sm:$0xff]
      %v304 = vld [vmem:[%s255 + $0x98] sm:$0xff]
      %v305 = vld [vmem:[%s255 + $0xa0] sm:$0xff]
      %v306 = vld [vmem:[%s255 + $0xa8] sm:$0xff]
      %v307 = vld [vmem:[%s255 + $0xb0] sm:$0xff]
      %v308 = vld [vmem:[%s255 + $0xb8] sm:$0xff]
      %v309 = vld [vmem:[%s255 + $0xc0] sm:$0xff]
      %v310 = vld [vmem:[%s255 + $0xc8] sm:$0xff]
      %v311 = vld [vmem:[%s255 + $0xd0] sm:$0xff]
      %v312 = vld [vmem:[%s255 + $0xd8] sm:$0xff]
      %v313 = vld [vmem:[%s255 + $0xe0] sm:$0xff]
      %v314 = vld [vmem:[%s255 + $0xe8] sm:$0xff]
      %v315 = vld [vmem:[%s255 + $0xf0] sm:$0xff]
      %v316 = vld [vmem:[%s255 + $0xf8] sm:$0xff]
      %v317 = vld [vmem:[%s264] sm:$0xf]
      %v318 = vld [vmem:[%s264 + $0x4] sm:$0xf]
      %v319 = vld [vmem:[%s264 + $0x8] sm:$0xf]
      %v320 = vld [vmem:[%s264 + $0xc] sm:$0xf]
      %v321 = vld [vmem:[%s264 + $0x10] sm:$0xf]
      %v322 = vld [vmem:[%s264 + $0x14] sm:$0xf]
      %v323 = vld [vmem:[%s264 + $0x18] sm:$0xf]
      %v324 = vld [vmem:[%s264 + $0x1c] sm:$0xf]
      %v325 = vld [vmem:[%s264 + $0x20] sm:$0xf]
      %v326 = vld [vmem:[%s264 + $0x24] sm:$0xf]
      %v327 = vld [vmem:[%s264 + $0x28] sm:$0xf]
      %v328 = vld [vmem:[%s264 + $0x2c] sm:$0xf]
      %v329 = vld [vmem:[%s264 + $0x30] sm:$0xf]
      %v330 = vld [vmem:[%s264 + $0x34] sm:$0xf]
      %v331 = vld [vmem:[%s264 + $0x38] sm:$0xf]
      %v332 = vld [vmem:[%s264 + $0x3c] sm:$0xf]
      %v333 = vld [vmem:[%s264 + $0x40] sm:$0xf]
      %v334 = vld [vmem:[%s264 + $0x44] sm:$0xf]
      %v335 = vld [vmem:[%s264 + $0x48] sm:$0xf]
      %v336 = vld [vmem:[%s264 + $0x4c] sm:$0xf]
      %v337 = vld [vmem:[%s264 + $0x50] sm:$0xf]
      %v338 = vld [vmem:[%s264 + $0x54] sm:$0xf]
      %v339 = vld [vmem:[%s264 + $0x58] sm:$0xf]
      %v340 = vld [vmem:[%s264 + $0x5c] sm:$0xf]
      %v341 = vld [vmem:[%s264 + $0x60] sm:$0xf]
      %v342 = vld [vmem:[%s264 + $0x64] sm:$0xf]
      %v343 = vld [vmem:[%s264 + $0x68] sm:$0xf]
      %v344 = vld [vmem:[%s264 + $0x6c] sm:$0xf]
      %v345 = vld [vmem:[%s264 + $0x70] sm:$0xf]
      %v346 = vld [vmem:[%s264 + $0x74] sm:$0xf]
      %v347 = vld [vmem:[%s264 + $0x78] sm:$0xf]
      %v348 = vld [vmem:[%s264 + $0x7c] sm:$0xf]
      %v349 = vld [vmem:[%s270] sm:$0x1]
      %v351 = vlaneseq
      %v352 = vshrl.u32 %v351, 7
      %v353 = vsub.s32 0, %v352
      %v354 = vrot.slane %v349, %v353
      %v388 = vunpack.c.l.b16 %v285
      %v389 = vunpack.c.h.b16 %v285
      %v390 = vunpack.c.l.b16 %v286
      %v391 = vunpack.c.h.b16 %v286
      %v392 = vunpack.c.l.b16 %v287
      %v393 = vunpack.c.h.b16 %v287
      %v394 = vunpack.c.l.b16 %v288
      %v395 = vunpack.c.h.b16 %v288
      %v396 = vunpack.c.l.b16 %v289
      %v397 = vunpack.c.h.b16 %v289
      %v398 = vunpack.c.l.b16 %v290
      %v399 = vunpack.c.h.b16 %v290
      %v400 = vunpack.c.l.b16 %v291
      %v401 = vunpack.c.h.b16 %v291
      %v402 = vunpack.c.l.b16 %v292
      %v403 = vunpack.c.h.b16 %v292
      %v404 = vunpack.c.l.b16 %v293
      %v405 = vunpack.c.h.b16 %v293
      %v406 = vunpack.c.l.b16 %v294
      %v407 = vunpack.c.h.b16 %v294
      %v408 = vunpack.c.l.b16 %v295
      %v409 = vunpack.c.h.b16 %v295
      %v410 = vunpack.c.l.b16 %v296
      %v411 = vunpack.c.h.b16 %v296
      %v412 = vunpack.c.l.b16 %v297
      %v413 = vunpack.c.h.b16 %v297
      %v414 = vunpack.c.l.b16 %v298
      %v415 = vunpack.c.h.b16 %v298
      %v416 = vunpack.c.l.b16 %v299
      %v417 = vunpack.c.h.b16 %v299
      %v418 = vunpack.c.l.b16 %v300
      %v419 = vunpack.c.h.b16 %v300
      %v420 = vunpack.c.l.b16 %v301
      %v421 = vunpack.c.h.b16 %v301
      %v422 = vunpack.c.l.b16 %v302
      %v423 = vunpack.c.h.b16 %v302
      %v424 = vunpack.c.l.b16 %v303
      %v425 = vunpack.c.h.b16 %v303
      %v426 = vunpack.c.l.b16 %v304
      %v427 = vunpack.c.h.b16 %v304
      %v428 = vunpack.c.l.b16 %v305
      %v429 = vunpack.c.h.b16 %v305
      %v430 = vunpack.c.l.b16 %v306
      %v431 = vunpack.c.h.b16 %v306
      %v432 = vunpack.c.l.b16 %v307
      %v433 = vunpack.c.h.b16 %v307
      %v434 = vunpack.c.l.b16 %v308
      %v435 = vunpack.c.h.b16 %v308
      %v436 = vunpack.c.l.b16 %v309
      %v437 = vunpack.c.h.b16 %v309
      %v438 = vunpack.c.l.b16 %v310
      %v439 = vunpack.c.h.b16 %v310
      %v440 = vunpack.c.l.b16 %v311
      %v441 = vunpack.c.h.b16 %v311
      %v442 = vunpack.c.l.b16 %v312
      %v443 = vunpack.c.h.b16 %v312
      %v444 = vunpack.c.l.b16 %v313
      %v445 = vunpack.c.h.b16 %v313
      %v446 = vunpack.c.l.b16 %v314
      %v447 = vunpack.c.h.b16 %v314
      %v448 = vunpack.c.l.b16 %v315
      %v449 = vunpack.c.h.b16 %v315
      %v450 = vunpack.c.l.b16 %v316
      %v451 = vunpack.c.h.b16 %v316
      %v452 = vpack.c.b16 %v390, %v388
      %v453 = vpack.c.b16 %v391, %v389
      %v454 = vpack.c.b16 %v394, %v392
      %v455 = vpack.c.b16 %v395, %v393
      %v456 = vpack.c.b16 %v398, %v396
      %v457 = vpack.c.b16 %v399, %v397
      %v458 = vpack.c.b16 %v402, %v400
      %v459 = vpack.c.b16 %v403, %v401
      %v460 = vpack.c.b16 %v406, %v404
      %v461 = vpack.c.b16 %v407, %v405
      %v462 = vpack.c.b16 %v410, %v408
      %v463 = vpack.c.b16 %v411, %v409
      %v464 = vpack.c.b16 %v414, %v412
      %v465 = vpack.c.b16 %v415, %v413
      %v466 = vpack.c.b16 %v418, %v416
      %v467 = vpack.c.b16 %v419, %v417
      %v468 = vpack.c.b16 %v422, %v420
      %v469 = vpack.c.b16 %v423, %v421
      %v470 = vpack.c.b16 %v426, %v424
      %v471 = vpack.c.b16 %v427, %v425
      %v472 = vpack.c.b16 %v430, %v428
      %v473 = vpack.c.b16 %v431, %v429
      %v474 = vpack.c.b16 %v434, %v432
      %v475 = vpack.c.b16 %v435, %v433
      %v476 = vpack.c.b16 %v438, %v436
      %v477 = vpack.c.b16 %v439, %v437
      %v478 = vpack.c.b16 %v442, %v440
      %v479 = vpack.c.b16 %v443, %v441
      %v480 = vpack.c.b16 %v446, %v444
      %v481 = vpack.c.b16 %v447, %v445
      %v482 = vpack.c.b16 %v450, %v448
      %v483 = vpack.c.b16 %v451, %v449
      %v548 = vunpack.c.l.b16 %v317
      %v549 = vunpack.c.l.b16 %v318
      %v550 = vunpack.c.l.b16 %v319
      %v551 = vunpack.c.l.b16 %v320
      %v552 = vunpack.c.l.b16 %v321
      %v553 = vunpack.c.l.b16 %v322
      %v554 = vunpack.c.l.b16 %v323
      %v555 = vunpack.c.l.b16 %v324
      %v556 = vunpack.c.l.b16 %v325
      %v557 = vunpack.c.l.b16 %v326
      %v558 = vunpack.c.l.b16 %v327
      %v559 = vunpack.c.l.b16 %v328
      %v560 = vunpack.c.l.b16 %v329
      %v561 = vunpack.c.l.b16 %v330
      %v562 = vunpack.c.l.b16 %v331
      %v563 = vunpack.c.l.b16 %v332
      %v564 = vunpack.c.l.b16 %v333
      %v565 = vunpack.c.l.b16 %v334
      %v566 = vunpack.c.l.b16 %v335
      %v567 = vunpack.c.l.b16 %v336
      %v568 = vunpack.c.l.b16 %v337
      %v569 = vunpack.c.l.b16 %v338
      %v570 = vunpack.c.l.b16 %v339
      %v571 = vunpack.c.l.b16 %v340
      %v572 = vunpack.c.l.b16 %v341
      %v573 = vunpack.c.l.b16 %v342
      %v574 = vunpack.c.l.b16 %v343
      %v575 = vunpack.c.l.b16 %v344
      %v576 = vunpack.c.l.b16 %v345
      %v577 = vunpack.c.l.b16 %v346
      %v578 = vunpack.c.l.b16 %v347
      %v579 = vunpack.c.l.b16 %v348
      %v580 = vpack.c.b16 %v549, %v548
      %v581 = vpack.c.b16 %v551, %v550
      %v582 = vpack.c.b16 %v553, %v552
      %v583 = vpack.c.b16 %v555, %v554
      %v584 = vpack.c.b16 %v557, %v556
      %v585 = vpack.c.b16 %v559, %v558
      %v586 = vpack.c.b16 %v561, %v560
      %v587 = vpack.c.b16 %v563, %v562
      %v588 = vpack.c.b16 %v565, %v564
      %v589 = vpack.c.b16 %v567, %v566
      %v590 = vpack.c.b16 %v569, %v568
      %v591 = vpack.c.b16 %v571, %v570
      %v592 = vpack.c.b16 %v573, %v572
      %v593 = vpack.c.b16 %v575, %v574
      %v594 = vpack.c.b16 %v577, %v576
      %v595 = vpack.c.b16 %v579, %v578
      %612 = vmatprep.subr.bf16.mxu0 0
      %613 = vmatpush1.bf16.msra.mxu0 %v580
      %614 = vmatprep.subr.bf16.mxu0 0
      %615 = vmatpush1.bf16.msra.mxu0 %v581
      %616 = vmatprep.subr.bf16.mxu0 0
      %617 = vmatpush1.bf16.msra.mxu0 %v582
      %618 = vmatprep.subr.bf16.mxu0 0
      %619 = vmatpush1.bf16.msra.mxu0 %v583
      %620 = vmatprep.subr.bf16.mxu0 0
      %621 = vmatpush1.bf16.msra.mxu0 %v584
      %622 = vmatprep.subr.bf16.mxu0 0
      %623 = vmatpush1.bf16.msra.mxu0 %v585
      %624 = vmatprep.subr.bf16.mxu0 0
      %625 = vmatpush1.bf16.msra.mxu0 %v586
      %626 = vmatprep.subr.bf16.mxu0 0
      %627 = vmatpush1.bf16.msra.mxu0 %v587
      %628 = vmatprep.subr.bf16.mxu0 0
      %629 = vmatpush1.bf16.msra.mxu0 %v588
      %630 = vmatprep.subr.bf16.mxu0 0
      %631 = vmatpush1.bf16.msra.mxu0 %v589
      %632 = vmatprep.subr.bf16.mxu0 0
      %633 = vmatpush1.bf16.msra.mxu0 %v590
      %634 = vmatprep.subr.bf16.mxu0 0
      %635 = vmatpush1.bf16.msra.mxu0 %v591
      %636 = vmatprep.subr.bf16.mxu0 0
      %637 = vmatpush1.bf16.msra.mxu0 %v592
      %638 = vmatprep.subr.bf16.mxu0 0
      %639 = vmatpush1.bf16.msra.mxu0 %v593
      %640 = vmatprep.subr.bf16.mxu0 0
      %641 = vmatpush1.bf16.msra.mxu0 %v594
      %642 = vmatprep.subr.bf16.mxu0 0
      %643 = vmatpush1.bf16.msra.mxu0 %v595
      %644 = vmatprep.mubr.bf16.mxu0 %v453
      %645 = vmatmul.mubr.bf16.gmra.mrb[0].mxu0 %v452
      %v646 = vpop.f32.mrb[0].mxu0
      %v647 = vadd.f32 %v354, %v646
      %v648 = vpop.f32.mrb[0].mxu0
      %v649 = vpop.f32.mrb[0].mxu0
      %v650 = vadd.f32 %v354, %v649
      %v651 = vpop.f32.mrb[0].mxu0
      %652 = vmatprep.mubr.bf16.mxu0 %v455
      %653 = vmatmul.mubr.bf16.gmra.mrb[0].mxu0 %v454
      %v654 = vpop.f32.mrb[0].mxu0
      %v655 = vadd.f32 %v354, %v654
      %v656 = vpop.f32.mrb[0].mxu0
      %v657 = vpop.f32.mrb[0].mxu0
      %v658 = vadd.f32 %v354, %v657
      %v659 = vpop.f32.mrb[0].mxu0
      %660 = vmatprep.mubr.bf16.mxu0 %v457
      %661 = vmatmul.mubr.bf16.gmra.mrb[0].mxu0 %v456
      %v662 = vpop.f32.mrb[0].mxu0
      %v663 = vadd.f32 %v354, %v662
      %v664 = vpop.f32.mrb[0].mxu0
      %v665 = vpop.f32.mrb[0].mxu0
      %v666 = vadd.f32 %v354, %v665
      %v667 = vpop.f32.mrb[0].mxu0
      %668 = vmatprep.mubr.bf16.mxu0 %v459
      %669 = vmatmul.mubr.bf16.gmra.mrb[0].mxu0 %v458
      %v670 = vpop.f32.mrb[0].mxu0
      %v671 = vadd.f32 %v354, %v670
      %v672 = vpop.f32.mrb[0].mxu0
      %v673 = vpop.f32.mrb[0].mxu0
      %v674 = vadd.f32 %v354, %v673
      %v675 = vpop.f32.mrb[0].mxu0
      %676 = vmatprep.mubr.bf16.mxu0 %v461
      %677 = vmatmul.mubr.bf16.gmra.mrb[0].mxu0 %v460
      %v678 = vpop.f32.mrb[0].mxu0
      %v679 = vadd.f32 %v354, %v678
      %v680 = vpop.f32.mrb[0].mxu0
      %v681 = vpop.f32.mrb[0].mxu0
      %v682 = vadd.f32 %v354, %v681
      %v683 = vpop.f32.mrb[0].mxu0
      %684 = vmatprep.mubr.bf16.mxu0 %v463
      %685 = vmatmul.mubr.bf16.gmra.mrb[0].mxu0 %v462
      %v686 = vpop.f32.mrb[0].mxu0
      %v687 = vadd.f32 %v354, %v686
      %v688 = vpop.f32.mrb[0].mxu0
      %v689 = vpop.f32.mrb[0].mxu0
      %v690 = vadd.f32 %v354, %v689
      %v691 = vpop.f32.mrb[0].mxu0
      %692 = vmatprep.mubr.bf16.mxu0 %v465
      %693 = vmatmul.mubr.bf16.gmra.mrb[0].mxu0 %v464
      %v694 = vpop.f32.mrb[0].mxu0
      %v695 = vadd.f32 %v354, %v694
      %v696 = vpop.f32.mrb[0].mxu0
      %v697 = vpop.f32.mrb[0].mxu0
      %v698 = vadd.f32 %v354, %v697
      %v699 = vpop.f32.mrb[0].mxu0
      %700 = vmatprep.mubr.bf16.mxu0 %v467
      %701 = vmatmul.mubr.bf16.gmra.mrb[0].mxu0 %v466
      %v702 = vpop.f32.mrb[0].mxu0
      %v703 = vadd.f32 %v354, %v702
      %v704 = vpop.f32.mrb[0].mxu0
      %v705 = vpop.f32.mrb[0].mxu0
      %v706 = vadd.f32 %v354, %v705
      %v707 = vpop.f32.mrb[0].mxu0
      %708 = vmatprep.mubr.bf16.mxu0 %v469
      %709 = vmatmul.mubr.bf16.gmra.mrb[0].mxu0 %v468
      %v710 = vpop.f32.mrb[0].mxu0
      %v711 = vadd.f32 %v354, %v710
      %v712 = vpop.f32.mrb[0].mxu0
      %v713 = vpop.f32.mrb[0].mxu0
      %v714 = vadd.f32 %v354, %v713
      %v715 = vpop.f32.mrb[0].mxu0
      %716 = vmatprep.mubr.bf16.mxu0 %v471
      %717 = vmatmul.mubr.bf16.gmra.mrb[0].mxu0 %v470
      %v718 = vpop.f32.mrb[0].mxu0
      %v719 = vadd.f32 %v354, %v718
      %v720 = vpop.f32.mrb[0].mxu0
      %v721 = vpop.f32.mrb[0].mxu0
      %v722 = vadd.f32 %v354, %v721
      %v723 = vpop.f32.mrb[0].mxu0
      %724 = vmatprep.mubr.bf16.mxu0 %v473
      %725 = vmatmul.mubr.bf16.gmra.mrb[0].mxu0 %v472
      %v726 = vpop.f32.mrb[0].mxu0
      %v727 = vadd.f32 %v354, %v726
      %v728 = vpop.f32.mrb[0].mxu0
      %v729 = vpop.f32.mrb[0].mxu0
      %v730 = vadd.f32 %v354, %v729
      %v731 = vpop.f32.mrb[0].mxu0
      %732 = vmatprep.mubr.bf16.mxu0 %v475
      %733 = vmatmul.mubr.bf16.gmra.mrb[0].mxu0 %v474
      %v734 = vpop.f32.mrb[0].mxu0
      %v735 = vadd.f32 %v354, %v734
      %v736 = vpop.f32.mrb[0].mxu0
      %v737 = vpop.f32.mrb[0].mxu0
      %v738 = vadd.f32 %v354, %v737
      %v739 = vpop.f32.mrb[0].mxu0
      %740 = vmatprep.mubr.bf16.mxu0 %v477
      %741 = vmatmul.mubr.bf16.gmra.mrb[0].mxu0 %v476
      %v742 = vpop.f32.mrb[0].mxu0
      %v743 = vadd.f32 %v354, %v742
      %v744 = vpop.f32.mrb[0].mxu0
      %v745 = vpop.f32.mrb[0].mxu0
      %v746 = vadd.f32 %v354, %v745
      %v747 = vpop.f32.mrb[0].mxu0
      %748 = vmatprep.mubr.bf16.mxu0 %v479
      %749 = vmatmul.mubr.bf16.gmra.mrb[0].mxu0 %v478
      %v750 = vpop.f32.mrb[0].mxu0
      %v751 = vadd.f32 %v354, %v750
      %v752 = vpop.f32.mrb[0].mxu0
      %v753 = vpop.f32.mrb[0].mxu0
      %v754 = vadd.f32 %v354, %v753
      %v755 = vpop.f32.mrb[0].mxu0
      %756 = vmatprep.mubr.bf16.mxu0 %v481
      %757 = vmatmul.mubr.bf16.gmra.mrb[0].mxu0 %v480
      %v758 = vpop.f32.mrb[0].mxu0
      %v759 = vadd.f32 %v354, %v758
      %v760 = vpop.f32.mrb[0].mxu0
      %v761 = vpop.f32.mrb[0].mxu0
      %v762 = vadd.f32 %v354, %v761
      %v763 = vpop.f32.mrb[0].mxu0
      %764 = vmatprep.mubr.bf16.mxu0 %v483
      %765 = vmatmul.mubr.bf16.gmra.mrb[0].mxu0 %v482
      %v766 = vpop.f32.mrb[0].mxu0
      %v767 = vadd.f32 %v354, %v766
      %v768 = vpop.f32.mrb[0].mxu0
      %v769 = vpop.f32.mrb[0].mxu0
      %v770 = vadd.f32 %v354, %v769
      %v771 = vpop.f32.mrb[0].mxu0
      %772 = vdwg.mxu0
      %v773 = vmax.f32 %v647, 0.0
      %v774 = vmax.f32 %v650, 0.0
      %v775 = vmax.f32 %v655, 0.0
      %v776 = vmax.f32 %v658, 0.0
      %v777 = vmax.f32 %v663, 0.0
      %v778 = vmax.f32 %v666, 0.0
      %v779 = vmax.f32 %v671, 0.0
      %v780 = vmax.f32 %v674, 0.0
      %v781 = vmax.f32 %v679, 0.0
      %v782 = vmax.f32 %v682, 0.0
      %v783 = vmax.f32 %v687, 0.0
      %v784 = vmax.f32 %v690, 0.0
      %v785 = vmax.f32 %v695, 0.0
      %v786 = vmax.f32 %v698, 0.0
      %v787 = vmax.f32 %v703, 0.0
      %v788 = vmax.f32 %v706, 0.0
      %v789 = vmax.f32 %v711, 0.0
      %v790 = vmax.f32 %v714, 0.0
      %v791 = vmax.f32 %v719, 0.0
      %v792 = vmax.f32 %v722, 0.0
      %v793 = vmax.f32 %v727, 0.0
      %v794 = vmax.f32 %v730, 0.0
      %v795 = vmax.f32 %v735, 0.0
      %v796 = vmax.f32 %v738, 0.0
      %v797 = vmax.f32 %v743, 0.0
      %v798 = vmax.f32 %v746, 0.0
      %v799 = vmax.f32 %v751, 0.0
      %v800 = vmax.f32 %v754, 0.0
      %v801 = vmax.f32 %v759, 0.0
      %v802 = vmax.f32 %v762, 0.0
      %v803 = vmax.f32 %v767, 0.0
      %v804 = vmax.f32 %v770, 0.0
      %805 = vst [vmem:[%s282] sm:$0xff] %v773
      %806 = vst [vmem:[%s282 + $0x8] sm:$0xff] %v774
      %807 = vst [vmem:[%s282 + $0x10] sm:$0xff] %v775
      %808 = vst [vmem:[%s282 + $0x18] sm:$0xff] %v776
      %809 = vst [vmem:[%s282 + $0x20] sm:$0xff] %v777
      %810 = vst [vmem:[%s282 + $0x28] sm:$0xff] %v778
      %811 = vst [vmem:[%s282 + $0x30] sm:$0xff] %v779
      %812 = vst [vmem:[%s282 + $0x38] sm:$0xff] %v780
      %813 = vst [vmem:[%s282 + $0x40] sm:$0xff] %v781
      %814 = vst [vmem:[%s282 + $0x48] sm:$0xff] %v782
      %815 = vst [vmem:[%s282 + $0x50] sm:$0xff] %v783
      %816 = vst [vmem:[%s282 + $0x58] sm:$0xff] %v784
      %817 = vst [vmem:[%s282 + $0x60] sm:$0xff] %v785
      %818 = vst [vmem:[%s282 + $0x68] sm:$0xff] %v786
      %819 = vst [vmem:[%s282 + $0x70] sm:$0xff] %v787
      %820 = vst [vmem:[%s282 + $0x78] sm:$0xff] %v788
      %821 = vst [vmem:[%s282 + $0x80] sm:$0xff] %v789
      %822 = vst [vmem:[%s282 + $0x88] sm:$0xff] %v790
      %823 = vst [vmem:[%s282 + $0x90] sm:$0xff] %v791
      %824 = vst [vmem:[%s282 + $0x98] sm:$0xff] %v792
      %825 = vst [vmem:[%s282 + $0xa0] sm:$0xff] %v793
      %826 = vst [vmem:[%s282 + $0xa8] sm:$0xff] %v794
      %827 = vst [vmem:[%s282 + $0xb0] sm:$0xff] %v795
      %828 = vst [vmem:[%s282 + $0xb8] sm:$0xff] %v796
      %829 = vst [vmem:[%s282 + $0xc0] sm:$0xff] %v797
      %830 = vst [vmem:[%s282 + $0xc8] sm:$0xff] %v798
      %831 = vst [vmem:[%s282 + $0xd0] sm:$0xff] %v799
      %832 = vst [vmem:[%s282 + $0xd8] sm:$0xff] %v800
      %833 = vst [vmem:[%s282 + $0xe0] sm:$0xff] %v801
      %834 = vst [vmem:[%s282 + $0xe8] sm:$0xff] %v802
      %835 = vst [vmem:[%s282 + $0xf0] sm:$0xff] %v803
      %836 = vst [vmem:[%s282 + $0xf8] sm:$0xff] %v804
      %s837 = smul.u32 32, %s20
      %p838 = scmp.lt.s32.totalorder %s19, 1
      %s839 = scalar_select %p838, %s19, 1
      %p840 = scmp.lt.s32.totalorder %s837, 31
      %s841 = scalar_select %p840, %s837, 31
      %p842 = scmp.lt.s32.totalorder %s21, 0
      %s843 = scalar_select %p842, %s21, 0
      %s844 = sadd.s32 %s843, %s841
      %s845 = smul.addr %s839, 32
      %s846 = sadd.s32 %s844, %s845
      %s847 = smul.addr %s846, 8
      %s848 = scalar_lea.vmem %s3, %s847
      // Predicated region
      $region33: #{forward_fn.17} parent=31 // pred_check
        %p849 = pneg %p139
      $region34: #{forward_fn.17} parent=31 // pred_check_branch
        %851 = sbr.rel (%p849) target = $region36
      $region35: #{forward_fn.17} parent=31 // pred_region
        %s852 = smul.u32 32, %s20
      $region36: #{forward_fn.17} parent=31 // pred_fallthru
        _
    $region32: #{forward_fn.17} parent=5 // pred_fallthru
      _
    %p853 = scmp.le.s32.totalorder 2, %s9
    // Predicated region
    $region37: #{forward_fn.17} parent=5 // pred_check
      %p854 = pneg %p853
    $region38: #{forward_fn.17} parent=5 // pred_check_branch
      %856 = sbr.rel (%p854) target = $region40
    $region39: #{forward_fn.17} parent=5 // pred_region
      %s857 = ssub.s32 %s9, 2
      // Predicated region
      $region41: #{forward_fn.17} parent=39 // pred_check
        %p858 = pneg %p145
      $region42: #{forward_fn.17} parent=39 // pred_check_branch
        %860 = sbr.rel (%p858) target = $region44
      $region43: #{forward_fn.17} parent=39 // pred_region
        %s861 = smul.u32 32, %s23
        %p862 = scmp.lt.s32.totalorder %s22, 1
        %s863 = scalar_select %p862, %s22, 1
        %p864 = scmp.lt.s32.totalorder %s861, 31
        %s865 = scalar_select %p864, %s861, 31
        %p866 = scmp.lt.s32.totalorder %s24, 0
        %s867 = scalar_select %p866, %s24, 0
        %s868 = sadd.s32 %s867, %s865
        %s869 = smul.addr %s863, 32
        %s870 = sadd.s32 %s868, %s869
        %s871 = smul.addr %s870, 8
        %s872 = scalar_lea.vmem %s3, %s871
      $region44: #{forward_fn.17} parent=39 // pred_fallthru
        _
    $region40: #{forward_fn.17} parent=5 // pred_fallthru
      _
  $region6: #{forward_fn.17} parent=0 // loop_footer
    %s13 = sadd.s32 1, %s9
  $region7: #{forward_fn.17} parent=0 // loop_footer_branch
    %8 = sbr.rel target = $region3
  $region8: #{forward_fn.17} parent=0 // loop_exit
    _

// kernel: forward_fn.18
$region0: #{forward_fn.18}
  #allocation0 [shape = 'u32[]', space=smem, size = 0x4, offset = 0x4, fixed_abs, tag = 'smem constant byte address 0x4 - core index']
  #allocation1 [shape = 'u32[144,128]{1,0:T(1,128)}', space=vmem, size = 0x12000, scoped, tag = 'internal scratch']
  %s0 = inlined_call_operand.vmem [shape: f32[9,16,128], index: 0, kind: input, shape index: {}]
  %s1 = inlined_call_operand.vmem [shape: f32[16,128], index: 1, kind: output, shape index: {}]
  %s2 = sld [smem:[#allocation0]]
  $region14: #{forward_fn.18} parent=0
    _
  %s4 = ssub.s32 1, %s2
  %s5 = scalar_select 0, %s4, %s2
  // Predicated region
  $region2: #{forward_fn.18} parent=0 // pred_check
    _
  $region3: #{forward_fn.18} parent=0 // pred_check_branch
    %7 = sbr.rel (0) target = $region5
  $region4: #{forward_fn.18} parent=0 // pred_region
    _
  $region5: #{forward_fn.18} parent=0 // pred_fallthru
    _
  %v8 = vld [vmem:[%s0] sm:$0xff]
  %v9 = vld [vmem:[%s0 + $0x8] sm:$0xff]
  %v10 = vld [vmem:[%s0 + $0x10] sm:$0xff]
  %v11 = vld [vmem:[%s0 + $0x18] sm:$0xff]
  %v12 = vld [vmem:[%s0 + $0x20] sm:$0xff]
  %v13 = vld [vmem:[%s0 + $0x28] sm:$0xff]
  %v14 = vld [vmem:[%s0 + $0x30] sm:$0xff]
  %v15 = vld [vmem:[%s0 + $0x38] sm:$0xff]
  %v16 = vld [vmem:[%s0 + $0x40] sm:$0xff]
  %v17 = vld [vmem:[%s0 + $0x48] sm:$0xff]
  %v18 = vld [vmem:[%s0 + $0x50] sm:$0xff]
  %v19 = vld [vmem:[%s0 + $0x58] sm:$0xff]
  %v20 = vld [vmem:[%s0 + $0x60] sm:$0xff]
  %v21 = vld [vmem:[%s0 + $0x68] sm:$0xff]
  %v22 = vld [vmem:[%s0 + $0x70] sm:$0xff]
  %v23 = vld [vmem:[%s0 + $0x78] sm:$0xff]
  %v24 = vld [vmem:[%s0 + $0x80] sm:$0xff]
  %v25 = vld [vmem:[%s0 + $0x88] sm:$0xff]
  %v26 = vmax.f32 %v8, %v12
  %v27 = vmax.f32 %v10, %v14
  %v28 = vmax.f32 %v26, %v16
  %v29 = vmax.f32 %v27, %v18
  %v30 = vmax.f32 %v28, %v20
  %v31 = vmax.f32 %v29, %v22
  %v32 = vmax.f32 %v30, %v24
  %v33 = vmax.f32 %v32, %v31
  %v34 = vmax.f32 %v9, %v13
  %v35 = vmax.f32 %v11, %v15
  %v36 = vmax.f32 %v34, %v17
  %v37 = vmax.f32 %v35, %v19
  %v38 = vmax.f32 %v36, %v21
  %v39 = vmax.f32 %v37, %v23
  %v40 = vmax.f32 %v38, %v25
  %v41 = vmax.f32 %v40, %v39
  %42 = vst [vmem:[%s1] sm:$0xff] %v33
  %43 = vst [vmem:[%s1 + $0x8] sm:$0xff] %v41
  // Predicated region
  $region6: #{forward_fn.18} parent=0 // pred_check
    _
  $region7: #{forward_fn.18} parent=0 // pred_check_branch
    %45 = sbr.rel (0) target = $region9
  $region8: #{forward_fn.18} parent=0 // pred_region
    _
  $region9: #{forward_fn.18} parent=0 // pred_fallthru
    _
  // Predicated region
  $region10: #{forward_fn.18} parent=0 // pred_check
    _
  $region11: #{forward_fn.18} parent=0 // pred_check_branch
    %47 = sbr.rel (0) target = $region13
  $region12: #{forward_fn.18} parent=0 // pred_region
    _
  $region13: #{forward_fn.18} parent=0 // pred_fallthru
    _

// kernel: forward_fn.19
$region0: #{forward_fn.19}
  #allocation0 [shape = 'u32[]', space=smem, size = 0x4, offset = 0x4, fixed_abs, tag = 'smem constant byte address 0x4 - core index']
  #allocation1 [shape = 'u32[144,128]{1,0:T(1,128)}', space=vmem, size = 0x12000, scoped, tag = 'internal scratch']
  %s0 = inlined_call_operand.vmem [shape: bf16[2,64,512], index: 0, kind: input, shape index: {}]
  %s1 = inlined_call_operand.vmem [shape: bf16[2,512,128], index: 1, kind: input, shape index: {}]
  %s2 = inlined_call_operand.vmem [shape: f32[2,1,128], index: 2, kind: input, shape index: {}]
  %s3 = inlined_call_operand.vmem [shape: f32[2,64,128], index: 3, kind: output, shape index: {}]
  %s4 = sld [smem:[#allocation0]]
  $region45: #{forward_fn.19} parent=0
    _
  %s6 = ssub.s32 1, %s4
  %s7 = scalar_select 0, %s6, %s4
  loop: start=0, step=1, limit=4
  $region2: #{forward_fn.19} parent=0 // loop_pre_header
    _
  $region3: #{forward_fn.19} parent=0 // loop_header
    %s9 = sphi 0, %s13
    %p10 = scmp.ge.s32.totalorder %s9, 4
    %s16 = sphi 0, %s35
    %s17 = sphi 0, %s31
    %s18 = sphi 0, %s27
    %s19 = sphi 0, %s16
    %s20 = sphi 0, %s17
    %s21 = sphi 0, %s18
    %s22 = sphi 0, %s19
    %s23 = sphi 0, %s20
    %s24 = sphi 0, %s21
    %s40 = sphi 0, %s42
    %s43 = sphi 0, %s40
    %s44 = sphi 0, %s43
    %s60 = sphi 0, %s44
    %s68 = sphi 0, %s70
    %s71 = sphi 0, %s68
    %s72 = sphi 0, %s71
    %s88 = sphi 0, %s72
    %s96 = sphi 0, %s98
    %s99 = sphi 0, %s96
    %s100 = sphi 0, %s99
    %s116 = sphi 0, %s100
    %s126 = sphi 0, %s128
    %s129 = sphi 0, %s126
    %s130 = sphi 0, %s129
    %s146 = sphi 0, %s130
  $region4: #{forward_fn.19} parent=0 // loop_header_branch
    %12 = sbr.rel (%p10) target = $region8
  $region5: #{forward_fn.19} parent=0 // loop_body
    %s14 = ssub.s32 %s9, 1
    %s15 = ssub.s32 %s9, 2
    %s25 = sadd.s32 1, %s18
    %p26 = scmp.ge.s32.totalorder %s25, 1
    %s27 = scalar_select %p26, 0, %s25
    %s28 = sadd.s32 1, %s17
    %s29 = scalar_select %p26, %s28, %s17
    %p30 = scmp.ge.s32.totalorder %s29, 1
    %s31 = scalar_select %p30, 0, %s29
    %s32 = sadd.s32 1, %s16
    %s33 = scalar_select %p30, %s32, %s16
    %p34 = scmp.ge.s32.totalorder %s33, 2
    %s35 = scalar_select %p34, 0, %s33
    %s36 = ssub.s32 %s16, %s35
    %s37 = ssub.s32 %s17, %s31
    %s38 = sor.u32 %s36, %s37
    %p39 = scmp.eq.s32.totalorder %s38, 0
    %s41 = sadd.s32 %s40, 1
    %s42 = scalar_select %p39, %s40, %s41
    %p45 = pneg %p39
    %p46 = scmp.eq.s32.totalorder %s9, 1
    %p47 = por %p45, %p46
    %p48 = scmp.ne.s32.totalorder %s40, %s43
    %p49 = scmp.eq.s32.totalorder %s9, 0
    %p50 = por %p48, %p49
    %p51 = scmp.ne.s32.totalorder %s40, %s43
    %p52 = scmp.eq.s32.totalorder %s14, 1
    %p53 = por %p51, %p52
    %p54 = scmp.ne.s32.totalorder %s43, %s44
    %p55 = scmp.eq.s32.totalorder %s14, 0
    %p56 = por %p54, %p55
    %p57 = scmp.ne.s32.totalorder %s43, %s44
    %p58 = scmp.eq.s32.totalorder %s15, 1
    %p59 = por %p57, %p58
    %p61 = scmp.ne.s32.totalorder %s44, %s60
    %p62 = scmp.eq.s32.totalorder %s15, 0
    %p63 = por %p61, %p62
    %s64 = ssub.s32 %s16, %s35
    %s65 = ssub.s32 %s18, %s27
    %s66 = sor.u32 %s64, %s65
    %p67 = scmp.eq.s32.totalorder %s66, 0
    %s69 = sadd.s32 %s68, 1
    %s70 = scalar_select %p67, %s68, %s69
    %p73 = pneg %p67
    %p74 = scmp.eq.s32.totalorder %s9, 1
    %p75 = por %p73, %p74
    %p76 = scmp.ne.s32.totalorder %s68, %s71
    %p77 = scmp.eq.s32.totalorder %s9, 0
    %p78 = por %p76, %p77
    %p79 = scmp.ne.s32.totalorder %s68, %s71
    %p80 = scmp.eq.s32.totalorder %s14, 1
    %p81 = por %p79, %p80
    %p82 = scmp.ne.s32.totalorder %s71, %s72
    %p83 = scmp.eq.s32.totalorder %s14, 0
    %p84 = por %p82, %p83
    %p85 = scmp.ne.s32.totalorder %s71, %s72
    %p86 = scmp.eq.s32.totalorder %s15, 1
    %p87 = por %p85, %p86
    %p89 = scmp.ne.s32.totalorder %s72, %s88
    %p90 = scmp.eq.s32.totalorder %s15, 0
    %p91 = por %p89, %p90
    %s92 = ssub.s32 %s16, %s35
    %s93 = ssub.s32 %s18, %s27
    %s94 = sor.u32 %s92, %s93
    %p95 = scmp.eq.s32.totalorder %s94, 0
    %s97 = sadd.s32 %s96, 1
    %s98 = scalar_select %p95, %s96, %s97
    %p101 = pneg %p95
    %p102 = scmp.eq.s32.totalorder %s9, 1
    %p103 = por %p101, %p102
    %p104 = scmp.ne.s32.totalorder %s96, %s99
    %p105 = scmp.eq.s32.totalorder %s9, 0
    %p106 = por %p104, %p105
    %p107 = scmp.ne.s32.totalorder %s96, %s99
    %p108 = scmp.eq.s32.totalorder %s14, 1
    %p109 = por %p107, %p108
    %p110 = scmp.ne.s32.totalorder %s99, %s100
    %p111 = scmp.eq.s32.totalorder %s14, 0
    %p112 = por %p110, %p111
    %p113 = scmp.ne.s32.totalorder %s99, %s100
    %p114 = scmp.eq.s32.totalorder %s15, 1
    %p115 = por %p113, %p114
    %p117 = scmp.ne.s32.totalorder %s100, %s116
    %p118 = scmp.eq.s32.totalorder %s15, 0
    %p119 = por %p117, %p118
    %s120 = ssub.s32 %s16, %s35
    %s121 = ssub.s32 %s17, %s31
    %s122 = sor.u32 %s120, %s121
    %s123 = ssub.s32 %s18, %s27
    %s124 = sor.u32 %s122, %s123
    %p125 = scmp.eq.s32.totalorder %s124, 0
    %s127 = sadd.s32 %s126, 1
    %s128 = scalar_select %p125, %s126, %s127
    %p131 = pneg %p125
    %p132 = scmp.eq.s32.totalorder %s9, 1
    %p133 = por %p131, %p132
    %p134 = scmp.ne.s32.totalorder %s126, %s129
    %p135 = scmp.eq.s32.totalorder %s9, 0
    %p136 = por %p134, %p135
    %p137 = scmp.ne.s32.totalorder %s126, %s129
    %p138 = scmp.eq.s32.totalorder %s14, 1
    %p139 = por %p137, %p138
    %p140 = scmp.ne.s32.totalorder %s129, %s130
    %p141 = scmp.eq.s32.totalorder %s14, 0
    %p142 = por %p140, %p141
    %p143 = scmp.ne.s32.totalorder %s129, %s130
    %p144 = scmp.eq.s32.totalorder %s15, 1
    %p145 = por %p143, %p144
    %p147 = scmp.ne.s32.totalorder %s130, %s146
    %p148 = scmp.eq.s32.totalorder %s15, 0
    %p149 = por %p147, %p148
    %p150 = scmp.le.s32.totalorder 1, %s9
    %p151 = scmp.lt.s32.totalorder %s9, 3
    %p152 = pnand %p150, %p151
    %p153 = pneg %p152
    // Predicated region
    $region9: #{forward_fn.19} parent=5 // pred_check
      _
    $region10: #{forward_fn.19} parent=5 // pred_check_branch
      %155 = sbr.rel (%p152) target = $region12
    $region11: #{forward_fn.19} parent=5 // pred_region
      %s156 = ssub.s32 %s9, 1
    $region12: #{forward_fn.19} parent=5 // pred_fallthru
      _
    %p157 = scmp.lt.s32.totalorder %s9, 2
    // Predicated region
    $region13: #{forward_fn.19} parent=5 // pred_check
      %p158 = pneg %p157
    $region14: #{forward_fn.19} parent=5 // pred_check_branch
      %160 = sbr.rel (%p158) target = $region16
    $region15: #{forward_fn.19} parent=5 // pred_region
      // Predicated region
      $region17: #{forward_fn.19} parent=15 // pred_check
        %p161 = pneg %p50
      $region18: #{forward_fn.19} parent=15 // pred_check_branch
        %163 = sbr.rel (%p161) target = $region20
      $region19: #{forward_fn.19} parent=15 // pred_region
        %s164 = smul.u32 8, %s17
        %p165 = scmp.lt.s32.totalorder %s16, 1
        %s166 = scalar_select %p165, %s16, 1
        %p167 = scmp.lt.s32.totalorder %s164, 7
        %s168 = scalar_select %p167, %s164, 7
        %s169 = smul.addr %s168, 4
        %s170 = smul.addr %s166, 32
        %s171 = sadd.s32 %s169, %s170
        %s172 = smul.addr %s171, 4
        %s173 = scalar_lea.vmem %s0, %s172
        %s174 = smul.u32 8, %s17
      $region20: #{forward_fn.19} parent=15 // pred_fallthru
        _
      // Predicated region
      $region21: #{forward_fn.19} parent=15 // pred_check
        %p175 = pneg %p78
      $region22: #{forward_fn.19} parent=15 // pred_check_branch
        %177 = sbr.rel (%p175) target = $region24
      $region23: #{forward_fn.19} parent=15 // pred_region
        %p178 = scmp.lt.s32.totalorder %s16, 1
        %s179 = scalar_select %p178, %s16, 1
        %p180 = scmp.lt.s32.totalorder %s18, 0
        %s181 = scalar_select %p180, %s18, 0
        %s182 = smul.addr %s179, 64
        %s183 = sadd.s32 %s181, %s182
        %s184 = smul.addr %s183, 4
        %s185 = scalar_lea.vmem %s1, %s184
      $region24: #{forward_fn.19} parent=15 // pred_fallthru
        _
      // Predicated region
      $region25: #{forward_fn.19} parent=15 // pred_check
        %p186 = pneg %p106
      $region26: #{forward_fn.19} parent=15 // pred_check_branch
        %188 = sbr.rel (%p186) target = $region28
      $region27: #{forward_fn.19} parent=15 // pred_region
        %p189 = scmp.lt.s32.totalorder %s16, 1
        %s190 = scalar_select %p189, %s16, 1
        %p191 = scmp.lt.s32.totalorder %s18, 0
        %s192 = scalar_select %p191, %s18, 0
        %s193 = sadd.s32 %s192, %s190
        %s194 = scalar_lea.vmem %s2, %s193
      $region28: #{forward_fn.19} parent=15 // pred_fallthru
        _
    $region16: #{forward_fn.19} parent=5 // pred_fallthru
      _
    %p195 = scmp.le.s32.totalorder 1, %s9
    %p196 = scmp.lt.s32.totalorder %s9, 3
    %p197 = pnand %p195, %p196
    %p198 = pneg %p197
    // Predicated region
    $region29: #{forward_fn.19} parent=5 // pred_check
      _
    $region30: #{forward_fn.19} parent=5 // pred_check_branch
      %200 = sbr.rel (%p197) target = $region32
    $region31: #{forward_fn.19} parent=5 // pred_region
      %s201 = ssub.s32 %s9, 1
      %s202 = smul.u32 8, %s20
      %p203 = scmp.lt.s32.totalorder %s19, 1
      %s204 = scalar_select %p203, %s19, 1
      %p205 = scmp.lt.s32.totalorder %s202, 7
      %s206 = scalar_select %p205, %s202, 7
      %s207 = smul.addr %s206, 4
      %s208 = smul.addr %s204, 32
      %s209 = sadd.s32 %s207, %s208
      %s210 = smul.addr %s209, 4
      %s211 = scalar_lea.vmem %s0, %s210
      %p212 = pneg %p56
      %p213 = pneg %p53
      %p214 = scmp.lt.s32.totalorder %s19, 1
      %s215 = scalar_select %p214, %s19, 1
      %p216 = scmp.lt.s32.totalorder %s21, 0
      %s217 = scalar_select %p216, %s21, 0
      %s218 = smul.addr %s215, 64
      %s219 = sadd.s32 %s217, %s218
      %s220 = smul.addr %s219, 4
      %s221 = scalar_lea.vmem %s1, %s220
      %p222 = pneg %p84
      %p223 = pneg %p81
      %p224 = scmp.lt.s32.totalorder %s19, 1
      %s225 = scalar_select %p224, %s19, 1
      %p226 = scmp.lt.s32.totalorder %s21, 0
      %s227 = scalar_select %p226, %s21, 0
      %s228 = sadd.s32 %s227, %s225
      %s229 = scalar_lea.vmem %s2, %s228
      %p230 = pneg %p112
      %p231 = pneg %p109
      %p232 = pneg %p142
      %p233 = pneg %p139
      %s234 = smul.u32 8, %s20
      %p235 = scmp.lt.s32.totalorder %s19, 1
      %s236 = scalar_select %p235, %s19, 1
      %p237 = scmp.lt.s32.totalorder %s234, 7
      %s238 = scalar_select %p237, %s234, 7
      %p239 = scmp.lt.s32.totalorder %s21, 0
      %s240 = scalar_select %p239, %s21, 0
      %s241 = sadd.s32 %s240, %s238
      %s242 = smul.addr %s236, 8
      %s243 = sadd.s32 %s241, %s242
      %s244 = smul.addr %s243, 8
      %s245 = scalar_lea.vmem %s3, %s244
      %s246 = smul.u32 8, %s20
      %p247 = scmp.lt.s32.totalorder %s19, 1
      %s248 = scalar_select %p247, %s19, 1
      %p249 = scmp.lt.s32.totalorder %s246, 7
      %s250 = scalar_select %p249, %s246, 7
      %s251 = smul.addr %s250, 4
      %s252 = smul.addr %s248, 32
      %s253 = sadd.s32 %s251, %s252
      %s254 = smul.addr %s253, 4
      %s255 = scalar_lea.vmem %s0, %s254
      %s256 = smul.u32 8, %s20
      %p257 = scmp.lt.s32.totalorder %s19, 1
      %s258 = scalar_select %p257, %s19, 1
      %p259 = scmp.lt.s32.totalorder %s21, 0
      %s260 = scalar_select %p259, %s21, 0
      %s261 = smul.addr %s258, 64
      %s262 = sadd.s32 %s260, %s261
      %s263 = smul.addr %s262, 4
      %s264 = scalar_lea.vmem %s1, %s263
      %p265 = scmp.lt.s32.totalorder %s19, 1
      %s266 = scalar_select %p265, %s19, 1
      %p267 = scmp.lt.s32.totalorder %s21, 0
      %s268 = scalar_select %p267, %s21, 0
      %s269 = sadd.s32 %s268, %s266
      %s270 = scalar_lea.vmem %s2, %s269
      %s271 = smul.u32 8, %s20
      %p272 = scmp.lt.s32.totalorder %s19, 1
      %s273 = scalar_select %p272, %s19, 1
      %p274 = scmp.lt.s32.totalorder %s271, 7
      %s275 = scalar_select %p274, %s271, 7
      %p276 = scmp.lt.s32.totalorder %s21, 0
      %s277 = scalar_select %p276, %s21, 0
      %s278 = sadd.s32 %s277, %s275
      %s279 = smul.addr %s273, 8
      %s280 = sadd.s32 %s278, %s279
      %s281 = smul.addr %s280, 8
      %s282 = scalar_lea.vmem %s3, %s281
      %s283 = smul.u32 8, %s20
      %v285 = vld [vmem:[%s255] sm:$0xff]
      %v286 = vld [vmem:[%s255 + $0x8] sm:$0xff]
      %v287 = vld [vmem:[%s255 + $0x10] sm:$0xff]
      %v288 = vld [vmem:[%s255 + $0x18] sm:$0xff]
      %v289 = vld [vmem:[%s255 + $0x20] sm:$0xff]
      %v290 = vld [vmem:[%s255 + $0x28] sm:$0xff]
      %v291 = vld [vmem:[%s255 + $0x30] sm:$0xff]
      %v292 = vld [vmem:[%s255 + $0x38] sm:$0xff]
      %v293 = vld [vmem:[%s255 + $0x40] sm:$0xff]
      %v294 = vld [vmem:[%s255 + $0x48] sm:$0xff]
      %v295 = vld [vmem:[%s255 + $0x50] sm:$0xff]
      %v296 = vld [vmem:[%s255 + $0x58] sm:$0xff]
      %v297 = vld [vmem:[%s255 + $0x60] sm:$0xff]
      %v298 = vld [vmem:[%s255 + $0x68] sm:$0xff]
      %v299 = vld [vmem:[%s255 + $0x70] sm:$0xff]
      %v300 = vld [vmem:[%s255 + $0x78] sm:$0xff]
      %v301 = vld [vmem:[%s264] sm:$0xf]
      %v302 = vld [vmem:[%s264 + $0x4] sm:$0xf]
      %v303 = vld [vmem:[%s264 + $0x8] sm:$0xf]
      %v304 = vld [vmem:[%s264 + $0xc] sm:$0xf]
      %v305 = vld [vmem:[%s264 + $0x10] sm:$0xf]
      %v306 = vld [vmem:[%s264 + $0x14] sm:$0xf]
      %v307 = vld [vmem:[%s264 + $0x18] sm:$0xf]
      %v308 = vld [vmem:[%s264 + $0x1c] sm:$0xf]
      %v309 = vld [vmem:[%s264 + $0x20] sm:$0xf]
      %v310 = vld [vmem:[%s264 + $0x24] sm:$0xf]
      %v311 = vld [vmem:[%s264 + $0x28] sm:$0xf]
      %v312 = vld [vmem:[%s264 + $0x2c] sm:$0xf]
      %v313 = vld [vmem:[%s264 + $0x30] sm:$0xf]
      %v314 = vld [vmem:[%s264 + $0x34] sm:$0xf]
      %v315 = vld [vmem:[%s264 + $0x38] sm:$0xf]
      %v316 = vld [vmem:[%s264 + $0x3c] sm:$0xf]
      %v317 = vld [vmem:[%s264 + $0x40] sm:$0xf]
      %v318 = vld [vmem:[%s264 + $0x44] sm:$0xf]
      %v319 = vld [vmem:[%s264 + $0x48] sm:$0xf]
      %v320 = vld [vmem:[%s264 + $0x4c] sm:$0xf]
      %v321 = vld [vmem:[%s264 + $0x50] sm:$0xf]
      %v322 = vld [vmem:[%s264 + $0x54] sm:$0xf]
      %v323 = vld [vmem:[%s264 + $0x58] sm:$0xf]
      %v324 = vld [vmem:[%s264 + $0x5c] sm:$0xf]
      %v325 = vld [vmem:[%s264 + $0x60] sm:$0xf]
      %v326 = vld [vmem:[%s264 + $0x64] sm:$0xf]
      %v327 = vld [vmem:[%s264 + $0x68] sm:$0xf]
      %v328 = vld [vmem:[%s264 + $0x6c] sm:$0xf]
      %v329 = vld [vmem:[%s264 + $0x70] sm:$0xf]
      %v330 = vld [vmem:[%s264 + $0x74] sm:$0xf]
      %v331 = vld [vmem:[%s264 + $0x78] sm:$0xf]
      %v332 = vld [vmem:[%s264 + $0x7c] sm:$0xf]
      %v333 = vld [vmem:[%s264 + $0x80] sm:$0xf]
      %v334 = vld [vmem:[%s264 + $0x84] sm:$0xf]
      %v335 = vld [vmem:[%s264 + $0x88] sm:$0xf]
      %v336 = vld [vmem:[%s264 + $0x8c] sm:$0xf]
      %v337 = vld [vmem:[%s264 + $0x90] sm:$0xf]
      %v338 = vld [vmem:[%s264 + $0x94] sm:$0xf]
      %v339 = vld [vmem:[%s264 + $0x98] sm:$0xf]
      %v340 = vld [vmem:[%s264 + $0x9c] sm:$0xf]
      %v341 = vld [vmem:[%s264 + $0xa0] sm:$0xf]
      %v342 = vld [vmem:[%s264 + $0xa4] sm:$0xf]
      %v343 = vld [vmem:[%s264 + $0xa8] sm:$0xf]
      %v344 = vld [vmem:[%s264 + $0xac] sm:$0xf]
      %v345 = vld [vmem:[%s264 + $0xb0] sm:$0xf]
      %v346 = vld [vmem:[%s264 + $0xb4] sm:$0xf]
      %v347 = vld [vmem:[%s264 + $0xb8] sm:$0xf]
      %v348 = vld [vmem:[%s264 + $0xbc] sm:$0xf]
      %v349 = vld [vmem:[%s264 + $0xc0] sm:$0xf]
      %v350 = vld [vmem:[%s264 + $0xc4] sm:$0xf]
      %v351 = vld [vmem:[%s264 + $0xc8] sm:$0xf]
      %v352 = vld [vmem:[%s264 + $0xcc] sm:$0xf]
      %v353 = vld [vmem:[%s264 + $0xd0] sm:$0xf]
      %v354 = vld [vmem:[%s264 + $0xd4] sm:$0xf]
      %v355 = vld [vmem:[%s264 + $0xd8] sm:$0xf]
      %v356 = vld [vmem:[%s264 + $0xdc] sm:$0xf]
      %v357 = vld [vmem:[%s264 + $0xe0] sm:$0xf]
      %v358 = vld [vmem:[%s264 + $0xe4] sm:$0xf]
      %v359 = vld [vmem:[%s264 + $0xe8] sm:$0xf]
      %v360 = vld [vmem:[%s264 + $0xec] sm:$0xf]
      %v361 = vld [vmem:[%s264 + $0xf0] sm:$0xf]
      %v362 = vld [vmem:[%s264 + $0xf4] sm:$0xf]
      %v363 = vld [vmem:[%s264 + $0xf8] sm:$0xf]
      %v364 = vld [vmem:[%s264 + $0xfc] sm:$0xf]
      %v365 = vld [vmem:[%s270] sm:$0x1]
      %v367 = vlaneseq
      %v368 = vshrl.u32 %v367, 7
      %v369 = vsub.s32 0, %v368
      %v370 = vrot.slane %v365, %v369
      %v388 = vunpack.c.l.b16 %v285
      %v389 = vunpack.c.h.b16 %v285
      %v390 = vunpack.c.l.b16 %v286
      %v391 = vunpack.c.h.b16 %v286
      %v392 = vunpack.c.l.b16 %v287
      %v393 = vunpack.c.h.b16 %v287
      %v394 = vunpack.c.l.b16 %v288
      %v395 = vunpack.c.h.b16 %v288
      %v396 = vunpack.c.l.b16 %v289
      %v397 = vunpack.c.h.b16 %v289
      %v398 = vunpack.c.l.b16 %v290
      %v399 = vunpack.c.h.b16 %v290
      %v400 = vunpack.c.l.b16 %v291
      %v401 = vunpack.c.h.b16 %v291
      %v402 = vunpack.c.l.b16 %v292
      %v403 = vunpack.c.h.b16 %v292
      %v404 = vunpack.c.l.b16 %v293
      %v405 = vunpack.c.h.b16 %v293
      %v406 = vunpack.c.l.b16 %v294
      %v407 = vunpack.c.h.b16 %v294
      %v408 = vunpack.c.l.b16 %v295
      %v409 = vunpack.c.h.b16 %v295
      %v410 = vunpack.c.l.b16 %v296
      %v411 = vunpack.c.h.b16 %v296
      %v412 = vunpack.c.l.b16 %v297
      %v413 = vunpack.c.h.b16 %v297
      %v414 = vunpack.c.l.b16 %v298
      %v415 = vunpack.c.h.b16 %v298
      %v416 = vunpack.c.l.b16 %v299
      %v417 = vunpack.c.h.b16 %v299
      %v418 = vunpack.c.l.b16 %v300
      %v419 = vunpack.c.h.b16 %v300
      %v420 = vpack.c.b16 %v392, %v388
      %v421 = vpack.c.b16 %v393, %v389
      %v422 = vpack.c.b16 %v394, %v390
      %v423 = vpack.c.b16 %v395, %v391
      %v424 = vpack.c.b16 %v400, %v396
      %v425 = vpack.c.b16 %v401, %v397
      %v426 = vpack.c.b16 %v402, %v398
      %v427 = vpack.c.b16 %v403, %v399
      %v428 = vpack.c.b16 %v408, %v404
      %v429 = vpack.c.b16 %v409, %v405
      %v430 = vpack.c.b16 %v410, %v406
      %v431 = vpack.c.b16 %v411, %v407
      %v432 = vpack.c.b16 %v416, %v412
      %v433 = vpack.c.b16 %v417, %v413
      %v434 = vpack.c.b16 %v418, %v414
      %v435 = vpack.c.b16 %v419, %v415
      %v516 = vunpack.c.l.b16 %v301
      %v517 = vunpack.c.l.b16 %v302
      %v518 = vunpack.c.l.b16 %v303
      %v519 = vunpack.c.l.b16 %v304
      %v520 = vunpack.c.l.b16 %v305
      %v521 = vunpack.c.l.b16 %v306
      %v522 = vunpack.c.l.b16 %v307
      %v523 = vunpack.c.l.b16 %v308
      %v524 = vunpack.c.l.b16 %v309
      %v525 = vunpack.c.l.b16 %v310
      %v526 = vunpack.c.l.b16 %v311
      %v527 = vunpack.c.l.b16 %v312
      %v528 = vunpack.c.l.b16 %v313
      %v529 = vunpack.c.l.b16 %v314
      %v530 = vunpack.c.l.b16 %v315
      %v531 = vunpack.c.l.b16 %v316
      %v532 = vunpack.c.l.b16 %v317
      %v533 = vunpack.c.l.b16 %v318
      %v534 = vunpack.c.l.b16 %v319
      %v535 = vunpack.c.l.b16 %v320
      %v536 = vunpack.c.l.b16 %v321
      %v537 = vunpack.c.l.b16 %v322
      %v538 = vunpack.c.l.b16 %v323
      %v539 = vunpack.c.l.b16 %v324
      %v540 = vunpack.c.l.b16 %v325
      %v541 = vunpack.c.l.b16 %v326
      %v542 = vunpack.c.l.b16 %v327
      %v543 = vunpack.c.l.b16 %v328
      %v544 = vunpack.c.l.b16 %v329
      %v545 = vunpack.c.l.b16 %v330
      %v546 = vunpack.c.l.b16 %v331
      %v547 = vunpack.c.l.b16 %v332
      %v548 = vunpack.c.l.b16 %v333
      %v549 = vunpack.c.l.b16 %v334
      %v550 = vunpack.c.l.b16 %v335
      %v551 = vunpack.c.l.b16 %v336
      %v552 = vunpack.c.l.b16 %v337
      %v553 = vunpack.c.l.b16 %v338
      %v554 = vunpack.c.l.b16 %v339
      %v555 = vunpack.c.l.b16 %v340
      %v556 = vunpack.c.l.b16 %v341
      %v557 = vunpack.c.l.b16 %v342
      %v558 = vunpack.c.l.b16 %v343
      %v559 = vunpack.c.l.b16 %v344
      %v560 = vunpack.c.l.b16 %v345
      %v561 = vunpack.c.l.b16 %v346
      %v562 = vunpack.c.l.b16 %v347
      %v563 = vunpack.c.l.b16 %v348
      %v564 = vunpack.c.l.b16 %v349
      %v565 = vunpack.c.l.b16 %v350
      %v566 = vunpack.c.l.b16 %v351
      %v567 = vunpack.c.l.b16 %v352
      %v568 = vunpack.c.l.b16 %v353
      %v569 = vunpack.c.l.b16 %v354
      %v570 = vunpack.c.l.b16 %v355
      %v571 = vunpack.c.l.b16 %v356
      %v572 = vunpack.c.l.b16 %v357
      %v573 = vunpack.c.l.b16 %v358
      %v574 = vunpack.c.l.b16 %v359
      %v575 = vunpack.c.l.b16 %v360
      %v576 = vunpack.c.l.b16 %v361
      %v577 = vunpack.c.l.b16 %v362
      %v578 = vunpack.c.l.b16 %v363
      %v579 = vunpack.c.l.b16 %v364
      %v580 = vpack.c.b16 %v517, %v516
      %v581 = vpack.c.b16 %v519, %v518
      %v582 = vpack.c.b16 %v521, %v520
      %v583 = vpack.c.b16 %v523, %v522
      %v584 = vpack.c.b16 %v525, %v524
      %v585 = vpack.c.b16 %v527, %v526
      %v586 = vpack.c.b16 %v529, %v528
      %v587 = vpack.c.b16 %v531, %v530
      %v588 = vpack.c.b16 %v533, %v532
      %v589 = vpack.c.b16 %v535, %v534
      %v590 = vpack.c.b16 %v537, %v536
      %v591 = vpack.c.b16 %v539, %v538
      %v592 = vpack.c.b16 %v541, %v540
      %v593 = vpack.c.b16 %v543, %v542
      %v594 = vpack.c.b16 %v545, %v544
      %v595 = vpack.c.b16 %v547, %v546
      %v596 = vpack.c.b16 %v549, %v548
      %v597 = vpack.c.b16 %v551, %v550
      %v598 = vpack.c.b16 %v553, %v552
      %v599 = vpack.c.b16 %v555, %v554
      %v600 = vpack.c.b16 %v557, %v556
      %v601 = vpack.c.b16 %v559, %v558
      %v602 = vpack.c.b16 %v561, %v560
      %v603 = vpack.c.b16 %v563, %v562
      %v604 = vpack.c.b16 %v565, %v564
      %v605 = vpack.c.b16 %v567, %v566
      %v606 = vpack.c.b16 %v569, %v568
      %v607 = vpack.c.b16 %v571, %v570
      %v608 = vpack.c.b16 %v573, %v572
      %v609 = vpack.c.b16 %v575, %v574
      %v610 = vpack.c.b16 %v577, %v576
      %v611 = vpack.c.b16 %v579, %v578
      %644 = vmatprep.subr.bf16.mxu0 0
      %645 = vmatpush1.bf16.msra.mxu0 %v580
      %646 = vmatprep.subr.bf16.mxu0 0
      %647 = vmatpush1.bf16.msra.mxu0 %v581
      %648 = vmatprep.subr.bf16.mxu0 0
      %649 = vmatpush1.bf16.msra.mxu0 %v582
      %650 = vmatprep.subr.bf16.mxu0 0
      %651 = vmatpush1.bf16.msra.mxu0 %v583
      %652 = vmatprep.subr.bf16.mxu0 0
      %653 = vmatpush1.bf16.msra.mxu0 %v584
      %654 = vmatprep.subr.bf16.mxu0 0
      %655 = vmatpush1.bf16.msra.mxu0 %v585
      %656 = vmatprep.subr.bf16.mxu0 0
      %657 = vmatpush1.bf16.msra.mxu0 %v586
      %658 = vmatprep.subr.bf16.mxu0 0
      %659 = vmatpush1.bf16.msra.mxu0 %v587
      %660 = vmatprep.subr.bf16.mxu0 0
      %661 = vmatpush1.bf16.msra.mxu0 %v588
      %662 = vmatprep.subr.bf16.mxu0 0
      %663 = vmatpush1.bf16.msra.mxu0 %v589
      %664 = vmatprep.subr.bf16.mxu0 0
      %665 = vmatpush1.bf16.msra.mxu0 %v590
      %666 = vmatprep.subr.bf16.mxu0 0
      %667 = vmatpush1.bf16.msra.mxu0 %v591
      %668 = vmatprep.subr.bf16.mxu0 0
      %669 = vmatpush1.bf16.msra.mxu0 %v592
      %670 = vmatprep.subr.bf16.mxu0 0
      %671 = vmatpush1.bf16.msra.mxu0 %v593
      %672 = vmatprep.subr.bf16.mxu0 0
      %673 = vmatpush1.bf16.msra.mxu0 %v594
      %674 = vmatprep.subr.bf16.mxu0 0
      %675 = vmatpush1.bf16.msra.mxu0 %v595
      %676 = vmatprep.mubr.bf16.mxu0 %v421
      %677 = vmatmul.mubr.bf16.gmra.mrb[0].mxu0 %v420
      %v678 = vpop.f32.mrb[0].mxu0
      %v679 = vadd.f32 %v370, %v678
      %v680 = vpop.f32.mrb[0].mxu0
      %v681 = vpop.f32.mrb[0].mxu0
      %v682 = vadd.f32 %v370, %v681
      %v683 = vpop.f32.mrb[0].mxu0
      %684 = vmatprep.mubr.bf16.mxu0 %v425
      %685 = vmatmul.mubr.bf16.gmra.mrb[0].mxu0 %v424
      %v686 = vpop.f32.mrb[0].mxu0
      %v687 = vadd.f32 %v370, %v686
      %v688 = vpop.f32.mrb[0].mxu0
      %v689 = vpop.f32.mrb[0].mxu0
      %v690 = vadd.f32 %v370, %v689
      %v691 = vpop.f32.mrb[0].mxu0
      %692 = vmatprep.mubr.bf16.mxu0 %v429
      %693 = vmatmul.mubr.bf16.gmra.mrb[0].mxu0 %v428
      %v694 = vpop.f32.mrb[0].mxu0
      %v695 = vadd.f32 %v370, %v694
      %v696 = vpop.f32.mrb[0].mxu0
      %v697 = vpop.f32.mrb[0].mxu0
      %v698 = vadd.f32 %v370, %v697
      %v699 = vpop.f32.mrb[0].mxu0
      %700 = vmatprep.mubr.bf16.mxu0 %v433
      %701 = vmatmul.mubr.bf16.gmra.mrb[0].mxu0 %v432
      %v702 = vpop.f32.mrb[0].mxu0
      %v703 = vadd.f32 %v370, %v702
      %v704 = vpop.f32.mrb[0].mxu0
      %v705 = vpop.f32.mrb[0].mxu0
      %v706 = vadd.f32 %v370, %v705
      %v707 = vpop.f32.mrb[0].mxu0
      %708 = vdwg.mxu0
      %709 = vmatprep.subr.bf16.mxu0 0
      %710 = vmatpush1.bf16.msra.mxu0 %v596
      %711 = vmatprep.subr.bf16.mxu0 0
      %712 = vmatpush1.bf16.msra.mxu0 %v597
      %713 = vmatprep.subr.bf16.mxu0 0
      %714 = vmatpush1.bf16.msra.mxu0 %v598
      %715 = vmatprep.subr.bf16.mxu0 0
      %716 = vmatpush1.bf16.msra.mxu0 %v599
      %717 = vmatprep.subr.bf16.mxu0 0
      %718 = vmatpush1.bf16.msra.mxu0 %v600
      %719 = vmatprep.subr.bf16.mxu0 0
      %720 = vmatpush1.bf16.msra.mxu0 %v601
      %721 = vmatprep.subr.bf16.mxu0 0
      %722 = vmatpush1.bf16.msra.mxu0 %v602
      %723 = vmatprep.subr.bf16.mxu0 0
      %724 = vmatpush1.bf16.msra.mxu0 %v603
      %725 = vmatprep.subr.bf16.mxu0 0
      %726 = vmatpush1.bf16.msra.mxu0 %v604
      %727 = vmatprep.subr.bf16.mxu0 0
      %728 = vmatpush1.bf16.msra.mxu0 %v605
      %729 = vmatprep.subr.bf16.mxu0 0
      %730 = vmatpush1.bf16.msra.mxu0 %v606
      %731 = vmatprep.subr.bf16.mxu0 0
      %732 = vmatpush1.bf16.msra.mxu0 %v607
      %733 = vmatprep.subr.bf16.mxu0 0
      %734 = vmatpush1.bf16.msra.mxu0 %v608
      %735 = vmatprep.subr.bf16.mxu0 0
      %736 = vmatpush1.bf16.msra.mxu0 %v609
      %737 = vmatprep.subr.bf16.mxu0 0
      %738 = vmatpush1.bf16.msra.mxu0 %v610
      %739 = vmatprep.subr.bf16.mxu0 0
      %740 = vmatpush1.bf16.msra.mxu0 %v611
      %741 = vmatprep.mubr.bf16.mxu0 %v423
      %742 = vmatmul.mubr.bf16.gmra.mrb[0].mxu0 %v422
      %v743 = vpop.f32.mrb[0].mxu0
      %v744 = vadd.f32 %v679, %v743
      %v745 = vpop.f32.mrb[0].mxu0
      %v746 = vpop.f32.mrb[0].mxu0
      %v747 = vadd.f32 %v682, %v746
      %v748 = vpop.f32.mrb[0].mxu0
      %749 = vmatprep.mubr.bf16.mxu0 %v427
      %750 = vmatmul.mubr.bf16.gmra.mrb[0].mxu0 %v426
      %v751 = vpop.f32.mrb[0].mxu0
      %v752 = vadd.f32 %v687, %v751
      %v753 = vpop.f32.mrb[0].mxu0
      %v754 = vpop.f32.mrb[0].mxu0
      %v755 = vadd.f32 %v690, %v754
      %v756 = vpop.f32.mrb[0].mxu0
      %757 = vmatprep.mubr.bf16.mxu0 %v431
      %758 = vmatmul.mubr.bf16.gmra.mrb[0].mxu0 %v430
      %v759 = vpop.f32.mrb[0].mxu0
      %v760 = vadd.f32 %v695, %v759
      %v761 = vpop.f32.mrb[0].mxu0
      %v762 = vpop.f32.mrb[0].mxu0
      %v763 = vadd.f32 %v698, %v762
      %v764 = vpop.f32.mrb[0].mxu0
      %765 = vmatprep.mubr.bf16.mxu0 %v435
      %766 = vmatmul.mubr.bf16.gmra.mrb[0].mxu0 %v434
      %v767 = vpop.f32.mrb[0].mxu0
      %v768 = vadd.f32 %v703, %v767
      %v769 = vpop.f32.mrb[0].mxu0
      %v770 = vpop.f32.mrb[0].mxu0
      %v771 = vadd.f32 %v706, %v770
      %v772 = vpop.f32.mrb[0].mxu0
      %773 = vdwg.mxu0
      %v774 = vmax.f32 %v744, 0.0
      %v775 = vmax.f32 %v747, 0.0
      %v776 = vmax.f32 %v752, 0.0
      %v777 = vmax.f32 %v755, 0.0
      %v778 = vmax.f32 %v760, 0.0
      %v779 = vmax.f32 %v763, 0.0
      %v780 = vmax.f32 %v768, 0.0
      %v781 = vmax.f32 %v771, 0.0
      %782 = vst [vmem:[%s282] sm:$0xff] %v774
      %783 = vst [vmem:[%s282 + $0x8] sm:$0xff] %v775
      %784 = vst [vmem:[%s282 + $0x10] sm:$0xff] %v776
      %785 = vst [vmem:[%s282 + $0x18] sm:$0xff] %v777
      %786 = vst [vmem:[%s282 + $0x20] sm:$0xff] %v778
      %787 = vst [vmem:[%s282 + $0x28] sm:$0xff] %v779
      %788 = vst [vmem:[%s282 + $0x30] sm:$0xff] %v780
      %789 = vst [vmem:[%s282 + $0x38] sm:$0xff] %v781
      %s790 = smul.u32 8, %s20
      %p791 = scmp.lt.s32.totalorder %s19, 1
      %s792 = scalar_select %p791, %s19, 1
      %p793 = scmp.lt.s32.totalorder %s790, 7
      %s794 = scalar_select %p793, %s790, 7
      %p795 = scmp.lt.s32.totalorder %s21, 0
      %s796 = scalar_select %p795, %s21, 0
      %s797 = sadd.s32 %s796, %s794
      %s798 = smul.addr %s792, 8
      %s799 = sadd.s32 %s797, %s798
      %s800 = smul.addr %s799, 8
      %s801 = scalar_lea.vmem %s3, %s800
      // Predicated region
      $region33: #{forward_fn.19} parent=31 // pred_check
        %p802 = pneg %p139
      $region34: #{forward_fn.19} parent=31 // pred_check_branch
        %804 = sbr.rel (%p802) target = $region36
      $region35: #{forward_fn.19} parent=31 // pred_region
        %s805 = smul.u32 8, %s20
      $region36: #{forward_fn.19} parent=31 // pred_fallthru
        _
    $region32: #{forward_fn.19} parent=5 // pred_fallthru
      _
    %p806 = scmp.le.s32.totalorder 2, %s9
    // Predicated region
    $region37: #{forward_fn.19} parent=5 // pred_check
      %p807 = pneg %p806
    $region38: #{forward_fn.19} parent=5 // pred_check_branch
      %809 = sbr.rel (%p807) target = $region40
    $region39: #{forward_fn.19} parent=5 // pred_region
      %s810 = ssub.s32 %s9, 2
      // Predicated region
      $region41: #{forward_fn.19} parent=39 // pred_check
        %p811 = pneg %p145
      $region42: #{forward_fn.19} parent=39 // pred_check_branch
        %813 = sbr.rel (%p811) target = $region44
      $region43: #{forward_fn.19} parent=39 // pred_region
        %s814 = smul.u32 8, %s23
        %p815 = scmp.lt.s32.totalorder %s22, 1
        %s816 = scalar_select %p815, %s22, 1
        %p817 = scmp.lt.s32.totalorder %s814, 7
        %s818 = scalar_select %p817, %s814, 7
        %p819 = scmp.lt.s32.totalorder %s24, 0
        %s820 = scalar_select %p819, %s24, 0
        %s821 = sadd.s32 %s820, %s818
        %s822 = smul.addr %s816, 8
        %s823 = sadd.s32 %s821, %s822
        %s824 = smul.addr %s823, 8
        %s825 = scalar_lea.vmem %s3, %s824
      $region44: #{forward_fn.19} parent=39 // pred_fallthru
        _
    $region40: #{forward_fn.19} parent=5 // pred_fallthru
      _
  $region6: #{forward_fn.19} parent=0 // loop_footer
    %s13 = sadd.s32 1, %s9
  $region7: #{forward_fn.19} parent=0 // loop_footer_branch
    %8 = sbr.rel target = $region3
  $region8: #{forward_fn.19} parent=0 // loop_exit
    _

// kernel: forward_fn.20
$region0: #{forward_fn.20}
  #allocation0 [shape = 'u32[]', space=smem, size = 0x4, offset = 0x4, fixed_abs, tag = 'smem constant byte address 0x4 - core index']
  #allocation1 [shape = 'u32[144,128]{1,0:T(1,128)}', space=vmem, size = 0x12000, scoped, tag = 'internal scratch']
  %s0 = inlined_call_operand.vmem [shape: bf16[2,64,768], index: 0, kind: input, shape index: {}]
  %s1 = inlined_call_operand.vmem [shape: bf16[2,768,128], index: 1, kind: input, shape index: {}]
  %s2 = inlined_call_operand.vmem [shape: f32[2,1,128], index: 2, kind: input, shape index: {}]
  %s3 = inlined_call_operand.vmem [shape: f32[2,64,128], index: 3, kind: output, shape index: {}]
  %s4 = sld [smem:[#allocation0]]
  $region45: #{forward_fn.20} parent=0
    _
  %s6 = ssub.s32 1, %s4
  %s7 = scalar_select 0, %s6, %s4
  loop: start=0, step=1, limit=4
  $region2: #{forward_fn.20} parent=0 // loop_pre_header
    _
  $region3: #{forward_fn.20} parent=0 // loop_header
    %s9 = sphi 0, %s13
    %p10 = scmp.ge.s32.totalorder %s9, 4
    %s16 = sphi 0, %s35
    %s17 = sphi 0, %s31
    %s18 = sphi 0, %s27
    %s19 = sphi 0, %s16
    %s20 = sphi 0, %s17
    %s21 = sphi 0, %s18
    %s22 = sphi 0, %s19
    %s23 = sphi 0, %s20
    %s24 = sphi 0, %s21
    %s40 = sphi 0, %s42
    %s43 = sphi 0, %s40
    %s44 = sphi 0, %s43
    %s60 = sphi 0, %s44
    %s68 = sphi 0, %s70
    %s71 = sphi 0, %s68
    %s72 = sphi 0, %s71
    %s88 = sphi 0, %s72
    %s96 = sphi 0, %s98
    %s99 = sphi 0, %s96
    %s100 = sphi 0, %s99
    %s116 = sphi 0, %s100
    %s126 = sphi 0, %s128
    %s129 = sphi 0, %s126
    %s130 = sphi 0, %s129
    %s146 = sphi 0, %s130
  $region4: #{forward_fn.20} parent=0 // loop_header_branch
    %12 = sbr.rel (%p10) target = $region8
  $region5: #{forward_fn.20} parent=0 // loop_body
    %s14 = ssub.s32 %s9, 1
    %s15 = ssub.s32 %s9, 2
    %s25 = sadd.s32 1, %s18
    %p26 = scmp.ge.s32.totalorder %s25, 1
    %s27 = scalar_select %p26, 0, %s25
    %s28 = sadd.s32 1, %s17
    %s29 = scalar_select %p26, %s28, %s17
    %p30 = scmp.ge.s32.totalorder %s29, 1
    %s31 = scalar_select %p30, 0, %s29
    %s32 = sadd.s32 1, %s16
    %s33 = scalar_select %p30, %s32, %s16
    %p34 = scmp.ge.s32.totalorder %s33, 2
    %s35 = scalar_select %p34, 0, %s33
    %s36 = ssub.s32 %s16, %s35
    %s37 = ssub.s32 %s17, %s31
    %s38 = sor.u32 %s36, %s37
    %p39 = scmp.eq.s32.totalorder %s38, 0
    %s41 = sadd.s32 %s40, 1
    %s42 = scalar_select %p39, %s40, %s41
    %p45 = pneg %p39
    %p46 = scmp.eq.s32.totalorder %s9, 1
    %p47 = por %p45, %p46
    %p48 = scmp.ne.s32.totalorder %s40, %s43
    %p49 = scmp.eq.s32.totalorder %s9, 0
    %p50 = por %p48, %p49
    %p51 = scmp.ne.s32.totalorder %s40, %s43
    %p52 = scmp.eq.s32.totalorder %s14, 1
    %p53 = por %p51, %p52
    %p54 = scmp.ne.s32.totalorder %s43, %s44
    %p55 = scmp.eq.s32.totalorder %s14, 0
    %p56 = por %p54, %p55
    %p57 = scmp.ne.s32.totalorder %s43, %s44
    %p58 = scmp.eq.s32.totalorder %s15, 1
    %p59 = por %p57, %p58
    %p61 = scmp.ne.s32.totalorder %s44, %s60
    %p62 = scmp.eq.s32.totalorder %s15, 0
    %p63 = por %p61, %p62
    %s64 = ssub.s32 %s16, %s35
    %s65 = ssub.s32 %s18, %s27
    %s66 = sor.u32 %s64, %s65
    %p67 = scmp.eq.s32.totalorder %s66, 0
    %s69 = sadd.s32 %s68, 1
    %s70 = scalar_select %p67, %s68, %s69
    %p73 = pneg %p67
    %p74 = scmp.eq.s32.totalorder %s9, 1
    %p75 = por %p73, %p74
    %p76 = scmp.ne.s32.totalorder %s68, %s71
    %p77 = scmp.eq.s32.totalorder %s9, 0
    %p78 = por %p76, %p77
    %p79 = scmp.ne.s32.totalorder %s68, %s71
    %p80 = scmp.eq.s32.totalorder %s14, 1
    %p81 = por %p79, %p80
    %p82 = scmp.ne.s32.totalorder %s71, %s72
    %p83 = scmp.eq.s32.totalorder %s14, 0
    %p84 = por %p82, %p83
    %p85 = scmp.ne.s32.totalorder %s71, %s72
    %p86 = scmp.eq.s32.totalorder %s15, 1
    %p87 = por %p85, %p86
    %p89 = scmp.ne.s32.totalorder %s72, %s88
    %p90 = scmp.eq.s32.totalorder %s15, 0
    %p91 = por %p89, %p90
    %s92 = ssub.s32 %s16, %s35
    %s93 = ssub.s32 %s18, %s27
    %s94 = sor.u32 %s92, %s93
    %p95 = scmp.eq.s32.totalorder %s94, 0
    %s97 = sadd.s32 %s96, 1
    %s98 = scalar_select %p95, %s96, %s97
    %p101 = pneg %p95
    %p102 = scmp.eq.s32.totalorder %s9, 1
    %p103 = por %p101, %p102
    %p104 = scmp.ne.s32.totalorder %s96, %s99
    %p105 = scmp.eq.s32.totalorder %s9, 0
    %p106 = por %p104, %p105
    %p107 = scmp.ne.s32.totalorder %s96, %s99
    %p108 = scmp.eq.s32.totalorder %s14, 1
    %p109 = por %p107, %p108
    %p110 = scmp.ne.s32.totalorder %s99, %s100
    %p111 = scmp.eq.s32.totalorder %s14, 0
    %p112 = por %p110, %p111
    %p113 = scmp.ne.s32.totalorder %s99, %s100
    %p114 = scmp.eq.s32.totalorder %s15, 1
    %p115 = por %p113, %p114
    %p117 = scmp.ne.s32.totalorder %s100, %s116
    %p118 = scmp.eq.s32.totalorder %s15, 0
    %p119 = por %p117, %p118
    %s120 = ssub.s32 %s16, %s35
    %s121 = ssub.s32 %s17, %s31
    %s122 = sor.u32 %s120, %s121
    %s123 = ssub.s32 %s18, %s27
    %s124 = sor.u32 %s122, %s123
    %p125 = scmp.eq.s32.totalorder %s124, 0
    %s127 = sadd.s32 %s126, 1
    %s128 = scalar_select %p125, %s126, %s127
    %p131 = pneg %p125
    %p132 = scmp.eq.s32.totalorder %s9, 1
    %p133 = por %p131, %p132
    %p134 = scmp.ne.s32.totalorder %s126, %s129
    %p135 = scmp.eq.s32.totalorder %s9, 0
    %p136 = por %p134, %p135
    %p137 = scmp.ne.s32.totalorder %s126, %s129
    %p138 = scmp.eq.s32.totalorder %s14, 1
    %p139 = por %p137, %p138
    %p140 = scmp.ne.s32.totalorder %s129, %s130
    %p141 = scmp.eq.s32.totalorder %s14, 0
    %p142 = por %p140, %p141
    %p143 = scmp.ne.s32.totalorder %s129, %s130
    %p144 = scmp.eq.s32.totalorder %s15, 1
    %p145 = por %p143, %p144
    %p147 = scmp.ne.s32.totalorder %s130, %s146
    %p148 = scmp.eq.s32.totalorder %s15, 0
    %p149 = por %p147, %p148
    %p150 = scmp.le.s32.totalorder 1, %s9
    %p151 = scmp.lt.s32.totalorder %s9, 3
    %p152 = pnand %p150, %p151
    %p153 = pneg %p152
    // Predicated region
    $region9: #{forward_fn.20} parent=5 // pred_check
      _
    $region10: #{forward_fn.20} parent=5 // pred_check_branch
      %155 = sbr.rel (%p152) target = $region12
    $region11: #{forward_fn.20} parent=5 // pred_region
      %s156 = ssub.s32 %s9, 1
    $region12: #{forward_fn.20} parent=5 // pred_fallthru
      _
    %p157 = scmp.lt.s32.totalorder %s9, 2
    // Predicated region
    $region13: #{forward_fn.20} parent=5 // pred_check
      %p158 = pneg %p157
    $region14: #{forward_fn.20} parent=5 // pred_check_branch
      %160 = sbr.rel (%p158) target = $region16
    $region15: #{forward_fn.20} parent=5 // pred_region
      // Predicated region
      $region17: #{forward_fn.20} parent=15 // pred_check
        %p161 = pneg %p50
      $region18: #{forward_fn.20} parent=15 // pred_check_branch
        %163 = sbr.rel (%p161) target = $region20
      $region19: #{forward_fn.20} parent=15 // pred_region
        %s164 = smul.u32 8, %s17
        %p165 = scmp.lt.s32.totalorder %s16, 1
        %s166 = scalar_select %p165, %s16, 1
        %p167 = scmp.lt.s32.totalorder %s164, 7
        %s168 = scalar_select %p167, %s164, 7
        %s169 = smul.addr %s168, 6
        %s170 = smul.addr %s166, 48
        %s171 = sadd.s32 %s169, %s170
        %s172 = smul.addr %s171, 4
        %s173 = scalar_lea.vmem %s0, %s172
        %s174 = smul.u32 8, %s17
      $region20: #{forward_fn.20} parent=15 // pred_fallthru
        _
      // Predicated region
      $region21: #{forward_fn.20} parent=15 // pred_check
        %p175 = pneg %p78
      $region22: #{forward_fn.20} parent=15 // pred_check_branch
        %177 = sbr.rel (%p175) target = $region24
      $region23: #{forward_fn.20} parent=15 // pred_region
        %p178 = scmp.lt.s32.totalorder %s16, 1
        %s179 = scalar_select %p178, %s16, 1
        %p180 = scmp.lt.s32.totalorder %s18, 0
        %s181 = scalar_select %p180, %s18, 0
        %s182 = smul.addr %s179, 96
        %s183 = sadd.s32 %s181, %s182
        %s184 = smul.addr %s183, 4
        %s185 = scalar_lea.vmem %s1, %s184
      $region24: #{forward_fn.20} parent=15 // pred_fallthru
        _
      // Predicated region
      $region25: #{forward_fn.20} parent=15 // pred_check
        %p186 = pneg %p106
      $region26: #{forward_fn.20} parent=15 // pred_check_branch
        %188 = sbr.rel (%p186) target = $region28
      $region27: #{forward_fn.20} parent=15 // pred_region
        %p189 = scmp.lt.s32.totalorder %s16, 1
        %s190 = scalar_select %p189, %s16, 1
        %p191 = scmp.lt.s32.totalorder %s18, 0
        %s192 = scalar_select %p191, %s18, 0
        %s193 = sadd.s32 %s192, %s190
        %s194 = scalar_lea.vmem %s2, %s193
      $region28: #{forward_fn.20} parent=15 // pred_fallthru
        _
    $region16: #{forward_fn.20} parent=5 // pred_fallthru
      _
    %p195 = scmp.le.s32.totalorder 1, %s9
    %p196 = scmp.lt.s32.totalorder %s9, 3
    %p197 = pnand %p195, %p196
    %p198 = pneg %p197
    // Predicated region
    $region29: #{forward_fn.20} parent=5 // pred_check
      _
    $region30: #{forward_fn.20} parent=5 // pred_check_branch
      %200 = sbr.rel (%p197) target = $region32
    $region31: #{forward_fn.20} parent=5 // pred_region
      %s201 = ssub.s32 %s9, 1
      %s202 = smul.u32 8, %s20
      %p203 = scmp.lt.s32.totalorder %s19, 1
      %s204 = scalar_select %p203, %s19, 1
      %p205 = scmp.lt.s32.totalorder %s202, 7
      %s206 = scalar_select %p205, %s202, 7
      %s207 = smul.addr %s206, 6
      %s208 = smul.addr %s204, 48
      %s209 = sadd.s32 %s207, %s208
      %s210 = smul.addr %s209, 4
      %s211 = scalar_lea.vmem %s0, %s210
      %p212 = pneg %p56
      %p213 = pneg %p53
      %p214 = scmp.lt.s32.totalorder %s19, 1
      %s215 = scalar_select %p214, %s19, 1
      %p216 = scmp.lt.s32.totalorder %s21, 0
      %s217 = scalar_select %p216, %s21, 0
      %s218 = smul.addr %s215, 96
      %s219 = sadd.s32 %s217, %s218
      %s220 = smul.addr %s219, 4
      %s221 = scalar_lea.vmem %s1, %s220
      %p222 = pneg %p84
      %p223 = pneg %p81
      %p224 = scmp.lt.s32.totalorder %s19, 1
      %s225 = scalar_select %p224, %s19, 1
      %p226 = scmp.lt.s32.totalorder %s21, 0
      %s227 = scalar_select %p226, %s21, 0
      %s228 = sadd.s32 %s227, %s225
      %s229 = scalar_lea.vmem %s2, %s228
      %p230 = pneg %p112
      %p231 = pneg %p109
      %p232 = pneg %p142
      %p233 = pneg %p139
      %s234 = smul.u32 8, %s20
      %p235 = scmp.lt.s32.totalorder %s19, 1
      %s236 = scalar_select %p235, %s19, 1
      %p237 = scmp.lt.s32.totalorder %s234, 7
      %s238 = scalar_select %p237, %s234, 7
      %p239 = scmp.lt.s32.totalorder %s21, 0
      %s240 = scalar_select %p239, %s21, 0
      %s241 = sadd.s32 %s240, %s238
      %s242 = smul.addr %s236, 8
      %s243 = sadd.s32 %s241, %s242
      %s244 = smul.addr %s243, 8
      %s245 = scalar_lea.vmem %s3, %s244
      %s246 = smul.u32 8, %s20
      %p247 = scmp.lt.s32.totalorder %s19, 1
      %s248 = scalar_select %p247, %s19, 1
      %p249 = scmp.lt.s32.totalorder %s246, 7
      %s250 = scalar_select %p249, %s246, 7
      %s251 = smul.addr %s250, 6
      %s252 = smul.addr %s248, 48
      %s253 = sadd.s32 %s251, %s252
      %s254 = smul.addr %s253, 4
      %s255 = scalar_lea.vmem %s0, %s254
      %s256 = smul.u32 8, %s20
      %p257 = scmp.lt.s32.totalorder %s19, 1
      %s258 = scalar_select %p257, %s19, 1
      %p259 = scmp.lt.s32.totalorder %s21, 0
      %s260 = scalar_select %p259, %s21, 0
      %s261 = smul.addr %s258, 96
      %s262 = sadd.s32 %s260, %s261
      %s263 = smul.addr %s262, 4
      %s264 = scalar_lea.vmem %s1, %s263
      %p265 = scmp.lt.s32.totalorder %s19, 1
      %s266 = scalar_select %p265, %s19, 1
      %p267 = scmp.lt.s32.totalorder %s21, 0
      %s268 = scalar_select %p267, %s21, 0
      %s269 = sadd.s32 %s268, %s266
      %s270 = scalar_lea.vmem %s2, %s269
      %s271 = smul.u32 8, %s20
      %p272 = scmp.lt.s32.totalorder %s19, 1
      %s273 = scalar_select %p272, %s19, 1
      %p274 = scmp.lt.s32.totalorder %s271, 7
      %s275 = scalar_select %p274, %s271, 7
      %p276 = scmp.lt.s32.totalorder %s21, 0
      %s277 = scalar_select %p276, %s21, 0
      %s278 = sadd.s32 %s277, %s275
      %s279 = smul.addr %s273, 8
      %s280 = sadd.s32 %s278, %s279
      %s281 = smul.addr %s280, 8
      %s282 = scalar_lea.vmem %s3, %s281
      %s283 = smul.u32 8, %s20
      %v285 = vld [vmem:[%s255] sm:$0xff]
      %v286 = vld [vmem:[%s255 + $0x8] sm:$0xff]
      %v287 = vld [vmem:[%s255 + $0x10] sm:$0xff]
      %v288 = vld [vmem:[%s255 + $0x18] sm:$0xff]
      %v289 = vld [vmem:[%s255 + $0x20] sm:$0xff]
      %v290 = vld [vmem:[%s255 + $0x28] sm:$0xff]
      %v291 = vld [vmem:[%s255 + $0x30] sm:$0xff]
      %v292 = vld [vmem:[%s255 + $0x38] sm:$0xff]
      %v293 = vld [vmem:[%s255 + $0x40] sm:$0xff]
      %v294 = vld [vmem:[%s255 + $0x48] sm:$0xff]
      %v295 = vld [vmem:[%s255 + $0x50] sm:$0xff]
      %v296 = vld [vmem:[%s255 + $0x58] sm:$0xff]
      %v297 = vld [vmem:[%s255 + $0x60] sm:$0xff]
      %v298 = vld [vmem:[%s255 + $0x68] sm:$0xff]
      %v299 = vld [vmem:[%s255 + $0x70] sm:$0xff]
      %v300 = vld [vmem:[%s255 + $0x78] sm:$0xff]
      %v301 = vld [vmem:[%s255 + $0x80] sm:$0xff]
      %v302 = vld [vmem:[%s255 + $0x88] sm:$0xff]
      %v303 = vld [vmem:[%s255 + $0x90] sm:$0xff]
      %v304 = vld [vmem:[%s255 + $0x98] sm:$0xff]
      %v305 = vld [vmem:[%s255 + $0xa0] sm:$0xff]
      %v306 = vld [vmem:[%s255 + $0xa8] sm:$0xff]
      %v307 = vld [vmem:[%s255 + $0xb0] sm:$0xff]
      %v308 = vld [vmem:[%s255 + $0xb8] sm:$0xff]
      %v309 = vld [vmem:[%s264] sm:$0xf]
      %v310 = vld [vmem:[%s264 + $0x4] sm:$0xf]
      %v311 = vld [vmem:[%s264 + $0x8] sm:$0xf]
      %v312 = vld [vmem:[%s264 + $0xc] sm:$0xf]
      %v313 = vld [vmem:[%s264 + $0x10] sm:$0xf]
      %v314 = vld [vmem:[%s264 + $0x14] sm:$0xf]
      %v315 = vld [vmem:[%s264 + $0x18] sm:$0xf]
      %v316 = vld [vmem:[%s264 + $0x1c] sm:$0xf]
      %v317 = vld [vmem:[%s264 + $0x20] sm:$0xf]
      %v318 = vld [vmem:[%s264 + $0x24] sm:$0xf]
      %v319 = vld [vmem:[%s264 + $0x28] sm:$0xf]
      %v320 = vld [vmem:[%s264 + $0x2c] sm:$0xf]
      %v321 = vld [vmem:[%s264 + $0x30] sm:$0xf]
      %v322 = vld [vmem:[%s264 + $0x34] sm:$0xf]
      %v323 = vld [vmem:[%s264 + $0x38] sm:$0xf]
      %v324 = vld [vmem:[%s264 + $0x3c] sm:$0xf]
      %v325 = vld [vmem:[%s264 + $0x40] sm:$0xf]
      %v326 = vld [vmem:[%s264 + $0x44] sm:$0xf]
      %v327 = vld [vmem:[%s264 + $0x48] sm:$0xf]
      %v328 = vld [vmem:[%s264 + $0x4c] sm:$0xf]
      %v329 = vld [vmem:[%s264 + $0x50] sm:$0xf]
      %v330 = vld [vmem:[%s264 + $0x54] sm:$0xf]
      %v331 = vld [vmem:[%s264 + $0x58] sm:$0xf]
      %v332 = vld [vmem:[%s264 + $0x5c] sm:$0xf]
      %v333 = vld [vmem:[%s264 + $0x60] sm:$0xf]
      %v334 = vld [vmem:[%s264 + $0x64] sm:$0xf]
      %v335 = vld [vmem:[%s264 + $0x68] sm:$0xf]
      %v336 = vld [vmem:[%s264 + $0x6c] sm:$0xf]
      %v337 = vld [vmem:[%s264 + $0x70] sm:$0xf]
      %v338 = vld [vmem:[%s264 + $0x74] sm:$0xf]
      %v339 = vld [vmem:[%s264 + $0x78] sm:$0xf]
      %v340 = vld [vmem:[%s264 + $0x7c] sm:$0xf]
      %v341 = vld [vmem:[%s264 + $0x80] sm:$0xf]
      %v342 = vld [vmem:[%s264 + $0x84] sm:$0xf]
      %v343 = vld [vmem:[%s264 + $0x88] sm:$0xf]
      %v344 = vld [vmem:[%s264 + $0x8c] sm:$0xf]
      %v345 = vld [vmem:[%s264 + $0x90] sm:$0xf]
      %v346 = vld [vmem:[%s264 + $0x94] sm:$0xf]
      %v347 = vld [vmem:[%s264 + $0x98] sm:$0xf]
      %v348 = vld [vmem:[%s264 + $0x9c] sm:$0xf]
      %v349 = vld [vmem:[%s264 + $0xa0] sm:$0xf]
      %v350 = vld [vmem:[%s264 + $0xa4] sm:$0xf]
      %v351 = vld [vmem:[%s264 + $0xa8] sm:$0xf]
      %v352 = vld [vmem:[%s264 + $0xac] sm:$0xf]
      %v353 = vld [vmem:[%s264 + $0xb0] sm:$0xf]
      %v354 = vld [vmem:[%s264 + $0xb4] sm:$0xf]
      %v355 = vld [vmem:[%s264 + $0xb8] sm:$0xf]
      %v356 = vld [vmem:[%s264 + $0xbc] sm:$0xf]
      %v357 = vld [vmem:[%s264 + $0xc0] sm:$0xf]
      %v358 = vld [vmem:[%s264 + $0xc4] sm:$0xf]
      %v359 = vld [vmem:[%s264 + $0xc8] sm:$0xf]
      %v360 = vld [vmem:[%s264 + $0xcc] sm:$0xf]
      %v361 = vld [vmem:[%s264 + $0xd0] sm:$0xf]
      %v362 = vld [vmem:[%s264 + $0xd4] sm:$0xf]
      %v363 = vld [vmem:[%s264 + $0xd8] sm:$0xf]
      %v364 = vld [vmem:[%s264 + $0xdc] sm:$0xf]
      %v365 = vld [vmem:[%s264 + $0xe0] sm:$0xf]
      %v366 = vld [vmem:[%s264 + $0xe4] sm:$0xf]
      %v367 = vld [vmem:[%s264 + $0xe8] sm:$0xf]
      %v368 = vld [vmem:[%s264 + $0xec] sm:$0xf]
      %v369 = vld [vmem:[%s264 + $0xf0] sm:$0xf]
      %v370 = vld [vmem:[%s264 + $0xf4] sm:$0xf]
      %v371 = vld [vmem:[%s264 + $0xf8] sm:$0xf]
      %v372 = vld [vmem:[%s264 + $0xfc] sm:$0xf]
      %v373 = vld [vmem:[%s264 + $0x100] sm:$0xf]
      %v374 = vld [vmem:[%s264 + $0x104] sm:$0xf]
      %v375 = vld [vmem:[%s264 + $0x108] sm:$0xf]
      %v376 = vld [vmem:[%s264 + $0x10c] sm:$0xf]
      %v377 = vld [vmem:[%s264 + $0x110] sm:$0xf]
      %v378 = vld [vmem:[%s264 + $0x114] sm:$0xf]
      %v379 = vld [vmem:[%s264 + $0x118] sm:$0xf]
      %v380 = vld [vmem:[%s264 + $0x11c] sm:$0xf]
      %v381 = vld [vmem:[%s264 + $0x120] sm:$0xf]
      %v382 = vld [vmem:[%s264 + $0x124] sm:$0xf]
      %v383 = vld [vmem:[%s264 + $0x128] sm:$0xf]
      %v384 = vld [vmem:[%s264 + $0x12c] sm:$0xf]
      %v385 = vld [vmem:[%s264 + $0x130] sm:$0xf]
      %v386 = vld [vmem:[%s264 + $0x134] sm:$0xf]
      %v387 = vld [vmem:[%s264 + $0x138] sm:$0xf]
      %v388 = vld [vmem:[%s264 + $0x13c] sm:$0xf]
      %v389 = vld [vmem:[%s264 + $0x140] sm:$0xf]
      %v390 = vld [vmem:[%s264 + $0x144] sm:$0xf]
      %v391 = vld [vmem:[%s264 + $0x148] sm:$0xf]
      %v392 = vld [vmem:[%s264 + $0x14c] sm:$0xf]
      %v393 = vld [vmem:[%s264 + $0x150] sm:$0xf]
      %v394 = vld [vmem:[%s264 + $0x154] sm:$0xf]
      %v395 = vld [vmem:[%s264 + $0x158] sm:$0xf]
      %v396 = vld [vmem:[%s264 + $0x15c] sm:$0xf]
      %v397 = vld [vmem:[%s264 + $0x160] sm:$0xf]
      %v398 = vld [vmem:[%s264 + $0x164] sm:$0xf]
      %v399 = vld [vmem:[%s264 + $0x168] sm:$0xf]
      %v400 = vld [vmem:[%s264 + $0x16c] sm:$0xf]
      %v401 = vld [vmem:[%s264 + $0x170] sm:$0xf]
      %v402 = vld [vmem:[%s264 + $0x174] sm:$0xf]
      %v403 = vld [vmem:[%s264 + $0x178] sm:$0xf]
      %v404 = vld [vmem:[%s264 + $0x17c] sm:$0xf]
      %v405 = vld [vmem:[%s270] sm:$0x1]
      %v407 = vlaneseq
      %v408 = vshrl.u32 %v407, 7
      %v409 = vsub.s32 0, %v408
      %v410 = vrot.slane %v405, %v409
      %v436 = vunpack.c.l.b16 %v285
      %v437 = vunpack.c.h.b16 %v285
      %v438 = vunpack.c.l.b16 %v286
      %v439 = vunpack.c.h.b16 %v286
      %v440 = vunpack.c.l.b16 %v287
      %v441 = vunpack.c.h.b16 %v287
      %v442 = vunpack.c.l.b16 %v288
      %v443 = vunpack.c.h.b16 %v288
      %v444 = vunpack.c.l.b16 %v289
      %v445 = vunpack.c.h.b16 %v289
      %v446 = vunpack.c.l.b16 %v290
      %v447 = vunpack.c.h.b16 %v290
      %v448 = vunpack.c.l.b16 %v291
      %v449 = vunpack.c.h.b16 %v291
      %v450 = vunpack.c.l.b16 %v292
      %v451 = vunpack.c.h.b16 %v292
      %v452 = vunpack.c.l.b16 %v293
      %v453 = vunpack.c.h.b16 %v293
      %v454 = vunpack.c.l.b16 %v294
      %v455 = vunpack.c.h.b16 %v294
      %v456 = vunpack.c.l.b16 %v295
      %v457 = vunpack.c.h.b16 %v295
      %v458 = vunpack.c.l.b16 %v296
      %v459 = vunpack.c.h.b16 %v296
      %v460 = vunpack.c.l.b16 %v297
      %v461 = vunpack.c.h.b16 %v297
      %v462 = vunpack.c.l.b16 %v298
      %v463 = vunpack.c.h.b16 %v298
      %v464 = vunpack.c.l.b16 %v299
      %v465 = vunpack.c.h.b16 %v299
      %v466 = vunpack.c.l.b16 %v300
      %v467 = vunpack.c.h.b16 %v300
      %v468 = vunpack.c.l.b16 %v301
      %v469 = vunpack.c.h.b16 %v301
      %v470 = vunpack.c.l.b16 %v302
      %v471 = vunpack.c.h.b16 %v302
      %v472 = vunpack.c.l.b16 %v303
      %v473 = vunpack.c.h.b16 %v303
      %v474 = vunpack.c.l.b16 %v304
      %v475 = vunpack.c.h.b16 %v304
      %v476 = vunpack.c.l.b16 %v305
      %v477 = vunpack.c.h.b16 %v305
      %v478 = vunpack.c.l.b16 %v306
      %v479 = vunpack.c.h.b16 %v306
      %v480 = vunpack.c.l.b16 %v307
      %v481 = vunpack.c.h.b16 %v307
      %v482 = vunpack.c.l.b16 %v308
      %v483 = vunpack.c.h.b16 %v308
      %v484 = vpack.c.b16 %v442, %v436
      %v485 = vpack.c.b16 %v443, %v437
      %v486 = vpack.c.b16 %v444, %v438
      %v487 = vpack.c.b16 %v445, %v439
      %v488 = vpack.c.b16 %v446, %v440
      %v489 = vpack.c.b16 %v447, %v441
      %v490 = vpack.c.b16 %v454, %v448
      %v491 = vpack.c.b16 %v455, %v449
      %v492 = vpack.c.b16 %v456, %v450
      %v493 = vpack.c.b16 %v457, %v451
      %v494 = vpack.c.b16 %v458, %v452
      %v495 = vpack.c.b16 %v459, %v453
      %v496 = vpack.c.b16 %v466, %v460
      %v497 = vpack.c.b16 %v467, %v461
      %v498 = vpack.c.b16 %v468, %v462
      %v499 = vpack.c.b16 %v469, %v463
      %v500 = vpack.c.b16 %v470, %v464
      %v501 = vpack.c.b16 %v471, %v465
      %v502 = vpack.c.b16 %v478, %v472
      %v503 = vpack.c.b16 %v479, %v473
      %v504 = vpack.c.b16 %v480, %v474
      %v505 = vpack.c.b16 %v481, %v475
      %v506 = vpack.c.b16 %v482, %v476
      %v507 = vpack.c.b16 %v483, %v477
      %v628 = vunpack.c.l.b16 %v309
      %v629 = vunpack.c.l.b16 %v310
      %v630 = vunpack.c.l.b16 %v311
      %v631 = vunpack.c.l.b16 %v312
      %v632 = vunpack.c.l.b16 %v313
      %v633 = vunpack.c.l.b16 %v314
      %v634 = vunpack.c.l.b16 %v315
      %v635 = vunpack.c.l.b16 %v316
      %v636 = vunpack.c.l.b16 %v317
      %v637 = vunpack.c.l.b16 %v318
      %v638 = vunpack.c.l.b16 %v319
      %v639 = vunpack.c.l.b16 %v320
      %v640 = vunpack.c.l.b16 %v321
      %v641 = vunpack.c.l.b16 %v322
      %v642 = vunpack.c.l.b16 %v323
      %v643 = vunpack.c.l.b16 %v324
      %v644 = vunpack.c.l.b16 %v325
      %v645 = vunpack.c.l.b16 %v326
      %v646 = vunpack.c.l.b16 %v327
      %v647 = vunpack.c.l.b16 %v328
      %v648 = vunpack.c.l.b16 %v329
      %v649 = vunpack.c.l.b16 %v330
      %v650 = vunpack.c.l.b16 %v331
      %v651 = vunpack.c.l.b16 %v332
      %v652 = vunpack.c.l.b16 %v333
      %v653 = vunpack.c.l.b16 %v334
      %v654 = vunpack.c.l.b16 %v335
      %v655 = vunpack.c.l.b16 %v336
      %v656 = vunpack.c.l.b16 %v337
      %v657 = vunpack.c.l.b16 %v338
      %v658 = vunpack.c.l.b16 %v339
      %v659 = vunpack.c.l.b16 %v340
      %v660 = vunpack.c.l.b16 %v341
      %v661 = vunpack.c.l.b16 %v342
      %v662 = vunpack.c.l.b16 %v343
      %v663 = vunpack.c.l.b16 %v344
      %v664 = vunpack.c.l.b16 %v345
      %v665 = vunpack.c.l.b16 %v346
      %v666 = vunpack.c.l.b16 %v347
      %v667 = vunpack.c.l.b16 %v348
      %v668 = vunpack.c.l.b16 %v349
      %v669 = vunpack.c.l.b16 %v350
      %v670 = vunpack.c.l.b16 %v351
      %v671 = vunpack.c.l.b16 %v352
      %v672 = vunpack.c.l.b16 %v353
      %v673 = vunpack.c.l.b16 %v354
      %v674 = vunpack.c.l.b16 %v355
      %v675 = vunpack.c.l.b16 %v356
      %v676 = vunpack.c.l.b16 %v357
      %v677 = vunpack.c.l.b16 %v358
      %v678 = vunpack.c.l.b16 %v359
      %v679 = vunpack.c.l.b16 %v360
      %v680 = vunpack.c.l.b16 %v361
      %v681 = vunpack.c.l.b16 %v362
      %v682 = vunpack.c.l.b16 %v363
      %v683 = vunpack.c.l.b16 %v364
      %v684 = vunpack.c.l.b16 %v365
      %v685 = vunpack.c.l.b16 %v366
      %v686 = vunpack.c.l.b16 %v367
      %v687 = vunpack.c.l.b16 %v368
      %v688 = vunpack.c.l.b16 %v369
      %v689 = vunpack.c.l.b16 %v370
      %v690 = vunpack.c.l.b16 %v371
      %v691 = vunpack.c.l.b16 %v372
      %v692 = vunpack.c.l.b16 %v373
      %v693 = vunpack.c.l.b16 %v374
      %v694 = vunpack.c.l.b16 %v375
      %v695 = vunpack.c.l.b16 %v376
      %v696 = vunpack.c.l.b16 %v377
      %v697 = vunpack.c.l.b16 %v378
      %v698 = vunpack.c.l.b16 %v379
      %v699 = vunpack.c.l.b16 %v380
      %v700 = vunpack.c.l.b16 %v381
      %v701 = vunpack.c.l.b16 %v382
      %v702 = vunpack.c.l.b16 %v383
      %v703 = vunpack.c.l.b16 %v384
      %v704 = vunpack.c.l.b16 %v385
      %v705 = vunpack.c.l.b16 %v386
      %v706 = vunpack.c.l.b16 %v387
      %v707 = vunpack.c.l.b16 %v388
      %v708 = vunpack.c.l.b16 %v389
      %v709 = vunpack.c.l.b16 %v390
      %v710 = vunpack.c.l.b16 %v391
      %v711 = vunpack.c.l.b16 %v392
      %v712 = vunpack.c.l.b16 %v393
      %v713 = vunpack.c.l.b16 %v394
      %v714 = vunpack.c.l.b16 %v395
      %v715 = vunpack.c.l.b16 %v396
      %v716 = vunpack.c.l.b16 %v397
      %v717 = vunpack.c.l.b16 %v398
      %v718 = vunpack.c.l.b16 %v399
      %v719 = vunpack.c.l.b16 %v400
      %v720 = vunpack.c.l.b16 %v401
      %v721 = vunpack.c.l.b16 %v402
      %v722 = vunpack.c.l.b16 %v403
      %v723 = vunpack.c.l.b16 %v404
      %v724 = vpack.c.b16 %v629, %v628
      %v725 = vpack.c.b16 %v631, %v630
      %v726 = vpack.c.b16 %v633, %v632
      %v727 = vpack.c.b16 %v635, %v634
      %v728 = vpack.c.b16 %v637, %v636
      %v729 = vpack.c.b16 %v639, %v638
      %v730 = vpack.c.b16 %v641, %v640
      %v731 = vpack.c.b16 %v643, %v642
      %v732 = vpack.c.b16 %v645, %v644
      %v733 = vpack.c.b16 %v647, %v646
      %v734 = vpack.c.b16 %v649, %v648
      %v735 = vpack.c.b16 %v651, %v650
      %v736 = vpack.c.b16 %v653, %v652
      %v737 = vpack.c.b16 %v655, %v654
      %v738 = vpack.c.b16 %v657, %v656
      %v739 = vpack.c.b16 %v659, %v658
      %v740 = vpack.c.b16 %v661, %v660
      %v741 = vpack.c.b16 %v663, %v662
      %v742 = vpack.c.b16 %v665, %v664
      %v743 = vpack.c.b16 %v667, %v666
      %v744 = vpack.c.b16 %v669, %v668
      %v745 = vpack.c.b16 %v671, %v670
      %v746 = vpack.c.b16 %v673, %v672
      %v747 = vpack.c.b16 %v675, %v674
      %v748 = vpack.c.b16 %v677, %v676
      %v749 = vpack.c.b16 %v679, %v678
      %v750 = vpack.c.b16 %v681, %v680
      %v751 = vpack.c.b16 %v683, %v682
      %v752 = vpack.c.b16 %v685, %v684
      %v753 = vpack.c.b16 %v687, %v686
      %v754 = vpack.c.b16 %v689, %v688
      %v755 = vpack.c.b16 %v691, %v690
      %v756 = vpack.c.b16 %v693, %v692
      %v757 = vpack.c.b16 %v695, %v694
      %v758 = vpack.c.b16 %v697, %v696
      %v759 = vpack.c.b16 %v699, %v698
      %v760 = vpack.c.b16 %v701, %v700
      %v761 = vpack.c.b16 %v703, %v702
      %v762 = vpack.c.b16 %v705, %v704
      %v763 = vpack.c.b16 %v707, %v706
      %v764 = vpack.c.b16 %v709, %v708
      %v765 = vpack.c.b16 %v711, %v710
      %v766 = vpack.c.b16 %v713, %v712
      %v767 = vpack.c.b16 %v715, %v714
      %v768 = vpack.c.b16 %v717, %v716
      %v769 = vpack.c.b16 %v719, %v718
      %v770 = vpack.c.b16 %v721, %v720
      %v771 = vpack.c.b16 %v723, %v722
      %820 = vmatprep.subr.bf16.mxu0 0
      %821 = vmatpush1.bf16.msra.mxu0 %v724
      %822 = vmatprep.subr.bf16.mxu0 0
      %823 = vmatpush1.bf16.msra.mxu0 %v725
      %824 = vmatprep.subr.bf16.mxu0 0
      %825 = vmatpush1.bf16.msra.mxu0 %v726
      %826 = vmatprep.subr.bf16.mxu0 0
      %827 = vmatpush1.bf16.msra.mxu0 %v727
      %828 = vmatprep.subr.bf16.mxu0 0
      %829 = vmatpush1.bf16.msra.mxu0 %v728
      %830 = vmatprep.subr.bf16.mxu0 0
      %831 = vmatpush1.bf16.msra.mxu0 %v729
      %832 = vmatprep.subr.bf16.mxu0 0
      %833 = vmatpush1.bf16.msra.mxu0 %v730
      %834 = vmatprep.subr.bf16.mxu0 0
      %835 = vmatpush1.bf16.msra.mxu0 %v731
      %836 = vmatprep.subr.bf16.mxu0 0
      %837 = vmatpush1.bf16.msra.mxu0 %v732
      %838 = vmatprep.subr.bf16.mxu0 0
      %839 = vmatpush1.bf16.msra.mxu0 %v733
      %840 = vmatprep.subr.bf16.mxu0 0
      %841 = vmatpush1.bf16.msra.mxu0 %v734
      %842 = vmatprep.subr.bf16.mxu0 0
      %843 = vmatpush1.bf16.msra.mxu0 %v735
      %844 = vmatprep.subr.bf16.mxu0 0
      %845 = vmatpush1.bf16.msra.mxu0 %v736
      %846 = vmatprep.subr.bf16.mxu0 0
      %847 = vmatpush1.bf16.msra.mxu0 %v737
      %848 = vmatprep.subr.bf16.mxu0 0
      %849 = vmatpush1.bf16.msra.mxu0 %v738
      %850 = vmatprep.subr.bf16.mxu0 0
      %851 = vmatpush1.bf16.msra.mxu0 %v739
      %852 = vmatprep.mubr.bf16.mxu0 %v485
      %853 = vmatmul.mubr.bf16.gmra.mrb[0].mxu0 %v484
      %v854 = vpop.f32.mrb[0].mxu0
      %v855 = vadd.f32 %v410, %v854
      %v856 = vpop.f32.mrb[0].mxu0
      %v857 = vpop.f32.mrb[0].mxu0
      %v858 = vadd.f32 %v410, %v857
      %v859 = vpop.f32.mrb[0].mxu0
      %860 = vmatprep.mubr.bf16.mxu0 %v491
      %861 = vmatmul.mubr.bf16.gmra.mrb[0].mxu0 %v490
      %v862 = vpop.f32.mrb[0].mxu0
      %v863 = vadd.f32 %v410, %v862
      %v864 = vpop.f32.mrb[0].mxu0
      %v865 = vpop.f32.mrb[0].mxu0
      %v866 = vadd.f32 %v410, %v865
      %v867 = vpop.f32.mrb[0].mxu0
      %868 = vmatprep.mubr.bf16.mxu0 %v497
      %869 = vmatmul.mubr.bf16.gmra.mrb[0].mxu0 %v496
      %v870 = vpop.f32.mrb[0].mxu0
      %v871 = vadd.f32 %v410, %v870
      %v872 = vpop.f32.mrb[0].mxu0
      %v873 = vpop.f32.mrb[0].mxu0
      %v874 = vadd.f32 %v410, %v873
      %v875 = vpop.f32.mrb[0].mxu0
      %876 = vmatprep.mubr.bf16.mxu0 %v503
      %877 = vmatmul.mubr.bf16.gmra.mrb[0].mxu0 %v502
      %v878 = vpop.f32.mrb[0].mxu0
      %v879 = vadd.f32 %v410, %v878
      %v880 = vpop.f32.mrb[0].mxu0
      %v881 = vpop.f32.mrb[0].mxu0
      %v882 = vadd.f32 %v410, %v881
      %v883 = vpop.f32.mrb[0].mxu0
      %884 = vdwg.mxu0
      %885 = vmatprep.subr.bf16.mxu0 0
      %886 = vmatpush1.bf16.msra.mxu0 %v740
      %887 = vmatprep.subr.bf16.mxu0 0
      %888 = vmatpush1.bf16.msra.mxu0 %v741
      %889 = vmatprep.subr.bf16.mxu0 0
      %890 = vmatpush1.bf16.msra.mxu0 %v742
      %891 = vmatprep.subr.bf16.mxu0 0
      %892 = vmatpush1.bf16.msra.mxu0 %v743
      %893 = vmatprep.subr.bf16.mxu0 0
      %894 = vmatpush1.bf16.msra.mxu0 %v744
      %895 = vmatprep.subr.bf16.mxu0 0
      %896 = vmatpush1.bf16.msra.mxu0 %v745
      %897 = vmatprep.subr.bf16.mxu0 0
      %898 = vmatpush1.bf16.msra.mxu0 %v746
      %899 = vmatprep.subr.bf16.mxu0 0
      %900 = vmatpush1.bf16.msra.mxu0 %v747
      %901 = vmatprep.subr.bf16.mxu0 0
      %902 = vmatpush1.bf16.msra.mxu0 %v748
      %903 = vmatprep.subr.bf16.mxu0 0
      %904 = vmatpush1.bf16.msra.mxu0 %v749
      %905 = vmatprep.subr.bf16.mxu0 0
      %906 = vmatpush1.bf16.msra.mxu0 %v750
      %907 = vmatprep.subr.bf16.mxu0 0
      %908 = vmatpush1.bf16.msra.mxu0 %v751
      %909 = vmatprep.subr.bf16.mxu0 0
      %910 = vmatpush1.bf16.msra.mxu0 %v752
      %911 = vmatprep.subr.bf16.mxu0 0
      %912 = vmatpush1.bf16.msra.mxu0 %v753
      %913 = vmatprep.subr.bf16.mxu0 0
      %914 = vmatpush1.bf16.msra.mxu0 %v754
      %915 = vmatprep.subr.bf16.mxu0 0
      %916 = vmatpush1.bf16.msra.mxu0 %v755
      %917 = vmatprep.mubr.bf16.mxu0 %v487
      %918 = vmatmul.mubr.bf16.gmra.mrb[0].mxu0 %v486
      %v919 = vpop.f32.mrb[0].mxu0
      %v920 = vadd.f32 %v855, %v919
      %v921 = vpop.f32.mrb[0].mxu0
      %v922 = vpop.f32.mrb[0].mxu0
      %v923 = vadd.f32 %v858, %v922
      %v924 = vpop.f32.mrb[0].mxu0
      %925 = vmatprep.mubr.bf16.mxu0 %v493
      %926 = vmatmul.mubr.bf16.gmra.mrb[0].mxu0 %v492
      %v927 = vpop.f32.mrb[0].mxu0
      %v928 = vadd.f32 %v863, %v927
      %v929 = vpop.f32.mrb[0].mxu0
      %v930 = vpop.f32.mrb[0].mxu0
      %v931 = vadd.f32 %v866, %v930
      %v932 = vpop.f32.mrb[0].mxu0
      %933 = vmatprep.mubr.bf16.mxu0 %v499
      %934 = vmatmul.mubr.bf16.gmra.mrb[0].mxu0 %v498
      %v935 = vpop.f32.mrb[0].mxu0
      %v936 = vadd.f32 %v871, %v935
      %v937 = vpop.f32.mrb[0].mxu0
      %v938 = vpop.f32.mrb[0].mxu0
      %v939 = vadd.f32 %v874, %v938
      %v940 = vpop.f32.mrb[0].mxu0
      %941 = vmatprep.mubr.bf16.mxu0 %v505
      %942 = vmatmul.mubr.bf16.gmra.mrb[0].mxu0 %v504
      %v943 = vpop.f32.mrb[0].mxu0
      %v944 = vadd.f32 %v879, %v943
      %v945 = vpop.f32.mrb[0].mxu0
      %v946 = vpop.f32.mrb[0].mxu0
      %v947 = vadd.f32 %v882, %v946
      %v948 = vpop.f32.mrb[0].mxu0
      %949 = vdwg.mxu0
      %950 = vmatprep.subr.bf16.mxu0 0
      %951 = vmatpush1.bf16.msra.mxu0 %v756
      %952 = vmatprep.subr.bf16.mxu0 0
      %953 = vmatpush1.bf16.msra.mxu0 %v757
      %954 = vmatprep.subr.bf16.mxu0 0
      %955 = vmatpush1.bf16.msra.mxu0 %v758
      %956 = vmatprep.subr.bf16.mxu0 0
      %957 = vmatpush1.bf16.msra.mxu0 %v759
      %958 = vmatprep.subr.bf16.mxu0 0
      %959 = vmatpush1.bf16.msra.mxu0 %v760
      %960 = vmatprep.subr.bf16.mxu0 0
      %961 = vmatpush1.bf16.msra.mxu0 %v761
      %962 = vmatprep.subr.bf16.mxu0 0
      %963 = vmatpush1.bf16.msra.mxu0 %v762
      %964 = vmatprep.subr.bf16.mxu0 0
      %965 = vmatpush1.bf16.msra.mxu0 %v763
      %966 = vmatprep.subr.bf16.mxu0 0
      %967 = vmatpush1.bf16.msra.mxu0 %v764
      %968 = vmatprep.subr.bf16.mxu0 0
      %969 = vmatpush1.bf16.msra.mxu0 %v765
      %970 = vmatprep.subr.bf16.mxu0 0
      %971 = vmatpush1.bf16.msra.mxu0 %v766
      %972 = vmatprep.subr.bf16.mxu0 0
      %973 = vmatpush1.bf16.msra.mxu0 %v767
      %974 = vmatprep.subr.bf16.mxu0 0
      %975 = vmatpush1.bf16.msra.mxu0 %v768
      %976 = vmatprep.subr.bf16.mxu0 0
      %977 = vmatpush1.bf16.msra.mxu0 %v769
      %978 = vmatprep.subr.bf16.mxu0 0
      %979 = vmatpush1.bf16.msra.mxu0 %v770
      %980 = vmatprep.subr.bf16.mxu0 0
      %981 = vmatpush1.bf16.msra.mxu0 %v771
      %982 = vmatprep.mubr.bf16.mxu0 %v489
      %983 = vmatmul.mubr.bf16.gmra.mrb[0].mxu0 %v488
      %v984 = vpop.f32.mrb[0].mxu0
      %v985 = vadd.f32 %v920, %v984
      %v986 = vpop.f32.mrb[0].mxu0
      %v987 = vpop.f32.mrb[0].mxu0
      %v988 = vadd.f32 %v923, %v987
      %v989 = vpop.f32.mrb[0].mxu0
      %990 = vmatprep.mubr.bf16.mxu0 %v495
      %991 = vmatmul.mubr.bf16.gmra.mrb[0].mxu0 %v494
      %v992 = vpop.f32.mrb[0].mxu0
      %v993 = vadd.f32 %v928, %v992
      %v994 = vpop.f32.mrb[0].mxu0
      %v995 = vpop.f32.mrb[0].mxu0
      %v996 = vadd.f32 %v931, %v995
      %v997 = vpop.f32.mrb[0].mxu0
      %998 = vmatprep.mubr.bf16.mxu0 %v501
      %999 = vmatmul.mubr.bf16.gmra.mrb[0].mxu0 %v500
      %v1000 = vpop.f32.mrb[0].mxu0
      %v1001 = vadd.f32 %v936, %v1000
      %v1002 = vpop.f32.mrb[0].mxu0
      %v1003 = vpop.f32.mrb[0].mxu0
      %v1004 = vadd.f32 %v939, %v1003
      %v1005 = vpop.f32.mrb[0].mxu0
      %1006 = vmatprep.mubr.bf16.mxu0 %v507
      %1007 = vmatmul.mubr.bf16.gmra.mrb[0].mxu0 %v506
      %v1008 = vpop.f32.mrb[0].mxu0
      %v1009 = vadd.f32 %v944, %v1008
      %v1010 = vpop.f32.mrb[0].mxu0
      %v1011 = vpop.f32.mrb[0].mxu0
      %v1012 = vadd.f32 %v947, %v1011
      %v1013 = vpop.f32.mrb[0].mxu0
      %1014 = vdwg.mxu0
      %v1015 = vmax.f32 %v985, 0.0
      %v1016 = vmax.f32 %v988, 0.0
      %v1017 = vmax.f32 %v993, 0.0
      %v1018 = vmax.f32 %v996, 0.0
      %v1019 = vmax.f32 %v1001, 0.0
      %v1020 = vmax.f32 %v1004, 0.0
      %v1021 = vmax.f32 %v1009, 0.0
      %v1022 = vmax.f32 %v1012, 0.0
      %1023 = vst [vmem:[%s282] sm:$0xff] %v1015
      %1024 = vst [vmem:[%s282 + $0x8] sm:$0xff] %v1016
      %1025 = vst [vmem:[%s282 + $0x10] sm:$0xff] %v1017
      %1026 = vst [vmem:[%s282 + $0x18] sm:$0xff] %v1018
      %1027 = vst [vmem:[%s282 + $0x20] sm:$0xff] %v1019
      %1028 = vst [vmem:[%s282 + $0x28] sm:$0xff] %v1020
      %1029 = vst [vmem:[%s282 + $0x30] sm:$0xff] %v1021
      %1030 = vst [vmem:[%s282 + $0x38] sm:$0xff] %v1022
      %s1031 = smul.u32 8, %s20
      %p1032 = scmp.lt.s32.totalorder %s19, 1
      %s1033 = scalar_select %p1032, %s19, 1
      %p1034 = scmp.lt.s32.totalorder %s1031, 7
      %s1035 = scalar_select %p1034, %s1031, 7
      %p1036 = scmp.lt.s32.totalorder %s21, 0
      %s1037 = scalar_select %p1036, %s21, 0
      %s1038 = sadd.s32 %s1037, %s1035
      %s1039 = smul.addr %s1033, 8
      %s1040 = sadd.s32 %s1038, %s1039
      %s1041 = smul.addr %s1040, 8
      %s1042 = scalar_lea.vmem %s3, %s1041
      // Predicated region
      $region33: #{forward_fn.20} parent=31 // pred_check
        %p1043 = pneg %p139
      $region34: #{forward_fn.20} parent=31 // pred_check_branch
        %1045 = sbr.rel (%p1043) target = $region36
      $region35: #{forward_fn.20} parent=31 // pred_region
        %s1046 = smul.u32 8, %s20
      $region36: #{forward_fn.20} parent=31 // pred_fallthru
        _
    $region32: #{forward_fn.20} parent=5 // pred_fallthru
      _
    %p1047 = scmp.le.s32.totalorder 2, %s9
    // Predicated region
    $region37: #{forward_fn.20} parent=5 // pred_check
      %p1048 = pneg %p1047
    $region38: #{forward_fn.20} parent=5 // pred_check_branch
      %1050 = sbr.rel (%p1048) target = $region40
    $region39: #{forward_fn.20} parent=5 // pred_region
      %s1051 = ssub.s32 %s9, 2
      // Predicated region
      $region41: #{forward_fn.20} parent=39 // pred_check
        %p1052 = pneg %p145
      $region42: #{forward_fn.20} parent=39 // pred_check_branch
        %1054 = sbr.rel (%p1052) target = $region44
      $region43: #{forward_fn.20} parent=39 // pred_region
        %s1055 = smul.u32 8, %s23
        %p1056 = scmp.lt.s32.totalorder %s22, 1
        %s1057 = scalar_select %p1056, %s22, 1
        %p1058 = scmp.lt.s32.totalorder %s1055, 7
        %s1059 = scalar_select %p1058, %s1055, 7
        %p1060 = scmp.lt.s32.totalorder %s24, 0
        %s1061 = scalar_select %p1060, %s24, 0
        %s1062 = sadd.s32 %s1061, %s1059
        %s1063 = smul.addr %s1057, 8
        %s1064 = sadd.s32 %s1062, %s1063
        %s1065 = smul.addr %s1064, 8
        %s1066 = scalar_lea.vmem %s3, %s1065
      $region44: #{forward_fn.20} parent=39 // pred_fallthru
        _
    $region40: #{forward_fn.20} parent=5 // pred_fallthru
      _
  $region6: #{forward_fn.20} parent=0 // loop_footer
    %s13 = sadd.s32 1, %s9
  $region7: #{forward_fn.20} parent=0 // loop_footer_branch
    %8 = sbr.rel target = $region3
  $region8: #{forward_fn.20} parent=0 // loop_exit
    _

// kernel: forward_fn.21
$region0: #{forward_fn.21}
  #allocation0 [shape = 'u32[]', space=smem, size = 0x4, offset = 0x4, fixed_abs, tag = 'smem constant byte address 0x4 - core index']
  #allocation1 [shape = 'u32[144,128]{1,0:T(1,128)}', space=vmem, size = 0x12000, scoped, tag = 'internal scratch']
  %s0 = inlined_call_operand.vmem [shape: f32[27,8,128], index: 0, kind: input, shape index: {}]
  %s1 = inlined_call_operand.vmem [shape: f32[8,128], index: 1, kind: output, shape index: {}]
  %s2 = sld [smem:[#allocation0]]
  $region14: #{forward_fn.21} parent=0
    _
  %s4 = ssub.s32 1, %s2
  %s5 = scalar_select 0, %s4, %s2
  // Predicated region
  $region2: #{forward_fn.21} parent=0 // pred_check
    _
  $region3: #{forward_fn.21} parent=0 // pred_check_branch
    %7 = sbr.rel (0) target = $region5
  $region4: #{forward_fn.21} parent=0 // pred_region
    _
  $region5: #{forward_fn.21} parent=0 // pred_fallthru
    _
  %v8 = vld [vmem:[%s0] sm:$0xff]
  %v9 = vld [vmem:[%s0 + $0x8] sm:$0xff]
  %v10 = vld [vmem:[%s0 + $0x10] sm:$0xff]
  %v11 = vld [vmem:[%s0 + $0x18] sm:$0xff]
  %v12 = vld [vmem:[%s0 + $0x20] sm:$0xff]
  %v13 = vld [vmem:[%s0 + $0x28] sm:$0xff]
  %v14 = vld [vmem:[%s0 + $0x30] sm:$0xff]
  %v15 = vld [vmem:[%s0 + $0x38] sm:$0xff]
  %v16 = vld [vmem:[%s0 + $0x40] sm:$0xff]
  %v17 = vld [vmem:[%s0 + $0x48] sm:$0xff]
  %v18 = vld [vmem:[%s0 + $0x50] sm:$0xff]
  %v19 = vld [vmem:[%s0 + $0x58] sm:$0xff]
  %v20 = vld [vmem:[%s0 + $0x60] sm:$0xff]
  %v21 = vld [vmem:[%s0 + $0x68] sm:$0xff]
  %v22 = vld [vmem:[%s0 + $0x70] sm:$0xff]
  %v23 = vld [vmem:[%s0 + $0x78] sm:$0xff]
  %v24 = vld [vmem:[%s0 + $0x80] sm:$0xff]
  %v25 = vld [vmem:[%s0 + $0x88] sm:$0xff]
  %v26 = vld [vmem:[%s0 + $0x90] sm:$0xff]
  %v27 = vld [vmem:[%s0 + $0x98] sm:$0xff]
  %v28 = vld [vmem:[%s0 + $0xa0] sm:$0xff]
  %v29 = vld [vmem:[%s0 + $0xa8] sm:$0xff]
  %v30 = vld [vmem:[%s0 + $0xb0] sm:$0xff]
  %v31 = vld [vmem:[%s0 + $0xb8] sm:$0xff]
  %v32 = vld [vmem:[%s0 + $0xc0] sm:$0xff]
  %v33 = vld [vmem:[%s0 + $0xc8] sm:$0xff]
  %v34 = vld [vmem:[%s0 + $0xd0] sm:$0xff]
  %v35 = vmax.f32 %v8, %v12
  %v36 = vmax.f32 %v9, %v13
  %v37 = vmax.f32 %v10, %v14
  %v38 = vmax.f32 %v11, %v15
  %v39 = vmax.f32 %v35, %v16
  %v40 = vmax.f32 %v36, %v17
  %v41 = vmax.f32 %v37, %v18
  %v42 = vmax.f32 %v38, %v19
  %v43 = vmax.f32 %v39, %v20
  %v44 = vmax.f32 %v40, %v21
  %v45 = vmax.f32 %v41, %v22
  %v46 = vmax.f32 %v42, %v23
  %v47 = vmax.f32 %v43, %v24
  %v48 = vmax.f32 %v44, %v25
  %v49 = vmax.f32 %v45, %v26
  %v50 = vmax.f32 %v46, %v27
  %v51 = vmax.f32 %v47, %v28
  %v52 = vmax.f32 %v48, %v29
  %v53 = vmax.f32 %v49, %v30
  %v54 = vmax.f32 %v50, %v31
  %v55 = vmax.f32 %v51, %v32
  %v56 = vmax.f32 %v52, %v33
  %v57 = vmax.f32 %v53, %v34
  %v58 = vmax.f32 %v55, %v56
  %v59 = vmax.f32 %v57, %v54
  %v60 = vmax.f32 %v58, %v59
  %61 = vst [vmem:[%s1] sm:$0xff] %v60
  // Predicated region
  $region6: #{forward_fn.21} parent=0 // pred_check
    _
  $region7: #{forward_fn.21} parent=0 // pred_check_branch
    %63 = sbr.rel (0) target = $region9
  $region8: #{forward_fn.21} parent=0 // pred_region
    _
  $region9: #{forward_fn.21} parent=0 // pred_fallthru
    _
  // Predicated region
  $region10: #{forward_fn.21} parent=0 // pred_check
    _
  $region11: #{forward_fn.21} parent=0 // pred_check_branch
    %65 = sbr.rel (0) target = $region13
  $region12: #{forward_fn.21} parent=0 // pred_region
    _
  $region13: #{forward_fn.21} parent=0 // pred_fallthru
    _

// kernel: forward_fn.22
$region0: #{forward_fn.22}
  #allocation0 [shape = 'u32[]', space=smem, size = 0x4, offset = 0x4, fixed_abs, tag = 'smem constant byte address 0x4 - core index']
  #allocation1 [shape = 'u32[144,128]{1,0:T(1,128)}', space=vmem, size = 0x12000, scoped, tag = 'internal scratch']
  %s0 = inlined_call_operand.vmem [shape: bf16[2,16,896], index: 0, kind: input, shape index: {}]
  %s1 = inlined_call_operand.vmem [shape: bf16[2,896,128], index: 1, kind: input, shape index: {}]
  %s2 = inlined_call_operand.vmem [shape: f32[2,1,128], index: 2, kind: input, shape index: {}]
  %s3 = inlined_call_operand.vmem [shape: f32[2,16,128], index: 3, kind: output, shape index: {}]
  %s4 = sld [smem:[#allocation0]]
  $region45: #{forward_fn.22} parent=0
    _
  %s6 = ssub.s32 1, %s4
  %s7 = scalar_select 0, %s6, %s4
  loop: start=0, step=1, limit=4
  $region2: #{forward_fn.22} parent=0 // loop_pre_header
    _
  $region3: #{forward_fn.22} parent=0 // loop_header
    %s9 = sphi 0, %s13
    %p10 = scmp.ge.s32.totalorder %s9, 4
    %s16 = sphi 0, %s35
    %s17 = sphi 0, %s31
    %s18 = sphi 0, %s27
    %s19 = sphi 0, %s16
    %s20 = sphi 0, %s17
    %s21 = sphi 0, %s18
    %s22 = sphi 0, %s19
    %s23 = sphi 0, %s20
    %s24 = sphi 0, %s21
    %s40 = sphi 0, %s42
    %s43 = sphi 0, %s40
    %s44 = sphi 0, %s43
    %s60 = sphi 0, %s44
    %s68 = sphi 0, %s70
    %s71 = sphi 0, %s68
    %s72 = sphi 0, %s71
    %s88 = sphi 0, %s72
    %s96 = sphi 0, %s98
    %s99 = sphi 0, %s96
    %s100 = sphi 0, %s99
    %s116 = sphi 0, %s100
    %s126 = sphi 0, %s128
    %s129 = sphi 0, %s126
    %s130 = sphi 0, %s129
    %s146 = sphi 0, %s130
  $region4: #{forward_fn.22} parent=0 // loop_header_branch
    %12 = sbr.rel (%p10) target = $region8
  $region5: #{forward_fn.22} parent=0 // loop_body
    %s14 = ssub.s32 %s9, 1
    %s15 = ssub.s32 %s9, 2
    %s25 = sadd.s32 1, %s18
    %p26 = scmp.ge.s32.totalorder %s25, 1
    %s27 = scalar_select %p26, 0, %s25
    %s28 = sadd.s32 1, %s17
    %s29 = scalar_select %p26, %s28, %s17
    %p30 = scmp.ge.s32.totalorder %s29, 1
    %s31 = scalar_select %p30, 0, %s29
    %s32 = sadd.s32 1, %s16
    %s33 = scalar_select %p30, %s32, %s16
    %p34 = scmp.ge.s32.totalorder %s33, 2
    %s35 = scalar_select %p34, 0, %s33
    %s36 = ssub.s32 %s16, %s35
    %s37 = ssub.s32 %s17, %s31
    %s38 = sor.u32 %s36, %s37
    %p39 = scmp.eq.s32.totalorder %s38, 0
    %s41 = sadd.s32 %s40, 1
    %s42 = scalar_select %p39, %s40, %s41
    %p45 = pneg %p39
    %p46 = scmp.eq.s32.totalorder %s9, 1
    %p47 = por %p45, %p46
    %p48 = scmp.ne.s32.totalorder %s40, %s43
    %p49 = scmp.eq.s32.totalorder %s9, 0
    %p50 = por %p48, %p49
    %p51 = scmp.ne.s32.totalorder %s40, %s43
    %p52 = scmp.eq.s32.totalorder %s14, 1
    %p53 = por %p51, %p52
    %p54 = scmp.ne.s32.totalorder %s43, %s44
    %p55 = scmp.eq.s32.totalorder %s14, 0
    %p56 = por %p54, %p55
    %p57 = scmp.ne.s32.totalorder %s43, %s44
    %p58 = scmp.eq.s32.totalorder %s15, 1
    %p59 = por %p57, %p58
    %p61 = scmp.ne.s32.totalorder %s44, %s60
    %p62 = scmp.eq.s32.totalorder %s15, 0
    %p63 = por %p61, %p62
    %s64 = ssub.s32 %s16, %s35
    %s65 = ssub.s32 %s18, %s27
    %s66 = sor.u32 %s64, %s65
    %p67 = scmp.eq.s32.totalorder %s66, 0
    %s69 = sadd.s32 %s68, 1
    %s70 = scalar_select %p67, %s68, %s69
    %p73 = pneg %p67
    %p74 = scmp.eq.s32.totalorder %s9, 1
    %p75 = por %p73, %p74
    %p76 = scmp.ne.s32.totalorder %s68, %s71
    %p77 = scmp.eq.s32.totalorder %s9, 0
    %p78 = por %p76, %p77
    %p79 = scmp.ne.s32.totalorder %s68, %s71
    %p80 = scmp.eq.s32.totalorder %s14, 1
    %p81 = por %p79, %p80
    %p82 = scmp.ne.s32.totalorder %s71, %s72
    %p83 = scmp.eq.s32.totalorder %s14, 0
    %p84 = por %p82, %p83
    %p85 = scmp.ne.s32.totalorder %s71, %s72
    %p86 = scmp.eq.s32.totalorder %s15, 1
    %p87 = por %p85, %p86
    %p89 = scmp.ne.s32.totalorder %s72, %s88
    %p90 = scmp.eq.s32.totalorder %s15, 0
    %p91 = por %p89, %p90
    %s92 = ssub.s32 %s16, %s35
    %s93 = ssub.s32 %s18, %s27
    %s94 = sor.u32 %s92, %s93
    %p95 = scmp.eq.s32.totalorder %s94, 0
    %s97 = sadd.s32 %s96, 1
    %s98 = scalar_select %p95, %s96, %s97
    %p101 = pneg %p95
    %p102 = scmp.eq.s32.totalorder %s9, 1
    %p103 = por %p101, %p102
    %p104 = scmp.ne.s32.totalorder %s96, %s99
    %p105 = scmp.eq.s32.totalorder %s9, 0
    %p106 = por %p104, %p105
    %p107 = scmp.ne.s32.totalorder %s96, %s99
    %p108 = scmp.eq.s32.totalorder %s14, 1
    %p109 = por %p107, %p108
    %p110 = scmp.ne.s32.totalorder %s99, %s100
    %p111 = scmp.eq.s32.totalorder %s14, 0
    %p112 = por %p110, %p111
    %p113 = scmp.ne.s32.totalorder %s99, %s100
    %p114 = scmp.eq.s32.totalorder %s15, 1
    %p115 = por %p113, %p114
    %p117 = scmp.ne.s32.totalorder %s100, %s116
    %p118 = scmp.eq.s32.totalorder %s15, 0
    %p119 = por %p117, %p118
    %s120 = ssub.s32 %s16, %s35
    %s121 = ssub.s32 %s17, %s31
    %s122 = sor.u32 %s120, %s121
    %s123 = ssub.s32 %s18, %s27
    %s124 = sor.u32 %s122, %s123
    %p125 = scmp.eq.s32.totalorder %s124, 0
    %s127 = sadd.s32 %s126, 1
    %s128 = scalar_select %p125, %s126, %s127
    %p131 = pneg %p125
    %p132 = scmp.eq.s32.totalorder %s9, 1
    %p133 = por %p131, %p132
    %p134 = scmp.ne.s32.totalorder %s126, %s129
    %p135 = scmp.eq.s32.totalorder %s9, 0
    %p136 = por %p134, %p135
    %p137 = scmp.ne.s32.totalorder %s126, %s129
    %p138 = scmp.eq.s32.totalorder %s14, 1
    %p139 = por %p137, %p138
    %p140 = scmp.ne.s32.totalorder %s129, %s130
    %p141 = scmp.eq.s32.totalorder %s14, 0
    %p142 = por %p140, %p141
    %p143 = scmp.ne.s32.totalorder %s129, %s130
    %p144 = scmp.eq.s32.totalorder %s15, 1
    %p145 = por %p143, %p144
    %p147 = scmp.ne.s32.totalorder %s130, %s146
    %p148 = scmp.eq.s32.totalorder %s15, 0
    %p149 = por %p147, %p148
    %p150 = scmp.le.s32.totalorder 1, %s9
    %p151 = scmp.lt.s32.totalorder %s9, 3
    %p152 = pnand %p150, %p151
    %p153 = pneg %p152
    // Predicated region
    $region9: #{forward_fn.22} parent=5 // pred_check
      _
    $region10: #{forward_fn.22} parent=5 // pred_check_branch
      %155 = sbr.rel (%p152) target = $region12
    $region11: #{forward_fn.22} parent=5 // pred_region
      %s156 = ssub.s32 %s9, 1
    $region12: #{forward_fn.22} parent=5 // pred_fallthru
      _
    %p157 = scmp.lt.s32.totalorder %s9, 2
    // Predicated region
    $region13: #{forward_fn.22} parent=5 // pred_check
      %p158 = pneg %p157
    $region14: #{forward_fn.22} parent=5 // pred_check_branch
      %160 = sbr.rel (%p158) target = $region16
    $region15: #{forward_fn.22} parent=5 // pred_region
      // Predicated region
      $region17: #{forward_fn.22} parent=15 // pred_check
        %p161 = pneg %p50
      $region18: #{forward_fn.22} parent=15 // pred_check_branch
        %163 = sbr.rel (%p161) target = $region20
      $region19: #{forward_fn.22} parent=15 // pred_region
        %s164 = smul.u32 2, %s17
        %p165 = scmp.lt.s32.totalorder %s16, 1
        %s166 = scalar_select %p165, %s16, 1
        %p167 = scmp.lt.s32.totalorder %s164, 1
        %s168 = scalar_select %p167, %s164, 1
        %s169 = smul.addr %s168, 7
        %s170 = smul.addr %s166, 14
        %s171 = sadd.s32 %s169, %s170
        %s172 = smul.addr %s171, 4
        %s173 = scalar_lea.vmem %s0, %s172
        %s174 = smul.u32 2, %s17
      $region20: #{forward_fn.22} parent=15 // pred_fallthru
        _
      // Predicated region
      $region21: #{forward_fn.22} parent=15 // pred_check
        %p175 = pneg %p78
      $region22: #{forward_fn.22} parent=15 // pred_check_branch
        %177 = sbr.rel (%p175) target = $region24
      $region23: #{forward_fn.22} parent=15 // pred_region
        %p178 = scmp.lt.s32.totalorder %s16, 1
        %s179 = scalar_select %p178, %s16, 1
        %p180 = scmp.lt.s32.totalorder %s18, 0
        %s181 = scalar_select %p180, %s18, 0
        %s182 = smul.addr %s179, 112
        %s183 = sadd.s32 %s181, %s182
        %s184 = smul.addr %s183, 4
        %s185 = scalar_lea.vmem %s1, %s184
      $region24: #{forward_fn.22} parent=15 // pred_fallthru
        _
      // Predicated region
      $region25: #{forward_fn.22} parent=15 // pred_check
        %p186 = pneg %p106
      $region26: #{forward_fn.22} parent=15 // pred_check_branch
        %188 = sbr.rel (%p186) target = $region28
      $region27: #{forward_fn.22} parent=15 // pred_region
        %p189 = scmp.lt.s32.totalorder %s16, 1
        %s190 = scalar_select %p189, %s16, 1
        %p191 = scmp.lt.s32.totalorder %s18, 0
        %s192 = scalar_select %p191, %s18, 0
        %s193 = sadd.s32 %s192, %s190
        %s194 = scalar_lea.vmem %s2, %s193
      $region28: #{forward_fn.22} parent=15 // pred_fallthru
        _
    $region16: #{forward_fn.22} parent=5 // pred_fallthru
      _
    %p195 = scmp.le.s32.totalorder 1, %s9
    %p196 = scmp.lt.s32.totalorder %s9, 3
    %p197 = pnand %p195, %p196
    %p198 = pneg %p197
    // Predicated region
    $region29: #{forward_fn.22} parent=5 // pred_check
      _
    $region30: #{forward_fn.22} parent=5 // pred_check_branch
      %200 = sbr.rel (%p197) target = $region32
    $region31: #{forward_fn.22} parent=5 // pred_region
      %s201 = ssub.s32 %s9, 1
      %s202 = smul.u32 2, %s20
      %p203 = scmp.lt.s32.totalorder %s19, 1
      %s204 = scalar_select %p203, %s19, 1
      %p205 = scmp.lt.s32.totalorder %s202, 1
      %s206 = scalar_select %p205, %s202, 1
      %s207 = smul.addr %s206, 7
      %s208 = smul.addr %s204, 14
      %s209 = sadd.s32 %s207, %s208
      %s210 = smul.addr %s209, 4
      %s211 = scalar_lea.vmem %s0, %s210
      %p212 = pneg %p56
      %p213 = pneg %p53
      %p214 = scmp.lt.s32.totalorder %s19, 1
      %s215 = scalar_select %p214, %s19, 1
      %p216 = scmp.lt.s32.totalorder %s21, 0
      %s217 = scalar_select %p216, %s21, 0
      %s218 = smul.addr %s215, 112
      %s219 = sadd.s32 %s217, %s218
      %s220 = smul.addr %s219, 4
      %s221 = scalar_lea.vmem %s1, %s220
      %p222 = pneg %p84
      %p223 = pneg %p81
      %p224 = scmp.lt.s32.totalorder %s19, 1
      %s225 = scalar_select %p224, %s19, 1
      %p226 = scmp.lt.s32.totalorder %s21, 0
      %s227 = scalar_select %p226, %s21, 0
      %s228 = sadd.s32 %s227, %s225
      %s229 = scalar_lea.vmem %s2, %s228
      %p230 = pneg %p112
      %p231 = pneg %p109
      %p232 = pneg %p142
      %p233 = pneg %p139
      %s234 = smul.u32 2, %s20
      %p235 = scmp.lt.s32.totalorder %s19, 1
      %s236 = scalar_select %p235, %s19, 1
      %p237 = scmp.lt.s32.totalorder %s234, 1
      %s238 = scalar_select %p237, %s234, 1
      %p239 = scmp.lt.s32.totalorder %s21, 0
      %s240 = scalar_select %p239, %s21, 0
      %s241 = sadd.s32 %s240, %s238
      %s242 = smul.addr %s236, 2
      %s243 = sadd.s32 %s241, %s242
      %s244 = smul.addr %s243, 8
      %s245 = scalar_lea.vmem %s3, %s244
      %s246 = smul.u32 2, %s20
      %p247 = scmp.lt.s32.totalorder %s19, 1
      %s248 = scalar_select %p247, %s19, 1
      %p249 = scmp.lt.s32.totalorder %s246, 1
      %s250 = scalar_select %p249, %s246, 1
      %s251 = smul.addr %s250, 7
      %s252 = smul.addr %s248, 14
      %s253 = sadd.s32 %s251, %s252
      %s254 = smul.addr %s253, 4
      %s255 = scalar_lea.vmem %s0, %s254
      %s256 = smul.u32 2, %s20
      %p257 = scmp.lt.s32.totalorder %s19, 1
      %s258 = scalar_select %p257, %s19, 1
      %p259 = scmp.lt.s32.totalorder %s21, 0
      %s260 = scalar_select %p259, %s21, 0
      %s261 = smul.addr %s258, 112
      %s262 = sadd.s32 %s260, %s261
      %s263 = smul.addr %s262, 4
      %s264 = scalar_lea.vmem %s1, %s263
      %p265 = scmp.lt.s32.totalorder %s19, 1
      %s266 = scalar_select %p265, %s19, 1
      %p267 = scmp.lt.s32.totalorder %s21, 0
      %s268 = scalar_select %p267, %s21, 0
      %s269 = sadd.s32 %s268, %s266
      %s270 = scalar_lea.vmem %s2, %s269
      %s271 = smul.u32 2, %s20
      %p272 = scmp.lt.s32.totalorder %s19, 1
      %s273 = scalar_select %p272, %s19, 1
      %p274 = scmp.lt.s32.totalorder %s271, 1
      %s275 = scalar_select %p274, %s271, 1
      %p276 = scmp.lt.s32.totalorder %s21, 0
      %s277 = scalar_select %p276, %s21, 0
      %s278 = sadd.s32 %s277, %s275
      %s279 = smul.addr %s273, 2
      %s280 = sadd.s32 %s278, %s279
      %s281 = smul.addr %s280, 8
      %s282 = scalar_lea.vmem %s3, %s281
      %s283 = smul.u32 2, %s20
      %v285 = vld [vmem:[%s255] sm:$0xff]
      %v286 = vld [vmem:[%s255 + $0x8] sm:$0xff]
      %v287 = vld [vmem:[%s255 + $0x10] sm:$0xff]
      %v288 = vld [vmem:[%s255 + $0x18] sm:$0xf]
      %v289 = vld [vmem:[%s255 + $0x1c] sm:$0xff]
      %v290 = vld [vmem:[%s255 + $0x24] sm:$0xff]
      %v291 = vld [vmem:[%s255 + $0x2c] sm:$0xff]
      %v292 = vld [vmem:[%s255 + $0x34] sm:$0xf]
      %v293 = vld [vmem:[%s264] sm:$0xf]
      %v294 = vld [vmem:[%s264 + $0x4] sm:$0xf]
      %v295 = vld [vmem:[%s264 + $0x8] sm:$0xf]
      %v296 = vld [vmem:[%s264 + $0xc] sm:$0xf]
      %v297 = vld [vmem:[%s264 + $0x10] sm:$0xf]
      %v298 = vld [vmem:[%s264 + $0x14] sm:$0xf]
      %v299 = vld [vmem:[%s264 + $0x18] sm:$0xf]
      %v300 = vld [vmem:[%s264 + $0x1c] sm:$0xf]
      %v301 = vld [vmem:[%s264 + $0x20] sm:$0xf]
      %v302 = vld [vmem:[%s264 + $0x24] sm:$0xf]
      %v303 = vld [vmem:[%s264 + $0x28] sm:$0xf]
      %v304 = vld [vmem:[%s264 + $0x2c] sm:$0xf]
      %v305 = vld [vmem:[%s264 + $0x30] sm:$0xf]
      %v306 = vld [vmem:[%s264 + $0x34] sm:$0xf]
      %v307 = vld [vmem:[%s264 + $0x38] sm:$0xf]
      %v308 = vld [vmem:[%s264 + $0x3c] sm:$0xf]
      %v309 = vld [vmem:[%s264 + $0x40] sm:$0xf]
      %v310 = vld [vmem:[%s264 + $0x44] sm:$0xf]
      %v311 = vld [vmem:[%s264 + $0x48] sm:$0xf]
      %v312 = vld [vmem:[%s264 + $0x4c] sm:$0xf]
      %v313 = vld [vmem:[%s264 + $0x50] sm:$0xf]
      %v314 = vld [vmem:[%s264 + $0x54] sm:$0xf]
      %v315 = vld [vmem:[%s264 + $0x58] sm:$0xf]
      %v316 = vld [vmem:[%s264 + $0x5c] sm:$0xf]
      %v317 = vld [vmem:[%s264 + $0x60] sm:$0xf]
      %v318 = vld [vmem:[%s264 + $0x64] sm:$0xf]
      %v319 = vld [vmem:[%s264 + $0x68] sm:$0xf]
      %v320 = vld [vmem:[%s264 + $0x6c] sm:$0xf]
      %v321 = vld [vmem:[%s264 + $0x70] sm:$0xf]
      %v322 = vld [vmem:[%s264 + $0x74] sm:$0xf]
      %v323 = vld [vmem:[%s264 + $0x78] sm:$0xf]
      %v324 = vld [vmem:[%s264 + $0x7c] sm:$0xf]
      %v325 = vld [vmem:[%s264 + $0x80] sm:$0xf]
      %v326 = vld [vmem:[%s264 + $0x84] sm:$0xf]
      %v327 = vld [vmem:[%s264 + $0x88] sm:$0xf]
      %v328 = vld [vmem:[%s264 + $0x8c] sm:$0xf]
      %v329 = vld [vmem:[%s264 + $0x90] sm:$0xf]
      %v330 = vld [vmem:[%s264 + $0x94] sm:$0xf]
      %v331 = vld [vmem:[%s264 + $0x98] sm:$0xf]
      %v332 = vld [vmem:[%s264 + $0x9c] sm:$0xf]
      %v333 = vld [vmem:[%s264 + $0xa0] sm:$0xf]
      %v334 = vld [vmem:[%s264 + $0xa4] sm:$0xf]
      %v335 = vld [vmem:[%s264 + $0xa8] sm:$0xf]
      %v336 = vld [vmem:[%s264 + $0xac] sm:$0xf]
      %v337 = vld [vmem:[%s264 + $0xb0] sm:$0xf]
      %v338 = vld [vmem:[%s264 + $0xb4] sm:$0xf]
      %v339 = vld [vmem:[%s264 + $0xb8] sm:$0xf]
      %v340 = vld [vmem:[%s264 + $0xbc] sm:$0xf]
      %v341 = vld [vmem:[%s264 + $0xc0] sm:$0xf]
      %v342 = vld [vmem:[%s264 + $0xc4] sm:$0xf]
      %v343 = vld [vmem:[%s264 + $0xc8] sm:$0xf]
      %v344 = vld [vmem:[%s264 + $0xcc] sm:$0xf]
      %v345 = vld [vmem:[%s264 + $0xd0] sm:$0xf]
      %v346 = vld [vmem:[%s264 + $0xd4] sm:$0xf]
      %v347 = vld [vmem:[%s264 + $0xd8] sm:$0xf]
      %v348 = vld [vmem:[%s264 + $0xdc] sm:$0xf]
      %v349 = vld [vmem:[%s264 + $0xe0] sm:$0xf]
      %v350 = vld [vmem:[%s264 + $0xe4] sm:$0xf]
      %v351 = vld [vmem:[%s264 + $0xe8] sm:$0xf]
      %v352 = vld [vmem:[%s264 + $0xec] sm:$0xf]
      %v353 = vld [vmem:[%s264 + $0xf0] sm:$0xf]
      %v354 = vld [vmem:[%s264 + $0xf4] sm:$0xf]
      %v355 = vld [vmem:[%s264 + $0xf8] sm:$0xf]
      %v356 = vld [vmem:[%s264 + $0xfc] sm:$0xf]
      %v357 = vld [vmem:[%s264 + $0x100] sm:$0xf]
      %v358 = vld [vmem:[%s264 + $0x104] sm:$0xf]
      %v359 = vld [vmem:[%s264 + $0x108] sm:$0xf]
      %v360 = vld [vmem:[%s264 + $0x10c] sm:$0xf]
      %v361 = vld [vmem:[%s264 + $0x110] sm:$0xf]
      %v362 = vld [vmem:[%s264 + $0x114] sm:$0xf]
      %v363 = vld [vmem:[%s264 + $0x118] sm:$0xf]
      %v364 = vld [vmem:[%s264 + $0x11c] sm:$0xf]
      %v365 = vld [vmem:[%s264 + $0x120] sm:$0xf]
      %v366 = vld [vmem:[%s264 + $0x124] sm:$0xf]
      %v367 = vld [vmem:[%s264 + $0x128] sm:$0xf]
      %v368 = vld [vmem:[%s264 + $0x12c] sm:$0xf]
      %v369 = vld [vmem:[%s264 + $0x130] sm:$0xf]
      %v370 = vld [vmem:[%s264 + $0x134] sm:$0xf]
      %v371 = vld [vmem:[%s264 + $0x138] sm:$0xf]
      %v372 = vld [vmem:[%s264 + $0x13c] sm:$0xf]
      %v373 = vld [vmem:[%s264 + $0x140] sm:$0xf]
      %v374 = vld [vmem:[%s264 + $0x144] sm:$0xf]
      %v375 = vld [vmem:[%s264 + $0x148] sm:$0xf]
      %v376 = vld [vmem:[%s264 + $0x14c] sm:$0xf]
      %v377 = vld [vmem:[%s264 + $0x150] sm:$0xf]
      %v378 = vld [vmem:[%s264 + $0x154] sm:$0xf]
      %v379 = vld [vmem:[%s264 + $0x158] sm:$0xf]
      %v380 = vld [vmem:[%s264 + $0x15c] sm:$0xf]
      %v381 = vld [vmem:[%s264 + $0x160] sm:$0xf]
      %v382 = vld [vmem:[%s264 + $0x164] sm:$0xf]
      %v383 = vld [vmem:[%s264 + $0x168] sm:$0xf]
      %v384 = vld [vmem:[%s264 + $0x16c] sm:$0xf]
      %v385 = vld [vmem:[%s264 + $0x170] sm:$0xf]
      %v386 = vld [vmem:[%s264 + $0x174] sm:$0xf]
      %v387 = vld [vmem:[%s264 + $0x178] sm:$0xf]
      %v388 = vld [vmem:[%s264 + $0x17c] sm:$0xf]
      %v389 = vld [vmem:[%s264 + $0x180] sm:$0xf]
      %v390 = vld [vmem:[%s264 + $0x184] sm:$0xf]
      %v391 = vld [vmem:[%s264 + $0x188] sm:$0xf]
      %v392 = vld [vmem:[%s264 + $0x18c] sm:$0xf]
      %v393 = vld [vmem:[%s264 + $0x190] sm:$0xf]
      %v394 = vld [vmem:[%s264 + $0x194] sm:$0xf]
      %v395 = vld [vmem:[%s264 + $0x198] sm:$0xf]
      %v396 = vld [vmem:[%s264 + $0x19c] sm:$0xf]
      %v397 = vld [vmem:[%s264 + $0x1a0] sm:$0xf]
      %v398 = vld [vmem:[%s264 + $0x1a4] sm:$0xf]
      %v399 = vld [vmem:[%s264 + $0x1a8] sm:$0xf]
      %v400 = vld [vmem:[%s264 + $0x1ac] sm:$0xf]
      %v401 = vld [vmem:[%s264 + $0x1b0] sm:$0xf]
      %v402 = vld [vmem:[%s264 + $0x1b4] sm:$0xf]
      %v403 = vld [vmem:[%s264 + $0x1b8] sm:$0xf]
      %v404 = vld [vmem:[%s264 + $0x1bc] sm:$0xf]
      %v405 = vld [vmem:[%s270] sm:$0x1]
      %v407 = vlaneseq
      %v408 = vshrl.u32 %v407, 7
      %v409 = vsub.s32 0, %v408
      %v410 = vrot.slane %v405, %v409
      %v420 = vunpack.c.l.b16 %v285
      %v421 = vunpack.c.h.b16 %v285
      %v422 = vunpack.c.l.b16 %v286
      %v423 = vunpack.c.h.b16 %v286
      %v424 = vunpack.c.l.b16 %v287
      %v425 = vunpack.c.h.b16 %v287
      %v426 = vunpack.c.l.b16 %v288
      %v427 = vunpack.c.l.b16 %v289
      %v428 = vunpack.c.h.b16 %v289
      %v429 = vunpack.c.l.b16 %v290
      %v430 = vunpack.c.h.b16 %v290
      %v431 = vunpack.c.l.b16 %v291
      %v432 = vunpack.c.h.b16 %v291
      %v433 = vunpack.c.l.b16 %v292
      %v434 = vpack.c.b16 %v427, %v420
      %v435 = vpack.c.b16 %v428, %v421
      %v436 = vpack.c.b16 %v429, %v422
      %v437 = vpack.c.b16 %v430, %v423
      %v438 = vpack.c.b16 %v431, %v424
      %v439 = vpack.c.b16 %v432, %v425
      %v440 = vpack.c.b16 %v433, %v426
      %v560 = vunpack.c.l.b16 %v293
      %v561 = vunpack.c.l.b16 %v294
      %v562 = vunpack.c.l.b16 %v295
      %v563 = vunpack.c.l.b16 %v296
      %v564 = vunpack.c.l.b16 %v297
      %v565 = vunpack.c.l.b16 %v298
      %v566 = vunpack.c.l.b16 %v299
      %v567 = vunpack.c.l.b16 %v300
      %v568 = vunpack.c.l.b16 %v301
      %v569 = vunpack.c.l.b16 %v302
      %v570 = vunpack.c.l.b16 %v303
      %v571 = vunpack.c.l.b16 %v304
      %v572 = vunpack.c.l.b16 %v305
      %v573 = vunpack.c.l.b16 %v306
      %v574 = vunpack.c.l.b16 %v307
      %v575 = vunpack.c.l.b16 %v308
      %v576 = vunpack.c.l.b16 %v309
      %v577 = vunpack.c.l.b16 %v310
      %v578 = vunpack.c.l.b16 %v311
      %v579 = vunpack.c.l.b16 %v312
      %v580 = vunpack.c.l.b16 %v313
      %v581 = vunpack.c.l.b16 %v314
      %v582 = vunpack.c.l.b16 %v315
      %v583 = vunpack.c.l.b16 %v316
      %v584 = vunpack.c.l.b16 %v317
      %v585 = vunpack.c.l.b16 %v318
      %v586 = vunpack.c.l.b16 %v319
      %v587 = vunpack.c.l.b16 %v320
      %v588 = vunpack.c.l.b16 %v321
      %v589 = vunpack.c.l.b16 %v322
      %v590 = vunpack.c.l.b16 %v323
      %v591 = vunpack.c.l.b16 %v324
      %v592 = vunpack.c.l.b16 %v325
      %v593 = vunpack.c.l.b16 %v326
      %v594 = vunpack.c.l.b16 %v327
      %v595 = vunpack.c.l.b16 %v328
      %v596 = vunpack.c.l.b16 %v329
      %v597 = vunpack.c.l.b16 %v330
      %v598 = vunpack.c.l.b16 %v331
      %v599 = vunpack.c.l.b16 %v332
      %v600 = vunpack.c.l.b16 %v333
      %v601 = vunpack.c.l.b16 %v334
      %v602 = vunpack.c.l.b16 %v335
      %v603 = vunpack.c.l.b16 %v336
      %v604 = vunpack.c.l.b16 %v337
      %v605 = vunpack.c.l.b16 %v338
      %v606 = vunpack.c.l.b16 %v339
      %v607 = vunpack.c.l.b16 %v340
      %v608 = vunpack.c.l.b16 %v341
      %v609 = vunpack.c.l.b16 %v342
      %v610 = vunpack.c.l.b16 %v343
      %v611 = vunpack.c.l.b16 %v344
      %v612 = vunpack.c.l.b16 %v345
      %v613 = vunpack.c.l.b16 %v346
      %v614 = vunpack.c.l.b16 %v347
      %v615 = vunpack.c.l.b16 %v348
      %v616 = vunpack.c.l.b16 %v349
      %v617 = vunpack.c.l.b16 %v350
      %v618 = vunpack.c.l.b16 %v351
      %v619 = vunpack.c.l.b16 %v352
      %v620 = vunpack.c.l.b16 %v353
      %v621 = vunpack.c.l.b16 %v354
      %v622 = vunpack.c.l.b16 %v355
      %v623 = vunpack.c.l.b16 %v356
      %v624 = vunpack.c.l.b16 %v357
      %v625 = vunpack.c.l.b16 %v358
      %v626 = vunpack.c.l.b16 %v359
      %v627 = vunpack.c.l.b16 %v360
      %v628 = vunpack.c.l.b16 %v361
      %v629 = vunpack.c.l.b16 %v362
      %v630 = vunpack.c.l.b16 %v363
      %v631 = vunpack.c.l.b16 %v364
      %v632 = vunpack.c.l.b16 %v365
      %v633 = vunpack.c.l.b16 %v366
      %v634 = vunpack.c.l.b16 %v367
      %v635 = vunpack.c.l.b16 %v368
      %v636 = vunpack.c.l.b16 %v369
      %v637 = vunpack.c.l.b16 %v370
      %v638 = vunpack.c.l.b16 %v371
      %v639 = vunpack.c.l.b16 %v372
      %v640 = vunpack.c.l.b16 %v373
      %v641 = vunpack.c.l.b16 %v374
      %v642 = vunpack.c.l.b16 %v375
      %v643 = vunpack.c.l.b16 %v376
      %v644 = vunpack.c.l.b16 %v377
      %v645 = vunpack.c.l.b16 %v378
      %v646 = vunpack.c.l.b16 %v379
      %v647 = vunpack.c.l.b16 %v380
      %v648 = vunpack.c.l.b16 %v381
      %v649 = vunpack.c.l.b16 %v382
      %v650 = vunpack.c.l.b16 %v383
      %v651 = vunpack.c.l.b16 %v384
      %v652 = vunpack.c.l.b16 %v385
      %v653 = vunpack.c.l.b16 %v386
      %v654 = vunpack.c.l.b16 %v387
      %v655 = vunpack.c.l.b16 %v388
      %v656 = vunpack.c.l.b16 %v389
      %v657 = vunpack.c.l.b16 %v390
      %v658 = vunpack.c.l.b16 %v391
      %v659 = vunpack.c.l.b16 %v392
      %v660 = vunpack.c.l.b16 %v393
      %v661 = vunpack.c.l.b16 %v394
      %v662 = vunpack.c.l.b16 %v395
      %v663 = vunpack.c.l.b16 %v396
      %v664 = vunpack.c.l.b16 %v397
      %v665 = vunpack.c.l.b16 %v398
      %v666 = vunpack.c.l.b16 %v399
      %v667 = vunpack.c.l.b16 %v400
      %v668 = vunpack.c.l.b16 %v401
      %v669 = vunpack.c.l.b16 %v402
      %v670 = vunpack.c.l.b16 %v403
      %v671 = vunpack.c.l.b16 %v404
      %v672 = vpack.c.b16 %v561, %v560
      %v673 = vpack.c.b16 %v563, %v562
      %v674 = vpack.c.b16 %v565, %v564
      %v675 = vpack.c.b16 %v567, %v566
      %v676 = vpack.c.b16 %v569, %v568
      %v677 = vpack.c.b16 %v571, %v570
      %v678 = vpack.c.b16 %v573, %v572
      %v679 = vpack.c.b16 %v575, %v574
      %v680 = vpack.c.b16 %v577, %v576
      %v681 = vpack.c.b16 %v579, %v578
      %v682 = vpack.c.b16 %v581, %v580
      %v683 = vpack.c.b16 %v583, %v582
      %v684 = vpack.c.b16 %v585, %v584
      %v685 = vpack.c.b16 %v587, %v586
      %v686 = vpack.c.b16 %v589, %v588
      %v687 = vpack.c.b16 %v591, %v590
      %v688 = vpack.c.b16 %v593, %v592
      %v689 = vpack.c.b16 %v595, %v594
      %v690 = vpack.c.b16 %v597, %v596
      %v691 = vpack.c.b16 %v599, %v598
      %v692 = vpack.c.b16 %v601, %v600
      %v693 = vpack.c.b16 %v603, %v602
      %v694 = vpack.c.b16 %v605, %v604
      %v695 = vpack.c.b16 %v607, %v606
      %v696 = vpack.c.b16 %v609, %v608
      %v697 = vpack.c.b16 %v611, %v610
      %v698 = vpack.c.b16 %v613, %v612
      %v699 = vpack.c.b16 %v615, %v614
      %v700 = vpack.c.b16 %v617, %v616
      %v701 = vpack.c.b16 %v619, %v618
      %v702 = vpack.c.b16 %v621, %v620
      %v703 = vpack.c.b16 %v623, %v622
      %v704 = vpack.c.b16 %v625, %v624
      %v705 = vpack.c.b16 %v627, %v626
      %v706 = vpack.c.b16 %v629, %v628
      %v707 = vpack.c.b16 %v631, %v630
      %v708 = vpack.c.b16 %v633, %v632
      %v709 = vpack.c.b16 %v635, %v634
      %v710 = vpack.c.b16 %v637, %v636
      %v711 = vpack.c.b16 %v639, %v638
      %v712 = vpack.c.b16 %v641, %v640
      %v713 = vpack.c.b16 %v643, %v642
      %v714 = vpack.c.b16 %v645, %v644
      %v715 = vpack.c.b16 %v647, %v646
      %v716 = vpack.c.b16 %v649, %v648
      %v717 = vpack.c.b16 %v651, %v650
      %v718 = vpack.c.b16 %v653, %v652
      %v719 = vpack.c.b16 %v655, %v654
      %v720 = vpack.c.b16 %v657, %v656
      %v721 = vpack.c.b16 %v659, %v658
      %v722 = vpack.c.b16 %v661, %v660
      %v723 = vpack.c.b16 %v663, %v662
      %v724 = vpack.c.b16 %v665, %v664
      %v725 = vpack.c.b16 %v667, %v666
      %v726 = vpack.c.b16 %v669, %v668
      %v727 = vpack.c.b16 %v671, %v670
      %784 = vmatprep.subr.bf16.mxu0 0
      %785 = vmatpush1.bf16.msra.mxu0 %v672
      %786 = vmatprep.subr.bf16.mxu0 0
      %787 = vmatpush1.bf16.msra.mxu0 %v673
      %788 = vmatprep.subr.bf16.mxu0 0
      %789 = vmatpush1.bf16.msra.mxu0 %v674
      %790 = vmatprep.subr.bf16.mxu0 0
      %791 = vmatpush1.bf16.msra.mxu0 %v675
      %792 = vmatprep.subr.bf16.mxu0 0
      %793 = vmatpush1.bf16.msra.mxu0 %v676
      %794 = vmatprep.subr.bf16.mxu0 0
      %795 = vmatpush1.bf16.msra.mxu0 %v677
      %796 = vmatprep.subr.bf16.mxu0 0
      %797 = vmatpush1.bf16.msra.mxu0 %v678
      %798 = vmatprep.subr.bf16.mxu0 0
      %799 = vmatpush1.bf16.msra.mxu0 %v679
      %800 = vmatprep.subr.bf16.mxu0 0
      %801 = vmatpush1.bf16.msra.mxu0 %v680
      %802 = vmatprep.subr.bf16.mxu0 0
      %803 = vmatpush1.bf16.msra.mxu0 %v681
      %804 = vmatprep.subr.bf16.mxu0 0
      %805 = vmatpush1.bf16.msra.mxu0 %v682
      %806 = vmatprep.subr.bf16.mxu0 0
      %807 = vmatpush1.bf16.msra.mxu0 %v683
      %808 = vmatprep.subr.bf16.mxu0 0
      %809 = vmatpush1.bf16.msra.mxu0 %v684
      %810 = vmatprep.subr.bf16.mxu0 0
      %811 = vmatpush1.bf16.msra.mxu0 %v685
      %812 = vmatprep.subr.bf16.mxu0 0
      %813 = vmatpush1.bf16.msra.mxu0 %v686
      %814 = vmatprep.subr.bf16.mxu0 0
      %815 = vmatpush1.bf16.msra.mxu0 %v687
      %816 = vmatprep.mubr.bf16.mxu0 %v435
      %817 = vmatmul.mubr.bf16.gmra.mrb[0].mxu0 %v434
      %v818 = vpop.f32.mrb[0].mxu0
      %v819 = vadd.f32 %v410, %v818
      %v820 = vpop.f32.mrb[0].mxu0
      %v821 = vpop.f32.mrb[0].mxu0
      %v822 = vadd.f32 %v410, %v821
      %v823 = vpop.f32.mrb[0].mxu0
      %824 = vdwg.mxu0
      %825 = vmatprep.subr.bf16.mxu0 0
      %826 = vmatpush1.bf16.msra.mxu0 %v688
      %827 = vmatprep.subr.bf16.mxu0 0
      %828 = vmatpush1.bf16.msra.mxu0 %v689
      %829 = vmatprep.subr.bf16.mxu0 0
      %830 = vmatpush1.bf16.msra.mxu0 %v690
      %831 = vmatprep.subr.bf16.mxu0 0
      %832 = vmatpush1.bf16.msra.mxu0 %v691
      %833 = vmatprep.subr.bf16.mxu0 0
      %834 = vmatpush1.bf16.msra.mxu0 %v692
      %835 = vmatprep.subr.bf16.mxu0 0
      %836 = vmatpush1.bf16.msra.mxu0 %v693
      %837 = vmatprep.subr.bf16.mxu0 0
      %838 = vmatpush1.bf16.msra.mxu0 %v694
      %839 = vmatprep.subr.bf16.mxu0 0
      %840 = vmatpush1.bf16.msra.mxu0 %v695
      %841 = vmatprep.subr.bf16.mxu0 0
      %842 = vmatpush1.bf16.msra.mxu0 %v696
      %843 = vmatprep.subr.bf16.mxu0 0
      %844 = vmatpush1.bf16.msra.mxu0 %v697
      %845 = vmatprep.subr.bf16.mxu0 0
      %846 = vmatpush1.bf16.msra.mxu0 %v698
      %847 = vmatprep.subr.bf16.mxu0 0
      %848 = vmatpush1.bf16.msra.mxu0 %v699
      %849 = vmatprep.subr.bf16.mxu0 0
      %850 = vmatpush1.bf16.msra.mxu0 %v700
      %851 = vmatprep.subr.bf16.mxu0 0
      %852 = vmatpush1.bf16.msra.mxu0 %v701
      %853 = vmatprep.subr.bf16.mxu0 0
      %854 = vmatpush1.bf16.msra.mxu0 %v702
      %855 = vmatprep.subr.bf16.mxu0 0
      %856 = vmatpush1.bf16.msra.mxu0 %v703
      %857 = vmatprep.mubr.bf16.mxu0 %v437
      %858 = vmatmul.mubr.bf16.gmra.mrb[0].mxu0 %v436
      %v859 = vpop.f32.mrb[0].mxu0
      %v860 = vadd.f32 %v819, %v859
      %v861 = vpop.f32.mrb[0].mxu0
      %v862 = vpop.f32.mrb[0].mxu0
      %v863 = vadd.f32 %v822, %v862
      %v864 = vpop.f32.mrb[0].mxu0
      %865 = vdwg.mxu0
      %866 = vmatprep.subr.bf16.mxu0 0
      %867 = vmatpush1.bf16.msra.mxu0 %v704
      %868 = vmatprep.subr.bf16.mxu0 0
      %869 = vmatpush1.bf16.msra.mxu0 %v705
      %870 = vmatprep.subr.bf16.mxu0 0
      %871 = vmatpush1.bf16.msra.mxu0 %v706
      %872 = vmatprep.subr.bf16.mxu0 0
      %873 = vmatpush1.bf16.msra.mxu0 %v707
      %874 = vmatprep.subr.bf16.mxu0 0
      %875 = vmatpush1.bf16.msra.mxu0 %v708
      %876 = vmatprep.subr.bf16.mxu0 0
      %877 = vmatpush1.bf16.msra.mxu0 %v709
      %878 = vmatprep.subr.bf16.mxu0 0
      %879 = vmatpush1.bf16.msra.mxu0 %v710
      %880 = vmatprep.subr.bf16.mxu0 0
      %881 = vmatpush1.bf16.msra.mxu0 %v711
      %882 = vmatprep.subr.bf16.mxu0 0
      %883 = vmatpush1.bf16.msra.mxu0 %v712
      %884 = vmatprep.subr.bf16.mxu0 0
      %885 = vmatpush1.bf16.msra.mxu0 %v713
      %886 = vmatprep.subr.bf16.mxu0 0
      %887 = vmatpush1.bf16.msra.mxu0 %v714
      %888 = vmatprep.subr.bf16.mxu0 0
      %889 = vmatpush1.bf16.msra.mxu0 %v715
      %890 = vmatprep.subr.bf16.mxu0 0
      %891 = vmatpush1.bf16.msra.mxu0 %v716
      %892 = vmatprep.subr.bf16.mxu0 0
      %893 = vmatpush1.bf16.msra.mxu0 %v717
      %894 = vmatprep.subr.bf16.mxu0 0
      %895 = vmatpush1.bf16.msra.mxu0 %v718
      %896 = vmatprep.subr.bf16.mxu0 0
      %897 = vmatpush1.bf16.msra.mxu0 %v719
      %898 = vmatprep.mubr.bf16.mxu0 %v439
      %899 = vmatmul.mubr.bf16.gmra.mrb[0].mxu0 %v438
      %v900 = vpop.f32.mrb[0].mxu0
      %v901 = vadd.f32 %v860, %v900
      %v902 = vpop.f32.mrb[0].mxu0
      %v903 = vpop.f32.mrb[0].mxu0
      %v904 = vadd.f32 %v863, %v903
      %v905 = vpop.f32.mrb[0].mxu0
      %906 = vdwg.mxu0
      %907 = vmatprep.subr.bf16.mxu0 0
      %908 = vmatpush1.bf16.msra.mxu0 %v720
      %909 = vmatprep.subr.bf16.mxu0 0
      %910 = vmatpush1.bf16.msra.mxu0 %v721
      %911 = vmatprep.subr.bf16.mxu0 0
      %912 = vmatpush1.bf16.msra.mxu0 %v722
      %913 = vmatprep.subr.bf16.mxu0 0
      %914 = vmatpush1.bf16.msra.mxu0 %v723
      %915 = vmatprep.subr.bf16.mxu0 0
      %916 = vmatpush1.bf16.msra.mxu0 %v724
      %917 = vmatprep.subr.bf16.mxu0 0
      %918 = vmatpush1.bf16.msra.mxu0 %v725
      %919 = vmatprep.subr.bf16.mxu0 0
      %920 = vmatpush1.bf16.msra.mxu0 %v726
      %921 = vmatprep.subr.bf16.mxu0 0
      %922 = vmatpush1.bf16.msra.mxu0 %v727
      %923 = vmatprep.subr.bf16.mxu0 0
      %924 = vmatpush1.bf16.msra.mxu0 0
      %925 = vmatprep.subr.bf16.mxu0 0
      %926 = vmatpush1.bf16.msra.mxu0 0
      %927 = vmatprep.subr.bf16.mxu0 0
      %928 = vmatpush1.bf16.msra.mxu0 0
      %929 = vmatprep.subr.bf16.mxu0 0
      %930 = vmatpush1.bf16.msra.mxu0 0
      %931 = vmatprep.subr.bf16.mxu0 0
      %932 = vmatpush1.bf16.msra.mxu0 0
      %933 = vmatprep.subr.bf16.mxu0 0
      %934 = vmatpush1.bf16.msra.mxu0 0
      %935 = vmatprep.subr.bf16.mxu0 0
      %936 = vmatpush1.bf16.msra.mxu0 0
      %937 = vmatprep.subr.bf16.mxu0 0
      %938 = vmatpush1.bf16.msra.mxu0 0
      %939 = vmatprep.mubr.bf16.mxu0 0
      %940 = vmatmul.mubr.bf16.gmra.mrb[0].mxu0 %v440
      %v941 = vpop.f32.mrb[0].mxu0
      %v942 = vadd.f32 %v901, %v941
      %v943 = vpop.f32.mrb[0].mxu0
      %v944 = vpop.f32.mrb[0].mxu0
      %v945 = vadd.f32 %v904, %v944
      %v946 = vpop.f32.mrb[0].mxu0
      %947 = vdwg.mxu0
      %v948 = vmax.f32 %v942, 0.0
      %v949 = vmax.f32 %v945, 0.0
      %950 = vst [vmem:[%s282] sm:$0xff] %v948
      %951 = vst [vmem:[%s282 + $0x8] sm:$0xff] %v949
      %s952 = smul.u32 2, %s20
      %p953 = scmp.lt.s32.totalorder %s19, 1
      %s954 = scalar_select %p953, %s19, 1
      %p955 = scmp.lt.s32.totalorder %s952, 1
      %s956 = scalar_select %p955, %s952, 1
      %p957 = scmp.lt.s32.totalorder %s21, 0
      %s958 = scalar_select %p957, %s21, 0
      %s959 = sadd.s32 %s958, %s956
      %s960 = smul.addr %s954, 2
      %s961 = sadd.s32 %s959, %s960
      %s962 = smul.addr %s961, 8
      %s963 = scalar_lea.vmem %s3, %s962
      // Predicated region
      $region33: #{forward_fn.22} parent=31 // pred_check
        %p964 = pneg %p139
      $region34: #{forward_fn.22} parent=31 // pred_check_branch
        %966 = sbr.rel (%p964) target = $region36
      $region35: #{forward_fn.22} parent=31 // pred_region
        %s967 = smul.u32 2, %s20
      $region36: #{forward_fn.22} parent=31 // pred_fallthru
        _
    $region32: #{forward_fn.22} parent=5 // pred_fallthru
      _
    %p968 = scmp.le.s32.totalorder 2, %s9
    // Predicated region
    $region37: #{forward_fn.22} parent=5 // pred_check
      %p969 = pneg %p968
    $region38: #{forward_fn.22} parent=5 // pred_check_branch
      %971 = sbr.rel (%p969) target = $region40
    $region39: #{forward_fn.22} parent=5 // pred_region
      %s972 = ssub.s32 %s9, 2
      // Predicated region
      $region41: #{forward_fn.22} parent=39 // pred_check
        %p973 = pneg %p145
      $region42: #{forward_fn.22} parent=39 // pred_check_branch
        %975 = sbr.rel (%p973) target = $region44
      $region43: #{forward_fn.22} parent=39 // pred_region
        %s976 = smul.u32 2, %s23
        %p977 = scmp.lt.s32.totalorder %s22, 1
        %s978 = scalar_select %p977, %s22, 1
        %p979 = scmp.lt.s32.totalorder %s976, 1
        %s980 = scalar_select %p979, %s976, 1
        %p981 = scmp.lt.s32.totalorder %s24, 0
        %s982 = scalar_select %p981, %s24, 0
        %s983 = sadd.s32 %s982, %s980
        %s984 = smul.addr %s978, 2
        %s985 = sadd.s32 %s983, %s984
        %s986 = smul.addr %s985, 8
        %s987 = scalar_lea.vmem %s3, %s986
      $region44: #{forward_fn.22} parent=39 // pred_fallthru
        _
    $region40: #{forward_fn.22} parent=5 // pred_fallthru
      _
  $region6: #{forward_fn.22} parent=0 // loop_footer
    %s13 = sadd.s32 1, %s9
  $region7: #{forward_fn.22} parent=0 // loop_footer_branch
    %8 = sbr.rel target = $region3
  $region8: #{forward_fn.22} parent=0 // loop_exit
    _

// kernel: forward_fn.26
$region0: #{forward_fn.26}
  #allocation0 [shape = 'u32[]', space=smem, size = 0x4, offset = 0x4, fixed_abs, tag = 'smem constant byte address 0x4 - core index']
  #allocation1 [shape = 'u32[144,128]{1,0:T(1,128)}', space=vmem, size = 0x12000, scoped, tag = 'internal scratch']
  %s0 = inlined_call_operand.vmem [shape: bf16[2,16,1408], index: 0, kind: input, shape index: {}]
  %s1 = inlined_call_operand.vmem [shape: bf16[2,1408,128], index: 1, kind: input, shape index: {}]
  %s2 = inlined_call_operand.vmem [shape: f32[2,1,128], index: 2, kind: input, shape index: {}]
  %s3 = inlined_call_operand.vmem [shape: f32[2,16,128], index: 3, kind: output, shape index: {}]
  %s4 = sld [smem:[#allocation0]]
  $region45: #{forward_fn.26} parent=0
    _
  %s6 = ssub.s32 1, %s4
  %s7 = scalar_select 0, %s6, %s4
  loop: start=0, step=1, limit=4
  $region2: #{forward_fn.26} parent=0 // loop_pre_header
    _
  $region3: #{forward_fn.26} parent=0 // loop_header
    %s9 = sphi 0, %s13
    %p10 = scmp.ge.s32.totalorder %s9, 4
    %s16 = sphi 0, %s35
    %s17 = sphi 0, %s31
    %s18 = sphi 0, %s27
    %s19 = sphi 0, %s16
    %s20 = sphi 0, %s17
    %s21 = sphi 0, %s18
    %s22 = sphi 0, %s19
    %s23 = sphi 0, %s20
    %s24 = sphi 0, %s21
    %s40 = sphi 0, %s42
    %s43 = sphi 0, %s40
    %s44 = sphi 0, %s43
    %s60 = sphi 0, %s44
    %s68 = sphi 0, %s70
    %s71 = sphi 0, %s68
    %s72 = sphi 0, %s71
    %s88 = sphi 0, %s72
    %s96 = sphi 0, %s98
    %s99 = sphi 0, %s96
    %s100 = sphi 0, %s99
    %s116 = sphi 0, %s100
    %s126 = sphi 0, %s128
    %s129 = sphi 0, %s126
    %s130 = sphi 0, %s129
    %s146 = sphi 0, %s130
  $region4: #{forward_fn.26} parent=0 // loop_header_branch
    %12 = sbr.rel (%p10) target = $region8
  $region5: #{forward_fn.26} parent=0 // loop_body
    %s14 = ssub.s32 %s9, 1
    %s15 = ssub.s32 %s9, 2
    %s25 = sadd.s32 1, %s18
    %p26 = scmp.ge.s32.totalorder %s25, 1
    %s27 = scalar_select %p26, 0, %s25
    %s28 = sadd.s32 1, %s17
    %s29 = scalar_select %p26, %s28, %s17
    %p30 = scmp.ge.s32.totalorder %s29, 1
    %s31 = scalar_select %p30, 0, %s29
    %s32 = sadd.s32 1, %s16
    %s33 = scalar_select %p30, %s32, %s16
    %p34 = scmp.ge.s32.totalorder %s33, 2
    %s35 = scalar_select %p34, 0, %s33
    %s36 = ssub.s32 %s16, %s35
    %s37 = ssub.s32 %s17, %s31
    %s38 = sor.u32 %s36, %s37
    %p39 = scmp.eq.s32.totalorder %s38, 0
    %s41 = sadd.s32 %s40, 1
    %s42 = scalar_select %p39, %s40, %s41
    %p45 = pneg %p39
    %p46 = scmp.eq.s32.totalorder %s9, 1
    %p47 = por %p45, %p46
    %p48 = scmp.ne.s32.totalorder %s40, %s43
    %p49 = scmp.eq.s32.totalorder %s9, 0
    %p50 = por %p48, %p49
    %p51 = scmp.ne.s32.totalorder %s40, %s43
    %p52 = scmp.eq.s32.totalorder %s14, 1
    %p53 = por %p51, %p52
    %p54 = scmp.ne.s32.totalorder %s43, %s44
    %p55 = scmp.eq.s32.totalorder %s14, 0
    %p56 = por %p54, %p55
    %p57 = scmp.ne.s32.totalorder %s43, %s44
    %p58 = scmp.eq.s32.totalorder %s15, 1
    %p59 = por %p57, %p58
    %p61 = scmp.ne.s32.totalorder %s44, %s60
    %p62 = scmp.eq.s32.totalorder %s15, 0
    %p63 = por %p61, %p62
    %s64 = ssub.s32 %s16, %s35
    %s65 = ssub.s32 %s18, %s27
    %s66 = sor.u32 %s64, %s65
    %p67 = scmp.eq.s32.totalorder %s66, 0
    %s69 = sadd.s32 %s68, 1
    %s70 = scalar_select %p67, %s68, %s69
    %p73 = pneg %p67
    %p74 = scmp.eq.s32.totalorder %s9, 1
    %p75 = por %p73, %p74
    %p76 = scmp.ne.s32.totalorder %s68, %s71
    %p77 = scmp.eq.s32.totalorder %s9, 0
    %p78 = por %p76, %p77
    %p79 = scmp.ne.s32.totalorder %s68, %s71
    %p80 = scmp.eq.s32.totalorder %s14, 1
    %p81 = por %p79, %p80
    %p82 = scmp.ne.s32.totalorder %s71, %s72
    %p83 = scmp.eq.s32.totalorder %s14, 0
    %p84 = por %p82, %p83
    %p85 = scmp.ne.s32.totalorder %s71, %s72
    %p86 = scmp.eq.s32.totalorder %s15, 1
    %p87 = por %p85, %p86
    %p89 = scmp.ne.s32.totalorder %s72, %s88
    %p90 = scmp.eq.s32.totalorder %s15, 0
    %p91 = por %p89, %p90
    %s92 = ssub.s32 %s16, %s35
    %s93 = ssub.s32 %s18, %s27
    %s94 = sor.u32 %s92, %s93
    %p95 = scmp.eq.s32.totalorder %s94, 0
    %s97 = sadd.s32 %s96, 1
    %s98 = scalar_select %p95, %s96, %s97
    %p101 = pneg %p95
    %p102 = scmp.eq.s32.totalorder %s9, 1
    %p103 = por %p101, %p102
    %p104 = scmp.ne.s32.totalorder %s96, %s99
    %p105 = scmp.eq.s32.totalorder %s9, 0
    %p106 = por %p104, %p105
    %p107 = scmp.ne.s32.totalorder %s96, %s99
    %p108 = scmp.eq.s32.totalorder %s14, 1
    %p109 = por %p107, %p108
    %p110 = scmp.ne.s32.totalorder %s99, %s100
    %p111 = scmp.eq.s32.totalorder %s14, 0
    %p112 = por %p110, %p111
    %p113 = scmp.ne.s32.totalorder %s99, %s100
    %p114 = scmp.eq.s32.totalorder %s15, 1
    %p115 = por %p113, %p114
    %p117 = scmp.ne.s32.totalorder %s100, %s116
    %p118 = scmp.eq.s32.totalorder %s15, 0
    %p119 = por %p117, %p118
    %s120 = ssub.s32 %s16, %s35
    %s121 = ssub.s32 %s17, %s31
    %s122 = sor.u32 %s120, %s121
    %s123 = ssub.s32 %s18, %s27
    %s124 = sor.u32 %s122, %s123
    %p125 = scmp.eq.s32.totalorder %s124, 0
    %s127 = sadd.s32 %s126, 1
    %s128 = scalar_select %p125, %s126, %s127
    %p131 = pneg %p125
    %p132 = scmp.eq.s32.totalorder %s9, 1
    %p133 = por %p131, %p132
    %p134 = scmp.ne.s32.totalorder %s126, %s129
    %p135 = scmp.eq.s32.totalorder %s9, 0
    %p136 = por %p134, %p135
    %p137 = scmp.ne.s32.totalorder %s126, %s129
    %p138 = scmp.eq.s32.totalorder %s14, 1
    %p139 = por %p137, %p138
    %p140 = scmp.ne.s32.totalorder %s129, %s130
    %p141 = scmp.eq.s32.totalorder %s14, 0
    %p142 = por %p140, %p141
    %p143 = scmp.ne.s32.totalorder %s129, %s130
    %p144 = scmp.eq.s32.totalorder %s15, 1
    %p145 = por %p143, %p144
    %p147 = scmp.ne.s32.totalorder %s130, %s146
    %p148 = scmp.eq.s32.totalorder %s15, 0
    %p149 = por %p147, %p148
    %p150 = scmp.le.s32.totalorder 1, %s9
    %p151 = scmp.lt.s32.totalorder %s9, 3
    %p152 = pnand %p150, %p151
    %p153 = pneg %p152
    // Predicated region
    $region9: #{forward_fn.26} parent=5 // pred_check
      _
    $region10: #{forward_fn.26} parent=5 // pred_check_branch
      %155 = sbr.rel (%p152) target = $region12
    $region11: #{forward_fn.26} parent=5 // pred_region
      %s156 = ssub.s32 %s9, 1
    $region12: #{forward_fn.26} parent=5 // pred_fallthru
      _
    %p157 = scmp.lt.s32.totalorder %s9, 2
    // Predicated region
    $region13: #{forward_fn.26} parent=5 // pred_check
      %p158 = pneg %p157
    $region14: #{forward_fn.26} parent=5 // pred_check_branch
      %160 = sbr.rel (%p158) target = $region16
    $region15: #{forward_fn.26} parent=5 // pred_region
      // Predicated region
      $region17: #{forward_fn.26} parent=15 // pred_check
        %p161 = pneg %p50
      $region18: #{forward_fn.26} parent=15 // pred_check_branch
        %163 = sbr.rel (%p161) target = $region20
      $region19: #{forward_fn.26} parent=15 // pred_region
        %s164 = smul.u32 2, %s17
        %p165 = scmp.lt.s32.totalorder %s16, 1
        %s166 = scalar_select %p165, %s16, 1
        %p167 = scmp.lt.s32.totalorder %s164, 1
        %s168 = scalar_select %p167, %s164, 1
        %s169 = smul.addr %s168, 11
        %s170 = smul.addr %s166, 22
        %s171 = sadd.s32 %s169, %s170
        %s172 = smul.addr %s171, 4
        %s173 = scalar_lea.vmem %s0, %s172
        %s174 = smul.u32 2, %s17
      $region20: #{forward_fn.26} parent=15 // pred_fallthru
        _
      // Predicated region
      $region21: #{forward_fn.26} parent=15 // pred_check
        %p175 = pneg %p78
      $region22: #{forward_fn.26} parent=15 // pred_check_branch
        %177 = sbr.rel (%p175) target = $region24
      $region23: #{forward_fn.26} parent=15 // pred_region
        %p178 = scmp.lt.s32.totalorder %s16, 1
        %s179 = scalar_select %p178, %s16, 1
        %p180 = scmp.lt.s32.totalorder %s18, 0
        %s181 = scalar_select %p180, %s18, 0
        %s182 = smul.addr %s179, 176
        %s183 = sadd.s32 %s181, %s182
        %s184 = smul.addr %s183, 4
        %s185 = scalar_lea.vmem %s1, %s184
      $region24: #{forward_fn.26} parent=15 // pred_fallthru
        _
      // Predicated region
      $region25: #{forward_fn.26} parent=15 // pred_check
        %p186 = pneg %p106
      $region26: #{forward_fn.26} parent=15 // pred_check_branch
        %188 = sbr.rel (%p186) target = $region28
      $region27: #{forward_fn.26} parent=15 // pred_region
        %p189 = scmp.lt.s32.totalorder %s16, 1
        %s190 = scalar_select %p189, %s16, 1
        %p191 = scmp.lt.s32.totalorder %s18, 0
        %s192 = scalar_select %p191, %s18, 0
        %s193 = sadd.s32 %s192, %s190
        %s194 = scalar_lea.vmem %s2, %s193
      $region28: #{forward_fn.26} parent=15 // pred_fallthru
        _
    $region16: #{forward_fn.26} parent=5 // pred_fallthru
      _
    %p195 = scmp.le.s32.totalorder 1, %s9
    %p196 = scmp.lt.s32.totalorder %s9, 3
    %p197 = pnand %p195, %p196
    %p198 = pneg %p197
    // Predicated region
    $region29: #{forward_fn.26} parent=5 // pred_check
      _
    $region30: #{forward_fn.26} parent=5 // pred_check_branch
      %200 = sbr.rel (%p197) target = $region32
    $region31: #{forward_fn.26} parent=5 // pred_region
      %s201 = ssub.s32 %s9, 1
      %s202 = smul.u32 2, %s20
      %p203 = scmp.lt.s32.totalorder %s19, 1
      %s204 = scalar_select %p203, %s19, 1
      %p205 = scmp.lt.s32.totalorder %s202, 1
      %s206 = scalar_select %p205, %s202, 1
      %s207 = smul.addr %s206, 11
      %s208 = smul.addr %s204, 22
      %s209 = sadd.s32 %s207, %s208
      %s210 = smul.addr %s209, 4
      %s211 = scalar_lea.vmem %s0, %s210
      %p212 = pneg %p56
      %p213 = pneg %p53
      %p214 = scmp.lt.s32.totalorder %s19, 1
      %s215 = scalar_select %p214, %s19, 1
      %p216 = scmp.lt.s32.totalorder %s21, 0
      %s217 = scalar_select %p216, %s21, 0
      %s218 = smul.addr %s215, 176
      %s219 = sadd.s32 %s217, %s218
      %s220 = smul.addr %s219, 4
      %s221 = scalar_lea.vmem %s1, %s220
      %p222 = pneg %p84
      %p223 = pneg %p81
      %p224 = scmp.lt.s32.totalorder %s19, 1
      %s225 = scalar_select %p224, %s19, 1
      %p226 = scmp.lt.s32.totalorder %s21, 0
      %s227 = scalar_select %p226, %s21, 0
      %s228 = sadd.s32 %s227, %s225
      %s229 = scalar_lea.vmem %s2, %s228
      %p230 = pneg %p112
      %p231 = pneg %p109
      %p232 = pneg %p142
      %p233 = pneg %p139
      %s234 = smul.u32 2, %s20
      %p235 = scmp.lt.s32.totalorder %s19, 1
      %s236 = scalar_select %p235, %s19, 1
      %p237 = scmp.lt.s32.totalorder %s234, 1
      %s238 = scalar_select %p237, %s234, 1
      %p239 = scmp.lt.s32.totalorder %s21, 0
      %s240 = scalar_select %p239, %s21, 0
      %s241 = sadd.s32 %s240, %s238
      %s242 = smul.addr %s236, 2
      %s243 = sadd.s32 %s241, %s242
      %s244 = smul.addr %s243, 8
      %s245 = scalar_lea.vmem %s3, %s244
      %s246 = smul.u32 2, %s20
      %p247 = scmp.lt.s32.totalorder %s19, 1
      %s248 = scalar_select %p247, %s19, 1
      %p249 = scmp.lt.s32.totalorder %s246, 1
      %s250 = scalar_select %p249, %s246, 1
      %s251 = smul.addr %s250, 11
      %s252 = smul.addr %s248, 22
      %s253 = sadd.s32 %s251, %s252
      %s254 = smul.addr %s253, 4
      %s255 = scalar_lea.vmem %s0, %s254
      %s256 = smul.u32 2, %s20
      %p257 = scmp.lt.s32.totalorder %s19, 1
      %s258 = scalar_select %p257, %s19, 1
      %p259 = scmp.lt.s32.totalorder %s21, 0
      %s260 = scalar_select %p259, %s21, 0
      %s261 = smul.addr %s258, 176
      %s262 = sadd.s32 %s260, %s261
      %s263 = smul.addr %s262, 4
      %s264 = scalar_lea.vmem %s1, %s263
      %p265 = scmp.lt.s32.totalorder %s19, 1
      %s266 = scalar_select %p265, %s19, 1
      %p267 = scmp.lt.s32.totalorder %s21, 0
      %s268 = scalar_select %p267, %s21, 0
      %s269 = sadd.s32 %s268, %s266
      %s270 = scalar_lea.vmem %s2, %s269
      %s271 = smul.u32 2, %s20
      %p272 = scmp.lt.s32.totalorder %s19, 1
      %s273 = scalar_select %p272, %s19, 1
      %p274 = scmp.lt.s32.totalorder %s271, 1
      %s275 = scalar_select %p274, %s271, 1
      %p276 = scmp.lt.s32.totalorder %s21, 0
      %s277 = scalar_select %p276, %s21, 0
      %s278 = sadd.s32 %s277, %s275
      %s279 = smul.addr %s273, 2
      %s280 = sadd.s32 %s278, %s279
      %s281 = smul.addr %s280, 8
      %s282 = scalar_lea.vmem %s3, %s281
      %s283 = smul.u32 2, %s20
      %v285 = vld [vmem:[%s255] sm:$0xff]
      %v286 = vld [vmem:[%s255 + $0x8] sm:$0xff]
      %v287 = vld [vmem:[%s255 + $0x10] sm:$0xff]
      %v288 = vld [vmem:[%s255 + $0x18] sm:$0xff]
      %v289 = vld [vmem:[%s255 + $0x20] sm:$0xff]
      %v290 = vld [vmem:[%s255 + $0x28] sm:$0xf]
      %v291 = vld [vmem:[%s255 + $0x2c] sm:$0xff]
      %v292 = vld [vmem:[%s255 + $0x34] sm:$0xff]
      %v293 = vld [vmem:[%s255 + $0x3c] sm:$0xff]
      %v294 = vld [vmem:[%s255 + $0x44] sm:$0xff]
      %v295 = vld [vmem:[%s255 + $0x4c] sm:$0xff]
      %v296 = vld [vmem:[%s255 + $0x54] sm:$0xf]
      %v297 = vld [vmem:[%s264] sm:$0xf]
      %v298 = vld [vmem:[%s264 + $0x4] sm:$0xf]
      %v299 = vld [vmem:[%s264 + $0x8] sm:$0xf]
      %v300 = vld [vmem:[%s264 + $0xc] sm:$0xf]
      %v301 = vld [vmem:[%s264 + $0x10] sm:$0xf]
      %v302 = vld [vmem:[%s264 + $0x14] sm:$0xf]
      %v303 = vld [vmem:[%s264 + $0x18] sm:$0xf]
      %v304 = vld [vmem:[%s264 + $0x1c] sm:$0xf]
      %v305 = vld [vmem:[%s264 + $0x20] sm:$0xf]
      %v306 = vld [vmem:[%s264 + $0x24] sm:$0xf]
      %v307 = vld [vmem:[%s264 + $0x28] sm:$0xf]
      %v308 = vld [vmem:[%s264 + $0x2c] sm:$0xf]
      %v309 = vld [vmem:[%s264 + $0x30] sm:$0xf]
      %v310 = vld [vmem:[%s264 + $0x34] sm:$0xf]
      %v311 = vld [vmem:[%s264 + $0x38] sm:$0xf]
      %v312 = vld [vmem:[%s264 + $0x3c] sm:$0xf]
      %v313 = vld [vmem:[%s264 + $0x40] sm:$0xf]
      %v314 = vld [vmem:[%s264 + $0x44] sm:$0xf]
      %v315 = vld [vmem:[%s264 + $0x48] sm:$0xf]
      %v316 = vld [vmem:[%s264 + $0x4c] sm:$0xf]
      %v317 = vld [vmem:[%s264 + $0x50] sm:$0xf]
      %v318 = vld [vmem:[%s264 + $0x54] sm:$0xf]
      %v319 = vld [vmem:[%s264 + $0x58] sm:$0xf]
      %v320 = vld [vmem:[%s264 + $0x5c] sm:$0xf]
      %v321 = vld [vmem:[%s264 + $0x60] sm:$0xf]
      %v322 = vld [vmem:[%s264 + $0x64] sm:$0xf]
      %v323 = vld [vmem:[%s264 + $0x68] sm:$0xf]
      %v324 = vld [vmem:[%s264 + $0x6c] sm:$0xf]
      %v325 = vld [vmem:[%s264 + $0x70] sm:$0xf]
      %v326 = vld [vmem:[%s264 + $0x74] sm:$0xf]
      %v327 = vld [vmem:[%s264 + $0x78] sm:$0xf]
      %v328 = vld [vmem:[%s264 + $0x7c] sm:$0xf]
      %v329 = vld [vmem:[%s264 + $0x80] sm:$0xf]
      %v330 = vld [vmem:[%s264 + $0x84] sm:$0xf]
      %v331 = vld [vmem:[%s264 + $0x88] sm:$0xf]
      %v332 = vld [vmem:[%s264 + $0x8c] sm:$0xf]
      %v333 = vld [vmem:[%s264 + $0x90] sm:$0xf]
      %v334 = vld [vmem:[%s264 + $0x94] sm:$0xf]
      %v335 = vld [vmem:[%s264 + $0x98] sm:$0xf]
      %v336 = vld [vmem:[%s264 + $0x9c] sm:$0xf]
      %v337 = vld [vmem:[%s264 + $0xa0] sm:$0xf]
      %v338 = vld [vmem:[%s264 + $0xa4] sm:$0xf]
      %v339 = vld [vmem:[%s264 + $0xa8] sm:$0xf]
      %v340 = vld [vmem:[%s264 + $0xac] sm:$0xf]
      %v341 = vld [vmem:[%s264 + $0xb0] sm:$0xf]
      %v342 = vld [vmem:[%s264 + $0xb4] sm:$0xf]
      %v343 = vld [vmem:[%s264 + $0xb8] sm:$0xf]
      %v344 = vld [vmem:[%s264 + $0xbc] sm:$0xf]
      %v345 = vld [vmem:[%s264 + $0xc0] sm:$0xf]
      %v346 = vld [vmem:[%s264 + $0xc4] sm:$0xf]
      %v347 = vld [vmem:[%s264 + $0xc8] sm:$0xf]
      %v348 = vld [vmem:[%s264 + $0xcc] sm:$0xf]
      %v349 = vld [vmem:[%s264 + $0xd0] sm:$0xf]
      %v350 = vld [vmem:[%s264 + $0xd4] sm:$0xf]
      %v351 = vld [vmem:[%s264 + $0xd8] sm:$0xf]
      %v352 = vld [vmem:[%s264 + $0xdc] sm:$0xf]
      %v353 = vld [vmem:[%s264 + $0xe0] sm:$0xf]
      %v354 = vld [vmem:[%s264 + $0xe4] sm:$0xf]
      %v355 = vld [vmem:[%s264 + $0xe8] sm:$0xf]
      %v356 = vld [vmem:[%s264 + $0xec] sm:$0xf]
      %v357 = vld [vmem:[%s264 + $0xf0] sm:$0xf]
      %v358 = vld [vmem:[%s264 + $0xf4] sm:$0xf]
      %v359 = vld [vmem:[%s264 + $0xf8] sm:$0xf]
      %v360 = vld [vmem:[%s264 + $0xfc] sm:$0xf]
      %v361 = vld [vmem:[%s264 + $0x100] sm:$0xf]
      %v362 = vld [vmem:[%s264 + $0x104] sm:$0xf]
      %v363 = vld [vmem:[%s264 + $0x108] sm:$0xf]
      %v364 = vld [vmem:[%s264 + $0x10c] sm:$0xf]
      %v365 = vld [vmem:[%s264 + $0x110] sm:$0xf]
      %v366 = vld [vmem:[%s264 + $0x114] sm:$0xf]
      %v367 = vld [vmem:[%s264 + $0x118] sm:$0xf]
      %v368 = vld [vmem:[%s264 + $0x11c] sm:$0xf]
      %v369 = vld [vmem:[%s264 + $0x120] sm:$0xf]
      %v370 = vld [vmem:[%s264 + $0x124] sm:$0xf]
      %v371 = vld [vmem:[%s264 + $0x128] sm:$0xf]
      %v372 = vld [vmem:[%s264 + $0x12c] sm:$0xf]
      %v373 = vld [vmem:[%s264 + $0x130] sm:$0xf]
      %v374 = vld [vmem:[%s264 + $0x134] sm:$0xf]
      %v375 = vld [vmem:[%s264 + $0x138] sm:$0xf]
      %v376 = vld [vmem:[%s264 + $0x13c] sm:$0xf]
      %v377 = vld [vmem:[%s264 + $0x140] sm:$0xf]
      %v378 = vld [vmem:[%s264 + $0x144] sm:$0xf]
      %v379 = vld [vmem:[%s264 + $0x148] sm:$0xf]
      %v380 = vld [vmem:[%s264 + $0x14c] sm:$0xf]
      %v381 = vld [vmem:[%s264 + $0x150] sm:$0xf]
      %v382 = vld [vmem:[%s264 + $0x154] sm:$0xf]
      %v383 = vld [vmem:[%s264 + $0x158] sm:$0xf]
      %v384 = vld [vmem:[%s264 + $0x15c] sm:$0xf]
      %v385 = vld [vmem:[%s264 + $0x160] sm:$0xf]
      %v386 = vld [vmem:[%s264 + $0x164] sm:$0xf]
      %v387 = vld [vmem:[%s264 + $0x168] sm:$0xf]
      %v388 = vld [vmem:[%s264 + $0x16c] sm:$0xf]
      %v389 = vld [vmem:[%s264 + $0x170] sm:$0xf]
      %v390 = vld [vmem:[%s264 + $0x174] sm:$0xf]
      %v391 = vld [vmem:[%s264 + $0x178] sm:$0xf]
      %v392 = vld [vmem:[%s264 + $0x17c] sm:$0xf]
      %v393 = vld [vmem:[%s264 + $0x180] sm:$0xf]
      %v394 = vld [vmem:[%s264 + $0x184] sm:$0xf]
      %v395 = vld [vmem:[%s264 + $0x188] sm:$0xf]
      %v396 = vld [vmem:[%s264 + $0x18c] sm:$0xf]
      %v397 = vld [vmem:[%s264 + $0x190] sm:$0xf]
      %v398 = vld [vmem:[%s264 + $0x194] sm:$0xf]
      %v399 = vld [vmem:[%s264 + $0x198] sm:$0xf]
      %v400 = vld [vmem:[%s264 + $0x19c] sm:$0xf]
      %v401 = vld [vmem:[%s264 + $0x1a0] sm:$0xf]
      %v402 = vld [vmem:[%s264 + $0x1a4] sm:$0xf]
      %v403 = vld [vmem:[%s264 + $0x1a8] sm:$0xf]
      %v404 = vld [vmem:[%s264 + $0x1ac] sm:$0xf]
      %v405 = vld [vmem:[%s264 + $0x1b0] sm:$0xf]
      %v406 = vld [vmem:[%s264 + $0x1b4] sm:$0xf]
      %v407 = vld [vmem:[%s264 + $0x1b8] sm:$0xf]
      %v408 = vld [vmem:[%s264 + $0x1bc] sm:$0xf]
      %v409 = vld [vmem:[%s264 + $0x1c0] sm:$0xf]
      %v410 = vld [vmem:[%s264 + $0x1c4] sm:$0xf]
      %v411 = vld [vmem:[%s264 + $0x1c8] sm:$0xf]
      %v412 = vld [vmem:[%s264 + $0x1cc] sm:$0xf]
      %v413 = vld [vmem:[%s264 + $0x1d0] sm:$0xf]
      %v414 = vld [vmem:[%s264 + $0x1d4] sm:$0xf]
      %v415 = vld [vmem:[%s264 + $0x1d8] sm:$0xf]
      %v416 = vld [vmem:[%s264 + $0x1dc] sm:$0xf]
      %v417 = vld [vmem:[%s264 + $0x1e0] sm:$0xf]
      %v418 = vld [vmem:[%s264 + $0x1e4] sm:$0xf]
      %v419 = vld [vmem:[%s264 + $0x1e8] sm:$0xf]
      %v420 = vld [vmem:[%s264 + $0x1ec] sm:$0xf]
      %v421 = vld [vmem:[%s264 + $0x1f0] sm:$0xf]
      %v422 = vld [vmem:[%s264 + $0x1f4] sm:$0xf]
      %v423 = vld [vmem:[%s264 + $0x1f8] sm:$0xf]
      %v424 = vld [vmem:[%s264 + $0x1fc] sm:$0xf]
      %v425 = vld [vmem:[%s264 + $0x200] sm:$0xf]
      %v426 = vld [vmem:[%s264 + $0x204] sm:$0xf]
      %v427 = vld [vmem:[%s264 + $0x208] sm:$0xf]
      %v428 = vld [vmem:[%s264 + $0x20c] sm:$0xf]
      %v429 = vld [vmem:[%s264 + $0x210] sm:$0xf]
      %v430 = vld [vmem:[%s264 + $0x214] sm:$0xf]
      %v431 = vld [vmem:[%s264 + $0x218] sm:$0xf]
      %v432 = vld [vmem:[%s264 + $0x21c] sm:$0xf]
      %v433 = vld [vmem:[%s264 + $0x220] sm:$0xf]
      %v434 = vld [vmem:[%s264 + $0x224] sm:$0xf]
      %v435 = vld [vmem:[%s264 + $0x228] sm:$0xf]
      %v436 = vld [vmem:[%s264 + $0x22c] sm:$0xf]
      %v437 = vld [vmem:[%s264 + $0x230] sm:$0xf]
      %v438 = vld [vmem:[%s264 + $0x234] sm:$0xf]
      %v439 = vld [vmem:[%s264 + $0x238] sm:$0xf]
      %v440 = vld [vmem:[%s264 + $0x23c] sm:$0xf]
      %v441 = vld [vmem:[%s264 + $0x240] sm:$0xf]
      %v442 = vld [vmem:[%s264 + $0x244] sm:$0xf]
      %v443 = vld [vmem:[%s264 + $0x248] sm:$0xf]
      %v444 = vld [vmem:[%s264 + $0x24c] sm:$0xf]
      %v445 = vld [vmem:[%s264 + $0x250] sm:$0xf]
      %v446 = vld [vmem:[%s264 + $0x254] sm:$0xf]
      %v447 = vld [vmem:[%s264 + $0x258] sm:$0xf]
      %v448 = vld [vmem:[%s264 + $0x25c] sm:$0xf]
      %v449 = vld [vmem:[%s264 + $0x260] sm:$0xf]
      %v450 = vld [vmem:[%s264 + $0x264] sm:$0xf]
      %v451 = vld [vmem:[%s264 + $0x268] sm:$0xf]
      %v452 = vld [vmem:[%s264 + $0x26c] sm:$0xf]
      %v453 = vld [vmem:[%s264 + $0x270] sm:$0xf]
      %v454 = vld [vmem:[%s264 + $0x274] sm:$0xf]
      %v455 = vld [vmem:[%s264 + $0x278] sm:$0xf]
      %v456 = vld [vmem:[%s264 + $0x27c] sm:$0xf]
      %v457 = vld [vmem:[%s264 + $0x280] sm:$0xf]
      %v458 = vld [vmem:[%s264 + $0x284] sm:$0xf]
      %v459 = vld [vmem:[%s264 + $0x288] sm:$0xf]
      %v460 = vld [vmem:[%s264 + $0x28c] sm:$0xf]
      %v461 = vld [vmem:[%s264 + $0x290] sm:$0xf]
      %v462 = vld [vmem:[%s264 + $0x294] sm:$0xf]
      %v463 = vld [vmem:[%s264 + $0x298] sm:$0xf]
      %v464 = vld [vmem:[%s264 + $0x29c] sm:$0xf]
      %v465 = vld [vmem:[%s264 + $0x2a0] sm:$0xf]
      %v466 = vld [vmem:[%s264 + $0x2a4] sm:$0xf]
      %v467 = vld [vmem:[%s264 + $0x2a8] sm:$0xf]
      %v468 = vld [vmem:[%s264 + $0x2ac] sm:$0xf]
      %v469 = vld [vmem:[%s264 + $0x2b0] sm:$0xf]
      %v470 = vld [vmem:[%s264 + $0x2b4] sm:$0xf]
      %v471 = vld [vmem:[%s264 + $0x2b8] sm:$0xf]
      %v472 = vld [vmem:[%s264 + $0x2bc] sm:$0xf]
      %v473 = vld [vmem:[%s270] sm:$0x1]
      %v475 = vlaneseq
      %v476 = vshrl.u32 %v475, 7
      %v477 = vsub.s32 0, %v476
      %v478 = vrot.slane %v473, %v477
      %v492 = vunpack.c.l.b16 %v285
      %v493 = vunpack.c.h.b16 %v285
      %v494 = vunpack.c.l.b16 %v286
      %v495 = vunpack.c.h.b16 %v286
      %v496 = vunpack.c.l.b16 %v287
      %v497 = vunpack.c.h.b16 %v287
      %v498 = vunpack.c.l.b16 %v288
      %v499 = vunpack.c.h.b16 %v288
      %v500 = vunpack.c.l.b16 %v289
      %v501 = vunpack.c.h.b16 %v289
      %v502 = vunpack.c.l.b16 %v290
      %v503 = vunpack.c.l.b16 %v291
      %v504 = vunpack.c.h.b16 %v291
      %v505 = vunpack.c.l.b16 %v292
      %v506 = vunpack.c.h.b16 %v292
      %v507 = vunpack.c.l.b16 %v293
      %v508 = vunpack.c.h.b16 %v293
      %v509 = vunpack.c.l.b16 %v294
      %v510 = vunpack.c.h.b16 %v294
      %v511 = vunpack.c.l.b16 %v295
      %v512 = vunpack.c.h.b16 %v295
      %v513 = vunpack.c.l.b16 %v296
      %v514 = vpack.c.b16 %v503, %v492
      %v515 = vpack.c.b16 %v504, %v493
      %v516 = vpack.c.b16 %v505, %v494
      %v517 = vpack.c.b16 %v506, %v495
      %v518 = vpack.c.b16 %v507, %v496
      %v519 = vpack.c.b16 %v508, %v497
      %v520 = vpack.c.b16 %v509, %v498
      %v521 = vpack.c.b16 %v510, %v499
      %v522 = vpack.c.b16 %v511, %v500
      %v523 = vpack.c.b16 %v512, %v501
      %v524 = vpack.c.b16 %v513, %v502
      %v712 = vunpack.c.l.b16 %v297
      %v713 = vunpack.c.l.b16 %v298
      %v714 = vunpack.c.l.b16 %v299
      %v715 = vunpack.c.l.b16 %v300
      %v716 = vunpack.c.l.b16 %v301
      %v717 = vunpack.c.l.b16 %v302
      %v718 = vunpack.c.l.b16 %v303
      %v719 = vunpack.c.l.b16 %v304
      %v720 = vunpack.c.l.b16 %v305
      %v721 = vunpack.c.l.b16 %v306
      %v722 = vunpack.c.l.b16 %v307
      %v723 = vunpack.c.l.b16 %v308
      %v724 = vunpack.c.l.b16 %v309
      %v725 = vunpack.c.l.b16 %v310
      %v726 = vunpack.c.l.b16 %v311
      %v727 = vunpack.c.l.b16 %v312
      %v728 = vunpack.c.l.b16 %v313
      %v729 = vunpack.c.l.b16 %v314
      %v730 = vunpack.c.l.b16 %v315
      %v731 = vunpack.c.l.b16 %v316
      %v732 = vunpack.c.l.b16 %v317
      %v733 = vunpack.c.l.b16 %v318
      %v734 = vunpack.c.l.b16 %v319
      %v735 = vunpack.c.l.b16 %v320
      %v736 = vunpack.c.l.b16 %v321
      %v737 = vunpack.c.l.b16 %v322
      %v738 = vunpack.c.l.b16 %v323
      %v739 = vunpack.c.l.b16 %v324
      %v740 = vunpack.c.l.b16 %v325
      %v741 = vunpack.c.l.b16 %v326
      %v742 = vunpack.c.l.b16 %v327
      %v743 = vunpack.c.l.b16 %v328
      %v744 = vunpack.c.l.b16 %v329
      %v745 = vunpack.c.l.b16 %v330
      %v746 = vunpack.c.l.b16 %v331
      %v747 = vunpack.c.l.b16 %v332
      %v748 = vunpack.c.l.b16 %v333
      %v749 = vunpack.c.l.b16 %v334
      %v750 = vunpack.c.l.b16 %v335
      %v751 = vunpack.c.l.b16 %v336
      %v752 = vunpack.c.l.b16 %v337
      %v753 = vunpack.c.l.b16 %v338
      %v754 = vunpack.c.l.b16 %v339
      %v755 = vunpack.c.l.b16 %v340
      %v756 = vunpack.c.l.b16 %v341
      %v757 = vunpack.c.l.b16 %v342
      %v758 = vunpack.c.l.b16 %v343
      %v759 = vunpack.c.l.b16 %v344
      %v760 = vunpack.c.l.b16 %v345
      %v761 = vunpack.c.l.b16 %v346
      %v762 = vunpack.c.l.b16 %v347
      %v763 = vunpack.c.l.b16 %v348
      %v764 = vunpack.c.l.b16 %v349
      %v765 = vunpack.c.l.b16 %v350
      %v766 = vunpack.c.l.b16 %v351
      %v767 = vunpack.c.l.b16 %v352
      %v768 = vunpack.c.l.b16 %v353
      %v769 = vunpack.c.l.b16 %v354
      %v770 = vunpack.c.l.b16 %v355
      %v771 = vunpack.c.l.b16 %v356
      %v772 = vunpack.c.l.b16 %v357
      %v773 = vunpack.c.l.b16 %v358
      %v774 = vunpack.c.l.b16 %v359
      %v775 = vunpack.c.l.b16 %v360
      %v776 = vunpack.c.l.b16 %v361
      %v777 = vunpack.c.l.b16 %v362
      %v778 = vunpack.c.l.b16 %v363
      %v779 = vunpack.c.l.b16 %v364
      %v780 = vunpack.c.l.b16 %v365
      %v781 = vunpack.c.l.b16 %v366
      %v782 = vunpack.c.l.b16 %v367
      %v783 = vunpack.c.l.b16 %v368
      %v784 = vunpack.c.l.b16 %v369
      %v785 = vunpack.c.l.b16 %v370
      %v786 = vunpack.c.l.b16 %v371
      %v787 = vunpack.c.l.b16 %v372
      %v788 = vunpack.c.l.b16 %v373
      %v789 = vunpack.c.l.b16 %v374
      %v790 = vunpack.c.l.b16 %v375
      %v791 = vunpack.c.l.b16 %v376
      %v792 = vunpack.c.l.b16 %v377
      %v793 = vunpack.c.l.b16 %v378
      %v794 = vunpack.c.l.b16 %v379
      %v795 = vunpack.c.l.b16 %v380
      %v796 = vunpack.c.l.b16 %v381
      %v797 = vunpack.c.l.b16 %v382
      %v798 = vunpack.c.l.b16 %v383
      %v799 = vunpack.c.l.b16 %v384
      %v800 = vunpack.c.l.b16 %v385
      %v801 = vunpack.c.l.b16 %v386
      %v802 = vunpack.c.l.b16 %v387
      %v803 = vunpack.c.l.b16 %v388
      %v804 = vunpack.c.l.b16 %v389
      %v805 = vunpack.c.l.b16 %v390
      %v806 = vunpack.c.l.b16 %v391
      %v807 = vunpack.c.l.b16 %v392
      %v808 = vunpack.c.l.b16 %v393
      %v809 = vunpack.c.l.b16 %v394
      %v810 = vunpack.c.l.b16 %v395
      %v811 = vunpack.c.l.b16 %v396
      %v812 = vunpack.c.l.b16 %v397
      %v813 = vunpack.c.l.b16 %v398
      %v814 = vunpack.c.l.b16 %v399
      %v815 = vunpack.c.l.b16 %v400
      %v816 = vunpack.c.l.b16 %v401
      %v817 = vunpack.c.l.b16 %v402
      %v818 = vunpack.c.l.b16 %v403
      %v819 = vunpack.c.l.b16 %v404
      %v820 = vunpack.c.l.b16 %v405
      %v821 = vunpack.c.l.b16 %v406
      %v822 = vunpack.c.l.b16 %v407
      %v823 = vunpack.c.l.b16 %v408
      %v824 = vunpack.c.l.b16 %v409
      %v825 = vunpack.c.l.b16 %v410
      %v826 = vunpack.c.l.b16 %v411
      %v827 = vunpack.c.l.b16 %v412
      %v828 = vunpack.c.l.b16 %v413
      %v829 = vunpack.c.l.b16 %v414
      %v830 = vunpack.c.l.b16 %v415
      %v831 = vunpack.c.l.b16 %v416
      %v832 = vunpack.c.l.b16 %v417
      %v833 = vunpack.c.l.b16 %v418
      %v834 = vunpack.c.l.b16 %v419
      %v835 = vunpack.c.l.b16 %v420
      %v836 = vunpack.c.l.b16 %v421
      %v837 = vunpack.c.l.b16 %v422
      %v838 = vunpack.c.l.b16 %v423
      %v839 = vunpack.c.l.b16 %v424
      %v840 = vunpack.c.l.b16 %v425
      %v841 = vunpack.c.l.b16 %v426
      %v842 = vunpack.c.l.b16 %v427
      %v843 = vunpack.c.l.b16 %v428
      %v844 = vunpack.c.l.b16 %v429
      %v845 = vunpack.c.l.b16 %v430
      %v846 = vunpack.c.l.b16 %v431
      %v847 = vunpack.c.l.b16 %v432
      %v848 = vunpack.c.l.b16 %v433
      %v849 = vunpack.c.l.b16 %v434
      %v850 = vunpack.c.l.b16 %v435
      %v851 = vunpack.c.l.b16 %v436
      %v852 = vunpack.c.l.b16 %v437
      %v853 = vunpack.c.l.b16 %v438
      %v854 = vunpack.c.l.b16 %v439
      %v855 = vunpack.c.l.b16 %v440
      %v856 = vunpack.c.l.b16 %v441
      %v857 = vunpack.c.l.b16 %v442
      %v858 = vunpack.c.l.b16 %v443
      %v859 = vunpack.c.l.b16 %v444
      %v860 = vunpack.c.l.b16 %v445
      %v861 = vunpack.c.l.b16 %v446
      %v862 = vunpack.c.l.b16 %v447
      %v863 = vunpack.c.l.b16 %v448
      %v864 = vunpack.c.l.b16 %v449
      %v865 = vunpack.c.l.b16 %v450
      %v866 = vunpack.c.l.b16 %v451
      %v867 = vunpack.c.l.b16 %v452
      %v868 = vunpack.c.l.b16 %v453
      %v869 = vunpack.c.l.b16 %v454
      %v870 = vunpack.c.l.b16 %v455
      %v871 = vunpack.c.l.b16 %v456
      %v872 = vunpack.c.l.b16 %v457
      %v873 = vunpack.c.l.b16 %v458
      %v874 = vunpack.c.l.b16 %v459
      %v875 = vunpack.c.l.b16 %v460
      %v876 = vunpack.c.l.b16 %v461
      %v877 = vunpack.c.l.b16 %v462
      %v878 = vunpack.c.l.b16 %v463
      %v879 = vunpack.c.l.b16 %v464
      %v880 = vunpack.c.l.b16 %v465
      %v881 = vunpack.c.l.b16 %v466
      %v882 = vunpack.c.l.b16 %v467
      %v883 = vunpack.c.l.b16 %v468
      %v884 = vunpack.c.l.b16 %v469
      %v885 = vunpack.c.l.b16 %v470
      %v886 = vunpack.c.l.b16 %v471
      %v887 = vunpack.c.l.b16 %v472
      %v888 = vpack.c.b16 %v713, %v712
      %v889 = vpack.c.b16 %v715, %v714
      %v890 = vpack.c.b16 %v717, %v716
      %v891 = vpack.c.b16 %v719, %v718
      %v892 = vpack.c.b16 %v721, %v720
      %v893 = vpack.c.b16 %v723, %v722
      %v894 = vpack.c.b16 %v725, %v724
      %v895 = vpack.c.b16 %v727, %v726
      %v896 = vpack.c.b16 %v729, %v728
      %v897 = vpack.c.b16 %v731, %v730
      %v898 = vpack.c.b16 %v733, %v732
      %v899 = vpack.c.b16 %v735, %v734
      %v900 = vpack.c.b16 %v737, %v736
      %v901 = vpack.c.b16 %v739, %v738
      %v902 = vpack.c.b16 %v741, %v740
      %v903 = vpack.c.b16 %v743, %v742
      %v904 = vpack.c.b16 %v745, %v744
      %v905 = vpack.c.b16 %v747, %v746
      %v906 = vpack.c.b16 %v749, %v748
      %v907 = vpack.c.b16 %v751, %v750
      %v908 = vpack.c.b16 %v753, %v752
      %v909 = vpack.c.b16 %v755, %v754
      %v910 = vpack.c.b16 %v757, %v756
      %v911 = vpack.c.b16 %v759, %v758
      %v912 = vpack.c.b16 %v761, %v760
      %v913 = vpack.c.b16 %v763, %v762
      %v914 = vpack.c.b16 %v765, %v764
      %v915 = vpack.c.b16 %v767, %v766
      %v916 = vpack.c.b16 %v769, %v768
      %v917 = vpack.c.b16 %v771, %v770
      %v918 = vpack.c.b16 %v773, %v772
      %v919 = vpack.c.b16 %v775, %v774
      %v920 = vpack.c.b16 %v777, %v776
      %v921 = vpack.c.b16 %v779, %v778
      %v922 = vpack.c.b16 %v781, %v780
      %v923 = vpack.c.b16 %v783, %v782
      %v924 = vpack.c.b16 %v785, %v784
      %v925 = vpack.c.b16 %v787, %v786
      %v926 = vpack.c.b16 %v789, %v788
      %v927 = vpack.c.b16 %v791, %v790
      %v928 = vpack.c.b16 %v793, %v792
      %v929 = vpack.c.b16 %v795, %v794
      %v930 = vpack.c.b16 %v797, %v796
      %v931 = vpack.c.b16 %v799, %v798
      %v932 = vpack.c.b16 %v801, %v800
      %v933 = vpack.c.b16 %v803, %v802
      %v934 = vpack.c.b16 %v805, %v804
      %v935 = vpack.c.b16 %v807, %v806
      %v936 = vpack.c.b16 %v809, %v808
      %v937 = vpack.c.b16 %v811, %v810
      %v938 = vpack.c.b16 %v813, %v812
      %v939 = vpack.c.b16 %v815, %v814
      %v940 = vpack.c.b16 %v817, %v816
      %v941 = vpack.c.b16 %v819, %v818
      %v942 = vpack.c.b16 %v821, %v820
      %v943 = vpack.c.b16 %v823, %v822
      %v944 = vpack.c.b16 %v825, %v824
      %v945 = vpack.c.b16 %v827, %v826
      %v946 = vpack.c.b16 %v829, %v828
      %v947 = vpack.c.b16 %v831, %v830
      %v948 = vpack.c.b16 %v833, %v832
      %v949 = vpack.c.b16 %v835, %v834
      %v950 = vpack.c.b16 %v837, %v836
      %v951 = vpack.c.b16 %v839, %v838
      %v952 = vpack.c.b16 %v841, %v840
      %v953 = vpack.c.b16 %v843, %v842
      %v954 = vpack.c.b16 %v845, %v844
      %v955 = vpack.c.b16 %v847, %v846
      %v956 = vpack.c.b16 %v849, %v848
      %v957 = vpack.c.b16 %v851, %v850
      %v958 = vpack.c.b16 %v853, %v852
      %v959 = vpack.c.b16 %v855, %v854
      %v960 = vpack.c.b16 %v857, %v856
      %v961 = vpack.c.b16 %v859, %v858
      %v962 = vpack.c.b16 %v861, %v860
      %v963 = vpack.c.b16 %v863, %v862
      %v964 = vpack.c.b16 %v865, %v864
      %v965 = vpack.c.b16 %v867, %v866
      %v966 = vpack.c.b16 %v869, %v868
      %v967 = vpack.c.b16 %v871, %v870
      %v968 = vpack.c.b16 %v873, %v872
      %v969 = vpack.c.b16 %v875, %v874
      %v970 = vpack.c.b16 %v877, %v876
      %v971 = vpack.c.b16 %v879, %v878
      %v972 = vpack.c.b16 %v881, %v880
      %v973 = vpack.c.b16 %v883, %v882
      %v974 = vpack.c.b16 %v885, %v884
      %v975 = vpack.c.b16 %v887, %v886
      %1064 = vmatprep.subr.bf16.mxu0 0
      %1065 = vmatpush1.bf16.msra.mxu0 %v888
      %1066 = vmatprep.subr.bf16.mxu0 0
      %1067 = vmatpush1.bf16.msra.mxu0 %v889
      %1068 = vmatprep.subr.bf16.mxu0 0
      %1069 = vmatpush1.bf16.msra.mxu0 %v890
      %1070 = vmatprep.subr.bf16.mxu0 0
      %1071 = vmatpush1.bf16.msra.mxu0 %v891
      %1072 = vmatprep.subr.bf16.mxu0 0
      %1073 = vmatpush1.bf16.msra.mxu0 %v892
      %1074 = vmatprep.subr.bf16.mxu0 0
      %1075 = vmatpush1.bf16.msra.mxu0 %v893
      %1076 = vmatprep.subr.bf16.mxu0 0
      %1077 = vmatpush1.bf16.msra.mxu0 %v894
      %1078 = vmatprep.subr.bf16.mxu0 0
      %1079 = vmatpush1.bf16.msra.mxu0 %v895
      %1080 = vmatprep.subr.bf16.mxu0 0
      %1081 = vmatpush1.bf16.msra.mxu0 %v896
      %1082 = vmatprep.subr.bf16.mxu0 0
      %1083 = vmatpush1.bf16.msra.mxu0 %v897
      %1084 = vmatprep.subr.bf16.mxu0 0
      %1085 = vmatpush1.bf16.msra.mxu0 %v898
      %1086 = vmatprep.subr.bf16.mxu0 0
      %1087 = vmatpush1.bf16.msra.mxu0 %v899
      %1088 = vmatprep.subr.bf16.mxu0 0
      %1089 = vmatpush1.bf16.msra.mxu0 %v900
      %1090 = vmatprep.subr.bf16.mxu0 0
      %1091 = vmatpush1.bf16.msra.mxu0 %v901
      %1092 = vmatprep.subr.bf16.mxu0 0
      %1093 = vmatpush1.bf16.msra.mxu0 %v902
      %1094 = vmatprep.subr.bf16.mxu0 0
      %1095 = vmatpush1.bf16.msra.mxu0 %v903
      %1096 = vmatprep.mubr.bf16.mxu0 %v515
      %1097 = vmatmul.mubr.bf16.gmra.mrb[0].mxu0 %v514
      %v1098 = vpop.f32.mrb[0].mxu0
      %v1099 = vadd.f32 %v478, %v1098
      %v1100 = vpop.f32.mrb[0].mxu0
      %v1101 = vpop.f32.mrb[0].mxu0
      %v1102 = vadd.f32 %v478, %v1101
      %v1103 = vpop.f32.mrb[0].mxu0
      %1104 = vdwg.mxu0
      %1105 = vmatprep.subr.bf16.mxu0 0
      %1106 = vmatpush1.bf16.msra.mxu0 %v904
      %1107 = vmatprep.subr.bf16.mxu0 0
      %1108 = vmatpush1.bf16.msra.mxu0 %v905
      %1109 = vmatprep.subr.bf16.mxu0 0
      %1110 = vmatpush1.bf16.msra.mxu0 %v906
      %1111 = vmatprep.subr.bf16.mxu0 0
      %1112 = vmatpush1.bf16.msra.mxu0 %v907
      %1113 = vmatprep.subr.bf16.mxu0 0
      %1114 = vmatpush1.bf16.msra.mxu0 %v908
      %1115 = vmatprep.subr.bf16.mxu0 0
      %1116 = vmatpush1.bf16.msra.mxu0 %v909
      %1117 = vmatprep.subr.bf16.mxu0 0
      %1118 = vmatpush1.bf16.msra.mxu0 %v910
      %1119 = vmatprep.subr.bf16.mxu0 0
      %1120 = vmatpush1.bf16.msra.mxu0 %v911
      %1121 = vmatprep.subr.bf16.mxu0 0
      %1122 = vmatpush1.bf16.msra.mxu0 %v912
      %1123 = vmatprep.subr.bf16.mxu0 0
      %1124 = vmatpush1.bf16.msra.mxu0 %v913
      %1125 = vmatprep.subr.bf16.mxu0 0
      %1126 = vmatpush1.bf16.msra.mxu0 %v914
      %1127 = vmatprep.subr.bf16.mxu0 0
      %1128 = vmatpush1.bf16.msra.mxu0 %v915
      %1129 = vmatprep.subr.bf16.mxu0 0
      %1130 = vmatpush1.bf16.msra.mxu0 %v916
      %1131 = vmatprep.subr.bf16.mxu0 0
      %1132 = vmatpush1.bf16.msra.mxu0 %v917
      %1133 = vmatprep.subr.bf16.mxu0 0
      %1134 = vmatpush1.bf16.msra.mxu0 %v918
      %1135 = vmatprep.subr.bf16.mxu0 0
      %1136 = vmatpush1.bf16.msra.mxu0 %v919
      %1137 = vmatprep.mubr.bf16.mxu0 %v517
      %1138 = vmatmul.mubr.bf16.gmra.mrb[0].mxu0 %v516
      %v1139 = vpop.f32.mrb[0].mxu0
      %v1140 = vadd.f32 %v1099, %v1139
      %v1141 = vpop.f32.mrb[0].mxu0
      %v1142 = vpop.f32.mrb[0].mxu0
      %v1143 = vadd.f32 %v1102, %v1142
      %v1144 = vpop.f32.mrb[0].mxu0
      %1145 = vdwg.mxu0
      %1146 = vmatprep.subr.bf16.mxu0 0
      %1147 = vmatpush1.bf16.msra.mxu0 %v920
      %1148 = vmatprep.subr.bf16.mxu0 0
      %1149 = vmatpush1.bf16.msra.mxu0 %v921
      %1150 = vmatprep.subr.bf16.mxu0 0
      %1151 = vmatpush1.bf16.msra.mxu0 %v922
      %1152 = vmatprep.subr.bf16.mxu0 0
      %1153 = vmatpush1.bf16.msra.mxu0 %v923
      %1154 = vmatprep.subr.bf16.mxu0 0
      %1155 = vmatpush1.bf16.msra.mxu0 %v924
      %1156 = vmatprep.subr.bf16.mxu0 0
      %1157 = vmatpush1.bf16.msra.mxu0 %v925
      %1158 = vmatprep.subr.bf16.mxu0 0
      %1159 = vmatpush1.bf16.msra.mxu0 %v926
      %1160 = vmatprep.subr.bf16.mxu0 0
      %1161 = vmatpush1.bf16.msra.mxu0 %v927
      %1162 = vmatprep.subr.bf16.mxu0 0
      %1163 = vmatpush1.bf16.msra.mxu0 %v928
      %1164 = vmatprep.subr.bf16.mxu0 0
      %1165 = vmatpush1.bf16.msra.mxu0 %v929
      %1166 = vmatprep.subr.bf16.mxu0 0
      %1167 = vmatpush1.bf16.msra.mxu0 %v930
      %1168 = vmatprep.subr.bf16.mxu0 0
      %1169 = vmatpush1.bf16.msra.mxu0 %v931
      %1170 = vmatprep.subr.bf16.mxu0 0
      %1171 = vmatpush1.bf16.msra.mxu0 %v932
      %1172 = vmatprep.subr.bf16.mxu0 0
      %1173 = vmatpush1.bf16.msra.mxu0 %v933
      %1174 = vmatprep.subr.bf16.mxu0 0
      %1175 = vmatpush1.bf16.msra.mxu0 %v934
      %1176 = vmatprep.subr.bf16.mxu0 0
      %1177 = vmatpush1.bf16.msra.mxu0 %v935
      %1178 = vmatprep.mubr.bf16.mxu0 %v519
      %1179 = vmatmul.mubr.bf16.gmra.mrb[0].mxu0 %v518
      %v1180 = vpop.f32.mrb[0].mxu0
      %v1181 = vadd.f32 %v1140, %v1180
      %v1182 = vpop.f32.mrb[0].mxu0
      %v1183 = vpop.f32.mrb[0].mxu0
      %v1184 = vadd.f32 %v1143, %v1183
      %v1185 = vpop.f32.mrb[0].mxu0
      %1186 = vdwg.mxu0
      %1187 = vmatprep.subr.bf16.mxu0 0
      %1188 = vmatpush1.bf16.msra.mxu0 %v936
      %1189 = vmatprep.subr.bf16.mxu0 0
      %1190 = vmatpush1.bf16.msra.mxu0 %v937
      %1191 = vmatprep.subr.bf16.mxu0 0
      %1192 = vmatpush1.bf16.msra.mxu0 %v938
      %1193 = vmatprep.subr.bf16.mxu0 0
      %1194 = vmatpush1.bf16.msra.mxu0 %v939
      %1195 = vmatprep.subr.bf16.mxu0 0
      %1196 = vmatpush1.bf16.msra.mxu0 %v940
      %1197 = vmatprep.subr.bf16.mxu0 0
      %1198 = vmatpush1.bf16.msra.mxu0 %v941
      %1199 = vmatprep.subr.bf16.mxu0 0
      %1200 = vmatpush1.bf16.msra.mxu0 %v942
      %1201 = vmatprep.subr.bf16.mxu0 0
      %1202 = vmatpush1.bf16.msra.mxu0 %v943
      %1203 = vmatprep.subr.bf16.mxu0 0
      %1204 = vmatpush1.bf16.msra.mxu0 %v944
      %1205 = vmatprep.subr.bf16.mxu0 0
      %1206 = vmatpush1.bf16.msra.mxu0 %v945
      %1207 = vmatprep.subr.bf16.mxu0 0
      %1208 = vmatpush1.bf16.msra.mxu0 %v946
      %1209 = vmatprep.subr.bf16.mxu0 0
      %1210 = vmatpush1.bf16.msra.mxu0 %v947
      %1211 = vmatprep.subr.bf16.mxu0 0
      %1212 = vmatpush1.bf16.msra.mxu0 %v948
      %1213 = vmatprep.subr.bf16.mxu0 0
      %1214 = vmatpush1.bf16.msra.mxu0 %v949
      %1215 = vmatprep.subr.bf16.mxu0 0
      %1216 = vmatpush1.bf16.msra.mxu0 %v950
      %1217 = vmatprep.subr.bf16.mxu0 0
      %1218 = vmatpush1.bf16.msra.mxu0 %v951
      %1219 = vmatprep.mubr.bf16.mxu0 %v521
      %1220 = vmatmul.mubr.bf16.gmra.mrb[0].mxu0 %v520
      %v1221 = vpop.f32.mrb[0].mxu0
      %v1222 = vadd.f32 %v1181, %v1221
      %v1223 = vpop.f32.mrb[0].mxu0
      %v1224 = vpop.f32.mrb[0].mxu0
      %v1225 = vadd.f32 %v1184, %v1224
      %v1226 = vpop.f32.mrb[0].mxu0
      %1227 = vdwg.mxu0
      %1228 = vmatprep.subr.bf16.mxu0 0
      %1229 = vmatpush1.bf16.msra.mxu0 %v952
      %1230 = vmatprep.subr.bf16.mxu0 0
      %1231 = vmatpush1.bf16.msra.mxu0 %v953
      %1232 = vmatprep.subr.bf16.mxu0 0
      %1233 = vmatpush1.bf16.msra.mxu0 %v954
      %1234 = vmatprep.subr.bf16.mxu0 0
      %1235 = vmatpush1.bf16.msra.mxu0 %v955
      %1236 = vmatprep.subr.bf16.mxu0 0
      %1237 = vmatpush1.bf16.msra.mxu0 %v956
      %1238 = vmatprep.subr.bf16.mxu0 0
      %1239 = vmatpush1.bf16.msra.mxu0 %v957
      %1240 = vmatprep.subr.bf16.mxu0 0
      %1241 = vmatpush1.bf16.msra.mxu0 %v958
      %1242 = vmatprep.subr.bf16.mxu0 0
      %1243 = vmatpush1.bf16.msra.mxu0 %v959
      %1244 = vmatprep.subr.bf16.mxu0 0
      %1245 = vmatpush1.bf16.msra.mxu0 %v960
      %1246 = vmatprep.subr.bf16.mxu0 0
      %1247 = vmatpush1.bf16.msra.mxu0 %v961
      %1248 = vmatprep.subr.bf16.mxu0 0
      %1249 = vmatpush1.bf16.msra.mxu0 %v962
      %1250 = vmatprep.subr.bf16.mxu0 0
      %1251 = vmatpush1.bf16.msra.mxu0 %v963
      %1252 = vmatprep.subr.bf16.mxu0 0
      %1253 = vmatpush1.bf16.msra.mxu0 %v964
      %1254 = vmatprep.subr.bf16.mxu0 0
      %1255 = vmatpush1.bf16.msra.mxu0 %v965
      %1256 = vmatprep.subr.bf16.mxu0 0
      %1257 = vmatpush1.bf16.msra.mxu0 %v966
      %1258 = vmatprep.subr.bf16.mxu0 0
      %1259 = vmatpush1.bf16.msra.mxu0 %v967
      %1260 = vmatprep.mubr.bf16.mxu0 %v523
      %1261 = vmatmul.mubr.bf16.gmra.mrb[0].mxu0 %v522
      %v1262 = vpop.f32.mrb[0].mxu0
      %v1263 = vadd.f32 %v1222, %v1262
      %v1264 = vpop.f32.mrb[0].mxu0
      %v1265 = vpop.f32.mrb[0].mxu0
      %v1266 = vadd.f32 %v1225, %v1265
      %v1267 = vpop.f32.mrb[0].mxu0
      %1268 = vdwg.mxu0
      %1269 = vmatprep.subr.bf16.mxu0 0
      %1270 = vmatpush1.bf16.msra.mxu0 %v968
      %1271 = vmatprep.subr.bf16.mxu0 0
      %1272 = vmatpush1.bf16.msra.mxu0 %v969
      %1273 = vmatprep.subr.bf16.mxu0 0
      %1274 = vmatpush1.bf16.msra.mxu0 %v970
      %1275 = vmatprep.subr.bf16.mxu0 0
      %1276 = vmatpush1.bf16.msra.mxu0 %v971
      %1277 = vmatprep.subr.bf16.mxu0 0
      %1278 = vmatpush1.bf16.msra.mxu0 %v972
      %1279 = vmatprep.subr.bf16.mxu0 0
      %1280 = vmatpush1.bf16.msra.mxu0 %v973
      %1281 = vmatprep.subr.bf16.mxu0 0
      %1282 = vmatpush1.bf16.msra.mxu0 %v974
      %1283 = vmatprep.subr.bf16.mxu0 0
      %1284 = vmatpush1.bf16.msra.mxu0 %v975
      %1285 = vmatprep.subr.bf16.mxu0 0
      %1286 = vmatpush1.bf16.msra.mxu0 0
      %1287 = vmatprep.subr.bf16.mxu0 0
      %1288 = vmatpush1.bf16.msra.mxu0 0
      %1289 = vmatprep.subr.bf16.mxu0 0
      %1290 = vmatpush1.bf16.msra.mxu0 0
      %1291 = vmatprep.subr.bf16.mxu0 0
      %1292 = vmatpush1.bf16.msra.mxu0 0
      %1293 = vmatprep.subr.bf16.mxu0 0
      %1294 = vmatpush1.bf16.msra.mxu0 0
      %1295 = vmatprep.subr.bf16.mxu0 0
      %1296 = vmatpush1.bf16.msra.mxu0 0
      %1297 = vmatprep.subr.bf16.mxu0 0
      %1298 = vmatpush1.bf16.msra.mxu0 0
      %1299 = vmatprep.subr.bf16.mxu0 0
      %1300 = vmatpush1.bf16.msra.mxu0 0
      %1301 = vmatprep.mubr.bf16.mxu0 0
      %1302 = vmatmul.mubr.bf16.gmra.mrb[0].mxu0 %v524
      %v1303 = vpop.f32.mrb[0].mxu0
      %v1304 = vadd.f32 %v1263, %v1303
      %v1305 = vpop.f32.mrb[0].mxu0
      %v1306 = vpop.f32.mrb[0].mxu0
      %v1307 = vadd.f32 %v1266, %v1306
      %v1308 = vpop.f32.mrb[0].mxu0
      %1309 = vdwg.mxu0
      %v1310 = vmax.f32 %v1304, 0.0
      %v1311 = vmax.f32 %v1307, 0.0
      %1312 = vst [vmem:[%s282] sm:$0xff] %v1310
      %1313 = vst [vmem:[%s282 + $0x8] sm:$0xff] %v1311
      %s1314 = smul.u32 2, %s20
      %p1315 = scmp.lt.s32.totalorder %s19, 1
      %s1316 = scalar_select %p1315, %s19, 1
      %p1317 = scmp.lt.s32.totalorder %s1314, 1
      %s1318 = scalar_select %p1317, %s1314, 1
      %p1319 = scmp.lt.s32.totalorder %s21, 0
      %s1320 = scalar_select %p1319, %s21, 0
      %s1321 = sadd.s32 %s1320, %s1318
      %s1322 = smul.addr %s1316, 2
      %s1323 = sadd.s32 %s1321, %s1322
      %s1324 = smul.addr %s1323, 8
      %s1325 = scalar_lea.vmem %s3, %s1324
      // Predicated region
      $region33: #{forward_fn.26} parent=31 // pred_check
        %p1326 = pneg %p139
      $region34: #{forward_fn.26} parent=31 // pred_check_branch
        %1328 = sbr.rel (%p1326) target = $region36
      $region35: #{forward_fn.26} parent=31 // pred_region
        %s1329 = smul.u32 2, %s20
      $region36: #{forward_fn.26} parent=31 // pred_fallthru
        _
    $region32: #{forward_fn.26} parent=5 // pred_fallthru
      _
    %p1330 = scmp.le.s32.totalorder 2, %s9
    // Predicated region
    $region37: #{forward_fn.26} parent=5 // pred_check
      %p1331 = pneg %p1330
    $region38: #{forward_fn.26} parent=5 // pred_check_branch
      %1333 = sbr.rel (%p1331) target = $region40
    $region39: #{forward_fn.26} parent=5 // pred_region
      %s1334 = ssub.s32 %s9, 2
      // Predicated region
      $region41: #{forward_fn.26} parent=39 // pred_check
        %p1335 = pneg %p145
      $region42: #{forward_fn.26} parent=39 // pred_check_branch
        %1337 = sbr.rel (%p1335) target = $region44
      $region43: #{forward_fn.26} parent=39 // pred_region
        %s1338 = smul.u32 2, %s23
        %p1339 = scmp.lt.s32.totalorder %s22, 1
        %s1340 = scalar_select %p1339, %s22, 1
        %p1341 = scmp.lt.s32.totalorder %s1338, 1
        %s1342 = scalar_select %p1341, %s1338, 1
        %p1343 = scmp.lt.s32.totalorder %s24, 0
        %s1344 = scalar_select %p1343, %s24, 0
        %s1345 = sadd.s32 %s1344, %s1342
        %s1346 = smul.addr %s1340, 2
        %s1347 = sadd.s32 %s1345, %s1346
        %s1348 = smul.addr %s1347, 8
        %s1349 = scalar_lea.vmem %s3, %s1348
      $region44: #{forward_fn.26} parent=39 // pred_fallthru
        _
    $region40: #{forward_fn.26} parent=5 // pred_fallthru
      _
  $region6: #{forward_fn.26} parent=0 // loop_footer
    %s13 = sadd.s32 1, %s9
  $region7: #{forward_fn.26} parent=0 // loop_footer_branch
    %8 = sbr.rel target = $region3
  $region8: #{forward_fn.26} parent=0 // loop_exit
    _

// kernel: forward_fn.27
$region0: #{forward_fn.27}
  #allocation0 [shape = 'u32[]', space=smem, size = 0x4, offset = 0x4, fixed_abs, tag = 'smem constant byte address 0x4 - core index']
  #allocation1 [shape = 'u32[144,128]{1,0:T(1,128)}', space=vmem, size = 0x12000, scoped, tag = 'internal scratch']
  %s0 = inlined_call_operand.vmem [shape: f32[1,8,128], index: 0, kind: input, shape index: {}]
  %s1 = inlined_call_operand.vmem [shape: f32[8,128], index: 1, kind: output, shape index: {}]
  %s2 = sld [smem:[#allocation0]]
  $region14: #{forward_fn.27} parent=0
    _
  %s4 = ssub.s32 1, %s2
  %s5 = scalar_select 0, %s4, %s2
  // Predicated region
  $region2: #{forward_fn.27} parent=0 // pred_check
    _
  $region3: #{forward_fn.27} parent=0 // pred_check_branch
    %7 = sbr.rel (0) target = $region5
  $region4: #{forward_fn.27} parent=0 // pred_region
    _
  $region5: #{forward_fn.27} parent=0 // pred_fallthru
    _
  %v8 = vld [vmem:[%s0] sm:$0xff]
  %v9 = vadd.f32 %v8, 0.0
  %10 = vst [vmem:[%s1] sm:$0xff] %v9
  // Predicated region
  $region6: #{forward_fn.27} parent=0 // pred_check
    _
  $region7: #{forward_fn.27} parent=0 // pred_check_branch
    %12 = sbr.rel (0) target = $region9
  $region8: #{forward_fn.27} parent=0 // pred_region
    _
  $region9: #{forward_fn.27} parent=0 // pred_fallthru
    _
  // Predicated region
  $region10: #{forward_fn.27} parent=0 // pred_check
    _
  $region11: #{forward_fn.27} parent=0 // pred_check_branch
    %14 = sbr.rel (0) target = $region13
  $region12: #{forward_fn.27} parent=0 // pred_region
    _
  $region13: #{forward_fn.27} parent=0 // pred_fallthru
    _

</llo_original>
